<compile_context>
chip_gen: v7x
topology: tpu7x:2x2x1
jax: 0.10.0
libtpu: 0.0.40
codegen_flags: <defaults>
</compile_context>

<pallas_src>
import math
from functools import partial

import jax
import jax.numpy as jnp
from jax.experimental import pallas as pl
from jax.experimental.pallas import tpu as pltpu


# ---------------------------------------------------------------------------
# Kernel 1: pairwise squared distances, row-tiled (diag masked to +inf).
# ---------------------------------------------------------------------------
def _pdist_kernel(xr_ref, xa_ref, sqc_ref, d_ref):
    xr = xr_ref[...]                                  # [TM, 3] rows of this block
    xa = xa_ref[...]                                  # [N, 3]  all points
    g = jax.lax.dot_general(xr, xa, (((1,), (1,)), ((), ())),
                            preferred_element_type=jnp.float32)     # [TM, N]
    sr = jnp.sum(xr * xr, axis=1, keepdims=True)      # row norms computed in-kernel
    d = sr + sqc_ref[...] - 2.0 * g
    tm = d.shape[0]
    row = jax.lax.broadcasted_iota(jnp.int32, d.shape, 0) + pl.program_id(0) * tm
    col = jax.lax.broadcasted_iota(jnp.int32, d.shape, 1)
    d_ref[...] = jnp.where(row == col, jnp.float32(jnp.inf), d)


def pairwise_sqdist(x, *, tile_m=128):
    n = x.shape[0]
    tm = tile_m if n % tile_m == 0 else n
    sqc = jnp.sum(x * x, axis=1)[None, :]             # [1, N] column norms
    return pl.pallas_call(
        _pdist_kernel,
        out_shape=jax.ShapeDtypeStruct((n, n), jnp.float32),
        grid=(n // tm,),
        in_specs=[
            pl.BlockSpec((tm, 3), lambda i: (i, 0)),
            pl.BlockSpec((n, 3), lambda i: (0, 0)),
            pl.BlockSpec((1, n), lambda i: (0, 0)),
        ],
        out_specs=pl.BlockSpec((tm, n), lambda i: (i, 0)),
        compiler_params=pltpu.CompilerParams(dimension_semantics=("parallel",)),
    )(x, x, sqc)


# ---------------------------------------------------------------------------
# Kernel 2: fully fused EdgeConv + n_ipt x (attention conv per dilation,
#           max-merge) + residual accumulation.  grid=(1,), everything in VMEM.
# ---------------------------------------------------------------------------
def _make_fused_kernel(n, c, k_pre, dil_slots, n_ipt):
    """dil_slots: tuple (per dilation) of STATIC neighbour-slot indices in [0, k_pre)."""
    n_dil = len(dil_slots)
    c4 = 4 * c

    def kernel(pos_ref, idx_ref, wpre_ref, bpre_ref, wf_ref, wpos_ref,
               bpos_ref, out_ref):
        pos_b = pos_ref[...].astype(jnp.bfloat16)     # [n, 3]

        # ---- one-hot gather matrices for the k*max_d neighbour slots, built
        #      ONCE and shared by pre_gcn and every layer/dilation -------------
        iota = jax.lax.broadcasted_iota(jnp.int32, (k_pre * n, n), 1)
        sel_full = (idx_ref[...] == iota).astype(jnp.float32).astype(jnp.bfloat16)
        sel = [sel_full[kk * n:(kk + 1) * n] for kk in range(k_pre)]   # k_pre x [n, n]

        # ---- pre_gcn EdgeConv: packed weight [W_i - W_d | W_d] -> one MXU push
        h0 = jnp.dot(pos_b, wpre_ref[...], preferred_element_type=jnp.float32)  # [n, 2c]
        a_i = h0[:, :c] + bpre_ref[...]               # x (W_i - W_d) + b   (node side)
        b_all = h0[:, c:].astype(jnp.bfloat16)        # x W_d               (gather side)
        feat = None
        for kk in range(k_pre):
            h = a_i + jnp.dot(sel[kk], b_all, preferred_element_type=jnp.float32)
            h = jnp.where(h > 0, h, 0.2 * h)          # LeakyReLU(0.2), f32
            feat = h if feat is None else jnp.maximum(feat, h)

        # ---- pos_nn projections for every (layer, dilation): ONE K=3 MXU push
        pproj = jnp.dot(pos_b, wpos_ref[...], preferred_element_type=jnp.float32)
        # pproj: [n, n_ipt * n_dil * 4c], only the last c lanes of each 4c block nonzero.

        # ---- inception blocks ------------------------------------------------
        res = jnp.zeros((n, c), jnp.float32)
        for li in range(n_ipt):
            feat_b = feat.astype(jnp.bfloat16)
            # all dilations' [Wdst|Wsrc|Wlin|0] packed on the lane axis -> 1 push/layer
            h_nodes = jnp.dot(feat_b, wf_ref[li], preferred_element_type=jnp.float32)
            h_max = None
            for di in range(n_dil):
                r = li * n_dil + di
                h_all = (h_nodes[:, di * c4:(di + 1) * c4]
                         + pproj[:, r * c4:(r + 1) * c4])          # [n, 4c] f32
                a_dst = h_all[:, 0:c]                 # W_dst x_i
                p_i = h_all[:, 3 * c:c4]              # pos_i @ W_pos
                bpos = bpos_ref[r:r + 1, :]           # [1, c]
                h_all_b = h_all.astype(jnp.bfloat16)
                # self loop handled analytically (p_j == p_i) -> no gather matmul
                logits = [a_dst - h_all[:, c:2 * c] + bpos]
                vals = [h_all[:, 2 * c:3 * c] + bpos]
                for kk in dil_slots[di]:              # gather k neighbours via MXU
                    g = jnp.dot(sel[kk], h_all_b, preferred_element_type=jnp.float32)
                    delta = p_i - g[:, 3 * c:c4] + bpos            # pos_nn(pos_i - pos_j)
                    logits.append(a_dst - g[:, c:2 * c] + delta)
                    vals.append(g[:, 2 * c:3 * c] + delta)
                m = logits[0]
                for lgt in logits[1:]:
                    m = jnp.maximum(m, lgt)
                denom = jnp.zeros_like(m)
                acc = jnp.zeros_like(m)
                for lgt, v in zip(logits, vals):      # per-channel softmax over nbrs
                    p = jnp.exp(lgt - m)
                    denom = denom + p
                    acc = acc + p * v
                h = acc * pl.reciprocal(denom, approx=True)        # EUP reciprocal
                h_max = h if h_max is None else jnp.maximum(h_max, h)
            feat = h_max
            res = res + feat
        out_ref[...] = res * jnp.float32(1.0 / n_ipt)

    return kernel


# ---------------------------------------------------------------------------
# Parameter init (PyTorch-like uniform bounds) and weight packing.
# ---------------------------------------------------------------------------
def init_params(key, channels, n_ipt, n_dilations):
    def uni(k, shape, fan_in):
        bound = 1.0 / math.sqrt(fan_in)
        return jax.random.uniform(k, shape, jnp.float32, minval=-bound, maxval=bound)

    keys = iter(jax.random.split(key, 3 + n_ipt * n_dilations * 5))
    params = {
        "pre_w_i": uni(next(keys), (3, channels), 3),
        "pre_w_d": uni(next(keys), (3, channels), 3),
        "pre_b": uni(next(keys), (1, channels), 3),
        "layers": [],
    }
    for _ in range(n_ipt):
        blk = []
        for _ in range(n_dilations):
            blk.append({
                "lin": uni(next(keys), (channels, channels), channels),
                "src": uni(next(keys), (channels, channels), channels),
                "dst": uni(next(keys), (channels, channels), channels),
                "pos_w": uni(next(keys), (3, channels), 3),
                "pos_b": uni(next(keys), (1, channels), 3),
            })
        params["layers"].append(blk)
    return params


def _pack_params(params, n_ipt, n_dil):
    c = params["pre_b"].shape[1]
    # pre_gcn:  x W_i + (x_j - x)W_d + b  ==  x(W_i - W_d) + x_j W_d + b
    w_pre = jnp.concatenate(
        [params["pre_w_i"] - params["pre_w_d"], params["pre_w_d"]], axis=1)  # [3, 2C]
    zc = jnp.zeros((c, c), jnp.float32)
    z3 = jnp.zeros((3, c), jnp.float32)
    wf, wp, bp = [], [], []
    for li in range(n_ipt):
        wf_l = []
        for di in range(n_dil):
            w = params["layers"][li][di]
            wf_l.append(jnp.concatenate([w["dst"], w["src"], w["lin"], zc], axis=1))
            wp.append(jnp.concatenate([z3, z3, z3, w["pos_w"]], axis=1))
            bp.append(w["pos_b"])
        wf.append(jnp.concatenate(wf_l, axis=1))          # [C, n_dil*4C] per layer
    # matmul operands in bf16 (f32 accumulation in-kernel); biases stay f32.
    return (w_pre.astype(jnp.bfloat16),                   # [3, 2C]
            params["pre_b"],                              # [1, C]
            jnp.stack(wf).astype(jnp.bfloat16),           # [n_ipt, C, n_dil*4C]
            jnp.concatenate(wp, axis=1).astype(jnp.bfloat16),  # [3, n_ipt*n_dil*4C]
            jnp.concatenate(bp, axis=0))                  # [n_ipt*n_dil, C]


# ---------------------------------------------------------------------------
# Full forward pass
# ---------------------------------------------------------------------------
def extractor_forward(x, params, *, k, dilations, n_ipt):
    n = x.shape[0]
    c = params["pre_b"].shape[1]
    n_dil = len(dilations)
    max_d = max(dilations)
    k_pre = k * max_d

    # kNN graph with k * max_d neighbours, sorted by distance (no self loops).
    dist = pairwise_sqdist(x)                       # Pallas kernel (f32 for kNN fidelity)
    _, nbr = jax.lax.top_k(-dist, k_pre)            # [N, k*max_d]
    nbr = nbr.astype(jnp.int32)

    # Slot-major neighbour table [k_pre*N, 1]; dilated graphs are STATIC slot subsets.
    idx_e = nbr.T.reshape(-1, 1)                    # row kk*N + i = kk-th nbr of node i
    dil_slots = tuple(tuple(range(0, k * d, d)) for d in dilations)

    w_pre, b_pre, wf, wp, bp = _pack_params(params, n_ipt, n_dil)
    kernel = _make_fused_kernel(n, c, k_pre, dil_slots, n_ipt)

    return pl.pallas_call(
        kernel,
        out_shape=jax.ShapeDtypeStruct((n, c), jnp.float32),
        grid=(1,),
        in_specs=[
            pl.BlockSpec((n, 3), lambda i: (0, 0)),
            pl.BlockSpec((k_pre * n, 1), lambda i: (0, 0)),
            pl.BlockSpec((3, 2 * c), lambda i: (0, 0)),
            pl.BlockSpec((1, c), lambda i: (0, 0)),
            pl.BlockSpec((n_ipt, c, n_dil * 4 * c), lambda i: (0, 0, 0)),
            pl.BlockSpec((3, n_ipt * n_dil * 4 * c), lambda i: (0, 0)),
            pl.BlockSpec((n_ipt * n_dil, c), lambda i: (0, 0)),
        ],
        out_specs=pl.BlockSpec((n, c), lambda i: (0, 0)),
        compiler_params=pltpu.CompilerParams(
            dimension_semantics=("arbitrary",),
            vmem_limit_bytes=32 * 1024 * 1024),
    )(x, idx_e, w_pre, b_pre, wf, wp, bp)


# ---------------------------------------------------------------------------
if __name__ == "__main__":
    N, CHANNELS, K = 128, 32, 4
    DILATIONS = (1, 2)
    N_IPT = 2

    key = jax.random.PRNGKey(0)
    kx, kp = jax.random.split(key)
    x = jax.random.normal(kx, (N, 3), dtype=jnp.float32)     # point cloud [N, 3]
    params = init_params(kp, CHANNELS, N_IPT, len(DILATIONS))

    fwd = jax.jit(partial(extractor_forward, k=K, dilations=DILATIONS, n_ipt=N_IPT))
    out = jax.block_until_ready(fwd(x, params))
    assert out.shape == (N, CHANNELS) and out.dtype == jnp.float32
    assert bool(jnp.all(jnp.isfinite(out)))
    print("KERNEL_OK")
</pallas_src>

<mosaic_0001>
module attributes {stable_mosaic.version = 11 : i64} {
  func.func @_pdist_kernel(%arg0: i32, %arg1: memref<128x3xf32, #tpu.memory_space<vmem>>, %arg2: memref<128x3xf32, #tpu.memory_space<vmem>>, %arg3: memref<1x128xf32, #tpu.memory_space<vmem>>, %arg4: memref<128x128xf32, #tpu.memory_space<vmem>>) attributes {dimension_semantics = [#tpu.dimension_semantics<parallel>], iteration_bounds = array<i64: 1>, scalar_prefetch = 0 : i64, scratch_operands = 0 : i64, tpu.core_type = #tpu.core_type<tc>, window_params = [{transform_indices = @transform_0, window_bounds = array<i64: 128, 3>}, {pipeline_mode = #tpu.pipeline_mode<synchronous>, transform_indices = @transform_1, window_bounds = array<i64: 128, 3>}, {pipeline_mode = #tpu.pipeline_mode<synchronous>, transform_indices = @transform_2, window_bounds = array<i64: 1, 128>}, {transform_indices = @transform_3, window_bounds = array<i64: 128, 128>}]} {
    %c0 = arith.constant 0 : index
    %c0_0 = arith.constant 0 : index
    %0 = vector.load %arg1[%c0, %c0_0] : memref<128x3xf32, #tpu.memory_space<vmem>>, vector<128x3xf32>
    %c0_1 = arith.constant 0 : index
    %c0_2 = arith.constant 0 : index
    %1 = vector.load %arg2[%c0_1, %c0_2] : memref<128x3xf32, #tpu.memory_space<vmem>>, vector<128x3xf32>
    %cst = arith.constant dense<0.000000e+00> : vector<128x128xf32>
    %2 = tpu.matmul %0, %1, %cst {dimension_numbers = #tpu.dot_dimension_numbers<[1], [1], [0], [0], [0, 0, 1, 0], [], []>} : vector<128x3xf32>, vector<128x3xf32>, vector<128x128xf32> -> vector<128x128xf32>
    %3 = arith.mulf %0, %0 : vector<128x3xf32>
    %cst_3 = arith.constant dense<0.000000e+00> : vector<128xf32>
    %4 = vector.multi_reduction <add>, %3, %cst_3 [1] : vector<128x3xf32> to vector<128xf32>
    %5 = vector.shape_cast %4 : vector<128xf32> to vector<128x1xf32>
    %c0_4 = arith.constant 0 : index
    %c0_5 = arith.constant 0 : index
    %6 = vector.load %arg3[%c0_4, %c0_5] : memref<1x128xf32, #tpu.memory_space<vmem>>, vector<1x128xf32>
    %7 = vector.broadcast %5 : vector<128x1xf32> to vector<128x128xf32>
    %8 = vector.broadcast %6 : vector<1x128xf32> to vector<128x128xf32>
    %9 = arith.addf %7, %8 : vector<128x128xf32>
    %cst_6 = arith.constant 2.000000e+00 : f32
    %10 = vector.broadcast %cst_6 : f32 to vector<128x128xf32>
    %11 = arith.mulf %10, %2 : vector<128x128xf32>
    %12 = arith.subf %9, %11 : vector<128x128xf32>
    %13 = tpu.iota {dimensions = array<i32: 0>} : vector<128x128xi32>
    %c128_i32 = arith.constant 128 : i32
    %14 = arith.muli %arg0, %c128_i32 : i32
    %15 = vector.broadcast %14 : i32 to vector<128x128xi32>
    %16 = arith.addi %13, %15 : vector<128x128xi32>
    %17 = tpu.iota {dimensions = array<i32: 1>} : vector<128x128xi32>
    %18 = arith.cmpi eq, %16, %17 : vector<128x128xi32>
    %cst_7 = arith.constant 0x7F800000 : f32
    %19 = vector.broadcast %cst_7 : f32 to vector<128x128xf32>
    %20 = arith.select %18, %19, %12 : vector<128x128xi1>, vector<128x128xf32>
    %c0_8 = arith.constant 0 : index
    %c0_9 = arith.constant 0 : index
    %21 = vector.load %arg4[%c0_8, %c0_9] : memref<128x128xf32, #tpu.memory_space<vmem>>, vector<128x128xf32>
    tpu.vector_store %arg4[%c0_8, %c0_9], %20 {strides = array<i32>} : memref<128x128xf32, #tpu.memory_space<vmem>>, vector<128x128xf32>,
    return
  }
  func.func @transform_0(%arg0: i32) -> (i32, i32) {
    %c0_i32 = arith.constant 0 : i32
    %c0_i32_0 = arith.constant 0 : i32
    return %arg0, %c0_i32 : i32, i32
  }
  func.func @transform_1(%arg0: i32) -> (i32, i32) {
    %c0_i32 = arith.constant 0 : i32
    %c0_i32_0 = arith.constant 0 : i32
    %c0_i32_1 = arith.constant 0 : i32
    return %c0_i32, %c0_i32_0 : i32, i32
  }
  func.func @transform_2(%arg0: i32) -> (i32, i32) {
    %c0_i32 = arith.constant 0 : i32
    %c0_i32_0 = arith.constant 0 : i32
    %c0_i32_1 = arith.constant 0 : i32
    return %c0_i32, %c0_i32_0 : i32, i32
  }
  func.func @transform_3(%arg0: i32) -> (i32, i32) {
    %c0_i32 = arith.constant 0 : i32
    %c0_i32_0 = arith.constant 0 : i32
    return %arg0, %c0_i32 : i32, i32
  }
}

module attributes {stable_mosaic.version = 11 : i64} {
  func.func @kernel(%arg0: i32, %arg1: memref<128x3xf32, #tpu.memory_space<vmem>>, %arg2: memref<1024x1xi32, #tpu.memory_space<vmem>>, %arg3: memref<3x64xbf16, #tpu.memory_space<vmem>>, %arg4: memref<1x32xf32, #tpu.memory_space<vmem>>, %arg5: memref<2x32x256xbf16, #tpu.memory_space<vmem>>, %arg6: memref<3x512xbf16, #tpu.memory_space<vmem>>, %arg7: memref<4x32xf32, #tpu.memory_space<vmem>>, %arg8: memref<128x32xf32, #tpu.memory_space<vmem>>) attributes {dimension_semantics = [#tpu.dimension_semantics<arbitrary>], iteration_bounds = array<i64: 1>, scalar_prefetch = 0 : i64, scratch_operands = 0 : i64, tpu.core_type = #tpu.core_type<tc>, window_params = [{pipeline_mode = #tpu.pipeline_mode<synchronous>, transform_indices = @transform_0, window_bounds = array<i64: 128, 3>}, {pipeline_mode = #tpu.pipeline_mode<synchronous>, transform_indices = @transform_1, window_bounds = array<i64: 1024, 1>}, {pipeline_mode = #tpu.pipeline_mode<synchronous>, transform_indices = @transform_2, window_bounds = array<i64: 3, 64>}, {pipeline_mode = #tpu.pipeline_mode<synchronous>, transform_indices = @transform_3, window_bounds = array<i64: 1, 32>}, {pipeline_mode = #tpu.pipeline_mode<synchronous>, transform_indices = @transform_4, window_bounds = array<i64: 2, 32, 256>}, {pipeline_mode = #tpu.pipeline_mode<synchronous>, transform_indices = @transform_5, window_bounds = array<i64: 3, 512>}, {pipeline_mode = #tpu.pipeline_mode<synchronous>, transform_indices = @transform_6, window_bounds = array<i64: 4, 32>}, {pipeline_mode = #tpu.pipeline_mode<synchronous>, transform_indices = @transform_7, window_bounds = array<i64: 128, 32>}]} {
    %c0 = arith.constant 0 : index
    %c0_0 = arith.constant 0 : index
    %0 = vector.load %arg1[%c0, %c0_0] : memref<128x3xf32, #tpu.memory_space<vmem>>, vector<128x3xf32>
    %1 = arith.truncf %0 : vector<128x3xf32> to vector<128x3xbf16>
    %2 = tpu.iota {dimensions = array<i32: 1>} : vector<1024x128xi32>
    %c0_1 = arith.constant 0 : index
    %c0_2 = arith.constant 0 : index
    %3 = vector.load %arg2[%c0_1, %c0_2] : memref<1024x1xi32, #tpu.memory_space<vmem>>, vector<1024x1xi32>
    %4 = vector.broadcast %3 : vector<1024x1xi32> to vector<1024x128xi32>
    %5 = arith.cmpi eq, %4, %2 : vector<1024x128xi32>
    %6 = arith.extui %5 : vector<1024x128xi1> to vector<1024x128xi32>
    %7 = arith.sitofp %6 : vector<1024x128xi32> to vector<1024x128xf32>
    %8 = arith.truncf %7 : vector<1024x128xf32> to vector<1024x128xbf16>
    %9 = vector.extract_strided_slice %8 {offsets = [0, 0], sizes = [128, 128], strides = [1, 1]} : vector<1024x128xbf16> to vector<128x128xbf16>
    %10 = vector.extract_strided_slice %8 {offsets = [128, 0], sizes = [128, 128], strides = [1, 1]} : vector<1024x128xbf16> to vector<128x128xbf16>
    %11 = vector.extract_strided_slice %8 {offsets = [256, 0], sizes = [128, 128], strides = [1, 1]} : vector<1024x128xbf16> to vector<128x128xbf16>
    %12 = vector.extract_strided_slice %8 {offsets = [384, 0], sizes = [128, 128], strides = [1, 1]} : vector<1024x128xbf16> to vector<128x128xbf16>
    %13 = vector.extract_strided_slice %8 {offsets = [512, 0], sizes = [128, 128], strides = [1, 1]} : vector<1024x128xbf16> to vector<128x128xbf16>
    %14 = vector.extract_strided_slice %8 {offsets = [640, 0], sizes = [128, 128], strides = [1, 1]} : vector<1024x128xbf16> to vector<128x128xbf16>
    %15 = vector.extract_strided_slice %8 {offsets = [768, 0], sizes = [128, 128], strides = [1, 1]} : vector<1024x128xbf16> to vector<128x128xbf16>
    %16 = vector.extract_strided_slice %8 {offsets = [896, 0], sizes = [128, 128], strides = [1, 1]} : vector<1024x128xbf16> to vector<128x128xbf16>
    %c0_3 = arith.constant 0 : index
    %c0_4 = arith.constant 0 : index
    %17 = vector.load %arg3[%c0_3, %c0_4] : memref<3x64xbf16, #tpu.memory_space<vmem>>, vector<3x64xbf16>
    %cst = arith.constant dense<0.000000e+00> : vector<128x64xf32>
    %18 = tpu.matmul %1, %17, %cst {dimension_numbers = #tpu.dot_dimension_numbers<[1], [0], [0], [1], [0, 0, 1, 1], [], []>} : vector<128x3xbf16>, vector<3x64xbf16>, vector<128x64xf32> -> vector<128x64xf32>
    %19 = vector.extract_strided_slice %18 {offsets = [0, 0], sizes = [128, 32], strides = [1, 1]} : vector<128x64xf32> to vector<128x32xf32>
    %c0_5 = arith.constant 0 : index
    %c0_6 = arith.constant 0 : index
    %20 = vector.load %arg4[%c0_5, %c0_6] : memref<1x32xf32, #tpu.memory_space<vmem>>, vector<1x32xf32>
    %21 = vector.broadcast %20 : vector<1x32xf32> to vector<128x32xf32>
    %22 = arith.addf %19, %21 : vector<128x32xf32>
    %23 = vector.extract_strided_slice %18 {offsets = [0, 32], sizes = [128, 32], strides = [1, 1]} : vector<128x64xf32> to vector<128x32xf32>
    %24 = arith.truncf %23 : vector<128x32xf32> to vector<128x32xbf16>
    %cst_7 = arith.constant dense<0.000000e+00> : vector<128x32xf32>
    %25 = tpu.matmul %9, %24, %cst_7 {dimension_numbers = #tpu.dot_dimension_numbers<[1], [0], [0], [1], [0, 0, 1, 1], [], []>} : vector<128x128xbf16>, vector<128x32xbf16>, vector<128x32xf32> -> vector<128x32xf32>
    %26 = arith.addf %22, %25 : vector<128x32xf32>
    %cst_8 = arith.constant 0.000000e+00 : f32
    %27 = vector.broadcast %cst_8 : f32 to vector<128x32xf32>
    %28 = arith.cmpf ogt, %26, %27 : vector<128x32xf32>
    %cst_9 = arith.constant 2.000000e-01 : f32
    %29 = vector.broadcast %cst_9 : f32 to vector<128x32xf32>
    %30 = arith.mulf %29, %26 : vector<128x32xf32>
    %31 = arith.select %28, %26, %30 : vector<128x32xi1>, vector<128x32xf32>
    %cst_10 = arith.constant dense<0.000000e+00> : vector<128x32xf32>
    %32 = tpu.matmul %10, %24, %cst_10 {dimension_numbers = #tpu.dot_dimension_numbers<[1], [0], [0], [1], [0, 0, 1, 1], [], []>} : vector<128x128xbf16>, vector<128x32xbf16>, vector<128x32xf32> -> vector<128x32xf32>
    %33 = arith.addf %22, %32 : vector<128x32xf32>
    %cst_11 = arith.constant 0.000000e+00 : f32
    %34 = vector.broadcast %cst_11 : f32 to vector<128x32xf32>
    %35 = arith.cmpf ogt, %33, %34 : vector<128x32xf32>
    %cst_12 = arith.constant 2.000000e-01 : f32
    %36 = vector.broadcast %cst_12 : f32 to vector<128x32xf32>
    %37 = arith.mulf %36, %33 : vector<128x32xf32>
    %38 = arith.select %35, %33, %37 : vector<128x32xi1>, vector<128x32xf32>
    %39 = arith.maximumf %31, %38 : vector<128x32xf32>
    %cst_13 = arith.constant dense<0.000000e+00> : vector<128x32xf32>
    %40 = tpu.matmul %11, %24, %cst_13 {dimension_numbers = #tpu.dot_dimension_numbers<[1], [0], [0], [1], [0, 0, 1, 1], [], []>} : vector<128x128xbf16>, vector<128x32xbf16>, vector<128x32xf32> -> vector<128x32xf32>
    %41 = arith.addf %22, %40 : vector<128x32xf32>
    %cst_14 = arith.constant 0.000000e+00 : f32
    %42 = vector.broadcast %cst_14 : f32 to vector<128x32xf32>
    %43 = arith.cmpf ogt, %41, %42 : vector<128x32xf32>
    %cst_15 = arith.constant 2.000000e-01 : f32
    %44 = vector.broadcast %cst_15 : f32 to vector<128x32xf32>
    %45 = arith.mulf %44, %41 : vector<128x32xf32>
    %46 = arith.select %43, %41, %45 : vector<128x32xi1>, vector<128x32xf32>
    %47 = arith.maximumf %39, %46 : vector<128x32xf32>
    %cst_16 = arith.constant dense<0.000000e+00> : vector<128x32xf32>
    %48 = tpu.matmul %12, %24, %cst_16 {dimension_numbers = #tpu.dot_dimension_numbers<[1], [0], [0], [1], [0, 0, 1, 1], [], []>} : vector<128x128xbf16>, vector<128x32xbf16>, vector<128x32xf32> -> vector<128x32xf32>
    %49 = arith.addf %22, %48 : vector<128x32xf32>
    %cst_17 = arith.constant 0.000000e+00 : f32
    %50 = vector.broadcast %cst_17 : f32 to vector<128x32xf32>
    %51 = arith.cmpf ogt, %49, %50 : vector<128x32xf32>
    %cst_18 = arith.constant 2.000000e-01 : f32
    %52 = vector.broadcast %cst_18 : f32 to vector<128x32xf32>
    %53 = arith.mulf %52, %49 : vector<128x32xf32>
    %54 = arith.select %51, %49, %53 : vector<128x32xi1>, vector<128x32xf32>
    %55 = arith.maximumf %47, %54 : vector<128x32xf32>
    %cst_19 = arith.constant dense<0.000000e+00> : vector<128x32xf32>
    %56 = tpu.matmul %13, %24, %cst_19 {dimension_numbers = #tpu.dot_dimension_numbers<[1], [0], [0], [1], [0, 0, 1, 1], [], []>} : vector<128x128xbf16>, vector<128x32xbf16>, vector<128x32xf32> -> vector<128x32xf32>
    %57 = arith.addf %22, %56 : vector<128x32xf32>
    %cst_20 = arith.constant 0.000000e+00 : f32
    %58 = vector.broadcast %cst_20 : f32 to vector<128x32xf32>
    %59 = arith.cmpf ogt, %57, %58 : vector<128x32xf32>
    %cst_21 = arith.constant 2.000000e-01 : f32
    %60 = vector.broadcast %cst_21 : f32 to vector<128x32xf32>
    %61 = arith.mulf %60, %57 : vector<128x32xf32>
    %62 = arith.select %59, %57, %61 : vector<128x32xi1>, vector<128x32xf32>
    %63 = arith.maximumf %55, %62 : vector<128x32xf32>
    %cst_22 = arith.constant dense<0.000000e+00> : vector<128x32xf32>
    %64 = tpu.matmul %14, %24, %cst_22 {dimension_numbers = #tpu.dot_dimension_numbers<[1], [0], [0], [1], [0, 0, 1, 1], [], []>} : vector<128x128xbf16>, vector<128x32xbf16>, vector<128x32xf32> -> vector<128x32xf32>
    %65 = arith.addf %22, %64 : vector<128x32xf32>
    %cst_23 = arith.constant 0.000000e+00 : f32
    %66 = vector.broadcast %cst_23 : f32 to vector<128x32xf32>
    %67 = arith.cmpf ogt, %65, %66 : vector<128x32xf32>
    %cst_24 = arith.constant 2.000000e-01 : f32
    %68 = vector.broadcast %cst_24 : f32 to vector<128x32xf32>
    %69 = arith.mulf %68, %65 : vector<128x32xf32>
    %70 = arith.select %67, %65, %69 : vector<128x32xi1>, vector<128x32xf32>
    %71 = arith.maximumf %63, %70 : vector<128x32xf32>
    %cst_25 = arith.constant dense<0.000000e+00> : vector<128x32xf32>
    %72 = tpu.matmul %15, %24, %cst_25 {dimension_numbers = #tpu.dot_dimension_numbers<[1], [0], [0], [1], [0, 0, 1, 1], [], []>} : vector<128x128xbf16>, vector<128x32xbf16>, vector<128x32xf32> -> vector<128x32xf32>
    %73 = arith.addf %22, %72 : vector<128x32xf32>
    %cst_26 = arith.constant 0.000000e+00 : f32
    %74 = vector.broadcast %cst_26 : f32 to vector<128x32xf32>
    %75 = arith.cmpf ogt, %73, %74 : vector<128x32xf32>
    %cst_27 = arith.constant 2.000000e-01 : f32
    %76 = vector.broadcast %cst_27 : f32 to vector<128x32xf32>
    %77 = arith.mulf %76, %73 : vector<128x32xf32>
    %78 = arith.select %75, %73, %77 : vector<128x32xi1>, vector<128x32xf32>
    %79 = arith.maximumf %71, %78 : vector<128x32xf32>
    %cst_28 = arith.constant dense<0.000000e+00> : vector<128x32xf32>
    %80 = tpu.matmul %16, %24, %cst_28 {dimension_numbers = #tpu.dot_dimension_numbers<[1], [0], [0], [1], [0, 0, 1, 1], [], []>} : vector<128x128xbf16>, vector<128x32xbf16>, vector<128x32xf32> -> vector<128x32xf32>
    %81 = arith.addf %22, %80 : vector<128x32xf32>
    %cst_29 = arith.constant 0.000000e+00 : f32
    %82 = vector.broadcast %cst_29 : f32 to vector<128x32xf32>
    %83 = arith.cmpf ogt, %81, %82 : vector<128x32xf32>
    %cst_30 = arith.constant 2.000000e-01 : f32
    %84 = vector.broadcast %cst_30 : f32 to vector<128x32xf32>
    %85 = arith.mulf %84, %81 : vector<128x32xf32>
    %86 = arith.select %83, %81, %85 : vector<128x32xi1>, vector<128x32xf32>
    %87 = arith.maximumf %79, %86 : vector<128x32xf32>
    %c0_31 = arith.constant 0 : index
    %c0_32 = arith.constant 0 : index
    %88 = vector.load %arg6[%c0_31, %c0_32] : memref<3x512xbf16, #tpu.memory_space<vmem>>, vector<3x512xbf16>
    %cst_33 = arith.constant dense<0.000000e+00> : vector<128x512xf32>
    %89 = tpu.matmul %1, %88, %cst_33 {dimension_numbers = #tpu.dot_dimension_numbers<[1], [0], [0], [1], [0, 0, 1, 1], [], []>} : vector<128x3xbf16>, vector<3x512xbf16>, vector<128x512xf32> -> vector<128x512xf32>
    %cst_34 = arith.constant 0.000000e+00 : f32
    %90 = vector.broadcast %cst_34 : f32 to vector<128x32xf32>
    %91 = arith.truncf %87 : vector<128x32xf32> to vector<128x32xbf16>
    %c0_35 = arith.constant 0 : index
    %c0_36 = arith.constant 0 : index
    %c0_37 = arith.constant 0 : index
    %92 = vector.load %arg5[%c0_35, %c0_36, %c0_37] : memref<2x32x256xbf16, #tpu.memory_space<vmem>>, vector<1x32x256xbf16>
    %93 = vector.shape_cast %92 : vector<1x32x256xbf16> to vector<32x256xbf16>
    %cst_38 = arith.constant dense<0.000000e+00> : vector<128x256xf32>
    %94 = tpu.matmul %91, %93, %cst_38 {dimension_numbers = #tpu.dot_dimension_numbers<[1], [0], [0], [1], [0, 0, 1, 1], [], []>} : vector<128x32xbf16>, vector<32x256xbf16>, vector<128x256xf32> -> vector<128x256xf32>
    %95 = vector.extract_strided_slice %94 {offsets = [0, 0], sizes = [128, 128], strides = [1, 1]} : vector<128x256xf32> to vector<128x128xf32>
    %96 = vector.extract_strided_slice %89 {offsets = [0, 0], sizes = [128, 128], strides = [1, 1]} : vector<128x512xf32> to vector<128x128xf32>
    %97 = arith.addf %95, %96 : vector<128x128xf32>
    %98 = vector.extract_strided_slice %97 {offsets = [0, 0], sizes = [128, 32], strides = [1, 1]} : vector<128x128xf32> to vector<128x32xf32>
    %99 = vector.extract_strided_slice %97 {offsets = [0, 96], sizes = [128, 32], strides = [1, 1]} : vector<128x128xf32> to vector<128x32xf32>
    %c0_39 = arith.constant 0 : index
    %c0_40 = arith.constant 0 : index
    %100 = vector.load %arg7[%c0_39, %c0_40] : memref<4x32xf32, #tpu.memory_space<vmem>>, vector<1x32xf32>
    %101 = arith.truncf %97 : vector<128x128xf32> to vector<128x128xbf16>
    %102 = vector.extract_strided_slice %97 {offsets = [0, 32], sizes = [128, 32], strides = [1, 1]} : vector<128x128xf32> to vector<128x32xf32>
    %103 = arith.subf %98, %102 : vector<128x32xf32>
    %104 = vector.broadcast %100 : vector<1x32xf32> to vector<128x32xf32>
    %105 = arith.addf %103, %104 : vector<128x32xf32>
    %106 = vector.extract_strided_slice %97 {offsets = [0, 64], sizes = [128, 32], strides = [1, 1]} : vector<128x128xf32> to vector<128x32xf32>
    %107 = vector.broadcast %100 : vector<1x32xf32> to vector<128x32xf32>
    %108 = arith.addf %106, %107 : vector<128x32xf32>
    %cst_41 = arith.constant dense<0.000000e+00> : vector<128x128xf32>
    %109 = tpu.matmul %9, %101, %cst_41 {dimension_numbers = #tpu.dot_dimension_numbers<[1], [0], [0], [1], [0, 0, 1, 1], [], []>} : vector<128x128xbf16>, vector<128x128xbf16>, vector<128x128xf32> -> vector<128x128xf32>
    %110 = vector.extract_strided_slice %109 {offsets = [0, 96], sizes = [128, 32], strides = [1, 1]} : vector<128x128xf32> to vector<128x32xf32>
    %111 = arith.subf %99, %110 : vector<128x32xf32>
    %112 = vector.broadcast %100 : vector<1x32xf32> to vector<128x32xf32>
    %113 = arith.addf %111, %112 : vector<128x32xf32>
    %114 = vector.extract_strided_slice %109 {offsets = [0, 32], sizes = [128, 32], strides = [1, 1]} : vector<128x128xf32> to vector<128x32xf32>
    %115 = arith.subf %98, %114 : vector<128x32xf32>
    %116 = arith.addf %115, %113 : vector<128x32xf32>
    %117 = vector.extract_strided_slice %109 {offsets = [0, 64], sizes = [128, 32], strides = [1, 1]} : vector<128x128xf32> to vector<128x32xf32>
    %118 = arith.addf %117, %113 : vector<128x32xf32>
    %cst_42 = arith.constant dense<0.000000e+00> : vector<128x128xf32>
    %119 = tpu.matmul %10, %101, %cst_42 {dimension_numbers = #tpu.dot_dimension_numbers<[1], [0], [0], [1], [0, 0, 1, 1], [], []>} : vector<128x128xbf16>, vector<128x128xbf16>, vector<128x128xf32> -> vector<128x128xf32>
    %120 = vector.extract_strided_slice %119 {offsets = [0, 96], sizes = [128, 32], strides = [1, 1]} : vector<128x128xf32> to vector<128x32xf32>
    %121 = arith.subf %99, %120 : vector<128x32xf32>
    %122 = vector.broadcast %100 : vector<1x32xf32> to vector<128x32xf32>
    %123 = arith.addf %121, %122 : vector<128x32xf32>
    %124 = vector.extract_strided_slice %119 {offsets = [0, 32], sizes = [128, 32], strides = [1, 1]} : vector<128x128xf32> to vector<128x32xf32>
    %125 = arith.subf %98, %124 : vector<128x32xf32>
    %126 = arith.addf %125, %123 : vector<128x32xf32>
    %127 = vector.extract_strided_slice %119 {offsets = [0, 64], sizes = [128, 32], strides = [1, 1]} : vector<128x128xf32> to vector<128x32xf32>
    %128 = arith.addf %127, %123 : vector<128x32xf32>
    %cst_43 = arith.constant dense<0.000000e+00> : vector<128x128xf32>
    %129 = tpu.matmul %11, %101, %cst_43 {dimension_numbers = #tpu.dot_dimension_numbers<[1], [0], [0], [1], [0, 0, 1, 1], [], []>} : vector<128x128xbf16>, vector<128x128xbf16>, vector<128x128xf32> -> vector<128x128xf32>
    %130 = vector.extract_strided_slice %129 {offsets = [0, 96], sizes = [128, 32], strides = [1, 1]} : vector<128x128xf32> to vector<128x32xf32>
    %131 = arith.subf %99, %130 : vector<128x32xf32>
    %132 = vector.broadcast %100 : vector<1x32xf32> to vector<128x32xf32>
    %133 = arith.addf %131, %132 : vector<128x32xf32>
    %134 = vector.extract_strided_slice %129 {offsets = [0, 32], sizes = [128, 32], strides = [1, 1]} : vector<128x128xf32> to vector<128x32xf32>
    %135 = arith.subf %98, %134 : vector<128x32xf32>
    %136 = arith.addf %135, %133 : vector<128x32xf32>
    %137 = vector.extract_strided_slice %129 {offsets = [0, 64], sizes = [128, 32], strides = [1, 1]} : vector<128x128xf32> to vector<128x32xf32>
    %138 = arith.addf %137, %133 : vector<128x32xf32>
    %cst_44 = arith.constant dense<0.000000e+00> : vector<128x128xf32>
    %139 = tpu.matmul %12, %101, %cst_44 {dimension_numbers = #tpu.dot_dimension_numbers<[1], [0], [0], [1], [0, 0, 1, 1], [], []>} : vector<128x128xbf16>, vector<128x128xbf16>, vector<128x128xf32> -> vector<128x128xf32>
    %140 = vector.extract_strided_slice %139 {offsets = [0, 96], sizes = [128, 32], strides = [1, 1]} : vector<128x128xf32> to vector<128x32xf32>
    %141 = arith.subf %99, %140 : vector<128x32xf32>
    %142 = vector.broadcast %100 : vector<1x32xf32> to vector<128x32xf32>
    %143 = arith.addf %141, %142 : vector<128x32xf32>
    %144 = vector.extract_strided_slice %139 {offsets = [0, 32], sizes = [128, 32], strides = [1, 1]} : vector<128x128xf32> to vector<128x32xf32>
    %145 = arith.subf %98, %144 : vector<128x32xf32>
    %146 = arith.addf %145, %143 : vector<128x32xf32>
    %147 = vector.extract_strided_slice %139 {offsets = [0, 64], sizes = [128, 32], strides = [1, 1]} : vector<128x128xf32> to vector<128x32xf32>
    %148 = arith.addf %147, %143 : vector<128x32xf32>
    %149 = arith.maximumf %105, %116 : vector<128x32xf32>
    %150 = arith.maximumf %149, %126 : vector<128x32xf32>
    %151 = arith.maximumf %150, %136 : vector<128x32xf32>
    %152 = arith.maximumf %151, %146 : vector<128x32xf32>
    %cst_45 = arith.constant 0.000000e+00 : f32
    %153 = vector.broadcast %cst_45 : f32 to vector<128x32xf32>
    %cst_46 = arith.constant 0.000000e+00 : f32
    %154 = vector.broadcast %cst_46 : f32 to vector<128x32xf32>
    %155 = arith.subf %105, %152 : vector<128x32xf32>
    %156 = math.exp %155 : vector<128x32xf32>
    %157 = arith.addf %153, %156 : vector<128x32xf32>
    %158 = arith.mulf %156, %108 : vector<128x32xf32>
    %159 = arith.addf %154, %158 : vector<128x32xf32>
    %160 = arith.subf %116, %152 : vector<128x32xf32>
    %161 = math.exp %160 : vector<128x32xf32>
    %162 = arith.addf %157, %161 : vector<128x32xf32>
    %163 = arith.mulf %161, %118 : vector<128x32xf32>
    %164 = arith.addf %159, %163 : vector<128x32xf32>
    %165 = arith.subf %126, %152 : vector<128x32xf32>
    %166 = math.exp %165 : vector<128x32xf32>
    %167 = arith.addf %162, %166 : vector<128x32xf32>
    %168 = arith.mulf %166, %128 : vector<128x32xf32>
    %169 = arith.addf %164, %168 : vector<128x32xf32>
    %170 = arith.subf %136, %152 : vector<128x32xf32>
    %171 = math.exp %170 : vector<128x32xf32>
    %172 = arith.addf %167, %171 : vector<128x32xf32>
    %173 = arith.mulf %171, %138 : vector<128x32xf32>
    %174 = arith.addf %169, %173 : vector<128x32xf32>
    %175 = arith.subf %146, %152 : vector<128x32xf32>
    %176 = math.exp %175 : vector<128x32xf32>
    %177 = arith.addf %172, %176 : vector<128x32xf32>
    %178 = arith.mulf %176, %148 : vector<128x32xf32>
    %179 = arith.addf %174, %178 : vector<128x32xf32>
    %180 = tpu.reciprocal %177 {approx = true} : vector<128x32xf32> -> vector<128x32xf32>
    %181 = arith.mulf %179, %180 : vector<128x32xf32>
    %182 = vector.extract_strided_slice %94 {offsets = [0, 128], sizes = [128, 128], strides = [1, 1]} : vector<128x256xf32> to vector<128x128xf32>
    %183 = vector.extract_strided_slice %89 {offsets = [0, 128], sizes = [128, 128], strides = [1, 1]} : vector<128x512xf32> to vector<128x128xf32>
    %184 = arith.addf %182, %183 : vector<128x128xf32>
    %185 = vector.extract_strided_slice %184 {offsets = [0, 0], sizes = [128, 32], strides = [1, 1]} : vector<128x128xf32> to vector<128x32xf32>
    %186 = vector.extract_strided_slice %184 {offsets = [0, 96], sizes = [128, 32], strides = [1, 1]} : vector<128x128xf32> to vector<128x32xf32>
    %c1 = arith.constant 1 : index
    %c0_47 = arith.constant 0 : index
    %187 = vector.load %arg7[%c1, %c0_47] : memref<4x32xf32, #tpu.memory_space<vmem>>, vector<1x32xf32>
    %188 = arith.truncf %184 : vector<128x128xf32> to vector<128x128xbf16>
    %189 = vector.extract_strided_slice %184 {offsets = [0, 32], sizes = [128, 32], strides = [1, 1]} : vector<128x128xf32> to vector<128x32xf32>
    %190 = arith.subf %185, %189 : vector<128x32xf32>
    %191 = vector.broadcast %187 : vector<1x32xf32> to vector<128x32xf32>
    %192 = arith.addf %190, %191 : vector<128x32xf32>
    %193 = vector.extract_strided_slice %184 {offsets = [0, 64], sizes = [128, 32], strides = [1, 1]} : vector<128x128xf32> to vector<128x32xf32>
    %194 = vector.broadcast %187 : vector<1x32xf32> to vector<128x32xf32>
    %195 = arith.addf %193, %194 : vector<128x32xf32>
    %cst_48 = arith.constant dense<0.000000e+00> : vector<128x128xf32>
    %196 = tpu.matmul %9, %188, %cst_48 {dimension_numbers = #tpu.dot_dimension_numbers<[1], [0], [0], [1], [0, 0, 1, 1], [], []>} : vector<128x128xbf16>, vector<128x128xbf16>, vector<128x128xf32> -> vector<128x128xf32>
    %197 = vector.extract_strided_slice %196 {offsets = [0, 96], sizes = [128, 32], strides = [1, 1]} : vector<128x128xf32> to vector<128x32xf32>
    %198 = arith.subf %186, %197 : vector<128x32xf32>
    %199 = vector.broadcast %187 : vector<1x32xf32> to vector<128x32xf32>
    %200 = arith.addf %198, %199 : vector<128x32xf32>
    %201 = vector.extract_strided_slice %196 {offsets = [0, 32], sizes = [128, 32], strides = [1, 1]} : vector<128x128xf32> to vector<128x32xf32>
    %202 = arith.subf %185, %201 : vector<128x32xf32>
    %203 = arith.addf %202, %200 : vector<128x32xf32>
    %204 = vector.extract_strided_slice %196 {offsets = [0, 64], sizes = [128, 32], strides = [1, 1]} : vector<128x128xf32> to vector<128x32xf32>
    %205 = arith.addf %204, %200 : vector<128x32xf32>
    %cst_49 = arith.constant dense<0.000000e+00> : vector<128x128xf32>
    %206 = tpu.matmul %11, %188, %cst_49 {dimension_numbers = #tpu.dot_dimension_numbers<[1], [0], [0], [1], [0, 0, 1, 1], [], []>} : vector<128x128xbf16>, vector<128x128xbf16>, vector<128x128xf32> -> vector<128x128xf32>
    %207 = vector.extract_strided_slice %206 {offsets = [0, 96], sizes = [128, 32], strides = [1, 1]} : vector<128x128xf32> to vector<128x32xf32>
    %208 = arith.subf %186, %207 : vector<128x32xf32>
    %209 = vector.broadcast %187 : vector<1x32xf32> to vector<128x32xf32>
    %210 = arith.addf %208, %209 : vector<128x32xf32>
    %211 = vector.extract_strided_slice %206 {offsets = [0, 32], sizes = [128, 32], strides = [1, 1]} : vector<128x128xf32> to vector<128x32xf32>
    %212 = arith.subf %185, %211 : vector<128x32xf32>
    %213 = arith.addf %212, %210 : vector<128x32xf32>
    %214 = vector.extract_strided_slice %206 {offsets = [0, 64], sizes = [128, 32], strides = [1, 1]} : vector<128x128xf32> to vector<128x32xf32>
    %215 = arith.addf %214, %210 : vector<128x32xf32>
    %cst_50 = arith.constant dense<0.000000e+00> : vector<128x128xf32>
    %216 = tpu.matmul %13, %188, %cst_50 {dimension_numbers = #tpu.dot_dimension_numbers<[1], [0], [0], [1], [0, 0, 1, 1], [], []>} : vector<128x128xbf16>, vector<128x128xbf16>, vector<128x128xf32> -> vector<128x128xf32>
    %217 = vector.extract_strided_slice %216 {offsets = [0, 96], sizes = [128, 32], strides = [1, 1]} : vector<128x128xf32> to vector<128x32xf32>
    %218 = arith.subf %186, %217 : vector<128x32xf32>
    %219 = vector.broadcast %187 : vector<1x32xf32> to vector<128x32xf32>
    %220 = arith.addf %218, %219 : vector<128x32xf32>
    %221 = vector.extract_strided_slice %216 {offsets = [0, 32], sizes = [128, 32], strides = [1, 1]} : vector<128x128xf32> to vector<128x32xf32>
    %222 = arith.subf %185, %221 : vector<128x32xf32>
    %223 = arith.addf %222, %220 : vector<128x32xf32>
    %224 = vector.extract_strided_slice %216 {offsets = [0, 64], sizes = [128, 32], strides = [1, 1]} : vector<128x128xf32> to vector<128x32xf32>
    %225 = arith.addf %224, %220 : vector<128x32xf32>
    %cst_51 = arith.constant dense<0.000000e+00> : vector<128x128xf32>
    %226 = tpu.matmul %15, %188, %cst_51 {dimension_numbers = #tpu.dot_dimension_numbers<[1], [0], [0], [1], [0, 0, 1, 1], [], []>} : vector<128x128xbf16>, vector<128x128xbf16>, vector<128x128xf32> -> vector<128x128xf32>
    %227 = vector.extract_strided_slice %226 {offsets = [0, 96], sizes = [128, 32], strides = [1, 1]} : vector<128x128xf32> to vector<128x32xf32>
    %228 = arith.subf %186, %227 : vector<128x32xf32>
    %229 = vector.broadcast %187 : vector<1x32xf32> to vector<128x32xf32>
    %230 = arith.addf %228, %229 : vector<128x32xf32>
    %231 = vector.extract_strided_slice %226 {offsets = [0, 32], sizes = [128, 32], strides = [1, 1]} : vector<128x128xf32> to vector<128x32xf32>
    %232 = arith.subf %185, %231 : vector<128x32xf32>
    %233 = arith.addf %232, %230 : vector<128x32xf32>
    %234 = vector.extract_strided_slice %226 {offsets = [0, 64], sizes = [128, 32], strides = [1, 1]} : vector<128x128xf32> to vector<128x32xf32>
    %235 = arith.addf %234, %230 : vector<128x32xf32>
    %236 = arith.maximumf %192, %203 : vector<128x32xf32>
    %237 = arith.maximumf %236, %213 : vector<128x32xf32>
    %238 = arith.maximumf %237, %223 : vector<128x32xf32>
    %239 = arith.maximumf %238, %233 : vector<128x32xf32>
    %cst_52 = arith.constant 0.000000e+00 : f32
    %240 = vector.broadcast %cst_52 : f32 to vector<128x32xf32>
    %cst_53 = arith.constant 0.000000e+00 : f32
    %241 = vector.broadcast %cst_53 : f32 to vector<128x32xf32>
    %242 = arith.subf %192, %239 : vector<128x32xf32>
    %243 = math.exp %242 : vector<128x32xf32>
    %244 = arith.addf %240, %243 : vector<128x32xf32>
    %245 = arith.mulf %243, %195 : vector<128x32xf32>
    %246 = arith.addf %241, %245 : vector<128x32xf32>
    %247 = arith.subf %203, %239 : vector<128x32xf32>
    %248 = math.exp %247 : vector<128x32xf32>
    %249 = arith.addf %244, %248 : vector<128x32xf32>
    %250 = arith.mulf %248, %205 : vector<128x32xf32>
    %251 = arith.addf %246, %250 : vector<128x32xf32>
    %252 = arith.subf %213, %239 : vector<128x32xf32>
    %253 = math.exp %252 : vector<128x32xf32>
    %254 = arith.addf %249, %253 : vector<128x32xf32>
    %255 = arith.mulf %253, %215 : vector<128x32xf32>
    %256 = arith.addf %251, %255 : vector<128x32xf32>
    %257 = arith.subf %223, %239 : vector<128x32xf32>
    %258 = math.exp %257 : vector<128x32xf32>
    %259 = arith.addf %254, %258 : vector<128x32xf32>
    %260 = arith.mulf %258, %225 : vector<128x32xf32>
    %261 = arith.addf %256, %260 : vector<128x32xf32>
    %262 = arith.subf %233, %239 : vector<128x32xf32>
    %263 = math.exp %262 : vector<128x32xf32>
    %264 = arith.addf %259, %263 : vector<128x32xf32>
    %265 = arith.mulf %263, %235 : vector<128x32xf32>
    %266 = arith.addf %261, %265 : vector<128x32xf32>
    %267 = tpu.reciprocal %264 {approx = true} : vector<128x32xf32> -> vector<128x32xf32>
    %268 = arith.mulf %266, %267 : vector<128x32xf32>
    %269 = arith.maximumf %181, %268 : vector<128x32xf32>
    %270 = arith.addf %90, %269 : vector<128x32xf32>
    %271 = arith.truncf %269 : vector<128x32xf32> to vector<128x32xbf16>
    %c1_54 = arith.constant 1 : index
    %c0_55 = arith.constant 0 : index
    %c0_56 = arith.constant 0 : index
    %272 = vector.load %arg5[%c1_54, %c0_55, %c0_56] : memref<2x32x256xbf16, #tpu.memory_space<vmem>>, vector<1x32x256xbf16>
    %273 = vector.shape_cast %272 : vector<1x32x256xbf16> to vector<32x256xbf16>
    %cst_57 = arith.constant dense<0.000000e+00> : vector<128x256xf32>
    %274 = tpu.matmul %271, %273, %cst_57 {dimension_numbers = #tpu.dot_dimension_numbers<[1], [0], [0], [1], [0, 0, 1, 1], [], []>} : vector<128x32xbf16>, vector<32x256xbf16>, vector<128x256xf32> -> vector<128x256xf32>
    %275 = vector.extract_strided_slice %274 {offsets = [0, 0], sizes = [128, 128], strides = [1, 1]} : vector<128x256xf32> to vector<128x128xf32>
    %276 = vector.extract_strided_slice %89 {offsets = [0, 256], sizes = [128, 128], strides = [1, 1]} : vector<128x512xf32> to vector<128x128xf32>
    %277 = arith.addf %275, %276 : vector<128x128xf32>
    %278 = vector.extract_strided_slice %277 {offsets = [0, 0], sizes = [128, 32], strides = [1, 1]} : vector<128x128xf32> to vector<128x32xf32>
    %279 = vector.extract_strided_slice %277 {offsets = [0, 96], sizes = [128, 32], strides = [1, 1]} : vector<128x128xf32> to vector<128x32xf32>
    %c2 = arith.constant 2 : index
    %c0_58 = arith.constant 0 : index
    %280 = vector.load %arg7[%c2, %c0_58] : memref<4x32xf32, #tpu.memory_space<vmem>>, vector<1x32xf32>
    %281 = arith.truncf %277 : vector<128x128xf32> to vector<128x128xbf16>
    %282 = vector.extract_strided_slice %277 {offsets = [0, 32], sizes = [128, 32], strides = [1, 1]} : vector<128x128xf32> to vector<128x32xf32>
    %283 = arith.subf %278, %282 : vector<128x32xf32>
    %284 = vector.broadcast %280 : vector<1x32xf32> to vector<128x32xf32>
    %285 = arith.addf %283, %284 : vector<128x32xf32>
    %286 = vector.extract_strided_slice %277 {offsets = [0, 64], sizes = [128, 32], strides = [1, 1]} : vector<128x128xf32> to vector<128x32xf32>
    %287 = vector.broadcast %280 : vector<1x32xf32> to vector<128x32xf32>
    %288 = arith.addf %286, %287 : vector<128x32xf32>
    %cst_59 = arith.constant dense<0.000000e+00> : vector<128x128xf32>
    %289 = tpu.matmul %9, %281, %cst_59 {dimension_numbers = #tpu.dot_dimension_numbers<[1], [0], [0], [1], [0, 0, 1, 1], [], []>} : vector<128x128xbf16>, vector<128x128xbf16>, vector<128x128xf32> -> vector<128x128xf32>
    %290 = vector.extract_strided_slice %289 {offsets = [0, 96], sizes = [128, 32], strides = [1, 1]} : vector<128x128xf32> to vector<128x32xf32>
    %291 = arith.subf %279, %290 : vector<128x32xf32>
    %292 = vector.broadcast %280 : vector<1x32xf32> to vector<128x32xf32>
    %293 = arith.addf %291, %292 : vector<128x32xf32>
    %294 = vector.extract_strided_slice %289 {offsets = [0, 32], sizes = [128, 32], strides = [1, 1]} : vector<128x128xf32> to vector<128x32xf32>
    %295 = arith.subf %278, %294 : vector<128x32xf32>
    %296 = arith.addf %295, %293 : vector<128x32xf32>
    %297 = vector.extract_strided_slice %289 {offsets = [0, 64], sizes = [128, 32], strides = [1, 1]} : vector<128x128xf32> to vector<128x32xf32>
    %298 = arith.addf %297, %293 : vector<128x32xf32>
    %cst_60 = arith.constant dense<0.000000e+00> : vector<128x128xf32>
    %299 = tpu.matmul %10, %281, %cst_60 {dimension_numbers = #tpu.dot_dimension_numbers<[1], [0], [0], [1], [0, 0, 1, 1], [], []>} : vector<128x128xbf16>, vector<128x128xbf16>, vector<128x128xf32> -> vector<128x128xf32>
    %300 = vector.extract_strided_slice %299 {offsets = [0, 96], sizes = [128, 32], strides = [1, 1]} : vector<128x128xf32> to vector<128x32xf32>
    %301 = arith.subf %279, %300 : vector<128x32xf32>
    %302 = vector.broadcast %280 : vector<1x32xf32> to vector<128x32xf32>
    %303 = arith.addf %301, %302 : vector<128x32xf32>
    %304 = vector.extract_strided_slice %299 {offsets = [0, 32], sizes = [128, 32], strides = [1, 1]} : vector<128x128xf32> to vector<128x32xf32>
    %305 = arith.subf %278, %304 : vector<128x32xf32>
    %306 = arith.addf %305, %303 : vector<128x32xf32>
    %307 = vector.extract_strided_slice %299 {offsets = [0, 64], sizes = [128, 32], strides = [1, 1]} : vector<128x128xf32> to vector<128x32xf32>
    %308 = arith.addf %307, %303 : vector<128x32xf32>
    %cst_61 = arith.constant dense<0.000000e+00> : vector<128x128xf32>
    %309 = tpu.matmul %11, %281, %cst_61 {dimension_numbers = #tpu.dot_dimension_numbers<[1], [0], [0], [1], [0, 0, 1, 1], [], []>} : vector<128x128xbf16>, vector<128x128xbf16>, vector<128x128xf32> -> vector<128x128xf32>
    %310 = vector.extract_strided_slice %309 {offsets = [0, 96], sizes = [128, 32], strides = [1, 1]} : vector<128x128xf32> to vector<128x32xf32>
    %311 = arith.subf %279, %310 : vector<128x32xf32>
    %312 = vector.broadcast %280 : vector<1x32xf32> to vector<128x32xf32>
    %313 = arith.addf %311, %312 : vector<128x32xf32>
    %314 = vector.extract_strided_slice %309 {offsets = [0, 32], sizes = [128, 32], strides = [1, 1]} : vector<128x128xf32> to vector<128x32xf32>
    %315 = arith.subf %278, %314 : vector<128x32xf32>
    %316 = arith.addf %315, %313 : vector<128x32xf32>
    %317 = vector.extract_strided_slice %309 {offsets = [0, 64], sizes = [128, 32], strides = [1, 1]} : vector<128x128xf32> to vector<128x32xf32>
    %318 = arith.addf %317, %313 : vector<128x32xf32>
    %cst_62 = arith.constant dense<0.000000e+00> : vector<128x128xf32>
    %319 = tpu.matmul %12, %281, %cst_62 {dimension_numbers = #tpu.dot_dimension_numbers<[1], [0], [0], [1], [0, 0, 1, 1], [], []>} : vector<128x128xbf16>, vector<128x128xbf16>, vector<128x128xf32> -> vector<128x128xf32>
    %320 = vector.extract_strided_slice %319 {offsets = [0, 96], sizes = [128, 32], strides = [1, 1]} : vector<128x128xf32> to vector<128x32xf32>
    %321 = arith.subf %279, %320 : vector<128x32xf32>
    %322 = vector.broadcast %280 : vector<1x32xf32> to vector<128x32xf32>
    %323 = arith.addf %321, %322 : vector<128x32xf32>
    %324 = vector.extract_strided_slice %319 {offsets = [0, 32], sizes = [128, 32], strides = [1, 1]} : vector<128x128xf32> to vector<128x32xf32>
    %325 = arith.subf %278, %324 : vector<128x32xf32>
    %326 = arith.addf %325, %323 : vector<128x32xf32>
    %327 = vector.extract_strided_slice %319 {offsets = [0, 64], sizes = [128, 32], strides = [1, 1]} : vector<128x128xf32> to vector<128x32xf32>
    %328 = arith.addf %327, %323 : vector<128x32xf32>
    %329 = arith.maximumf %285, %296 : vector<128x32xf32>
    %330 = arith.maximumf %329, %306 : vector<128x32xf32>
    %331 = arith.maximumf %330, %316 : vector<128x32xf32>
    %332 = arith.maximumf %331, %326 : vector<128x32xf32>
    %cst_63 = arith.constant 0.000000e+00 : f32
    %333 = vector.broadcast %cst_63 : f32 to vector<128x32xf32>
    %cst_64 = arith.constant 0.000000e+00 : f32
    %334 = vector.broadcast %cst_64 : f32 to vector<128x32xf32>
    %335 = arith.subf %285, %332 : vector<128x32xf32>
    %336 = math.exp %335 : vector<128x32xf32>
    %337 = arith.addf %333, %336 : vector<128x32xf32>
    %338 = arith.mulf %336, %288 : vector<128x32xf32>
    %339 = arith.addf %334, %338 : vector<128x32xf32>
    %340 = arith.subf %296, %332 : vector<128x32xf32>
    %341 = math.exp %340 : vector<128x32xf32>
    %342 = arith.addf %337, %341 : vector<128x32xf32>
    %343 = arith.mulf %341, %298 : vector<128x32xf32>
    %344 = arith.addf %339, %343 : vector<128x32xf32>
    %345 = arith.subf %306, %332 : vector<128x32xf32>
    %346 = math.exp %345 : vector<128x32xf32>
    %347 = arith.addf %342, %346 : vector<128x32xf32>
    %348 = arith.mulf %346, %308 : vector<128x32xf32>
    %349 = arith.addf %344, %348 : vector<128x32xf32>
    %350 = arith.subf %316, %332 : vector<128x32xf32>
    %351 = math.exp %350 : vector<128x32xf32>
    %352 = arith.addf %347, %351 : vector<128x32xf32>
    %353 = arith.mulf %351, %318 : vector<128x32xf32>
    %354 = arith.addf %349, %353 : vector<128x32xf32>
    %355 = arith.subf %326, %332 : vector<128x32xf32>
    %356 = math.exp %355 : vector<128x32xf32>
    %357 = arith.addf %352, %356 : vector<128x32xf32>
    %358 = arith.mulf %356, %328 : vector<128x32xf32>
    %359 = arith.addf %354, %358 : vector<128x32xf32>
    %360 = tpu.reciprocal %357 {approx = true} : vector<128x32xf32> -> vector<128x32xf32>
    %361 = arith.mulf %359, %360 : vector<128x32xf32>
    %362 = vector.extract_strided_slice %274 {offsets = [0, 128], sizes = [128, 128], strides = [1, 1]} : vector<128x256xf32> to vector<128x128xf32>
    %363 = vector.extract_strided_slice %89 {offsets = [0, 384], sizes = [128, 128], strides = [1, 1]} : vector<128x512xf32> to vector<128x128xf32>
    %364 = arith.addf %362, %363 : vector<128x128xf32>
    %365 = vector.extract_strided_slice %364 {offsets = [0, 0], sizes = [128, 32], strides = [1, 1]} : vector<128x128xf32> to vector<128x32xf32>
    %366 = vector.extract_strided_slice %364 {offsets = [0, 96], sizes = [128, 32], strides = [1, 1]} : vector<128x128xf32> to vector<128x32xf32>
    %c3 = arith.constant 3 : index
    %c0_65 = arith.constant 0 : index
    %367 = vector.load %arg7[%c3, %c0_65] : memref<4x32xf32, #tpu.memory_space<vmem>>, vector<1x32xf32>
    %368 = arith.truncf %364 : vector<128x128xf32> to vector<128x128xbf16>
    %369 = vector.extract_strided_slice %364 {offsets = [0, 32], sizes = [128, 32], strides = [1, 1]} : vector<128x128xf32> to vector<128x32xf32>
    %370 = arith.subf %365, %369 : vector<128x32xf32>
    %371 = vector.broadcast %367 : vector<1x32xf32> to vector<128x32xf32>
    %372 = arith.addf %370, %371 : vector<128x32xf32>
    %373 = vector.extract_strided_slice %364 {offsets = [0, 64], sizes = [128, 32], strides = [1, 1]} : vector<128x128xf32> to vector<128x32xf32>
    %374 = vector.broadcast %367 : vector<1x32xf32> to vector<128x32xf32>
    %375 = arith.addf %373, %374 : vector<128x32xf32>
    %cst_66 = arith.constant dense<0.000000e+00> : vector<128x128xf32>
    %376 = tpu.matmul %9, %368, %cst_66 {dimension_numbers = #tpu.dot_dimension_numbers<[1], [0], [0], [1], [0, 0, 1, 1], [], []>} : vector<128x128xbf16>, vector<128x128xbf16>, vector<128x128xf32> -> vector<128x128xf32>
    %377 = vector.extract_strided_slice %376 {offsets = [0, 96], sizes = [128, 32], strides = [1, 1]} : vector<128x128xf32> to vector<128x32xf32>
    %378 = arith.subf %366, %377 : vector<128x32xf32>
    %379 = vector.broadcast %367 : vector<1x32xf32> to vector<128x32xf32>
    %380 = arith.addf %378, %379 : vector<128x32xf32>
    %381 = vector.extract_strided_slice %376 {offsets = [0, 32], sizes = [128, 32], strides = [1, 1]} : vector<128x128xf32> to vector<128x32xf32>
    %382 = arith.subf %365, %381 : vector<128x32xf32>
    %383 = arith.addf %382, %380 : vector<128x32xf32>
    %384 = vector.extract_strided_slice %376 {offsets = [0, 64], sizes = [128, 32], strides = [1, 1]} : vector<128x128xf32> to vector<128x32xf32>
    %385 = arith.addf %384, %380 : vector<128x32xf32>
    %cst_67 = arith.constant dense<0.000000e+00> : vector<128x128xf32>
    %386 = tpu.matmul %11, %368, %cst_67 {dimension_numbers = #tpu.dot_dimension_numbers<[1], [0], [0], [1], [0, 0, 1, 1], [], []>} : vector<128x128xbf16>, vector<128x128xbf16>, vector<128x128xf32> -> vector<128x128xf32>
    %387 = vector.extract_strided_slice %386 {offsets = [0, 96], sizes = [128, 32], strides = [1, 1]} : vector<128x128xf32> to vector<128x32xf32>
    %388 = arith.subf %366, %387 : vector<128x32xf32>
    %389 = vector.broadcast %367 : vector<1x32xf32> to vector<128x32xf32>
    %390 = arith.addf %388, %389 : vector<128x32xf32>
    %391 = vector.extract_strided_slice %386 {offsets = [0, 32], sizes = [128, 32], strides = [1, 1]} : vector<128x128xf32> to vector<128x32xf32>
    %392 = arith.subf %365, %391 : vector<128x32xf32>
    %393 = arith.addf %392, %390 : vector<128x32xf32>
    %394 = vector.extract_strided_slice %386 {offsets = [0, 64], sizes = [128, 32], strides = [1, 1]} : vector<128x128xf32> to vector<128x32xf32>
    %395 = arith.addf %394, %390 : vector<128x32xf32>
    %cst_68 = arith.constant dense<0.000000e+00> : vector<128x128xf32>
    %396 = tpu.matmul %13, %368, %cst_68 {dimension_numbers = #tpu.dot_dimension_numbers<[1], [0], [0], [1], [0, 0, 1, 1], [], []>} : vector<128x128xbf16>, vector<128x128xbf16>, vector<128x128xf32> -> vector<128x128xf32>
    %397 = vector.extract_strided_slice %396 {offsets = [0, 96], sizes = [128, 32], strides = [1, 1]} : vector<128x128xf32> to vector<128x32xf32>
    %398 = arith.subf %366, %397 : vector<128x32xf32>
    %399 = vector.broadcast %367 : vector<1x32xf32> to vector<128x32xf32>
    %400 = arith.addf %398, %399 : vector<128x32xf32>
    %401 = vector.extract_strided_slice %396 {offsets = [0, 32], sizes = [128, 32], strides = [1, 1]} : vector<128x128xf32> to vector<128x32xf32>
    %402 = arith.subf %365, %401 : vector<128x32xf32>
    %403 = arith.addf %402, %400 : vector<128x32xf32>
    %404 = vector.extract_strided_slice %396 {offsets = [0, 64], sizes = [128, 32], strides = [1, 1]} : vector<128x128xf32> to vector<128x32xf32>
    %405 = arith.addf %404, %400 : vector<128x32xf32>
    %cst_69 = arith.constant dense<0.000000e+00> : vector<128x128xf32>
    %406 = tpu.matmul %15, %368, %cst_69 {dimension_numbers = #tpu.dot_dimension_numbers<[1], [0], [0], [1], [0, 0, 1, 1], [], []>} : vector<128x128xbf16>, vector<128x128xbf16>, vector<128x128xf32> -> vector<128x128xf32>
    %407 = vector.extract_strided_slice %406 {offsets = [0, 96], sizes = [128, 32], strides = [1, 1]} : vector<128x128xf32> to vector<128x32xf32>
    %408 = arith.subf %366, %407 : vector<128x32xf32>
    %409 = vector.broadcast %367 : vector<1x32xf32> to vector<128x32xf32>
    %410 = arith.addf %408, %409 : vector<128x32xf32>
    %411 = vector.extract_strided_slice %406 {offsets = [0, 32], sizes = [128, 32], strides = [1, 1]} : vector<128x128xf32> to vector<128x32xf32>
    %412 = arith.subf %365, %411 : vector<128x32xf32>
    %413 = arith.addf %412, %410 : vector<128x32xf32>
    %414 = vector.extract_strided_slice %406 {offsets = [0, 64], sizes = [128, 32], strides = [1, 1]} : vector<128x128xf32> to vector<128x32xf32>
    %415 = arith.addf %414, %410 : vector<128x32xf32>
    %416 = arith.maximumf %372, %383 : vector<128x32xf32>
    %417 = arith.maximumf %416, %393 : vector<128x32xf32>
    %418 = arith.maximumf %417, %403 : vector<128x32xf32>
    %419 = arith.maximumf %418, %413 : vector<128x32xf32>
    %cst_70 = arith.constant 0.000000e+00 : f32
    %420 = vector.broadcast %cst_70 : f32 to vector<128x32xf32>
    %cst_71 = arith.constant 0.000000e+00 : f32
    %421 = vector.broadcast %cst_71 : f32 to vector<128x32xf32>
    %422 = arith.subf %372, %419 : vector<128x32xf32>
    %423 = math.exp %422 : vector<128x32xf32>
    %424 = arith.addf %420, %423 : vector<128x32xf32>
    %425 = arith.mulf %423, %375 : vector<128x32xf32>
    %426 = arith.addf %421, %425 : vector<128x32xf32>
    %427 = arith.subf %383, %419 : vector<128x32xf32>
    %428 = math.exp %427 : vector<128x32xf32>
    %429 = arith.addf %424, %428 : vector<128x32xf32>
    %430 = arith.mulf %428, %385 : vector<128x32xf32>
    %431 = arith.addf %426, %430 : vector<128x32xf32>
    %432 = arith.subf %393, %419 : vector<128x32xf32>
    %433 = math.exp %432 : vector<128x32xf32>
    %434 = arith.addf %429, %433 : vector<128x32xf32>
    %435 = arith.mulf %433, %395 : vector<128x32xf32>
    %436 = arith.addf %431, %435 : vector<128x32xf32>
    %437 = arith.subf %403, %419 : vector<128x32xf32>
    %438 = math.exp %437 : vector<128x32xf32>
    %439 = arith.addf %434, %438 : vector<128x32xf32>
    %440 = arith.mulf %438, %405 : vector<128x32xf32>
    %441 = arith.addf %436, %440 : vector<128x32xf32>
    %442 = arith.subf %413, %419 : vector<128x32xf32>
    %443 = math.exp %442 : vector<128x32xf32>
    %444 = arith.addf %439, %443 : vector<128x32xf32>
    %445 = arith.mulf %443, %415 : vector<128x32xf32>
    %446 = arith.addf %441, %445 : vector<128x32xf32>
    %447 = tpu.reciprocal %444 {approx = true} : vector<128x32xf32> -> vector<128x32xf32>
    %448 = arith.mulf %446, %447 : vector<128x32xf32>
    %449 = arith.maximumf %361, %448 : vector<128x32xf32>
    %450 = arith.addf %270, %449 : vector<128x32xf32>
    %cst_72 = arith.constant 5.000000e-01 : f32
    %451 = vector.broadcast %cst_72 : f32 to vector<128x32xf32>
    %452 = arith.mulf %450, %451 : vector<128x32xf32>
    %c0_73 = arith.constant 0 : index
    %c0_74 = arith.constant 0 : index
    %453 = vector.load %arg8[%c0_73, %c0_74] : memref<128x32xf32, #tpu.memory_space<vmem>>, vector<128x32xf32>
    tpu.vector_store %arg8[%c0_73, %c0_74], %452 {strides = array<i32>} : memref<128x32xf32, #tpu.memory_space<vmem>>, vector<128x32xf32>,
    return
  }
  func.func @transform_0(%arg0: i32) -> (i32, i32) {
    %c0_i32 = arith.constant 0 : i32
    %c0_i32_0 = arith.constant 0 : i32
    %c0_i32_1 = arith.constant 0 : i32
    return %c0_i32, %c0_i32_0 : i32, i32
  }
  func.func @transform_1(%arg0: i32) -> (i32, i32) {
    %c0_i32 = arith.constant 0 : i32
    %c0_i32_0 = arith.constant 0 : i32
    %c0_i32_1 = arith.constant 0 : i32
    return %c0_i32, %c0_i32_0 : i32, i32
  }
  func.func @transform_2(%arg0: i32) -> (i32, i32) {
    %c0_i32 = arith.constant 0 : i32
    %c0_i32_0 = arith.constant 0 : i32
    %c0_i32_1 = arith.constant 0 : i32
    return %c0_i32, %c0_i32_0 : i32, i32
  }
  func.func @transform_3(%arg0: i32) -> (i32, i32) {
    %c0_i32 = arith.constant 0 : i32
    %c0_i32_0 = arith.constant 0 : i32
    %c0_i32_1 = arith.constant 0 : i32
    return %c0_i32, %c0_i32_0 : i32, i32
  }
  func.func @transform_4(%arg0: i32) -> (i32, i32, i32) {
    %c0_i32 = arith.constant 0 : i32
    %c0_i32_0 = arith.constant 0 : i32
    %c0_i32_1 = arith.constant 0 : i32
    %c0_i32_2 = arith.constant 0 : i32
    return %c0_i32, %c0_i32_0, %c0_i32_1 : i32, i32, i32
  }
  func.func @transform_5(%arg0: i32) -> (i32, i32) {
    %c0_i32 = arith.constant 0 : i32
    %c0_i32_0 = arith.constant 0 : i32
    %c0_i32_1 = arith.constant 0 : i32
    return %c0_i32, %c0_i32_0 : i32, i32
  }
  func.func @transform_6(%arg0: i32) -> (i32, i32) {
    %c0_i32 = arith.constant 0 : i32
    %c0_i32_0 = arith.constant 0 : i32
    %c0_i32_1 = arith.constant 0 : i32
    return %c0_i32, %c0_i32_0 : i32, i32
  }
  func.func @transform_7(%arg0: i32) -> (i32, i32) {
    %c0_i32 = arith.constant 0 : i32
    %c0_i32_0 = arith.constant 0 : i32
    %c0_i32_1 = arith.constant 0 : i32
    return %c0_i32, %c0_i32_0 : i32, i32
  }
}

</mosaic_0001>

<llo_original>
// kernel: neg.1
$region0: #{neg.1}
  #allocation0 [shape = 's32[1]{0}', space=sflag, size = 0x4, scoped, tag = 'scoped memory for neg.1']
  %s0 = inlined_call_operand.vmem [shape: f32[128,128], index: 0, kind: input, shape index: {}]
  %s1 = inlined_call_operand.vmem [shape: f32[128,128], index: 1, kind: output, shape index: {}]
  %v2 = vld [vmem:[%s0] sm:$0xff]
  %3 = xla_tuple %v2
  %4 = xla_tuple %3
  %v5 = vxor.u32 %v2, 2147483648
  %6 = xla_tuple %v5
  %7 = vst [vmem:[%s1] sm:$0xff] %v5
  %s8 = scalar_lea.vmem %s0, 8
  %v9 = vld [vmem:[%s8] sm:$0xff]
  %10 = xla_tuple %v9
  %11 = xla_tuple %10
  %v12 = vxor.u32 %v9, 2147483648
  %13 = xla_tuple %v12
  %s14 = scalar_lea.vmem %s1, 8
  %15 = vst [vmem:[%s14] sm:$0xff] %v12
  %s16 = scalar_lea.vmem %s0, 16
  %v17 = vld [vmem:[%s16] sm:$0xff]
  %18 = xla_tuple %v17
  %19 = xla_tuple %18
  %v20 = vxor.u32 %v17, 2147483648
  %21 = xla_tuple %v20
  %s22 = scalar_lea.vmem %s1, 16
  %23 = vst [vmem:[%s22] sm:$0xff] %v20
  %s24 = scalar_lea.vmem %s0, 24
  %v25 = vld [vmem:[%s24] sm:$0xff]
  %26 = xla_tuple %v25
  %27 = xla_tuple %26
  %v28 = vxor.u32 %v25, 2147483648
  %29 = xla_tuple %v28
  %s30 = scalar_lea.vmem %s1, 24
  %31 = vst [vmem:[%s30] sm:$0xff] %v28
  %s32 = scalar_lea.vmem %s0, 32
  %v33 = vld [vmem:[%s32] sm:$0xff]
  %34 = xla_tuple %v33
  %35 = xla_tuple %34
  %v36 = vxor.u32 %v33, 2147483648
  %37 = xla_tuple %v36
  %s38 = scalar_lea.vmem %s1, 32
  %39 = vst [vmem:[%s38] sm:$0xff] %v36
  %s40 = scalar_lea.vmem %s0, 40
  %v41 = vld [vmem:[%s40] sm:$0xff]
  %42 = xla_tuple %v41
  %43 = xla_tuple %42
  %v44 = vxor.u32 %v41, 2147483648
  %45 = xla_tuple %v44
  %s46 = scalar_lea.vmem %s1, 40
  %47 = vst [vmem:[%s46] sm:$0xff] %v44
  %s48 = scalar_lea.vmem %s0, 48
  %v49 = vld [vmem:[%s48] sm:$0xff]
  %50 = xla_tuple %v49
  %51 = xla_tuple %50
  %v52 = vxor.u32 %v49, 2147483648
  %53 = xla_tuple %v52
  %s54 = scalar_lea.vmem %s1, 48
  %55 = vst [vmem:[%s54] sm:$0xff] %v52
  %s56 = scalar_lea.vmem %s0, 56
  %v57 = vld [vmem:[%s56] sm:$0xff]
  %58 = xla_tuple %v57
  %59 = xla_tuple %58
  %v60 = vxor.u32 %v57, 2147483648
  %61 = xla_tuple %v60
  %s62 = scalar_lea.vmem %s1, 56
  %63 = vst [vmem:[%s62] sm:$0xff] %v60
  %s64 = scalar_lea.vmem %s0, 64
  %v65 = vld [vmem:[%s64] sm:$0xff]
  %66 = xla_tuple %v65
  %67 = xla_tuple %66
  %v68 = vxor.u32 %v65, 2147483648
  %69 = xla_tuple %v68
  %s70 = scalar_lea.vmem %s1, 64
  %71 = vst [vmem:[%s70] sm:$0xff] %v68
  %s72 = scalar_lea.vmem %s0, 72
  %v73 = vld [vmem:[%s72] sm:$0xff]
  %74 = xla_tuple %v73
  %75 = xla_tuple %74
  %v76 = vxor.u32 %v73, 2147483648
  %77 = xla_tuple %v76
  %s78 = scalar_lea.vmem %s1, 72
  %79 = vst [vmem:[%s78] sm:$0xff] %v76
  %s80 = scalar_lea.vmem %s0, 80
  %v81 = vld [vmem:[%s80] sm:$0xff]
  %82 = xla_tuple %v81
  %83 = xla_tuple %82
  %v84 = vxor.u32 %v81, 2147483648
  %85 = xla_tuple %v84
  %s86 = scalar_lea.vmem %s1, 80
  %87 = vst [vmem:[%s86] sm:$0xff] %v84
  %s88 = scalar_lea.vmem %s0, 88
  %v89 = vld [vmem:[%s88] sm:$0xff]
  %90 = xla_tuple %v89
  %91 = xla_tuple %90
  %v92 = vxor.u32 %v89, 2147483648
  %93 = xla_tuple %v92
  %s94 = scalar_lea.vmem %s1, 88
  %95 = vst [vmem:[%s94] sm:$0xff] %v92
  %s96 = scalar_lea.vmem %s0, 96
  %v97 = vld [vmem:[%s96] sm:$0xff]
  %98 = xla_tuple %v97
  %99 = xla_tuple %98
  %v100 = vxor.u32 %v97, 2147483648
  %101 = xla_tuple %v100
  %s102 = scalar_lea.vmem %s1, 96
  %103 = vst [vmem:[%s102] sm:$0xff] %v100
  %s104 = scalar_lea.vmem %s0, 104
  %v105 = vld [vmem:[%s104] sm:$0xff]
  %106 = xla_tuple %v105
  %107 = xla_tuple %106
  %v108 = vxor.u32 %v105, 2147483648
  %109 = xla_tuple %v108
  %s110 = scalar_lea.vmem %s1, 104
  %111 = vst [vmem:[%s110] sm:$0xff] %v108
  %s112 = scalar_lea.vmem %s0, 112
  %v113 = vld [vmem:[%s112] sm:$0xff]
  %114 = xla_tuple %v113
  %115 = xla_tuple %114
  %v116 = vxor.u32 %v113, 2147483648
  %117 = xla_tuple %v116
  %s118 = scalar_lea.vmem %s1, 112
  %119 = vst [vmem:[%s118] sm:$0xff] %v116
  %s120 = scalar_lea.vmem %s0, 120
  %v121 = vld [vmem:[%s120] sm:$0xff]
  %122 = xla_tuple %v121
  %123 = xla_tuple %122
  %v124 = vxor.u32 %v121, 2147483648
  %125 = xla_tuple %v124
  %s126 = scalar_lea.vmem %s1, 120
  %127 = vst [vmem:[%s126] sm:$0xff] %v124

// kernel: extractor_forward.2
$region0: #{extractor_forward.2}
  #allocation0 [shape = 'u32[]', space=smem, size = 0x4, offset = 0x4, fixed_abs, tag = 'smem constant byte address 0x4 - core index']
  #allocation1 [shape = 'u32[144,128]{1,0:T(1,128)}', space=vmem, size = 0x12000, scoped, tag = 'internal scratch']
  %s0 = inlined_call_operand.vmem [shape: f32[128,3], index: 0, kind: input, shape index: {}, may-alias: {0,1}]
  %s1 = inlined_call_operand.vmem [shape: f32[128,3], index: 1, kind: input, shape index: {}, may-alias: {0,1}]
  %s2 = inlined_call_operand.vmem [shape: f32[1,128], index: 2, kind: input, shape index: {}]
  %s3 = inlined_call_operand.vmem [shape: f32[128,128], index: 3, kind: output, shape index: {}]
  %s4 = sld [smem:[#allocation0]]
  $region22: #{extractor_forward.2} parent=0
    _
  %s6 = ssub.s32 1, %s4
  %s7 = scalar_select 0, %s6, %s4
  // Predicated region
  $region2: #{extractor_forward.2} parent=0 // pred_check
    _
  $region3: #{extractor_forward.2} parent=0 // pred_check_branch
    %9 = sbr.rel (0) target = $region5
  $region4: #{extractor_forward.2} parent=0 // pred_region
    _
  $region5: #{extractor_forward.2} parent=0 // pred_fallthru
    _
  // Predicated region
  $region6: #{extractor_forward.2} parent=0 // pred_check
    _
  $region7: #{extractor_forward.2} parent=0 // pred_check_branch
    %11 = sbr.rel (0) target = $region9
  $region8: #{extractor_forward.2} parent=0 // pred_region
    _
  $region9: #{extractor_forward.2} parent=0 // pred_fallthru
    _
  // Predicated region
  $region10: #{extractor_forward.2} parent=0 // pred_check
    _
  $region11: #{extractor_forward.2} parent=0 // pred_check_branch
    %13 = sbr.rel (0) target = $region13
  $region12: #{extractor_forward.2} parent=0 // pred_region
    _
  $region13: #{extractor_forward.2} parent=0 // pred_fallthru
    _
  %v14 = vld [vmem:[%s0] sm:$0xff]
  %v15 = vld [vmem:[%s0 + $0x8] sm:$0xff]
  %v16 = vld [vmem:[%s0 + $0x10] sm:$0xff]
  %v17 = vld [vmem:[%s0 + $0x18] sm:$0xff]
  %v18 = vld [vmem:[%s0 + $0x20] sm:$0xff]
  %v19 = vld [vmem:[%s0 + $0x28] sm:$0xff]
  %v20 = vld [vmem:[%s0 + $0x30] sm:$0xff]
  %v21 = vld [vmem:[%s0 + $0x38] sm:$0xff]
  %v22 = vld [vmem:[%s0 + $0x40] sm:$0xff]
  %v23 = vld [vmem:[%s0 + $0x48] sm:$0xff]
  %v24 = vld [vmem:[%s0 + $0x50] sm:$0xff]
  %v25 = vld [vmem:[%s0 + $0x58] sm:$0xff]
  %v26 = vld [vmem:[%s0 + $0x60] sm:$0xff]
  %v27 = vld [vmem:[%s0 + $0x68] sm:$0xff]
  %v28 = vld [vmem:[%s0 + $0x70] sm:$0xff]
  %v29 = vld [vmem:[%s0 + $0x78] sm:$0xff]
  %v30 = vld [vmem:[%s1] sm:$0xff]
  %v31 = vld [vmem:[%s1 + $0x8] sm:$0xff]
  %v32 = vld [vmem:[%s1 + $0x10] sm:$0xff]
  %v33 = vld [vmem:[%s1 + $0x18] sm:$0xff]
  %v34 = vld [vmem:[%s1 + $0x20] sm:$0xff]
  %v35 = vld [vmem:[%s1 + $0x28] sm:$0xff]
  %v36 = vld [vmem:[%s1 + $0x30] sm:$0xff]
  %v37 = vld [vmem:[%s1 + $0x38] sm:$0xff]
  %v38 = vld [vmem:[%s1 + $0x40] sm:$0xff]
  %v39 = vld [vmem:[%s1 + $0x48] sm:$0xff]
  %v40 = vld [vmem:[%s1 + $0x50] sm:$0xff]
  %v41 = vld [vmem:[%s1 + $0x58] sm:$0xff]
  %v42 = vld [vmem:[%s1 + $0x60] sm:$0xff]
  %v43 = vld [vmem:[%s1 + $0x68] sm:$0xff]
  %v44 = vld [vmem:[%s1 + $0x70] sm:$0xff]
  %v45 = vld [vmem:[%s1 + $0x78] sm:$0xff]
  %vm46 = vcmask 23552
  %v48 = vsel %vm46, %v14, 0
  %v51 = vsel %vm46, %v15, 0
  %v54 = vsel %vm46, %v16, 0
  %v57 = vsel %vm46, %v17, 0
  %v60 = vsel %vm46, %v18, 0
  %v63 = vsel %vm46, %v19, 0
  %v66 = vsel %vm46, %v20, 0
  %v69 = vsel %vm46, %v21, 0
  %v72 = vsel %vm46, %v22, 0
  %v75 = vsel %vm46, %v23, 0
  %v78 = vsel %vm46, %v24, 0
  %v81 = vsel %vm46, %v25, 0
  %v84 = vsel %vm46, %v26, 0
  %v87 = vsel %vm46, %v27, 0
  %v90 = vsel %vm46, %v28, 0
  %v93 = vsel %vm46, %v29, 0
  %v96 = vsel %vm46, %v30, 0
  %v99 = vsel %vm46, %v31, 0
  %v102 = vsel %vm46, %v32, 0
  %v105 = vsel %vm46, %v33, 0
  %v108 = vsel %vm46, %v34, 0
  %v111 = vsel %vm46, %v35, 0
  %v114 = vsel %vm46, %v36, 0
  %v117 = vsel %vm46, %v37, 0
  %v120 = vsel %vm46, %v38, 0
  %v123 = vsel %vm46, %v39, 0
  %v126 = vsel %vm46, %v40, 0
  %v129 = vsel %vm46, %v41, 0
  %v132 = vsel %vm46, %v42, 0
  %v135 = vsel %vm46, %v43, 0
  %v138 = vsel %vm46, %v44, 0
  %v141 = vsel %vm46, %v45, 0
  %143 = vmatprep.subr.mxu0 0.0
  %144 = vmatpush1.xpose.msra.mxu0 %v96
  %145 = vmatprep.subr.mxu0 0.0
  %146 = vmatpush1.xpose.msra.mxu0 %v99
  %147 = vmatprep.subr.mxu0 0.0
  %148 = vmatpush1.xpose.msra.mxu0 %v102
  %149 = vmatprep.subr.mxu0 0.0
  %150 = vmatpush1.xpose.msra.mxu0 %v105
  %151 = vmatprep.subr.mxu0 0.0
  %152 = vmatpush1.xpose.msra.mxu0 %v108
  %153 = vmatprep.subr.mxu0 0.0
  %154 = vmatpush1.xpose.msra.mxu0 %v111
  %155 = vmatprep.subr.mxu0 0.0
  %156 = vmatpush1.xpose.msra.mxu0 %v114
  %157 = vmatprep.subr.mxu0 0.0
  %158 = vmatpush1.xpose.msra.mxu0 %v117
  %159 = vmatprep.subr.mxu0 0.0
  %160 = vmatpush1.xpose.msra.mxu0 %v120
  %161 = vmatprep.subr.mxu0 0.0
  %162 = vmatpush1.xpose.msra.mxu0 %v123
  %163 = vmatprep.subr.mxu0 0.0
  %164 = vmatpush1.xpose.msra.mxu0 %v126
  %165 = vmatprep.subr.mxu0 0.0
  %166 = vmatpush1.xpose.msra.mxu0 %v129
  %167 = vmatprep.subr.mxu0 0.0
  %168 = vmatpush1.xpose.msra.mxu0 %v132
  %169 = vmatprep.subr.mxu0 0.0
  %170 = vmatpush1.xpose.msra.mxu0 %v135
  %171 = vmatprep.subr.mxu0 0.0
  %172 = vmatpush1.xpose.msra.mxu0 %v138
  %173 = vmatprep.subr.mxu0 0.0
  %174 = vmatpush1.xpose.msra.mxu0 %v141
  %175 = vmatprep.subr.mxu0 0.0
  %176 = vmatpush1.xpose.msra.mxu0 0.0
  %177 = vmatprep.subr.mxu0 0.0
  %178 = vmatpush1.xpose.msra.mxu0 0.0
  %179 = vmatprep.subr.mxu0 0.0
  %180 = vmatpush1.xpose.msra.mxu0 0.0
  %181 = vmatprep.subr.mxu0 0.0
  %182 = vmatpush1.xpose.msra.mxu0 0.0
  %183 = vmatprep.subr.mxu0 0.0
  %184 = vmatpush1.xpose.msra.mxu0 0.0
  %185 = vmatprep.subr.mxu0 0.0
  %186 = vmatpush1.xpose.msra.mxu0 0.0
  %187 = vmatprep.subr.mxu0 0.0
  %188 = vmatpush1.xpose.msra.mxu0 0.0
  %189 = vmatprep.subr.mxu0 0.0
  %190 = vmatpush1.xpose.msra.mxu0 0.0
  %191 = vmatprep.subr.mxu0 0.0
  %192 = vmatpush1.xpose.msra.mxu0 0.0
  %193 = vmatprep.subr.mxu0 0.0
  %194 = vmatpush1.xpose.msra.mxu0 0.0
  %195 = vmatprep.subr.mxu0 0.0
  %196 = vmatpush1.xpose.msra.mxu0 0.0
  %197 = vmatprep.subr.mxu0 0.0
  %198 = vmatpush1.xpose.msra.mxu0 0.0
  %199 = vmatprep.subr.mxu0 0.0
  %200 = vmatpush1.xpose.msra.mxu0 0.0
  %201 = vmatprep.subr.mxu0 0.0
  %202 = vmatpush1.xpose.msra.mxu0 0.0
  %203 = vmatprep.subr.mxu0 0.0
  %204 = vmatpush1.xpose.msra.mxu0 0.0
  %205 = vmatprep.subr.mxu0 0.0
  %206 = vmatpush1.xpose.msra.mxu0 0.0
  %207 = vmatprep.mubr.f32.mxu0 0.0
  %208 = vmatmul.mubr.f32.gmra.mrb[0].mxu0 %v48
  %v209 = vpop.f32.mrb[0].mxu0
  %v210 = vadd.f32 0.0, %v209
  %v211 = vpop.f32.mrb[0].mxu0
  %212 = vmatprep.mubr.f32.mxu0 0.0
  %213 = vmatmul.mubr.f32.gmra.mrb[0].mxu0 %v51
  %v214 = vpop.f32.mrb[0].mxu0
  %v215 = vadd.f32 0.0, %v214
  %v216 = vpop.f32.mrb[0].mxu0
  %217 = vmatprep.mubr.f32.mxu0 0.0
  %218 = vmatmul.mubr.f32.gmra.mrb[0].mxu0 %v54
  %v219 = vpop.f32.mrb[0].mxu0
  %v220 = vadd.f32 0.0, %v219
  %v221 = vpop.f32.mrb[0].mxu0
  %222 = vmatprep.mubr.f32.mxu0 0.0
  %223 = vmatmul.mubr.f32.gmra.mrb[0].mxu0 %v57
  %v224 = vpop.f32.mrb[0].mxu0
  %v225 = vadd.f32 0.0, %v224
  %v226 = vpop.f32.mrb[0].mxu0
  %227 = vmatprep.mubr.f32.mxu0 0.0
  %228 = vmatmul.mubr.f32.gmra.mrb[0].mxu0 %v60
  %v229 = vpop.f32.mrb[0].mxu0
  %v230 = vadd.f32 0.0, %v229
  %v231 = vpop.f32.mrb[0].mxu0
  %232 = vmatprep.mubr.f32.mxu0 0.0
  %233 = vmatmul.mubr.f32.gmra.mrb[0].mxu0 %v63
  %v234 = vpop.f32.mrb[0].mxu0
  %v235 = vadd.f32 0.0, %v234
  %v236 = vpop.f32.mrb[0].mxu0
  %237 = vmatprep.mubr.f32.mxu0 0.0
  %238 = vmatmul.mubr.f32.gmra.mrb[0].mxu0 %v66
  %v239 = vpop.f32.mrb[0].mxu0
  %v240 = vadd.f32 0.0, %v239
  %v241 = vpop.f32.mrb[0].mxu0
  %242 = vmatprep.mubr.f32.mxu0 0.0
  %243 = vmatmul.mubr.f32.gmra.mrb[0].mxu0 %v69
  %v244 = vpop.f32.mrb[0].mxu0
  %v245 = vadd.f32 0.0, %v244
  %v246 = vpop.f32.mrb[0].mxu0
  %247 = vmatprep.mubr.f32.mxu0 0.0
  %248 = vmatmul.mubr.f32.gmra.mrb[0].mxu0 %v72
  %v249 = vpop.f32.mrb[0].mxu0
  %v250 = vadd.f32 0.0, %v249
  %v251 = vpop.f32.mrb[0].mxu0
  %252 = vmatprep.mubr.f32.mxu0 0.0
  %253 = vmatmul.mubr.f32.gmra.mrb[0].mxu0 %v75
  %v254 = vpop.f32.mrb[0].mxu0
  %v255 = vadd.f32 0.0, %v254
  %v256 = vpop.f32.mrb[0].mxu0
  %257 = vmatprep.mubr.f32.mxu0 0.0
  %258 = vmatmul.mubr.f32.gmra.mrb[0].mxu0 %v78
  %v259 = vpop.f32.mrb[0].mxu0
  %v260 = vadd.f32 0.0, %v259
  %v261 = vpop.f32.mrb[0].mxu0
  %262 = vmatprep.mubr.f32.mxu0 0.0
  %263 = vmatmul.mubr.f32.gmra.mrb[0].mxu0 %v81
  %v264 = vpop.f32.mrb[0].mxu0
  %v265 = vadd.f32 0.0, %v264
  %v266 = vpop.f32.mrb[0].mxu0
  %267 = vmatprep.mubr.f32.mxu0 0.0
  %268 = vmatmul.mubr.f32.gmra.mrb[0].mxu0 %v84
  %v269 = vpop.f32.mrb[0].mxu0
  %v270 = vadd.f32 0.0, %v269
  %v271 = vpop.f32.mrb[0].mxu0
  %272 = vmatprep.mubr.f32.mxu0 0.0
  %273 = vmatmul.mubr.f32.gmra.mrb[0].mxu0 %v87
  %v274 = vpop.f32.mrb[0].mxu0
  %v275 = vadd.f32 0.0, %v274
  %v276 = vpop.f32.mrb[0].mxu0
  %277 = vmatprep.mubr.f32.mxu0 0.0
  %278 = vmatmul.mubr.f32.gmra.mrb[0].mxu0 %v90
  %v279 = vpop.f32.mrb[0].mxu0
  %v280 = vadd.f32 0.0, %v279
  %v281 = vpop.f32.mrb[0].mxu0
  %282 = vmatprep.mubr.f32.mxu0 0.0
  %283 = vmatmul.mubr.f32.gmra.mrb[0].mxu0 %v93
  %v284 = vpop.f32.mrb[0].mxu0
  %v285 = vadd.f32 0.0, %v284
  %v286 = vpop.f32.mrb[0].mxu0
  %287 = vdwg.mxu0
  %v288 = vmul.f32 %v14, %v14
  %v289 = vmul.f32 %v15, %v15
  %v290 = vmul.f32 %v16, %v16
  %v291 = vmul.f32 %v17, %v17
  %v292 = vmul.f32 %v18, %v18
  %v293 = vmul.f32 %v19, %v19
  %v294 = vmul.f32 %v20, %v20
  %v295 = vmul.f32 %v21, %v21
  %v296 = vmul.f32 %v22, %v22
  %v297 = vmul.f32 %v23, %v23
  %v298 = vmul.f32 %v24, %v24
  %v299 = vmul.f32 %v25, %v25
  %v300 = vmul.f32 %v26, %v26
  %v301 = vmul.f32 %v27, %v27
  %v302 = vmul.f32 %v28, %v28
  %v303 = vmul.f32 %v29, %v29
  %v304 = vsel %vm46, %v288, 0.0
  %305 = vadd.xlane.f32.xlu0 %v304
  %v306 = vpop.xlane.xlu0 %305
  %v307 = vsel %vm46, %v289, 0.0
  %308 = vadd.xlane.f32.xlu0 %v307
  %v309 = vpop.xlane.xlu0 %308
  %v310 = vsel %vm46, %v290, 0.0
  %311 = vadd.xlane.f32.xlu0 %v310
  %v312 = vpop.xlane.xlu0 %311
  %v313 = vsel %vm46, %v291, 0.0
  %314 = vadd.xlane.f32.xlu0 %v313
  %v315 = vpop.xlane.xlu0 %314
  %v316 = vsel %vm46, %v292, 0.0
  %317 = vadd.xlane.f32.xlu0 %v316
  %v318 = vpop.xlane.xlu0 %317
  %v319 = vsel %vm46, %v293, 0.0
  %320 = vadd.xlane.f32.xlu0 %v319
  %v321 = vpop.xlane.xlu0 %320
  %v322 = vsel %vm46, %v294, 0.0
  %323 = vadd.xlane.f32.xlu0 %v322
  %v324 = vpop.xlane.xlu0 %323
  %v325 = vsel %vm46, %v295, 0.0
  %326 = vadd.xlane.f32.xlu0 %v325
  %v327 = vpop.xlane.xlu0 %326
  %v328 = vsel %vm46, %v296, 0.0
  %329 = vadd.xlane.f32.xlu0 %v328
  %v330 = vpop.xlane.xlu0 %329
  %v331 = vsel %vm46, %v297, 0.0
  %332 = vadd.xlane.f32.xlu0 %v331
  %v333 = vpop.xlane.xlu0 %332
  %v334 = vsel %vm46, %v298, 0.0
  %335 = vadd.xlane.f32.xlu0 %v334
  %v336 = vpop.xlane.xlu0 %335
  %v337 = vsel %vm46, %v299, 0.0
  %338 = vadd.xlane.f32.xlu0 %v337
  %v339 = vpop.xlane.xlu0 %338
  %v340 = vsel %vm46, %v300, 0.0
  %341 = vadd.xlane.f32.xlu0 %v340
  %v342 = vpop.xlane.xlu0 %341
  %v343 = vsel %vm46, %v301, 0.0
  %344 = vadd.xlane.f32.xlu0 %v343
  %v345 = vpop.xlane.xlu0 %344
  %v346 = vsel %vm46, %v302, 0.0
  %347 = vadd.xlane.f32.xlu0 %v346
  %v348 = vpop.xlane.xlu0 %347
  %v349 = vsel %vm46, %v303, 0.0
  %350 = vadd.xlane.f32.xlu0 %v349
  %v351 = vpop.xlane.xlu0 %350
  %v352 = vld [vmem:[%s2] sm:$0x1]
  %v354 = vlaneseq
  %v355 = vshrl.u32 %v354, 7
  %v356 = vsub.s32 0, %v355
  %v357 = vrot.slane %v352, %v356
  %v359 = vadd.f32 %v306, %v357
  %v360 = vadd.f32 %v309, %v357
  %v361 = vadd.f32 %v312, %v357
  %v362 = vadd.f32 %v315, %v357
  %v363 = vadd.f32 %v318, %v357
  %v364 = vadd.f32 %v321, %v357
  %v365 = vadd.f32 %v324, %v357
  %v366 = vadd.f32 %v327, %v357
  %v367 = vadd.f32 %v330, %v357
  %v368 = vadd.f32 %v333, %v357
  %v369 = vadd.f32 %v336, %v357
  %v370 = vadd.f32 %v339, %v357
  %v371 = vadd.f32 %v342, %v357
  %v372 = vadd.f32 %v345, %v357
  %v373 = vadd.f32 %v348, %v357
  %v374 = vadd.f32 %v351, %v357
  %v375 = vmul.f32 %v210, 2.0
  %v376 = vmul.f32 %v215, 2.0
  %v377 = vmul.f32 %v220, 2.0
  %v378 = vmul.f32 %v225, 2.0
  %v379 = vmul.f32 %v230, 2.0
  %v380 = vmul.f32 %v235, 2.0
  %v381 = vmul.f32 %v240, 2.0
  %v382 = vmul.f32 %v245, 2.0
  %v383 = vmul.f32 %v250, 2.0
  %v384 = vmul.f32 %v255, 2.0
  %v385 = vmul.f32 %v260, 2.0
  %v386 = vmul.f32 %v265, 2.0
  %v387 = vmul.f32 %v270, 2.0
  %v388 = vmul.f32 %v275, 2.0
  %v389 = vmul.f32 %v280, 2.0
  %v390 = vmul.f32 %v285, 2.0
  %v391 = vsub.f32 %v359, %v375
  %v392 = vsub.f32 %v360, %v376
  %v393 = vsub.f32 %v361, %v377
  %v394 = vsub.f32 %v362, %v378
  %v395 = vsub.f32 %v363, %v379
  %v396 = vsub.f32 %v364, %v380
  %v397 = vsub.f32 %v365, %v381
  %v398 = vsub.f32 %v366, %v382
  %v399 = vsub.f32 %v367, %v383
  %v400 = vsub.f32 %v368, %v384
  %v401 = vsub.f32 %v369, %v385
  %v402 = vsub.f32 %v370, %v386
  %v403 = vsub.f32 %v371, %v387
  %v404 = vsub.f32 %v372, %v388
  %v405 = vsub.f32 %v373, %v389
  %v406 = vsub.f32 %v374, %v390
  %v407 = vlaneseq
  %v408 = vshrl.u32 %v407, 7
  %v409 = vadd.s32 %v408, 8
  %v410 = vadd.s32 %v408, 16
  %v411 = vadd.s32 %v408, 24
  %v412 = vadd.s32 %v408, 32
  %v413 = vadd.s32 %v408, 40
  %v414 = vadd.s32 %v408, 48
  %v415 = vadd.s32 %v408, 56
  %v416 = vadd.s32 %v408, 64
  %v417 = vadd.s32 %v408, 72
  %v418 = vadd.s32 %v408, 80
  %v419 = vadd.s32 %v408, 88
  %v420 = vadd.s32 %v408, 96
  %v421 = vadd.s32 %v408, 104
  %v422 = vadd.s32 %v408, 112
  %v423 = vadd.s32 %v408, 120
  %s424 = smul.u32 0, 128
  %v425 = vstv %s424
  %v426 = vadd.s32 %v408, %v425
  %v427 = vadd.s32 %v409, %v425
  %v428 = vadd.s32 %v410, %v425
  %v429 = vadd.s32 %v411, %v425
  %v430 = vadd.s32 %v412, %v425
  %v431 = vadd.s32 %v413, %v425
  %v432 = vadd.s32 %v414, %v425
  %v433 = vadd.s32 %v415, %v425
  %v434 = vadd.s32 %v416, %v425
  %v435 = vadd.s32 %v417, %v425
  %v436 = vadd.s32 %v418, %v425
  %v437 = vadd.s32 %v419, %v425
  %v438 = vadd.s32 %v420, %v425
  %v439 = vadd.s32 %v421, %v425
  %v440 = vadd.s32 %v422, %v425
  %v441 = vadd.s32 %v423, %v425
  %v442 = vlaneseq
  %v443 = vand.u32 %v442, 127
  %vm444 = vcmp.eq.s32.totalorder %v426, %v443
  %vm445 = vcmp.eq.s32.totalorder %v427, %v443
  %vm446 = vcmp.eq.s32.totalorder %v428, %v443
  %vm447 = vcmp.eq.s32.totalorder %v429, %v443
  %vm448 = vcmp.eq.s32.totalorder %v430, %v443
  %vm449 = vcmp.eq.s32.totalorder %v431, %v443
  %vm450 = vcmp.eq.s32.totalorder %v432, %v443
  %vm451 = vcmp.eq.s32.totalorder %v433, %v443
  %vm452 = vcmp.eq.s32.totalorder %v434, %v443
  %vm453 = vcmp.eq.s32.totalorder %v435, %v443
  %vm454 = vcmp.eq.s32.totalorder %v436, %v443
  %vm455 = vcmp.eq.s32.totalorder %v437, %v443
  %vm456 = vcmp.eq.s32.totalorder %v438, %v443
  %vm457 = vcmp.eq.s32.totalorder %v439, %v443
  %vm458 = vcmp.eq.s32.totalorder %v440, %v443
  %vm459 = vcmp.eq.s32.totalorder %v441, %v443
  %v460 = vsel %vm444, inf, %v391
  %v461 = vsel %vm445, inf, %v392
  %v462 = vsel %vm446, inf, %v393
  %v463 = vsel %vm447, inf, %v394
  %v464 = vsel %vm448, inf, %v395
  %v465 = vsel %vm449, inf, %v396
  %v466 = vsel %vm450, inf, %v397
  %v467 = vsel %vm451, inf, %v398
  %v468 = vsel %vm452, inf, %v399
  %v469 = vsel %vm453, inf, %v400
  %v470 = vsel %vm454, inf, %v401
  %v471 = vsel %vm455, inf, %v402
  %v472 = vsel %vm456, inf, %v403
  %v473 = vsel %vm457, inf, %v404
  %v474 = vsel %vm458, inf, %v405
  %v475 = vsel %vm459, inf, %v406
  %476 = vst [vmem:[%s3] sm:$0xff] %v460
  %477 = vst [vmem:[%s3 + $0x8] sm:$0xff] %v461
  %478 = vst [vmem:[%s3 + $0x10] sm:$0xff] %v462
  %479 = vst [vmem:[%s3 + $0x18] sm:$0xff] %v463
  %480 = vst [vmem:[%s3 + $0x20] sm:$0xff] %v464
  %481 = vst [vmem:[%s3 + $0x28] sm:$0xff] %v465
  %482 = vst [vmem:[%s3 + $0x30] sm:$0xff] %v466
  %483 = vst [vmem:[%s3 + $0x38] sm:$0xff] %v467
  %484 = vst [vmem:[%s3 + $0x40] sm:$0xff] %v468
  %485 = vst [vmem:[%s3 + $0x48] sm:$0xff] %v469
  %486 = vst [vmem:[%s3 + $0x50] sm:$0xff] %v470
  %487 = vst [vmem:[%s3 + $0x58] sm:$0xff] %v471
  %488 = vst [vmem:[%s3 + $0x60] sm:$0xff] %v472
  %489 = vst [vmem:[%s3 + $0x68] sm:$0xff] %v473
  %490 = vst [vmem:[%s3 + $0x70] sm:$0xff] %v474
  %491 = vst [vmem:[%s3 + $0x78] sm:$0xff] %v475
  // Predicated region
  $region14: #{extractor_forward.2} parent=0 // pred_check
    _
  $region15: #{extractor_forward.2} parent=0 // pred_check_branch
    %493 = sbr.rel (0) target = $region17
  $region16: #{extractor_forward.2} parent=0 // pred_region
    _
  $region17: #{extractor_forward.2} parent=0 // pred_fallthru
    _
  // Predicated region
  $region18: #{extractor_forward.2} parent=0 // pred_check
    _
  $region19: #{extractor_forward.2} parent=0 // pred_check_branch
    %495 = sbr.rel (0) target = $region21
  $region20: #{extractor_forward.2} parent=0 // pred_region
    _
  $region21: #{extractor_forward.2} parent=0 // pred_fallthru
    _

// kernel: extractor_forward.3
$region0: #{extractor_forward.3}
  #allocation0 [shape = 'u32[]', space=smem, size = 0x4, offset = 0x4, fixed_abs, tag = 'smem constant byte address 0x4 - core index']
  #allocation1 [shape = 'u32[144,128]{1,0:T(1,128)}', space=vmem, size = 0x12000, scoped, tag = 'internal scratch']
  %s0 = inlined_call_operand.vmem [shape: f32[128,3], index: 0, kind: input, shape index: {}]
  %s1 = inlined_call_operand.vmem [shape: s32[1024,1], index: 1, kind: input, shape index: {}]
  %s2 = inlined_call_operand.vmem [shape: bf16[3,64], index: 2, kind: input, shape index: {}]
  %s3 = inlined_call_operand.vmem [shape: f32[1,32], index: 3, kind: input, shape index: {}]
  %s4 = inlined_call_operand.vmem [shape: bf16[2,32,256], index: 4, kind: input, shape index: {}]
  %s5 = inlined_call_operand.vmem [shape: bf16[3,512], index: 5, kind: input, shape index: {}]
  %s6 = inlined_call_operand.vmem [shape: f32[4,32], index: 6, kind: input, shape index: {}]
  %s7 = inlined_call_operand.vmem [shape: f32[128,32], index: 7, kind: output, shape index: {}]
  %s8 = sld [smem:[#allocation0]]
  $region38: #{extractor_forward.3} parent=0
    _
  %s10 = ssub.s32 1, %s8
  %s11 = scalar_select 0, %s10, %s8
  // Predicated region
  $region2: #{extractor_forward.3} parent=0 // pred_check
    _
  $region3: #{extractor_forward.3} parent=0 // pred_check_branch
    %13 = sbr.rel (0) target = $region5
  $region4: #{extractor_forward.3} parent=0 // pred_region
    _
  $region5: #{extractor_forward.3} parent=0 // pred_fallthru
    _
  // Predicated region
  $region6: #{extractor_forward.3} parent=0 // pred_check
    _
  $region7: #{extractor_forward.3} parent=0 // pred_check_branch
    %15 = sbr.rel (0) target = $region9
  $region8: #{extractor_forward.3} parent=0 // pred_region
    _
  $region9: #{extractor_forward.3} parent=0 // pred_fallthru
    _
  // Predicated region
  $region10: #{extractor_forward.3} parent=0 // pred_check
    _
  $region11: #{extractor_forward.3} parent=0 // pred_check_branch
    %17 = sbr.rel (0) target = $region13
  $region12: #{extractor_forward.3} parent=0 // pred_region
    _
  $region13: #{extractor_forward.3} parent=0 // pred_fallthru
    _
  // Predicated region
  $region14: #{extractor_forward.3} parent=0 // pred_check
    _
  $region15: #{extractor_forward.3} parent=0 // pred_check_branch
    %19 = sbr.rel (0) target = $region17
  $region16: #{extractor_forward.3} parent=0 // pred_region
    _
  $region17: #{extractor_forward.3} parent=0 // pred_fallthru
    _
  // Predicated region
  $region18: #{extractor_forward.3} parent=0 // pred_check
    _
  $region19: #{extractor_forward.3} parent=0 // pred_check_branch
    %21 = sbr.rel (0) target = $region21
  $region20: #{extractor_forward.3} parent=0 // pred_region
    _
  $region21: #{extractor_forward.3} parent=0 // pred_fallthru
    _
  // Predicated region
  $region22: #{extractor_forward.3} parent=0 // pred_check
    _
  $region23: #{extractor_forward.3} parent=0 // pred_check_branch
    %23 = sbr.rel (0) target = $region25
  $region24: #{extractor_forward.3} parent=0 // pred_region
    _
  $region25: #{extractor_forward.3} parent=0 // pred_fallthru
    _
  // Predicated region
  $region26: #{extractor_forward.3} parent=0 // pred_check
    _
  $region27: #{extractor_forward.3} parent=0 // pred_check_branch
    %25 = sbr.rel (0) target = $region29
  $region28: #{extractor_forward.3} parent=0 // pred_region
    _
  $region29: #{extractor_forward.3} parent=0 // pred_fallthru
    _
  %v27 = vld [vmem:[%s0] sm:$0xff]
  %v28 = vld [vmem:[%s0 + $0x8] sm:$0xff]
  %v29 = vld [vmem:[%s0 + $0x10] sm:$0xff]
  %v30 = vld [vmem:[%s0 + $0x18] sm:$0xff]
  %v31 = vld [vmem:[%s0 + $0x20] sm:$0xff]
  %v32 = vld [vmem:[%s0 + $0x28] sm:$0xff]
  %v33 = vld [vmem:[%s0 + $0x30] sm:$0xff]
  %v34 = vld [vmem:[%s0 + $0x38] sm:$0xff]
  %v35 = vld [vmem:[%s0 + $0x40] sm:$0xff]
  %v36 = vld [vmem:[%s0 + $0x48] sm:$0xff]
  %v37 = vld [vmem:[%s0 + $0x50] sm:$0xff]
  %v38 = vld [vmem:[%s0 + $0x58] sm:$0xff]
  %v39 = vld [vmem:[%s0 + $0x60] sm:$0xff]
  %v40 = vld [vmem:[%s0 + $0x68] sm:$0xff]
  %v41 = vld [vmem:[%s0 + $0x70] sm:$0xff]
  %v42 = vld [vmem:[%s0 + $0x78] sm:$0xff]
  %v43 = vpack.c.bf16 %v28, %v27
  %v44 = vpack.c.bf16 %v30, %v29
  %v45 = vpack.c.bf16 %v32, %v31
  %v46 = vpack.c.bf16 %v34, %v33
  %v47 = vpack.c.bf16 %v36, %v35
  %v48 = vpack.c.bf16 %v38, %v37
  %v49 = vpack.c.bf16 %v40, %v39
  %v50 = vpack.c.bf16 %v42, %v41
  %v51 = vlaneseq
  %v52 = vand.u32 %v51, 127
  %v53 = vld [vmem:[%s1] sm:$0xff]
  %v54 = vld [vmem:[%s1 + $0x8] sm:$0xff]
  %v55 = vld [vmem:[%s1 + $0x10] sm:$0xff]
  %v56 = vld [vmem:[%s1 + $0x18] sm:$0xff]
  %v57 = vld [vmem:[%s1 + $0x20] sm:$0xff]
  %v58 = vld [vmem:[%s1 + $0x28] sm:$0xff]
  %v59 = vld [vmem:[%s1 + $0x30] sm:$0xff]
  %v60 = vld [vmem:[%s1 + $0x38] sm:$0xff]
  %v61 = vld [vmem:[%s1 + $0x40] sm:$0xff]
  %v62 = vld [vmem:[%s1 + $0x48] sm:$0xff]
  %v63 = vld [vmem:[%s1 + $0x50] sm:$0xff]
  %v64 = vld [vmem:[%s1 + $0x58] sm:$0xff]
  %v65 = vld [vmem:[%s1 + $0x60] sm:$0xff]
  %v66 = vld [vmem:[%s1 + $0x68] sm:$0xff]
  %v67 = vld [vmem:[%s1 + $0x70] sm:$0xff]
  %v68 = vld [vmem:[%s1 + $0x78] sm:$0xff]
  %v69 = vld [vmem:[%s1 + $0x80] sm:$0xff]
  %v70 = vld [vmem:[%s1 + $0x88] sm:$0xff]
  %v71 = vld [vmem:[%s1 + $0x90] sm:$0xff]
  %v72 = vld [vmem:[%s1 + $0x98] sm:$0xff]
  %v73 = vld [vmem:[%s1 + $0xa0] sm:$0xff]
  %v74 = vld [vmem:[%s1 + $0xa8] sm:$0xff]
  %v75 = vld [vmem:[%s1 + $0xb0] sm:$0xff]
  %v76 = vld [vmem:[%s1 + $0xb8] sm:$0xff]
  %v77 = vld [vmem:[%s1 + $0xc0] sm:$0xff]
  %v78 = vld [vmem:[%s1 + $0xc8] sm:$0xff]
  %v79 = vld [vmem:[%s1 + $0xd0] sm:$0xff]
  %v80 = vld [vmem:[%s1 + $0xd8] sm:$0xff]
  %v81 = vld [vmem:[%s1 + $0xe0] sm:$0xff]
  %v82 = vld [vmem:[%s1 + $0xe8] sm:$0xff]
  %v83 = vld [vmem:[%s1 + $0xf0] sm:$0xff]
  %v84 = vld [vmem:[%s1 + $0xf8] sm:$0xff]
  %v85 = vld [vmem:[%s1 + $0x100] sm:$0xff]
  %v86 = vld [vmem:[%s1 + $0x108] sm:$0xff]
  %v87 = vld [vmem:[%s1 + $0x110] sm:$0xff]
  %v88 = vld [vmem:[%s1 + $0x118] sm:$0xff]
  %v89 = vld [vmem:[%s1 + $0x120] sm:$0xff]
  %v90 = vld [vmem:[%s1 + $0x128] sm:$0xff]
  %v91 = vld [vmem:[%s1 + $0x130] sm:$0xff]
  %v92 = vld [vmem:[%s1 + $0x138] sm:$0xff]
  %v93 = vld [vmem:[%s1 + $0x140] sm:$0xff]
  %v94 = vld [vmem:[%s1 + $0x148] sm:$0xff]
  %v95 = vld [vmem:[%s1 + $0x150] sm:$0xff]
  %v96 = vld [vmem:[%s1 + $0x158] sm:$0xff]
  %v97 = vld [vmem:[%s1 + $0x160] sm:$0xff]
  %v98 = vld [vmem:[%s1 + $0x168] sm:$0xff]
  %v99 = vld [vmem:[%s1 + $0x170] sm:$0xff]
  %v100 = vld [vmem:[%s1 + $0x178] sm:$0xff]
  %v101 = vld [vmem:[%s1 + $0x180] sm:$0xff]
  %v102 = vld [vmem:[%s1 + $0x188] sm:$0xff]
  %v103 = vld [vmem:[%s1 + $0x190] sm:$0xff]
  %v104 = vld [vmem:[%s1 + $0x198] sm:$0xff]
  %v105 = vld [vmem:[%s1 + $0x1a0] sm:$0xff]
  %v106 = vld [vmem:[%s1 + $0x1a8] sm:$0xff]
  %v107 = vld [vmem:[%s1 + $0x1b0] sm:$0xff]
  %v108 = vld [vmem:[%s1 + $0x1b8] sm:$0xff]
  %v109 = vld [vmem:[%s1 + $0x1c0] sm:$0xff]
  %v110 = vld [vmem:[%s1 + $0x1c8] sm:$0xff]
  %v111 = vld [vmem:[%s1 + $0x1d0] sm:$0xff]
  %v112 = vld [vmem:[%s1 + $0x1d8] sm:$0xff]
  %v113 = vld [vmem:[%s1 + $0x1e0] sm:$0xff]
  %v114 = vld [vmem:[%s1 + $0x1e8] sm:$0xff]
  %v115 = vld [vmem:[%s1 + $0x1f0] sm:$0xff]
  %v116 = vld [vmem:[%s1 + $0x1f8] sm:$0xff]
  %v117 = vld [vmem:[%s1 + $0x200] sm:$0xff]
  %v118 = vld [vmem:[%s1 + $0x208] sm:$0xff]
  %v119 = vld [vmem:[%s1 + $0x210] sm:$0xff]
  %v120 = vld [vmem:[%s1 + $0x218] sm:$0xff]
  %v121 = vld [vmem:[%s1 + $0x220] sm:$0xff]
  %v122 = vld [vmem:[%s1 + $0x228] sm:$0xff]
  %v123 = vld [vmem:[%s1 + $0x230] sm:$0xff]
  %v124 = vld [vmem:[%s1 + $0x238] sm:$0xff]
  %v125 = vld [vmem:[%s1 + $0x240] sm:$0xff]
  %v126 = vld [vmem:[%s1 + $0x248] sm:$0xff]
  %v127 = vld [vmem:[%s1 + $0x250] sm:$0xff]
  %v128 = vld [vmem:[%s1 + $0x258] sm:$0xff]
  %v129 = vld [vmem:[%s1 + $0x260] sm:$0xff]
  %v130 = vld [vmem:[%s1 + $0x268] sm:$0xff]
  %v131 = vld [vmem:[%s1 + $0x270] sm:$0xff]
  %v132 = vld [vmem:[%s1 + $0x278] sm:$0xff]
  %v133 = vld [vmem:[%s1 + $0x280] sm:$0xff]
  %v134 = vld [vmem:[%s1 + $0x288] sm:$0xff]
  %v135 = vld [vmem:[%s1 + $0x290] sm:$0xff]
  %v136 = vld [vmem:[%s1 + $0x298] sm:$0xff]
  %v137 = vld [vmem:[%s1 + $0x2a0] sm:$0xff]
  %v138 = vld [vmem:[%s1 + $0x2a8] sm:$0xff]
  %v139 = vld [vmem:[%s1 + $0x2b0] sm:$0xff]
  %v140 = vld [vmem:[%s1 + $0x2b8] sm:$0xff]
  %v141 = vld [vmem:[%s1 + $0x2c0] sm:$0xff]
  %v142 = vld [vmem:[%s1 + $0x2c8] sm:$0xff]
  %v143 = vld [vmem:[%s1 + $0x2d0] sm:$0xff]
  %v144 = vld [vmem:[%s1 + $0x2d8] sm:$0xff]
  %v145 = vld [vmem:[%s1 + $0x2e0] sm:$0xff]
  %v146 = vld [vmem:[%s1 + $0x2e8] sm:$0xff]
  %v147 = vld [vmem:[%s1 + $0x2f0] sm:$0xff]
  %v148 = vld [vmem:[%s1 + $0x2f8] sm:$0xff]
  %v149 = vld [vmem:[%s1 + $0x300] sm:$0xff]
  %v150 = vld [vmem:[%s1 + $0x308] sm:$0xff]
  %v151 = vld [vmem:[%s1 + $0x310] sm:$0xff]
  %v152 = vld [vmem:[%s1 + $0x318] sm:$0xff]
  %v153 = vld [vmem:[%s1 + $0x320] sm:$0xff]
  %v154 = vld [vmem:[%s1 + $0x328] sm:$0xff]
  %v155 = vld [vmem:[%s1 + $0x330] sm:$0xff]
  %v156 = vld [vmem:[%s1 + $0x338] sm:$0xff]
  %v157 = vld [vmem:[%s1 + $0x340] sm:$0xff]
  %v158 = vld [vmem:[%s1 + $0x348] sm:$0xff]
  %v159 = vld [vmem:[%s1 + $0x350] sm:$0xff]
  %v160 = vld [vmem:[%s1 + $0x358] sm:$0xff]
  %v161 = vld [vmem:[%s1 + $0x360] sm:$0xff]
  %v162 = vld [vmem:[%s1 + $0x368] sm:$0xff]
  %v163 = vld [vmem:[%s1 + $0x370] sm:$0xff]
  %v164 = vld [vmem:[%s1 + $0x378] sm:$0xff]
  %v165 = vld [vmem:[%s1 + $0x380] sm:$0xff]
  %v166 = vld [vmem:[%s1 + $0x388] sm:$0xff]
  %v167 = vld [vmem:[%s1 + $0x390] sm:$0xff]
  %v168 = vld [vmem:[%s1 + $0x398] sm:$0xff]
  %v169 = vld [vmem:[%s1 + $0x3a0] sm:$0xff]
  %v170 = vld [vmem:[%s1 + $0x3a8] sm:$0xff]
  %v171 = vld [vmem:[%s1 + $0x3b0] sm:$0xff]
  %v172 = vld [vmem:[%s1 + $0x3b8] sm:$0xff]
  %v173 = vld [vmem:[%s1 + $0x3c0] sm:$0xff]
  %v174 = vld [vmem:[%s1 + $0x3c8] sm:$0xff]
  %v175 = vld [vmem:[%s1 + $0x3d0] sm:$0xff]
  %v176 = vld [vmem:[%s1 + $0x3d8] sm:$0xff]
  %v177 = vld [vmem:[%s1 + $0x3e0] sm:$0xff]
  %v178 = vld [vmem:[%s1 + $0x3e8] sm:$0xff]
  %v179 = vld [vmem:[%s1 + $0x3f0] sm:$0xff]
  %v180 = vld [vmem:[%s1 + $0x3f8] sm:$0xff]
  %181 = vset.pattern.permute.xlu0 0
  %182 = vperm.xlu0 %181, %v53
  %v183 = vpop.permute.xlu0 %182
  %184 = vset.pattern.permute.xlu0 0
  %185 = vperm.xlu0 %184, %v54
  %v186 = vpop.permute.xlu0 %185
  %187 = vset.pattern.permute.xlu0 0
  %188 = vperm.xlu0 %187, %v55
  %v189 = vpop.permute.xlu0 %188
  %190 = vset.pattern.permute.xlu0 0
  %191 = vperm.xlu0 %190, %v56
  %v192 = vpop.permute.xlu0 %191
  %193 = vset.pattern.permute.xlu0 0
  %194 = vperm.xlu0 %193, %v57
  %v195 = vpop.permute.xlu0 %194
  %196 = vset.pattern.permute.xlu0 0
  %197 = vperm.xlu0 %196, %v58
  %v198 = vpop.permute.xlu0 %197
  %199 = vset.pattern.permute.xlu0 0
  %200 = vperm.xlu0 %199, %v59
  %v201 = vpop.permute.xlu0 %200
  %202 = vset.pattern.permute.xlu0 0
  %203 = vperm.xlu0 %202, %v60
  %v204 = vpop.permute.xlu0 %203
  %205 = vset.pattern.permute.xlu0 0
  %206 = vperm.xlu0 %205, %v61
  %v207 = vpop.permute.xlu0 %206
  %208 = vset.pattern.permute.xlu0 0
  %209 = vperm.xlu0 %208, %v62
  %v210 = vpop.permute.xlu0 %209
  %211 = vset.pattern.permute.xlu0 0
  %212 = vperm.xlu0 %211, %v63
  %v213 = vpop.permute.xlu0 %212
  %214 = vset.pattern.permute.xlu0 0
  %215 = vperm.xlu0 %214, %v64
  %v216 = vpop.permute.xlu0 %215
  %217 = vset.pattern.permute.xlu0 0
  %218 = vperm.xlu0 %217, %v65
  %v219 = vpop.permute.xlu0 %218
  %220 = vset.pattern.permute.xlu0 0
  %221 = vperm.xlu0 %220, %v66
  %v222 = vpop.permute.xlu0 %221
  %223 = vset.pattern.permute.xlu0 0
  %224 = vperm.xlu0 %223, %v67
  %v225 = vpop.permute.xlu0 %224
  %226 = vset.pattern.permute.xlu0 0
  %227 = vperm.xlu0 %226, %v68
  %v228 = vpop.permute.xlu0 %227
  %229 = vset.pattern.permute.xlu0 0
  %230 = vperm.xlu0 %229, %v69
  %v231 = vpop.permute.xlu0 %230
  %232 = vset.pattern.permute.xlu0 0
  %233 = vperm.xlu0 %232, %v70
  %v234 = vpop.permute.xlu0 %233
  %235 = vset.pattern.permute.xlu0 0
  %236 = vperm.xlu0 %235, %v71
  %v237 = vpop.permute.xlu0 %236
  %238 = vset.pattern.permute.xlu0 0
  %239 = vperm.xlu0 %238, %v72
  %v240 = vpop.permute.xlu0 %239
  %241 = vset.pattern.permute.xlu0 0
  %242 = vperm.xlu0 %241, %v73
  %v243 = vpop.permute.xlu0 %242
  %244 = vset.pattern.permute.xlu0 0
  %245 = vperm.xlu0 %244, %v74
  %v246 = vpop.permute.xlu0 %245
  %247 = vset.pattern.permute.xlu0 0
  %248 = vperm.xlu0 %247, %v75
  %v249 = vpop.permute.xlu0 %248
  %250 = vset.pattern.permute.xlu0 0
  %251 = vperm.xlu0 %250, %v76
  %v252 = vpop.permute.xlu0 %251
  %253 = vset.pattern.permute.xlu0 0
  %254 = vperm.xlu0 %253, %v77
  %v255 = vpop.permute.xlu0 %254
  %256 = vset.pattern.permute.xlu0 0
  %257 = vperm.xlu0 %256, %v78
  %v258 = vpop.permute.xlu0 %257
  %259 = vset.pattern.permute.xlu0 0
  %260 = vperm.xlu0 %259, %v79
  %v261 = vpop.permute.xlu0 %260
  %262 = vset.pattern.permute.xlu0 0
  %263 = vperm.xlu0 %262, %v80
  %v264 = vpop.permute.xlu0 %263
  %265 = vset.pattern.permute.xlu0 0
  %266 = vperm.xlu0 %265, %v81
  %v267 = vpop.permute.xlu0 %266
  %268 = vset.pattern.permute.xlu0 0
  %269 = vperm.xlu0 %268, %v82
  %v270 = vpop.permute.xlu0 %269
  %271 = vset.pattern.permute.xlu0 0
  %272 = vperm.xlu0 %271, %v83
  %v273 = vpop.permute.xlu0 %272
  %274 = vset.pattern.permute.xlu0 0
  %275 = vperm.xlu0 %274, %v84
  %v276 = vpop.permute.xlu0 %275
  %277 = vset.pattern.permute.xlu0 0
  %278 = vperm.xlu0 %277, %v85
  %v279 = vpop.permute.xlu0 %278
  %280 = vset.pattern.permute.xlu0 0
  %281 = vperm.xlu0 %280, %v86
  %v282 = vpop.permute.xlu0 %281
  %283 = vset.pattern.permute.xlu0 0
  %284 = vperm.xlu0 %283, %v87
  %v285 = vpop.permute.xlu0 %284
  %286 = vset.pattern.permute.xlu0 0
  %287 = vperm.xlu0 %286, %v88
  %v288 = vpop.permute.xlu0 %287
  %289 = vset.pattern.permute.xlu0 0
  %290 = vperm.xlu0 %289, %v89
  %v291 = vpop.permute.xlu0 %290
  %292 = vset.pattern.permute.xlu0 0
  %293 = vperm.xlu0 %292, %v90
  %v294 = vpop.permute.xlu0 %293
  %295 = vset.pattern.permute.xlu0 0
  %296 = vperm.xlu0 %295, %v91
  %v297 = vpop.permute.xlu0 %296
  %298 = vset.pattern.permute.xlu0 0
  %299 = vperm.xlu0 %298, %v92
  %v300 = vpop.permute.xlu0 %299
  %301 = vset.pattern.permute.xlu0 0
  %302 = vperm.xlu0 %301, %v93
  %v303 = vpop.permute.xlu0 %302
  %304 = vset.pattern.permute.xlu0 0
  %305 = vperm.xlu0 %304, %v94
  %v306 = vpop.permute.xlu0 %305
  %307 = vset.pattern.permute.xlu0 0
  %308 = vperm.xlu0 %307, %v95
  %v309 = vpop.permute.xlu0 %308
  %310 = vset.pattern.permute.xlu0 0
  %311 = vperm.xlu0 %310, %v96
  %v312 = vpop.permute.xlu0 %311
  %313 = vset.pattern.permute.xlu0 0
  %314 = vperm.xlu0 %313, %v97
  %v315 = vpop.permute.xlu0 %314
  %316 = vset.pattern.permute.xlu0 0
  %317 = vperm.xlu0 %316, %v98
  %v318 = vpop.permute.xlu0 %317
  %319 = vset.pattern.permute.xlu0 0
  %320 = vperm.xlu0 %319, %v99
  %v321 = vpop.permute.xlu0 %320
  %322 = vset.pattern.permute.xlu0 0
  %323 = vperm.xlu0 %322, %v100
  %v324 = vpop.permute.xlu0 %323
  %325 = vset.pattern.permute.xlu0 0
  %326 = vperm.xlu0 %325, %v101
  %v327 = vpop.permute.xlu0 %326
  %328 = vset.pattern.permute.xlu0 0
  %329 = vperm.xlu0 %328, %v102
  %v330 = vpop.permute.xlu0 %329
  %331 = vset.pattern.permute.xlu0 0
  %332 = vperm.xlu0 %331, %v103
  %v333 = vpop.permute.xlu0 %332
  %334 = vset.pattern.permute.xlu0 0
  %335 = vperm.xlu0 %334, %v104
  %v336 = vpop.permute.xlu0 %335
  %337 = vset.pattern.permute.xlu0 0
  %338 = vperm.xlu0 %337, %v105
  %v339 = vpop.permute.xlu0 %338
  %340 = vset.pattern.permute.xlu0 0
  %341 = vperm.xlu0 %340, %v106
  %v342 = vpop.permute.xlu0 %341
  %343 = vset.pattern.permute.xlu0 0
  %344 = vperm.xlu0 %343, %v107
  %v345 = vpop.permute.xlu0 %344
  %346 = vset.pattern.permute.xlu0 0
  %347 = vperm.xlu0 %346, %v108
  %v348 = vpop.permute.xlu0 %347
  %349 = vset.pattern.permute.xlu0 0
  %350 = vperm.xlu0 %349, %v109
  %v351 = vpop.permute.xlu0 %350
  %352 = vset.pattern.permute.xlu0 0
  %353 = vperm.xlu0 %352, %v110
  %v354 = vpop.permute.xlu0 %353
  %355 = vset.pattern.permute.xlu0 0
  %356 = vperm.xlu0 %355, %v111
  %v357 = vpop.permute.xlu0 %356
  %358 = vset.pattern.permute.xlu0 0
  %359 = vperm.xlu0 %358, %v112
  %v360 = vpop.permute.xlu0 %359
  %361 = vset.pattern.permute.xlu0 0
  %362 = vperm.xlu0 %361, %v113
  %v363 = vpop.permute.xlu0 %362
  %364 = vset.pattern.permute.xlu0 0
  %365 = vperm.xlu0 %364, %v114
  %v366 = vpop.permute.xlu0 %365
  %367 = vset.pattern.permute.xlu0 0
  %368 = vperm.xlu0 %367, %v115
  %v369 = vpop.permute.xlu0 %368
  %370 = vset.pattern.permute.xlu0 0
  %371 = vperm.xlu0 %370, %v116
  %v372 = vpop.permute.xlu0 %371
  %373 = vset.pattern.permute.xlu0 0
  %374 = vperm.xlu0 %373, %v117
  %v375 = vpop.permute.xlu0 %374
  %376 = vset.pattern.permute.xlu0 0
  %377 = vperm.xlu0 %376, %v118
  %v378 = vpop.permute.xlu0 %377
  %379 = vset.pattern.permute.xlu0 0
  %380 = vperm.xlu0 %379, %v119
  %v381 = vpop.permute.xlu0 %380
  %382 = vset.pattern.permute.xlu0 0
  %383 = vperm.xlu0 %382, %v120
  %v384 = vpop.permute.xlu0 %383
  %385 = vset.pattern.permute.xlu0 0
  %386 = vperm.xlu0 %385, %v121
  %v387 = vpop.permute.xlu0 %386
  %388 = vset.pattern.permute.xlu0 0
  %389 = vperm.xlu0 %388, %v122
  %v390 = vpop.permute.xlu0 %389
  %391 = vset.pattern.permute.xlu0 0
  %392 = vperm.xlu0 %391, %v123
  %v393 = vpop.permute.xlu0 %392
  %394 = vset.pattern.permute.xlu0 0
  %395 = vperm.xlu0 %394, %v124
  %v396 = vpop.permute.xlu0 %395
  %397 = vset.pattern.permute.xlu0 0
  %398 = vperm.xlu0 %397, %v125
  %v399 = vpop.permute.xlu0 %398
  %400 = vset.pattern.permute.xlu0 0
  %401 = vperm.xlu0 %400, %v126
  %v402 = vpop.permute.xlu0 %401
  %403 = vset.pattern.permute.xlu0 0
  %404 = vperm.xlu0 %403, %v127
  %v405 = vpop.permute.xlu0 %404
  %406 = vset.pattern.permute.xlu0 0
  %407 = vperm.xlu0 %406, %v128
  %v408 = vpop.permute.xlu0 %407
  %409 = vset.pattern.permute.xlu0 0
  %410 = vperm.xlu0 %409, %v129
  %v411 = vpop.permute.xlu0 %410
  %412 = vset.pattern.permute.xlu0 0
  %413 = vperm.xlu0 %412, %v130
  %v414 = vpop.permute.xlu0 %413
  %415 = vset.pattern.permute.xlu0 0
  %416 = vperm.xlu0 %415, %v131
  %v417 = vpop.permute.xlu0 %416
  %418 = vset.pattern.permute.xlu0 0
  %419 = vperm.xlu0 %418, %v132
  %v420 = vpop.permute.xlu0 %419
  %421 = vset.pattern.permute.xlu0 0
  %422 = vperm.xlu0 %421, %v133
  %v423 = vpop.permute.xlu0 %422
  %424 = vset.pattern.permute.xlu0 0
  %425 = vperm.xlu0 %424, %v134
  %v426 = vpop.permute.xlu0 %425
  %427 = vset.pattern.permute.xlu0 0
  %428 = vperm.xlu0 %427, %v135
  %v429 = vpop.permute.xlu0 %428
  %430 = vset.pattern.permute.xlu0 0
  %431 = vperm.xlu0 %430, %v136
  %v432 = vpop.permute.xlu0 %431
  %433 = vset.pattern.permute.xlu0 0
  %434 = vperm.xlu0 %433, %v137
  %v435 = vpop.permute.xlu0 %434
  %436 = vset.pattern.permute.xlu0 0
  %437 = vperm.xlu0 %436, %v138
  %v438 = vpop.permute.xlu0 %437
  %439 = vset.pattern.permute.xlu0 0
  %440 = vperm.xlu0 %439, %v139
  %v441 = vpop.permute.xlu0 %440
  %442 = vset.pattern.permute.xlu0 0
  %443 = vperm.xlu0 %442, %v140
  %v444 = vpop.permute.xlu0 %443
  %445 = vset.pattern.permute.xlu0 0
  %446 = vperm.xlu0 %445, %v141
  %v447 = vpop.permute.xlu0 %446
  %448 = vset.pattern.permute.xlu0 0
  %449 = vperm.xlu0 %448, %v142
  %v450 = vpop.permute.xlu0 %449
  %451 = vset.pattern.permute.xlu0 0
  %452 = vperm.xlu0 %451, %v143
  %v453 = vpop.permute.xlu0 %452
  %454 = vset.pattern.permute.xlu0 0
  %455 = vperm.xlu0 %454, %v144
  %v456 = vpop.permute.xlu0 %455
  %457 = vset.pattern.permute.xlu0 0
  %458 = vperm.xlu0 %457, %v145
  %v459 = vpop.permute.xlu0 %458
  %460 = vset.pattern.permute.xlu0 0
  %461 = vperm.xlu0 %460, %v146
  %v462 = vpop.permute.xlu0 %461
  %463 = vset.pattern.permute.xlu0 0
  %464 = vperm.xlu0 %463, %v147
  %v465 = vpop.permute.xlu0 %464
  %466 = vset.pattern.permute.xlu0 0
  %467 = vperm.xlu0 %466, %v148
  %v468 = vpop.permute.xlu0 %467
  %469 = vset.pattern.permute.xlu0 0
  %470 = vperm.xlu0 %469, %v149
  %v471 = vpop.permute.xlu0 %470
  %472 = vset.pattern.permute.xlu0 0
  %473 = vperm.xlu0 %472, %v150
  %v474 = vpop.permute.xlu0 %473
  %475 = vset.pattern.permute.xlu0 0
  %476 = vperm.xlu0 %475, %v151
  %v477 = vpop.permute.xlu0 %476
  %478 = vset.pattern.permute.xlu0 0
  %479 = vperm.xlu0 %478, %v152
  %v480 = vpop.permute.xlu0 %479
  %481 = vset.pattern.permute.xlu0 0
  %482 = vperm.xlu0 %481, %v153
  %v483 = vpop.permute.xlu0 %482
  %484 = vset.pattern.permute.xlu0 0
  %485 = vperm.xlu0 %484, %v154
  %v486 = vpop.permute.xlu0 %485
  %487 = vset.pattern.permute.xlu0 0
  %488 = vperm.xlu0 %487, %v155
  %v489 = vpop.permute.xlu0 %488
  %490 = vset.pattern.permute.xlu0 0
  %491 = vperm.xlu0 %490, %v156
  %v492 = vpop.permute.xlu0 %491
  %493 = vset.pattern.permute.xlu0 0
  %494 = vperm.xlu0 %493, %v157
  %v495 = vpop.permute.xlu0 %494
  %496 = vset.pattern.permute.xlu0 0
  %497 = vperm.xlu0 %496, %v158
  %v498 = vpop.permute.xlu0 %497
  %499 = vset.pattern.permute.xlu0 0
  %500 = vperm.xlu0 %499, %v159
  %v501 = vpop.permute.xlu0 %500
  %502 = vset.pattern.permute.xlu0 0
  %503 = vperm.xlu0 %502, %v160
  %v504 = vpop.permute.xlu0 %503
  %505 = vset.pattern.permute.xlu0 0
  %506 = vperm.xlu0 %505, %v161
  %v507 = vpop.permute.xlu0 %506
  %508 = vset.pattern.permute.xlu0 0
  %509 = vperm.xlu0 %508, %v162
  %v510 = vpop.permute.xlu0 %509
  %511 = vset.pattern.permute.xlu0 0
  %512 = vperm.xlu0 %511, %v163
  %v513 = vpop.permute.xlu0 %512
  %514 = vset.pattern.permute.xlu0 0
  %515 = vperm.xlu0 %514, %v164
  %v516 = vpop.permute.xlu0 %515
  %517 = vset.pattern.permute.xlu0 0
  %518 = vperm.xlu0 %517, %v165
  %v519 = vpop.permute.xlu0 %518
  %520 = vset.pattern.permute.xlu0 0
  %521 = vperm.xlu0 %520, %v166
  %v522 = vpop.permute.xlu0 %521
  %523 = vset.pattern.permute.xlu0 0
  %524 = vperm.xlu0 %523, %v167
  %v525 = vpop.permute.xlu0 %524
  %526 = vset.pattern.permute.xlu0 0
  %527 = vperm.xlu0 %526, %v168
  %v528 = vpop.permute.xlu0 %527
  %529 = vset.pattern.permute.xlu0 0
  %530 = vperm.xlu0 %529, %v169
  %v531 = vpop.permute.xlu0 %530
  %532 = vset.pattern.permute.xlu0 0
  %533 = vperm.xlu0 %532, %v170
  %v534 = vpop.permute.xlu0 %533
  %535 = vset.pattern.permute.xlu0 0
  %536 = vperm.xlu0 %535, %v171
  %v537 = vpop.permute.xlu0 %536
  %538 = vset.pattern.permute.xlu0 0
  %539 = vperm.xlu0 %538, %v172
  %v540 = vpop.permute.xlu0 %539
  %541 = vset.pattern.permute.xlu0 0
  %542 = vperm.xlu0 %541, %v173
  %v543 = vpop.permute.xlu0 %542
  %544 = vset.pattern.permute.xlu0 0
  %545 = vperm.xlu0 %544, %v174
  %v546 = vpop.permute.xlu0 %545
  %547 = vset.pattern.permute.xlu0 0
  %548 = vperm.xlu0 %547, %v175
  %v549 = vpop.permute.xlu0 %548
  %550 = vset.pattern.permute.xlu0 0
  %551 = vperm.xlu0 %550, %v176
  %v552 = vpop.permute.xlu0 %551
  %553 = vset.pattern.permute.xlu0 0
  %554 = vperm.xlu0 %553, %v177
  %v555 = vpop.permute.xlu0 %554
  %556 = vset.pattern.permute.xlu0 0
  %557 = vperm.xlu0 %556, %v178
  %v558 = vpop.permute.xlu0 %557
  %559 = vset.pattern.permute.xlu0 0
  %560 = vperm.xlu0 %559, %v179
  %v561 = vpop.permute.xlu0 %560
  %562 = vset.pattern.permute.xlu0 0
  %563 = vperm.xlu0 %562, %v180
  %v564 = vpop.permute.xlu0 %563
  %vm565 = vcmp.eq.s32.totalorder %v183, %v52
  %vm566 = vcmp.eq.s32.totalorder %v186, %v52
  %vm567 = vcmp.eq.s32.totalorder %v189, %v52
  %vm568 = vcmp.eq.s32.totalorder %v192, %v52
  %vm569 = vcmp.eq.s32.totalorder %v195, %v52
  %vm570 = vcmp.eq.s32.totalorder %v198, %v52
  %vm571 = vcmp.eq.s32.totalorder %v201, %v52
  %vm572 = vcmp.eq.s32.totalorder %v204, %v52
  %vm573 = vcmp.eq.s32.totalorder %v207, %v52
  %vm574 = vcmp.eq.s32.totalorder %v210, %v52
  %vm575 = vcmp.eq.s32.totalorder %v213, %v52
  %vm576 = vcmp.eq.s32.totalorder %v216, %v52
  %vm577 = vcmp.eq.s32.totalorder %v219, %v52
  %vm578 = vcmp.eq.s32.totalorder %v222, %v52
  %vm579 = vcmp.eq.s32.totalorder %v225, %v52
  %vm580 = vcmp.eq.s32.totalorder %v228, %v52
  %vm581 = vcmp.eq.s32.totalorder %v231, %v52
  %vm582 = vcmp.eq.s32.totalorder %v234, %v52
  %vm583 = vcmp.eq.s32.totalorder %v237, %v52
  %vm584 = vcmp.eq.s32.totalorder %v240, %v52
  %vm585 = vcmp.eq.s32.totalorder %v243, %v52
  %vm586 = vcmp.eq.s32.totalorder %v246, %v52
  %vm587 = vcmp.eq.s32.totalorder %v249, %v52
  %vm588 = vcmp.eq.s32.totalorder %v252, %v52
  %vm589 = vcmp.eq.s32.totalorder %v255, %v52
  %vm590 = vcmp.eq.s32.totalorder %v258, %v52
  %vm591 = vcmp.eq.s32.totalorder %v261, %v52
  %vm592 = vcmp.eq.s32.totalorder %v264, %v52
  %vm593 = vcmp.eq.s32.totalorder %v267, %v52
  %vm594 = vcmp.eq.s32.totalorder %v270, %v52
  %vm595 = vcmp.eq.s32.totalorder %v273, %v52
  %vm596 = vcmp.eq.s32.totalorder %v276, %v52
  %vm597 = vcmp.eq.s32.totalorder %v279, %v52
  %vm598 = vcmp.eq.s32.totalorder %v282, %v52
  %vm599 = vcmp.eq.s32.totalorder %v285, %v52
  %vm600 = vcmp.eq.s32.totalorder %v288, %v52
  %vm601 = vcmp.eq.s32.totalorder %v291, %v52
  %vm602 = vcmp.eq.s32.totalorder %v294, %v52
  %vm603 = vcmp.eq.s32.totalorder %v297, %v52
  %vm604 = vcmp.eq.s32.totalorder %v300, %v52
  %vm605 = vcmp.eq.s32.totalorder %v303, %v52
  %vm606 = vcmp.eq.s32.totalorder %v306, %v52
  %vm607 = vcmp.eq.s32.totalorder %v309, %v52
  %vm608 = vcmp.eq.s32.totalorder %v312, %v52
  %vm609 = vcmp.eq.s32.totalorder %v315, %v52
  %vm610 = vcmp.eq.s32.totalorder %v318, %v52
  %vm611 = vcmp.eq.s32.totalorder %v321, %v52
  %vm612 = vcmp.eq.s32.totalorder %v324, %v52
  %vm613 = vcmp.eq.s32.totalorder %v327, %v52
  %vm614 = vcmp.eq.s32.totalorder %v330, %v52
  %vm615 = vcmp.eq.s32.totalorder %v333, %v52
  %vm616 = vcmp.eq.s32.totalorder %v336, %v52
  %vm617 = vcmp.eq.s32.totalorder %v339, %v52
  %vm618 = vcmp.eq.s32.totalorder %v342, %v52
  %vm619 = vcmp.eq.s32.totalorder %v345, %v52
  %vm620 = vcmp.eq.s32.totalorder %v348, %v52
  %vm621 = vcmp.eq.s32.totalorder %v351, %v52
  %vm622 = vcmp.eq.s32.totalorder %v354, %v52
  %vm623 = vcmp.eq.s32.totalorder %v357, %v52
  %vm624 = vcmp.eq.s32.totalorder %v360, %v52
  %vm625 = vcmp.eq.s32.totalorder %v363, %v52
  %vm626 = vcmp.eq.s32.totalorder %v366, %v52
  %vm627 = vcmp.eq.s32.totalorder %v369, %v52
  %vm628 = vcmp.eq.s32.totalorder %v372, %v52
  %vm629 = vcmp.eq.s32.totalorder %v375, %v52
  %vm630 = vcmp.eq.s32.totalorder %v378, %v52
  %vm631 = vcmp.eq.s32.totalorder %v381, %v52
  %vm632 = vcmp.eq.s32.totalorder %v384, %v52
  %vm633 = vcmp.eq.s32.totalorder %v387, %v52
  %vm634 = vcmp.eq.s32.totalorder %v390, %v52
  %vm635 = vcmp.eq.s32.totalorder %v393, %v52
  %vm636 = vcmp.eq.s32.totalorder %v396, %v52
  %vm637 = vcmp.eq.s32.totalorder %v399, %v52
  %vm638 = vcmp.eq.s32.totalorder %v402, %v52
  %vm639 = vcmp.eq.s32.totalorder %v405, %v52
  %vm640 = vcmp.eq.s32.totalorder %v408, %v52
  %vm641 = vcmp.eq.s32.totalorder %v411, %v52
  %vm642 = vcmp.eq.s32.totalorder %v414, %v52
  %vm643 = vcmp.eq.s32.totalorder %v417, %v52
  %vm644 = vcmp.eq.s32.totalorder %v420, %v52
  %vm645 = vcmp.eq.s32.totalorder %v423, %v52
  %vm646 = vcmp.eq.s32.totalorder %v426, %v52
  %vm647 = vcmp.eq.s32.totalorder %v429, %v52
  %vm648 = vcmp.eq.s32.totalorder %v432, %v52
  %vm649 = vcmp.eq.s32.totalorder %v435, %v52
  %vm650 = vcmp.eq.s32.totalorder %v438, %v52
  %vm651 = vcmp.eq.s32.totalorder %v441, %v52
  %vm652 = vcmp.eq.s32.totalorder %v444, %v52
  %vm653 = vcmp.eq.s32.totalorder %v447, %v52
  %vm654 = vcmp.eq.s32.totalorder %v450, %v52
  %vm655 = vcmp.eq.s32.totalorder %v453, %v52
  %vm656 = vcmp.eq.s32.totalorder %v456, %v52
  %vm657 = vcmp.eq.s32.totalorder %v459, %v52
  %vm658 = vcmp.eq.s32.totalorder %v462, %v52
  %vm659 = vcmp.eq.s32.totalorder %v465, %v52
  %vm660 = vcmp.eq.s32.totalorder %v468, %v52
  %vm661 = vcmp.eq.s32.totalorder %v471, %v52
  %vm662 = vcmp.eq.s32.totalorder %v474, %v52
  %vm663 = vcmp.eq.s32.totalorder %v477, %v52
  %vm664 = vcmp.eq.s32.totalorder %v480, %v52
  %vm665 = vcmp.eq.s32.totalorder %v483, %v52
  %vm666 = vcmp.eq.s32.totalorder %v486, %v52
  %vm667 = vcmp.eq.s32.totalorder %v489, %v52
  %vm668 = vcmp.eq.s32.totalorder %v492, %v52
  %vm669 = vcmp.eq.s32.totalorder %v495, %v52
  %vm670 = vcmp.eq.s32.totalorder %v498, %v52
  %vm671 = vcmp.eq.s32.totalorder %v501, %v52
  %vm672 = vcmp.eq.s32.totalorder %v504, %v52
  %vm673 = vcmp.eq.s32.totalorder %v507, %v52
  %vm674 = vcmp.eq.s32.totalorder %v510, %v52
  %vm675 = vcmp.eq.s32.totalorder %v513, %v52
  %vm676 = vcmp.eq.s32.totalorder %v516, %v52
  %vm677 = vcmp.eq.s32.totalorder %v519, %v52
  %vm678 = vcmp.eq.s32.totalorder %v522, %v52
  %vm679 = vcmp.eq.s32.totalorder %v525, %v52
  %vm680 = vcmp.eq.s32.totalorder %v528, %v52
  %vm681 = vcmp.eq.s32.totalorder %v531, %v52
  %vm682 = vcmp.eq.s32.totalorder %v534, %v52
  %vm683 = vcmp.eq.s32.totalorder %v537, %v52
  %vm684 = vcmp.eq.s32.totalorder %v540, %v52
  %vm685 = vcmp.eq.s32.totalorder %v543, %v52
  %vm686 = vcmp.eq.s32.totalorder %v546, %v52
  %vm687 = vcmp.eq.s32.totalorder %v549, %v52
  %vm688 = vcmp.eq.s32.totalorder %v552, %v52
  %vm689 = vcmp.eq.s32.totalorder %v555, %v52
  %vm690 = vcmp.eq.s32.totalorder %v558, %v52
  %vm691 = vcmp.eq.s32.totalorder %v561, %v52
  %vm692 = vcmp.eq.s32.totalorder %v564, %v52
  %v693 = vsel %vm565, 1, 0
  %v694 = vsel %vm566, 1, 0
  %v695 = vsel %vm567, 1, 0
  %v696 = vsel %vm568, 1, 0
  %v697 = vsel %vm569, 1, 0
  %v698 = vsel %vm570, 1, 0
  %v699 = vsel %vm571, 1, 0
  %v700 = vsel %vm572, 1, 0
  %v701 = vsel %vm573, 1, 0
  %v702 = vsel %vm574, 1, 0
  %v703 = vsel %vm575, 1, 0
  %v704 = vsel %vm576, 1, 0
  %v705 = vsel %vm577, 1, 0
  %v706 = vsel %vm578, 1, 0
  %v707 = vsel %vm579, 1, 0
  %v708 = vsel %vm580, 1, 0
  %v709 = vsel %vm581, 1, 0
  %v710 = vsel %vm582, 1, 0
  %v711 = vsel %vm583, 1, 0
  %v712 = vsel %vm584, 1, 0
  %v713 = vsel %vm585, 1, 0
  %v714 = vsel %vm586, 1, 0
  %v715 = vsel %vm587, 1, 0
  %v716 = vsel %vm588, 1, 0
  %v717 = vsel %vm589, 1, 0
  %v718 = vsel %vm590, 1, 0
  %v719 = vsel %vm591, 1, 0
  %v720 = vsel %vm592, 1, 0
  %v721 = vsel %vm593, 1, 0
  %v722 = vsel %vm594, 1, 0
  %v723 = vsel %vm595, 1, 0
  %v724 = vsel %vm596, 1, 0
  %v725 = vsel %vm597, 1, 0
  %v726 = vsel %vm598, 1, 0
  %v727 = vsel %vm599, 1, 0
  %v728 = vsel %vm600, 1, 0
  %v729 = vsel %vm601, 1, 0
  %v730 = vsel %vm602, 1, 0
  %v731 = vsel %vm603, 1, 0
  %v732 = vsel %vm604, 1, 0
  %v733 = vsel %vm605, 1, 0
  %v734 = vsel %vm606, 1, 0
  %v735 = vsel %vm607, 1, 0
  %v736 = vsel %vm608, 1, 0
  %v737 = vsel %vm609, 1, 0
  %v738 = vsel %vm610, 1, 0
  %v739 = vsel %vm611, 1, 0
  %v740 = vsel %vm612, 1, 0
  %v741 = vsel %vm613, 1, 0
  %v742 = vsel %vm614, 1, 0
  %v743 = vsel %vm615, 1, 0
  %v744 = vsel %vm616, 1, 0
  %v745 = vsel %vm617, 1, 0
  %v746 = vsel %vm618, 1, 0
  %v747 = vsel %vm619, 1, 0
  %v748 = vsel %vm620, 1, 0
  %v749 = vsel %vm621, 1, 0
  %v750 = vsel %vm622, 1, 0
  %v751 = vsel %vm623, 1, 0
  %v752 = vsel %vm624, 1, 0
  %v753 = vsel %vm625, 1, 0
  %v754 = vsel %vm626, 1, 0
  %v755 = vsel %vm627, 1, 0
  %v756 = vsel %vm628, 1, 0
  %v757 = vsel %vm629, 1, 0
  %v758 = vsel %vm630, 1, 0
  %v759 = vsel %vm631, 1, 0
  %v760 = vsel %vm632, 1, 0
  %v761 = vsel %vm633, 1, 0
  %v762 = vsel %vm634, 1, 0
  %v763 = vsel %vm635, 1, 0
  %v764 = vsel %vm636, 1, 0
  %v765 = vsel %vm637, 1, 0
  %v766 = vsel %vm638, 1, 0
  %v767 = vsel %vm639, 1, 0
  %v768 = vsel %vm640, 1, 0
  %v769 = vsel %vm641, 1, 0
  %v770 = vsel %vm642, 1, 0
  %v771 = vsel %vm643, 1, 0
  %v772 = vsel %vm644, 1, 0
  %v773 = vsel %vm645, 1, 0
  %v774 = vsel %vm646, 1, 0
  %v775 = vsel %vm647, 1, 0
  %v776 = vsel %vm648, 1, 0
  %v777 = vsel %vm649, 1, 0
  %v778 = vsel %vm650, 1, 0
  %v779 = vsel %vm651, 1, 0
  %v780 = vsel %vm652, 1, 0
  %v781 = vsel %vm653, 1, 0
  %v782 = vsel %vm654, 1, 0
  %v783 = vsel %vm655, 1, 0
  %v784 = vsel %vm656, 1, 0
  %v785 = vsel %vm657, 1, 0
  %v786 = vsel %vm658, 1, 0
  %v787 = vsel %vm659, 1, 0
  %v788 = vsel %vm660, 1, 0
  %v789 = vsel %vm661, 1, 0
  %v790 = vsel %vm662, 1, 0
  %v791 = vsel %vm663, 1, 0
  %v792 = vsel %vm664, 1, 0
  %v793 = vsel %vm665, 1, 0
  %v794 = vsel %vm666, 1, 0
  %v795 = vsel %vm667, 1, 0
  %v796 = vsel %vm668, 1, 0
  %v797 = vsel %vm669, 1, 0
  %v798 = vsel %vm670, 1, 0
  %v799 = vsel %vm671, 1, 0
  %v800 = vsel %vm672, 1, 0
  %v801 = vsel %vm673, 1, 0
  %v802 = vsel %vm674, 1, 0
  %v803 = vsel %vm675, 1, 0
  %v804 = vsel %vm676, 1, 0
  %v805 = vsel %vm677, 1, 0
  %v806 = vsel %vm678, 1, 0
  %v807 = vsel %vm679, 1, 0
  %v808 = vsel %vm680, 1, 0
  %v809 = vsel %vm681, 1, 0
  %v810 = vsel %vm682, 1, 0
  %v811 = vsel %vm683, 1, 0
  %v812 = vsel %vm684, 1, 0
  %v813 = vsel %vm685, 1, 0
  %v814 = vsel %vm686, 1, 0
  %v815 = vsel %vm687, 1, 0
  %v816 = vsel %vm688, 1, 0
  %v817 = vsel %vm689, 1, 0
  %v818 = vsel %vm690, 1, 0
  %v819 = vsel %vm691, 1, 0
  %v820 = vsel %vm692, 1, 0
  %v821 = vcvt.s32.f32 %v693
  %v822 = vcvt.s32.f32 %v694
  %v823 = vcvt.s32.f32 %v695
  %v824 = vcvt.s32.f32 %v696
  %v825 = vcvt.s32.f32 %v697
  %v826 = vcvt.s32.f32 %v698
  %v827 = vcvt.s32.f32 %v699
  %v828 = vcvt.s32.f32 %v700
  %v829 = vcvt.s32.f32 %v701
  %v830 = vcvt.s32.f32 %v702
  %v831 = vcvt.s32.f32 %v703
  %v832 = vcvt.s32.f32 %v704
  %v833 = vcvt.s32.f32 %v705
  %v834 = vcvt.s32.f32 %v706
  %v835 = vcvt.s32.f32 %v707
  %v836 = vcvt.s32.f32 %v708
  %v837 = vcvt.s32.f32 %v709
  %v838 = vcvt.s32.f32 %v710
  %v839 = vcvt.s32.f32 %v711
  %v840 = vcvt.s32.f32 %v712
  %v841 = vcvt.s32.f32 %v713
  %v842 = vcvt.s32.f32 %v714
  %v843 = vcvt.s32.f32 %v715
  %v844 = vcvt.s32.f32 %v716
  %v845 = vcvt.s32.f32 %v717
  %v846 = vcvt.s32.f32 %v718
  %v847 = vcvt.s32.f32 %v719
  %v848 = vcvt.s32.f32 %v720
  %v849 = vcvt.s32.f32 %v721
  %v850 = vcvt.s32.f32 %v722
  %v851 = vcvt.s32.f32 %v723
  %v852 = vcvt.s32.f32 %v724
  %v853 = vcvt.s32.f32 %v725
  %v854 = vcvt.s32.f32 %v726
  %v855 = vcvt.s32.f32 %v727
  %v856 = vcvt.s32.f32 %v728
  %v857 = vcvt.s32.f32 %v729
  %v858 = vcvt.s32.f32 %v730
  %v859 = vcvt.s32.f32 %v731
  %v860 = vcvt.s32.f32 %v732
  %v861 = vcvt.s32.f32 %v733
  %v862 = vcvt.s32.f32 %v734
  %v863 = vcvt.s32.f32 %v735
  %v864 = vcvt.s32.f32 %v736
  %v865 = vcvt.s32.f32 %v737
  %v866 = vcvt.s32.f32 %v738
  %v867 = vcvt.s32.f32 %v739
  %v868 = vcvt.s32.f32 %v740
  %v869 = vcvt.s32.f32 %v741
  %v870 = vcvt.s32.f32 %v742
  %v871 = vcvt.s32.f32 %v743
  %v872 = vcvt.s32.f32 %v744
  %v873 = vcvt.s32.f32 %v745
  %v874 = vcvt.s32.f32 %v746
  %v875 = vcvt.s32.f32 %v747
  %v876 = vcvt.s32.f32 %v748
  %v877 = vcvt.s32.f32 %v749
  %v878 = vcvt.s32.f32 %v750
  %v879 = vcvt.s32.f32 %v751
  %v880 = vcvt.s32.f32 %v752
  %v881 = vcvt.s32.f32 %v753
  %v882 = vcvt.s32.f32 %v754
  %v883 = vcvt.s32.f32 %v755
  %v884 = vcvt.s32.f32 %v756
  %v885 = vcvt.s32.f32 %v757
  %v886 = vcvt.s32.f32 %v758
  %v887 = vcvt.s32.f32 %v759
  %v888 = vcvt.s32.f32 %v760
  %v889 = vcvt.s32.f32 %v761
  %v890 = vcvt.s32.f32 %v762
  %v891 = vcvt.s32.f32 %v763
  %v892 = vcvt.s32.f32 %v764
  %v893 = vcvt.s32.f32 %v765
  %v894 = vcvt.s32.f32 %v766
  %v895 = vcvt.s32.f32 %v767
  %v896 = vcvt.s32.f32 %v768
  %v897 = vcvt.s32.f32 %v769
  %v898 = vcvt.s32.f32 %v770
  %v899 = vcvt.s32.f32 %v771
  %v900 = vcvt.s32.f32 %v772
  %v901 = vcvt.s32.f32 %v773
  %v902 = vcvt.s32.f32 %v774
  %v903 = vcvt.s32.f32 %v775
  %v904 = vcvt.s32.f32 %v776
  %v905 = vcvt.s32.f32 %v777
  %v906 = vcvt.s32.f32 %v778
  %v907 = vcvt.s32.f32 %v779
  %v908 = vcvt.s32.f32 %v780
  %v909 = vcvt.s32.f32 %v781
  %v910 = vcvt.s32.f32 %v782
  %v911 = vcvt.s32.f32 %v783
  %v912 = vcvt.s32.f32 %v784
  %v913 = vcvt.s32.f32 %v785
  %v914 = vcvt.s32.f32 %v786
  %v915 = vcvt.s32.f32 %v787
  %v916 = vcvt.s32.f32 %v788
  %v917 = vcvt.s32.f32 %v789
  %v918 = vcvt.s32.f32 %v790
  %v919 = vcvt.s32.f32 %v791
  %v920 = vcvt.s32.f32 %v792
  %v921 = vcvt.s32.f32 %v793
  %v922 = vcvt.s32.f32 %v794
  %v923 = vcvt.s32.f32 %v795
  %v924 = vcvt.s32.f32 %v796
  %v925 = vcvt.s32.f32 %v797
  %v926 = vcvt.s32.f32 %v798
  %v927 = vcvt.s32.f32 %v799
  %v928 = vcvt.s32.f32 %v800
  %v929 = vcvt.s32.f32 %v801
  %v930 = vcvt.s32.f32 %v802
  %v931 = vcvt.s32.f32 %v803
  %v932 = vcvt.s32.f32 %v804
  %v933 = vcvt.s32.f32 %v805
  %v934 = vcvt.s32.f32 %v806
  %v935 = vcvt.s32.f32 %v807
  %v936 = vcvt.s32.f32 %v808
  %v937 = vcvt.s32.f32 %v809
  %v938 = vcvt.s32.f32 %v810
  %v939 = vcvt.s32.f32 %v811
  %v940 = vcvt.s32.f32 %v812
  %v941 = vcvt.s32.f32 %v813
  %v942 = vcvt.s32.f32 %v814
  %v943 = vcvt.s32.f32 %v815
  %v944 = vcvt.s32.f32 %v816
  %v945 = vcvt.s32.f32 %v817
  %v946 = vcvt.s32.f32 %v818
  %v947 = vcvt.s32.f32 %v819
  %v948 = vcvt.s32.f32 %v820
  %v949 = vpack.c.bf16 %v822, %v821
  %v950 = vpack.c.bf16 %v824, %v823
  %v951 = vpack.c.bf16 %v826, %v825
  %v952 = vpack.c.bf16 %v828, %v827
  %v953 = vpack.c.bf16 %v830, %v829
  %v954 = vpack.c.bf16 %v832, %v831
  %v955 = vpack.c.bf16 %v834, %v833
  %v956 = vpack.c.bf16 %v836, %v835
  %v957 = vpack.c.bf16 %v838, %v837
  %v958 = vpack.c.bf16 %v840, %v839
  %v959 = vpack.c.bf16 %v842, %v841
  %v960 = vpack.c.bf16 %v844, %v843
  %v961 = vpack.c.bf16 %v846, %v845
  %v962 = vpack.c.bf16 %v848, %v847
  %v963 = vpack.c.bf16 %v850, %v849
  %v964 = vpack.c.bf16 %v852, %v851
  %v965 = vpack.c.bf16 %v854, %v853
  %v966 = vpack.c.bf16 %v856, %v855
  %v967 = vpack.c.bf16 %v858, %v857
  %v968 = vpack.c.bf16 %v860, %v859
  %v969 = vpack.c.bf16 %v862, %v861
  %v970 = vpack.c.bf16 %v864, %v863
  %v971 = vpack.c.bf16 %v866, %v865
  %v972 = vpack.c.bf16 %v868, %v867
  %v973 = vpack.c.bf16 %v870, %v869
  %v974 = vpack.c.bf16 %v872, %v871
  %v975 = vpack.c.bf16 %v874, %v873
  %v976 = vpack.c.bf16 %v876, %v875
  %v977 = vpack.c.bf16 %v878, %v877
  %v978 = vpack.c.bf16 %v880, %v879
  %v979 = vpack.c.bf16 %v882, %v881
  %v980 = vpack.c.bf16 %v884, %v883
  %v981 = vpack.c.bf16 %v886, %v885
  %v982 = vpack.c.bf16 %v888, %v887
  %v983 = vpack.c.bf16 %v890, %v889
  %v984 = vpack.c.bf16 %v892, %v891
  %v985 = vpack.c.bf16 %v894, %v893
  %v986 = vpack.c.bf16 %v896, %v895
  %v987 = vpack.c.bf16 %v898, %v897
  %v988 = vpack.c.bf16 %v900, %v899
  %v989 = vpack.c.bf16 %v902, %v901
  %v990 = vpack.c.bf16 %v904, %v903
  %v991 = vpack.c.bf16 %v906, %v905
  %v992 = vpack.c.bf16 %v908, %v907
  %v993 = vpack.c.bf16 %v910, %v909
  %v994 = vpack.c.bf16 %v912, %v911
  %v995 = vpack.c.bf16 %v914, %v913
  %v996 = vpack.c.bf16 %v916, %v915
  %v997 = vpack.c.bf16 %v918, %v917
  %v998 = vpack.c.bf16 %v920, %v919
  %v999 = vpack.c.bf16 %v922, %v921
  %v1000 = vpack.c.bf16 %v924, %v923
  %v1001 = vpack.c.bf16 %v926, %v925
  %v1002 = vpack.c.bf16 %v928, %v927
  %v1003 = vpack.c.bf16 %v930, %v929
  %v1004 = vpack.c.bf16 %v932, %v931
  %v1005 = vpack.c.bf16 %v934, %v933
  %v1006 = vpack.c.bf16 %v936, %v935
  %v1007 = vpack.c.bf16 %v938, %v937
  %v1008 = vpack.c.bf16 %v940, %v939
  %v1009 = vpack.c.bf16 %v942, %v941
  %v1010 = vpack.c.bf16 %v944, %v943
  %v1011 = vpack.c.bf16 %v946, %v945
  %v1012 = vpack.c.bf16 %v948, %v947
  %v1013 = vld [vmem:[%s2] sm:$0x3]
  %vm1014 = vcmask 23552
  %v1016 = vsel %vm1014, %v43, 0
  %v1019 = vsel %vm1014, %v44, 0
  %v1022 = vsel %vm1014, %v45, 0
  %v1025 = vsel %vm1014, %v46, 0
  %v1028 = vsel %vm1014, %v47, 0
  %v1031 = vsel %vm1014, %v48, 0
  %v1034 = vsel %vm1014, %v49, 0
  %v1037 = vsel %vm1014, %v50, 0
  %vm1039 = vcmask 1040384
  %vm1040 = vcmask 1041408
  %v1041 = vsel %vm1039, 4294967295, 65535
  %v1042 = vsel %vm1040, %v1041, 0
  %v1044 = vand.u32 %v1013, %v1042
  %1046 = vmatprep.subr.bf16.mxu0 0
  %1047 = vmatpush1.bf16.msra.mxu0 %v1044
  %1048 = vmatprep.subr.bf16.mxu0 0
  %1049 = vmatpush1.bf16.msra.mxu0 0
  %1050 = vmatprep.subr.bf16.mxu0 0
  %1051 = vmatpush1.bf16.msra.mxu0 0
  %1052 = vmatprep.subr.bf16.mxu0 0
  %1053 = vmatpush1.bf16.msra.mxu0 0
  %1054 = vmatprep.subr.bf16.mxu0 0
  %1055 = vmatpush1.bf16.msra.mxu0 0
  %1056 = vmatprep.subr.bf16.mxu0 0
  %1057 = vmatpush1.bf16.msra.mxu0 0
  %1058 = vmatprep.subr.bf16.mxu0 0
  %1059 = vmatpush1.bf16.msra.mxu0 0
  %1060 = vmatprep.subr.bf16.mxu0 0
  %1061 = vmatpush1.bf16.msra.mxu0 0
  %1062 = vmatprep.subr.bf16.mxu0 0
  %1063 = vmatpush1.bf16.msra.mxu0 0
  %1064 = vmatprep.subr.bf16.mxu0 0
  %1065 = vmatpush1.bf16.msra.mxu0 0
  %1066 = vmatprep.subr.bf16.mxu0 0
  %1067 = vmatpush1.bf16.msra.mxu0 0
  %1068 = vmatprep.subr.bf16.mxu0 0
  %1069 = vmatpush1.bf16.msra.mxu0 0
  %1070 = vmatprep.subr.bf16.mxu0 0
  %1071 = vmatpush1.bf16.msra.mxu0 0
  %1072 = vmatprep.subr.bf16.mxu0 0
  %1073 = vmatpush1.bf16.msra.mxu0 0
  %1074 = vmatprep.subr.bf16.mxu0 0
  %1075 = vmatpush1.bf16.msra.mxu0 0
  %1076 = vmatprep.subr.bf16.mxu0 0
  %1077 = vmatpush1.bf16.msra.mxu0 0
  %1078 = vmatprep.mubr.bf16.mxu0 0
  %1079 = vmatmul.mubr.bf16.gmra.mrb[0].mxu0 %v1016
  %v1080 = vpop.f32.mrb[0].mxu0
  %v1081 = vadd.f32 0.0, %v1080
  %v1082 = vpop.f32.mrb[0].mxu0
  %v1083 = vpop.f32.mrb[0].mxu0
  %v1084 = vadd.f32 0.0, %v1083
  %v1085 = vpop.f32.mrb[0].mxu0
  %1086 = vmatprep.mubr.bf16.mxu0 0
  %1087 = vmatmul.mubr.bf16.gmra.mrb[0].mxu0 %v1019
  %v1088 = vpop.f32.mrb[0].mxu0
  %v1089 = vadd.f32 0.0, %v1088
  %v1090 = vpop.f32.mrb[0].mxu0
  %v1091 = vpop.f32.mrb[0].mxu0
  %v1092 = vadd.f32 0.0, %v1091
  %v1093 = vpop.f32.mrb[0].mxu0
  %1094 = vmatprep.mubr.bf16.mxu0 0
  %1095 = vmatmul.mubr.bf16.gmra.mrb[0].mxu0 %v1022
  %v1096 = vpop.f32.mrb[0].mxu0
  %v1097 = vadd.f32 0.0, %v1096
  %v1098 = vpop.f32.mrb[0].mxu0
  %v1099 = vpop.f32.mrb[0].mxu0
  %v1100 = vadd.f32 0.0, %v1099
  %v1101 = vpop.f32.mrb[0].mxu0
  %1102 = vmatprep.mubr.bf16.mxu0 0
  %1103 = vmatmul.mubr.bf16.gmra.mrb[0].mxu0 %v1025
  %v1104 = vpop.f32.mrb[0].mxu0
  %v1105 = vadd.f32 0.0, %v1104
  %v1106 = vpop.f32.mrb[0].mxu0
  %v1107 = vpop.f32.mrb[0].mxu0
  %v1108 = vadd.f32 0.0, %v1107
  %v1109 = vpop.f32.mrb[0].mxu0
  %1110 = vmatprep.mubr.bf16.mxu0 0
  %1111 = vmatmul.mubr.bf16.gmra.mrb[0].mxu0 %v1028
  %v1112 = vpop.f32.mrb[0].mxu0
  %v1113 = vadd.f32 0.0, %v1112
  %v1114 = vpop.f32.mrb[0].mxu0
  %v1115 = vpop.f32.mrb[0].mxu0
  %v1116 = vadd.f32 0.0, %v1115
  %v1117 = vpop.f32.mrb[0].mxu0
  %1118 = vmatprep.mubr.bf16.mxu0 0
  %1119 = vmatmul.mubr.bf16.gmra.mrb[0].mxu0 %v1031
  %v1120 = vpop.f32.mrb[0].mxu0
  %v1121 = vadd.f32 0.0, %v1120
  %v1122 = vpop.f32.mrb[0].mxu0
  %v1123 = vpop.f32.mrb[0].mxu0
  %v1124 = vadd.f32 0.0, %v1123
  %v1125 = vpop.f32.mrb[0].mxu0
  %1126 = vmatprep.mubr.bf16.mxu0 0
  %1127 = vmatmul.mubr.bf16.gmra.mrb[0].mxu0 %v1034
  %v1128 = vpop.f32.mrb[0].mxu0
  %v1129 = vadd.f32 0.0, %v1128
  %v1130 = vpop.f32.mrb[0].mxu0
  %v1131 = vpop.f32.mrb[0].mxu0
  %v1132 = vadd.f32 0.0, %v1131
  %v1133 = vpop.f32.mrb[0].mxu0
  %1134 = vmatprep.mubr.bf16.mxu0 0
  %1135 = vmatmul.mubr.bf16.gmra.mrb[0].mxu0 %v1037
  %v1136 = vpop.f32.mrb[0].mxu0
  %v1137 = vadd.f32 0.0, %v1136
  %v1138 = vpop.f32.mrb[0].mxu0
  %v1139 = vpop.f32.mrb[0].mxu0
  %v1140 = vadd.f32 0.0, %v1139
  %v1141 = vpop.f32.mrb[0].mxu0
  %1142 = vdwg.mxu0
  %v1143 = vld [vmem:[%s3] sm:$0x1]
  %v1145 = vlaneseq
  %v1146 = vshrl.u32 %v1145, 7
  %v1147 = vsub.s32 0, %v1146
  %v1148 = vrot.slane %v1143, %v1147
  %v1150 = vadd.f32 %v1081, %v1148
  %v1151 = vadd.f32 %v1084, %v1148
  %v1152 = vadd.f32 %v1089, %v1148
  %v1153 = vadd.f32 %v1092, %v1148
  %v1154 = vadd.f32 %v1097, %v1148
  %v1155 = vadd.f32 %v1100, %v1148
  %v1156 = vadd.f32 %v1105, %v1148
  %v1157 = vadd.f32 %v1108, %v1148
  %v1158 = vadd.f32 %v1113, %v1148
  %v1159 = vadd.f32 %v1116, %v1148
  %v1160 = vadd.f32 %v1121, %v1148
  %v1161 = vadd.f32 %v1124, %v1148
  %v1162 = vadd.f32 %v1129, %v1148
  %v1163 = vadd.f32 %v1132, %v1148
  %v1164 = vadd.f32 %v1137, %v1148
  %v1165 = vadd.f32 %v1140, %v1148
  %v1166 = vpack.c.bf16 %v1084, %v1081
  %v1167 = vpack.c.bf16 %v1092, %v1089
  %v1168 = vpack.c.bf16 %v1100, %v1097
  %v1169 = vpack.c.bf16 %v1108, %v1105
  %v1170 = vpack.c.bf16 %v1116, %v1113
  %v1171 = vpack.c.bf16 %v1124, %v1121
  %v1172 = vpack.c.bf16 %v1132, %v1129
  %v1173 = vpack.c.bf16 %v1140, %v1137
  %1182 = vrot.lane.b32.xlu0 %v1166, 96
  %v1183 = vpop.permute.xlu0 %1182
  %1184 = vrot.lane.b32.xlu0 %v1167, 96
  %v1185 = vpop.permute.xlu0 %1184
  %1186 = vrot.lane.b32.xlu0 %v1168, 96
  %v1187 = vpop.permute.xlu0 %1186
  %1188 = vrot.lane.b32.xlu0 %v1169, 96
  %v1189 = vpop.permute.xlu0 %1188
  %1190 = vrot.lane.b32.xlu0 %v1170, 96
  %v1191 = vpop.permute.xlu0 %1190
  %1192 = vrot.lane.b32.xlu0 %v1171, 96
  %v1193 = vpop.permute.xlu0 %1192
  %1194 = vrot.lane.b32.xlu0 %v1172, 96
  %v1195 = vpop.permute.xlu0 %1194
  %1196 = vrot.lane.b32.xlu0 %v1173, 96
  %v1197 = vpop.permute.xlu0 %1196
  %1206 = vmatprep.subr.bf16.mxu0 0
  %1207 = vmatpush1.bf16.msra.mxu0 %v1183
  %1208 = vmatprep.subr.bf16.mxu0 0
  %1209 = vmatpush1.bf16.msra.mxu0 %v1185
  %1210 = vmatprep.subr.bf16.mxu0 0
  %1211 = vmatpush1.bf16.msra.mxu0 %v1187
  %1212 = vmatprep.subr.bf16.mxu0 0
  %1213 = vmatpush1.bf16.msra.mxu0 %v1189
  %1214 = vmatprep.subr.bf16.mxu0 0
  %1215 = vmatpush1.bf16.msra.mxu0 %v1191
  %1216 = vmatprep.subr.bf16.mxu0 0
  %1217 = vmatpush1.bf16.msra.mxu0 %v1193
  %1218 = vmatprep.subr.bf16.mxu0 0
  %1219 = vmatpush1.bf16.msra.mxu0 %v1195
  %1220 = vmatprep.subr.bf16.mxu0 0
  %1221 = vmatpush1.bf16.msra.mxu0 %v1197
  %1222 = vmatprep.subr.bf16.mxu0 0
  %1223 = vmatpush1.bf16.msra.mxu0 0
  %1224 = vmatprep.subr.bf16.mxu0 0
  %1225 = vmatpush1.bf16.msra.mxu0 0
  %1226 = vmatprep.subr.bf16.mxu0 0
  %1227 = vmatpush1.bf16.msra.mxu0 0
  %1228 = vmatprep.subr.bf16.mxu0 0
  %1229 = vmatpush1.bf16.msra.mxu0 0
  %1230 = vmatprep.subr.bf16.mxu0 0
  %1231 = vmatpush1.bf16.msra.mxu0 0
  %1232 = vmatprep.subr.bf16.mxu0 0
  %1233 = vmatpush1.bf16.msra.mxu0 0
  %1234 = vmatprep.subr.bf16.mxu0 0
  %1235 = vmatpush1.bf16.msra.mxu0 0
  %1236 = vmatprep.subr.bf16.mxu0 0
  %1237 = vmatpush1.bf16.msra.mxu0 0
  %1238 = vmatprep.mubr.bf16.mxu0 0
  %1239 = vmatmul.mubr.bf16.gmra.mrb[0].mxu0 %v949
  %v1240 = vpop.f32.mrb[0].mxu0
  %v1241 = vadd.f32 0.0, %v1240
  %v1242 = vpop.f32.mrb[0].mxu0
  %v1243 = vpop.f32.mrb[0].mxu0
  %v1244 = vadd.f32 0.0, %v1243
  %v1245 = vpop.f32.mrb[0].mxu0
  %1246 = vmatprep.mubr.bf16.mxu0 0
  %1247 = vmatmul.mubr.bf16.gmra.mrb[0].mxu0 %v950
  %v1248 = vpop.f32.mrb[0].mxu0
  %v1249 = vadd.f32 0.0, %v1248
  %v1250 = vpop.f32.mrb[0].mxu0
  %v1251 = vpop.f32.mrb[0].mxu0
  %v1252 = vadd.f32 0.0, %v1251
  %v1253 = vpop.f32.mrb[0].mxu0
  %1254 = vmatprep.mubr.bf16.mxu0 0
  %1255 = vmatmul.mubr.bf16.gmra.mrb[0].mxu0 %v951
  %v1256 = vpop.f32.mrb[0].mxu0
  %v1257 = vadd.f32 0.0, %v1256
  %v1258 = vpop.f32.mrb[0].mxu0
  %v1259 = vpop.f32.mrb[0].mxu0
  %v1260 = vadd.f32 0.0, %v1259
  %v1261 = vpop.f32.mrb[0].mxu0
  %1262 = vmatprep.mubr.bf16.mxu0 0
  %1263 = vmatmul.mubr.bf16.gmra.mrb[0].mxu0 %v952
  %v1264 = vpop.f32.mrb[0].mxu0
  %v1265 = vadd.f32 0.0, %v1264
  %v1266 = vpop.f32.mrb[0].mxu0
  %v1267 = vpop.f32.mrb[0].mxu0
  %v1268 = vadd.f32 0.0, %v1267
  %v1269 = vpop.f32.mrb[0].mxu0
  %1270 = vmatprep.mubr.bf16.mxu0 0
  %1271 = vmatmul.mubr.bf16.gmra.mrb[0].mxu0 %v953
  %v1272 = vpop.f32.mrb[0].mxu0
  %v1273 = vadd.f32 0.0, %v1272
  %v1274 = vpop.f32.mrb[0].mxu0
  %v1275 = vpop.f32.mrb[0].mxu0
  %v1276 = vadd.f32 0.0, %v1275
  %v1277 = vpop.f32.mrb[0].mxu0
  %1278 = vmatprep.mubr.bf16.mxu0 0
  %1279 = vmatmul.mubr.bf16.gmra.mrb[0].mxu0 %v954
  %v1280 = vpop.f32.mrb[0].mxu0
  %v1281 = vadd.f32 0.0, %v1280
  %v1282 = vpop.f32.mrb[0].mxu0
  %v1283 = vpop.f32.mrb[0].mxu0
  %v1284 = vadd.f32 0.0, %v1283
  %v1285 = vpop.f32.mrb[0].mxu0
  %1286 = vmatprep.mubr.bf16.mxu0 0
  %1287 = vmatmul.mubr.bf16.gmra.mrb[0].mxu0 %v955
  %v1288 = vpop.f32.mrb[0].mxu0
  %v1289 = vadd.f32 0.0, %v1288
  %v1290 = vpop.f32.mrb[0].mxu0
  %v1291 = vpop.f32.mrb[0].mxu0
  %v1292 = vadd.f32 0.0, %v1291
  %v1293 = vpop.f32.mrb[0].mxu0
  %1294 = vmatprep.mubr.bf16.mxu0 0
  %1295 = vmatmul.mubr.bf16.gmra.mrb[0].mxu0 %v956
  %v1296 = vpop.f32.mrb[0].mxu0
  %v1297 = vadd.f32 0.0, %v1296
  %v1298 = vpop.f32.mrb[0].mxu0
  %v1299 = vpop.f32.mrb[0].mxu0
  %v1300 = vadd.f32 0.0, %v1299
  %v1301 = vpop.f32.mrb[0].mxu0
  %1302 = vdwg.mxu0
  %v1303 = vadd.f32 %v1150, %v1241
  %v1304 = vadd.f32 %v1151, %v1244
  %v1305 = vadd.f32 %v1152, %v1249
  %v1306 = vadd.f32 %v1153, %v1252
  %v1307 = vadd.f32 %v1154, %v1257
  %v1308 = vadd.f32 %v1155, %v1260
  %v1309 = vadd.f32 %v1156, %v1265
  %v1310 = vadd.f32 %v1157, %v1268
  %v1311 = vadd.f32 %v1158, %v1273
  %v1312 = vadd.f32 %v1159, %v1276
  %v1313 = vadd.f32 %v1160, %v1281
  %v1314 = vadd.f32 %v1161, %v1284
  %v1315 = vadd.f32 %v1162, %v1289
  %v1316 = vadd.f32 %v1163, %v1292
  %v1317 = vadd.f32 %v1164, %v1297
  %v1318 = vadd.f32 %v1165, %v1300
  %vm1319 = vcmp.gt.f32.partialorder %v1303, 0.0
  %vm1320 = vcmp.gt.f32.partialorder %v1304, 0.0
  %vm1321 = vcmp.gt.f32.partialorder %v1305, 0.0
  %vm1322 = vcmp.gt.f32.partialorder %v1306, 0.0
  %vm1323 = vcmp.gt.f32.partialorder %v1307, 0.0
  %vm1324 = vcmp.gt.f32.partialorder %v1308, 0.0
  %vm1325 = vcmp.gt.f32.partialorder %v1309, 0.0
  %vm1326 = vcmp.gt.f32.partialorder %v1310, 0.0
  %vm1327 = vcmp.gt.f32.partialorder %v1311, 0.0
  %vm1328 = vcmp.gt.f32.partialorder %v1312, 0.0
  %vm1329 = vcmp.gt.f32.partialorder %v1313, 0.0
  %vm1330 = vcmp.gt.f32.partialorder %v1314, 0.0
  %vm1331 = vcmp.gt.f32.partialorder %v1315, 0.0
  %vm1332 = vcmp.gt.f32.partialorder %v1316, 0.0
  %vm1333 = vcmp.gt.f32.partialorder %v1317, 0.0
  %vm1334 = vcmp.gt.f32.partialorder %v1318, 0.0
  %v1335 = vmul.f32 %v1303, 0.2
  %v1336 = vmul.f32 %v1304, 0.2
  %v1337 = vmul.f32 %v1305, 0.2
  %v1338 = vmul.f32 %v1306, 0.2
  %v1339 = vmul.f32 %v1307, 0.2
  %v1340 = vmul.f32 %v1308, 0.2
  %v1341 = vmul.f32 %v1309, 0.2
  %v1342 = vmul.f32 %v1310, 0.2
  %v1343 = vmul.f32 %v1311, 0.2
  %v1344 = vmul.f32 %v1312, 0.2
  %v1345 = vmul.f32 %v1313, 0.2
  %v1346 = vmul.f32 %v1314, 0.2
  %v1347 = vmul.f32 %v1315, 0.2
  %v1348 = vmul.f32 %v1316, 0.2
  %v1349 = vmul.f32 %v1317, 0.2
  %v1350 = vmul.f32 %v1318, 0.2
  %v1351 = vsel %vm1319, %v1303, %v1335
  %v1352 = vsel %vm1320, %v1304, %v1336
  %v1353 = vsel %vm1321, %v1305, %v1337
  %v1354 = vsel %vm1322, %v1306, %v1338
  %v1355 = vsel %vm1323, %v1307, %v1339
  %v1356 = vsel %vm1324, %v1308, %v1340
  %v1357 = vsel %vm1325, %v1309, %v1341
  %v1358 = vsel %vm1326, %v1310, %v1342
  %v1359 = vsel %vm1327, %v1311, %v1343
  %v1360 = vsel %vm1328, %v1312, %v1344
  %v1361 = vsel %vm1329, %v1313, %v1345
  %v1362 = vsel %vm1330, %v1314, %v1346
  %v1363 = vsel %vm1331, %v1315, %v1347
  %v1364 = vsel %vm1332, %v1316, %v1348
  %v1365 = vsel %vm1333, %v1317, %v1349
  %v1366 = vsel %vm1334, %v1318, %v1350
  %1367 = vmatprep.subr.bf16.mxu0 0
  %1368 = vmatpush1.bf16.msra.mxu0 %v1183
  %1369 = vmatprep.subr.bf16.mxu0 0
  %1370 = vmatpush1.bf16.msra.mxu0 %v1185
  %1371 = vmatprep.subr.bf16.mxu0 0
  %1372 = vmatpush1.bf16.msra.mxu0 %v1187
  %1373 = vmatprep.subr.bf16.mxu0 0
  %1374 = vmatpush1.bf16.msra.mxu0 %v1189
  %1375 = vmatprep.subr.bf16.mxu0 0
  %1376 = vmatpush1.bf16.msra.mxu0 %v1191
  %1377 = vmatprep.subr.bf16.mxu0 0
  %1378 = vmatpush1.bf16.msra.mxu0 %v1193
  %1379 = vmatprep.subr.bf16.mxu0 0
  %1380 = vmatpush1.bf16.msra.mxu0 %v1195
  %1381 = vmatprep.subr.bf16.mxu0 0
  %1382 = vmatpush1.bf16.msra.mxu0 %v1197
  %1383 = vmatprep.subr.bf16.mxu0 0
  %1384 = vmatpush1.bf16.msra.mxu0 0
  %1385 = vmatprep.subr.bf16.mxu0 0
  %1386 = vmatpush1.bf16.msra.mxu0 0
  %1387 = vmatprep.subr.bf16.mxu0 0
  %1388 = vmatpush1.bf16.msra.mxu0 0
  %1389 = vmatprep.subr.bf16.mxu0 0
  %1390 = vmatpush1.bf16.msra.mxu0 0
  %1391 = vmatprep.subr.bf16.mxu0 0
  %1392 = vmatpush1.bf16.msra.mxu0 0
  %1393 = vmatprep.subr.bf16.mxu0 0
  %1394 = vmatpush1.bf16.msra.mxu0 0
  %1395 = vmatprep.subr.bf16.mxu0 0
  %1396 = vmatpush1.bf16.msra.mxu0 0
  %1397 = vmatprep.subr.bf16.mxu0 0
  %1398 = vmatpush1.bf16.msra.mxu0 0
  %1399 = vmatprep.mubr.bf16.mxu0 0
  %1400 = vmatmul.mubr.bf16.gmra.mrb[0].mxu0 %v957
  %v1401 = vpop.f32.mrb[0].mxu0
  %v1402 = vadd.f32 0.0, %v1401
  %v1403 = vpop.f32.mrb[0].mxu0
  %v1404 = vpop.f32.mrb[0].mxu0
  %v1405 = vadd.f32 0.0, %v1404
  %v1406 = vpop.f32.mrb[0].mxu0
  %1407 = vmatprep.mubr.bf16.mxu0 0
  %1408 = vmatmul.mubr.bf16.gmra.mrb[0].mxu0 %v958
  %v1409 = vpop.f32.mrb[0].mxu0
  %v1410 = vadd.f32 0.0, %v1409
  %v1411 = vpop.f32.mrb[0].mxu0
  %v1412 = vpop.f32.mrb[0].mxu0
  %v1413 = vadd.f32 0.0, %v1412
  %v1414 = vpop.f32.mrb[0].mxu0
  %1415 = vmatprep.mubr.bf16.mxu0 0
  %1416 = vmatmul.mubr.bf16.gmra.mrb[0].mxu0 %v959
  %v1417 = vpop.f32.mrb[0].mxu0
  %v1418 = vadd.f32 0.0, %v1417
  %v1419 = vpop.f32.mrb[0].mxu0
  %v1420 = vpop.f32.mrb[0].mxu0
  %v1421 = vadd.f32 0.0, %v1420
  %v1422 = vpop.f32.mrb[0].mxu0
  %1423 = vmatprep.mubr.bf16.mxu0 0
  %1424 = vmatmul.mubr.bf16.gmra.mrb[0].mxu0 %v960
  %v1425 = vpop.f32.mrb[0].mxu0
  %v1426 = vadd.f32 0.0, %v1425
  %v1427 = vpop.f32.mrb[0].mxu0
  %v1428 = vpop.f32.mrb[0].mxu0
  %v1429 = vadd.f32 0.0, %v1428
  %v1430 = vpop.f32.mrb[0].mxu0
  %1431 = vmatprep.mubr.bf16.mxu0 0
  %1432 = vmatmul.mubr.bf16.gmra.mrb[0].mxu0 %v961
  %v1433 = vpop.f32.mrb[0].mxu0
  %v1434 = vadd.f32 0.0, %v1433
  %v1435 = vpop.f32.mrb[0].mxu0
  %v1436 = vpop.f32.mrb[0].mxu0
  %v1437 = vadd.f32 0.0, %v1436
  %v1438 = vpop.f32.mrb[0].mxu0
  %1439 = vmatprep.mubr.bf16.mxu0 0
  %1440 = vmatmul.mubr.bf16.gmra.mrb[0].mxu0 %v962
  %v1441 = vpop.f32.mrb[0].mxu0
  %v1442 = vadd.f32 0.0, %v1441
  %v1443 = vpop.f32.mrb[0].mxu0
  %v1444 = vpop.f32.mrb[0].mxu0
  %v1445 = vadd.f32 0.0, %v1444
  %v1446 = vpop.f32.mrb[0].mxu0
  %1447 = vmatprep.mubr.bf16.mxu0 0
  %1448 = vmatmul.mubr.bf16.gmra.mrb[0].mxu0 %v963
  %v1449 = vpop.f32.mrb[0].mxu0
  %v1450 = vadd.f32 0.0, %v1449
  %v1451 = vpop.f32.mrb[0].mxu0
  %v1452 = vpop.f32.mrb[0].mxu0
  %v1453 = vadd.f32 0.0, %v1452
  %v1454 = vpop.f32.mrb[0].mxu0
  %1455 = vmatprep.mubr.bf16.mxu0 0
  %1456 = vmatmul.mubr.bf16.gmra.mrb[0].mxu0 %v964
  %v1457 = vpop.f32.mrb[0].mxu0
  %v1458 = vadd.f32 0.0, %v1457
  %v1459 = vpop.f32.mrb[0].mxu0
  %v1460 = vpop.f32.mrb[0].mxu0
  %v1461 = vadd.f32 0.0, %v1460
  %v1462 = vpop.f32.mrb[0].mxu0
  %1463 = vdwg.mxu0
  %v1464 = vadd.f32 %v1150, %v1402
  %v1465 = vadd.f32 %v1151, %v1405
  %v1466 = vadd.f32 %v1152, %v1410
  %v1467 = vadd.f32 %v1153, %v1413
  %v1468 = vadd.f32 %v1154, %v1418
  %v1469 = vadd.f32 %v1155, %v1421
  %v1470 = vadd.f32 %v1156, %v1426
  %v1471 = vadd.f32 %v1157, %v1429
  %v1472 = vadd.f32 %v1158, %v1434
  %v1473 = vadd.f32 %v1159, %v1437
  %v1474 = vadd.f32 %v1160, %v1442
  %v1475 = vadd.f32 %v1161, %v1445
  %v1476 = vadd.f32 %v1162, %v1450
  %v1477 = vadd.f32 %v1163, %v1453
  %v1478 = vadd.f32 %v1164, %v1458
  %v1479 = vadd.f32 %v1165, %v1461
  %vm1480 = vcmp.gt.f32.partialorder %v1464, 0.0
  %vm1481 = vcmp.gt.f32.partialorder %v1465, 0.0
  %vm1482 = vcmp.gt.f32.partialorder %v1466, 0.0
  %vm1483 = vcmp.gt.f32.partialorder %v1467, 0.0
  %vm1484 = vcmp.gt.f32.partialorder %v1468, 0.0
  %vm1485 = vcmp.gt.f32.partialorder %v1469, 0.0
  %vm1486 = vcmp.gt.f32.partialorder %v1470, 0.0
  %vm1487 = vcmp.gt.f32.partialorder %v1471, 0.0
  %vm1488 = vcmp.gt.f32.partialorder %v1472, 0.0
  %vm1489 = vcmp.gt.f32.partialorder %v1473, 0.0
  %vm1490 = vcmp.gt.f32.partialorder %v1474, 0.0
  %vm1491 = vcmp.gt.f32.partialorder %v1475, 0.0
  %vm1492 = vcmp.gt.f32.partialorder %v1476, 0.0
  %vm1493 = vcmp.gt.f32.partialorder %v1477, 0.0
  %vm1494 = vcmp.gt.f32.partialorder %v1478, 0.0
  %vm1495 = vcmp.gt.f32.partialorder %v1479, 0.0
  %v1496 = vmul.f32 %v1464, 0.2
  %v1497 = vmul.f32 %v1465, 0.2
  %v1498 = vmul.f32 %v1466, 0.2
  %v1499 = vmul.f32 %v1467, 0.2
  %v1500 = vmul.f32 %v1468, 0.2
  %v1501 = vmul.f32 %v1469, 0.2
  %v1502 = vmul.f32 %v1470, 0.2
  %v1503 = vmul.f32 %v1471, 0.2
  %v1504 = vmul.f32 %v1472, 0.2
  %v1505 = vmul.f32 %v1473, 0.2
  %v1506 = vmul.f32 %v1474, 0.2
  %v1507 = vmul.f32 %v1475, 0.2
  %v1508 = vmul.f32 %v1476, 0.2
  %v1509 = vmul.f32 %v1477, 0.2
  %v1510 = vmul.f32 %v1478, 0.2
  %v1511 = vmul.f32 %v1479, 0.2
  %v1512 = vsel %vm1480, %v1464, %v1496
  %v1513 = vsel %vm1481, %v1465, %v1497
  %v1514 = vsel %vm1482, %v1466, %v1498
  %v1515 = vsel %vm1483, %v1467, %v1499
  %v1516 = vsel %vm1484, %v1468, %v1500
  %v1517 = vsel %vm1485, %v1469, %v1501
  %v1518 = vsel %vm1486, %v1470, %v1502
  %v1519 = vsel %vm1487, %v1471, %v1503
  %v1520 = vsel %vm1488, %v1472, %v1504
  %v1521 = vsel %vm1489, %v1473, %v1505
  %v1522 = vsel %vm1490, %v1474, %v1506
  %v1523 = vsel %vm1491, %v1475, %v1507
  %v1524 = vsel %vm1492, %v1476, %v1508
  %v1525 = vsel %vm1493, %v1477, %v1509
  %v1526 = vsel %vm1494, %v1478, %v1510
  %v1527 = vsel %vm1495, %v1479, %v1511
  %v1528 = vmax.f32 %v1351, %v1512
  %v1529 = vmax.f32 %v1352, %v1513
  %v1530 = vmax.f32 %v1353, %v1514
  %v1531 = vmax.f32 %v1354, %v1515
  %v1532 = vmax.f32 %v1355, %v1516
  %v1533 = vmax.f32 %v1356, %v1517
  %v1534 = vmax.f32 %v1357, %v1518
  %v1535 = vmax.f32 %v1358, %v1519
  %v1536 = vmax.f32 %v1359, %v1520
  %v1537 = vmax.f32 %v1360, %v1521
  %v1538 = vmax.f32 %v1361, %v1522
  %v1539 = vmax.f32 %v1362, %v1523
  %v1540 = vmax.f32 %v1363, %v1524
  %v1541 = vmax.f32 %v1364, %v1525
  %v1542 = vmax.f32 %v1365, %v1526
  %v1543 = vmax.f32 %v1366, %v1527
  %1544 = vmatprep.subr.bf16.mxu0 0
  %1545 = vmatpush1.bf16.msra.mxu0 %v1183
  %1546 = vmatprep.subr.bf16.mxu0 0
  %1547 = vmatpush1.bf16.msra.mxu0 %v1185
  %1548 = vmatprep.subr.bf16.mxu0 0
  %1549 = vmatpush1.bf16.msra.mxu0 %v1187
  %1550 = vmatprep.subr.bf16.mxu0 0
  %1551 = vmatpush1.bf16.msra.mxu0 %v1189
  %1552 = vmatprep.subr.bf16.mxu0 0
  %1553 = vmatpush1.bf16.msra.mxu0 %v1191
  %1554 = vmatprep.subr.bf16.mxu0 0
  %1555 = vmatpush1.bf16.msra.mxu0 %v1193
  %1556 = vmatprep.subr.bf16.mxu0 0
  %1557 = vmatpush1.bf16.msra.mxu0 %v1195
  %1558 = vmatprep.subr.bf16.mxu0 0
  %1559 = vmatpush1.bf16.msra.mxu0 %v1197
  %1560 = vmatprep.subr.bf16.mxu0 0
  %1561 = vmatpush1.bf16.msra.mxu0 0
  %1562 = vmatprep.subr.bf16.mxu0 0
  %1563 = vmatpush1.bf16.msra.mxu0 0
  %1564 = vmatprep.subr.bf16.mxu0 0
  %1565 = vmatpush1.bf16.msra.mxu0 0
  %1566 = vmatprep.subr.bf16.mxu0 0
  %1567 = vmatpush1.bf16.msra.mxu0 0
  %1568 = vmatprep.subr.bf16.mxu0 0
  %1569 = vmatpush1.bf16.msra.mxu0 0
  %1570 = vmatprep.subr.bf16.mxu0 0
  %1571 = vmatpush1.bf16.msra.mxu0 0
  %1572 = vmatprep.subr.bf16.mxu0 0
  %1573 = vmatpush1.bf16.msra.mxu0 0
  %1574 = vmatprep.subr.bf16.mxu0 0
  %1575 = vmatpush1.bf16.msra.mxu0 0
  %1576 = vmatprep.mubr.bf16.mxu0 0
  %1577 = vmatmul.mubr.bf16.gmra.mrb[0].mxu0 %v965
  %v1578 = vpop.f32.mrb[0].mxu0
  %v1579 = vadd.f32 0.0, %v1578
  %v1580 = vpop.f32.mrb[0].mxu0
  %v1581 = vpop.f32.mrb[0].mxu0
  %v1582 = vadd.f32 0.0, %v1581
  %v1583 = vpop.f32.mrb[0].mxu0
  %1584 = vmatprep.mubr.bf16.mxu0 0
  %1585 = vmatmul.mubr.bf16.gmra.mrb[0].mxu0 %v966
  %v1586 = vpop.f32.mrb[0].mxu0
  %v1587 = vadd.f32 0.0, %v1586
  %v1588 = vpop.f32.mrb[0].mxu0
  %v1589 = vpop.f32.mrb[0].mxu0
  %v1590 = vadd.f32 0.0, %v1589
  %v1591 = vpop.f32.mrb[0].mxu0
  %1592 = vmatprep.mubr.bf16.mxu0 0
  %1593 = vmatmul.mubr.bf16.gmra.mrb[0].mxu0 %v967
  %v1594 = vpop.f32.mrb[0].mxu0
  %v1595 = vadd.f32 0.0, %v1594
  %v1596 = vpop.f32.mrb[0].mxu0
  %v1597 = vpop.f32.mrb[0].mxu0
  %v1598 = vadd.f32 0.0, %v1597
  %v1599 = vpop.f32.mrb[0].mxu0
  %1600 = vmatprep.mubr.bf16.mxu0 0
  %1601 = vmatmul.mubr.bf16.gmra.mrb[0].mxu0 %v968
  %v1602 = vpop.f32.mrb[0].mxu0
  %v1603 = vadd.f32 0.0, %v1602
  %v1604 = vpop.f32.mrb[0].mxu0
  %v1605 = vpop.f32.mrb[0].mxu0
  %v1606 = vadd.f32 0.0, %v1605
  %v1607 = vpop.f32.mrb[0].mxu0
  %1608 = vmatprep.mubr.bf16.mxu0 0
  %1609 = vmatmul.mubr.bf16.gmra.mrb[0].mxu0 %v969
  %v1610 = vpop.f32.mrb[0].mxu0
  %v1611 = vadd.f32 0.0, %v1610
  %v1612 = vpop.f32.mrb[0].mxu0
  %v1613 = vpop.f32.mrb[0].mxu0
  %v1614 = vadd.f32 0.0, %v1613
  %v1615 = vpop.f32.mrb[0].mxu0
  %1616 = vmatprep.mubr.bf16.mxu0 0
  %1617 = vmatmul.mubr.bf16.gmra.mrb[0].mxu0 %v970
  %v1618 = vpop.f32.mrb[0].mxu0
  %v1619 = vadd.f32 0.0, %v1618
  %v1620 = vpop.f32.mrb[0].mxu0
  %v1621 = vpop.f32.mrb[0].mxu0
  %v1622 = vadd.f32 0.0, %v1621
  %v1623 = vpop.f32.mrb[0].mxu0
  %1624 = vmatprep.mubr.bf16.mxu0 0
  %1625 = vmatmul.mubr.bf16.gmra.mrb[0].mxu0 %v971
  %v1626 = vpop.f32.mrb[0].mxu0
  %v1627 = vadd.f32 0.0, %v1626
  %v1628 = vpop.f32.mrb[0].mxu0
  %v1629 = vpop.f32.mrb[0].mxu0
  %v1630 = vadd.f32 0.0, %v1629
  %v1631 = vpop.f32.mrb[0].mxu0
  %1632 = vmatprep.mubr.bf16.mxu0 0
  %1633 = vmatmul.mubr.bf16.gmra.mrb[0].mxu0 %v972
  %v1634 = vpop.f32.mrb[0].mxu0
  %v1635 = vadd.f32 0.0, %v1634
  %v1636 = vpop.f32.mrb[0].mxu0
  %v1637 = vpop.f32.mrb[0].mxu0
  %v1638 = vadd.f32 0.0, %v1637
  %v1639 = vpop.f32.mrb[0].mxu0
  %1640 = vdwg.mxu0
  %v1641 = vadd.f32 %v1150, %v1579
  %v1642 = vadd.f32 %v1151, %v1582
  %v1643 = vadd.f32 %v1152, %v1587
  %v1644 = vadd.f32 %v1153, %v1590
  %v1645 = vadd.f32 %v1154, %v1595
  %v1646 = vadd.f32 %v1155, %v1598
  %v1647 = vadd.f32 %v1156, %v1603
  %v1648 = vadd.f32 %v1157, %v1606
  %v1649 = vadd.f32 %v1158, %v1611
  %v1650 = vadd.f32 %v1159, %v1614
  %v1651 = vadd.f32 %v1160, %v1619
  %v1652 = vadd.f32 %v1161, %v1622
  %v1653 = vadd.f32 %v1162, %v1627
  %v1654 = vadd.f32 %v1163, %v1630
  %v1655 = vadd.f32 %v1164, %v1635
  %v1656 = vadd.f32 %v1165, %v1638
  %vm1657 = vcmp.gt.f32.partialorder %v1641, 0.0
  %vm1658 = vcmp.gt.f32.partialorder %v1642, 0.0
  %vm1659 = vcmp.gt.f32.partialorder %v1643, 0.0
  %vm1660 = vcmp.gt.f32.partialorder %v1644, 0.0
  %vm1661 = vcmp.gt.f32.partialorder %v1645, 0.0
  %vm1662 = vcmp.gt.f32.partialorder %v1646, 0.0
  %vm1663 = vcmp.gt.f32.partialorder %v1647, 0.0
  %vm1664 = vcmp.gt.f32.partialorder %v1648, 0.0
  %vm1665 = vcmp.gt.f32.partialorder %v1649, 0.0
  %vm1666 = vcmp.gt.f32.partialorder %v1650, 0.0
  %vm1667 = vcmp.gt.f32.partialorder %v1651, 0.0
  %vm1668 = vcmp.gt.f32.partialorder %v1652, 0.0
  %vm1669 = vcmp.gt.f32.partialorder %v1653, 0.0
  %vm1670 = vcmp.gt.f32.partialorder %v1654, 0.0
  %vm1671 = vcmp.gt.f32.partialorder %v1655, 0.0
  %vm1672 = vcmp.gt.f32.partialorder %v1656, 0.0
  %v1673 = vmul.f32 %v1641, 0.2
  %v1674 = vmul.f32 %v1642, 0.2
  %v1675 = vmul.f32 %v1643, 0.2
  %v1676 = vmul.f32 %v1644, 0.2
  %v1677 = vmul.f32 %v1645, 0.2
  %v1678 = vmul.f32 %v1646, 0.2
  %v1679 = vmul.f32 %v1647, 0.2
  %v1680 = vmul.f32 %v1648, 0.2
  %v1681 = vmul.f32 %v1649, 0.2
  %v1682 = vmul.f32 %v1650, 0.2
  %v1683 = vmul.f32 %v1651, 0.2
  %v1684 = vmul.f32 %v1652, 0.2
  %v1685 = vmul.f32 %v1653, 0.2
  %v1686 = vmul.f32 %v1654, 0.2
  %v1687 = vmul.f32 %v1655, 0.2
  %v1688 = vmul.f32 %v1656, 0.2
  %v1689 = vsel %vm1657, %v1641, %v1673
  %v1690 = vsel %vm1658, %v1642, %v1674
  %v1691 = vsel %vm1659, %v1643, %v1675
  %v1692 = vsel %vm1660, %v1644, %v1676
  %v1693 = vsel %vm1661, %v1645, %v1677
  %v1694 = vsel %vm1662, %v1646, %v1678
  %v1695 = vsel %vm1663, %v1647, %v1679
  %v1696 = vsel %vm1664, %v1648, %v1680
  %v1697 = vsel %vm1665, %v1649, %v1681
  %v1698 = vsel %vm1666, %v1650, %v1682
  %v1699 = vsel %vm1667, %v1651, %v1683
  %v1700 = vsel %vm1668, %v1652, %v1684
  %v1701 = vsel %vm1669, %v1653, %v1685
  %v1702 = vsel %vm1670, %v1654, %v1686
  %v1703 = vsel %vm1671, %v1655, %v1687
  %v1704 = vsel %vm1672, %v1656, %v1688
  %v1705 = vmax.f32 %v1528, %v1689
  %v1706 = vmax.f32 %v1529, %v1690
  %v1707 = vmax.f32 %v1530, %v1691
  %v1708 = vmax.f32 %v1531, %v1692
  %v1709 = vmax.f32 %v1532, %v1693
  %v1710 = vmax.f32 %v1533, %v1694
  %v1711 = vmax.f32 %v1534, %v1695
  %v1712 = vmax.f32 %v1535, %v1696
  %v1713 = vmax.f32 %v1536, %v1697
  %v1714 = vmax.f32 %v1537, %v1698
  %v1715 = vmax.f32 %v1538, %v1699
  %v1716 = vmax.f32 %v1539, %v1700
  %v1717 = vmax.f32 %v1540, %v1701
  %v1718 = vmax.f32 %v1541, %v1702
  %v1719 = vmax.f32 %v1542, %v1703
  %v1720 = vmax.f32 %v1543, %v1704
  %1721 = vmatprep.subr.bf16.mxu0 0
  %1722 = vmatpush1.bf16.msra.mxu0 %v1183
  %1723 = vmatprep.subr.bf16.mxu0 0
  %1724 = vmatpush1.bf16.msra.mxu0 %v1185
  %1725 = vmatprep.subr.bf16.mxu0 0
  %1726 = vmatpush1.bf16.msra.mxu0 %v1187
  %1727 = vmatprep.subr.bf16.mxu0 0
  %1728 = vmatpush1.bf16.msra.mxu0 %v1189
  %1729 = vmatprep.subr.bf16.mxu0 0
  %1730 = vmatpush1.bf16.msra.mxu0 %v1191
  %1731 = vmatprep.subr.bf16.mxu0 0
  %1732 = vmatpush1.bf16.msra.mxu0 %v1193
  %1733 = vmatprep.subr.bf16.mxu0 0
  %1734 = vmatpush1.bf16.msra.mxu0 %v1195
  %1735 = vmatprep.subr.bf16.mxu0 0
  %1736 = vmatpush1.bf16.msra.mxu0 %v1197
  %1737 = vmatprep.subr.bf16.mxu0 0
  %1738 = vmatpush1.bf16.msra.mxu0 0
  %1739 = vmatprep.subr.bf16.mxu0 0
  %1740 = vmatpush1.bf16.msra.mxu0 0
  %1741 = vmatprep.subr.bf16.mxu0 0
  %1742 = vmatpush1.bf16.msra.mxu0 0
  %1743 = vmatprep.subr.bf16.mxu0 0
  %1744 = vmatpush1.bf16.msra.mxu0 0
  %1745 = vmatprep.subr.bf16.mxu0 0
  %1746 = vmatpush1.bf16.msra.mxu0 0
  %1747 = vmatprep.subr.bf16.mxu0 0
  %1748 = vmatpush1.bf16.msra.mxu0 0
  %1749 = vmatprep.subr.bf16.mxu0 0
  %1750 = vmatpush1.bf16.msra.mxu0 0
  %1751 = vmatprep.subr.bf16.mxu0 0
  %1752 = vmatpush1.bf16.msra.mxu0 0
  %1753 = vmatprep.mubr.bf16.mxu0 0
  %1754 = vmatmul.mubr.bf16.gmra.mrb[0].mxu0 %v973
  %v1755 = vpop.f32.mrb[0].mxu0
  %v1756 = vadd.f32 0.0, %v1755
  %v1757 = vpop.f32.mrb[0].mxu0
  %v1758 = vpop.f32.mrb[0].mxu0
  %v1759 = vadd.f32 0.0, %v1758
  %v1760 = vpop.f32.mrb[0].mxu0
  %1761 = vmatprep.mubr.bf16.mxu0 0
  %1762 = vmatmul.mubr.bf16.gmra.mrb[0].mxu0 %v974
  %v1763 = vpop.f32.mrb[0].mxu0
  %v1764 = vadd.f32 0.0, %v1763
  %v1765 = vpop.f32.mrb[0].mxu0
  %v1766 = vpop.f32.mrb[0].mxu0
  %v1767 = vadd.f32 0.0, %v1766
  %v1768 = vpop.f32.mrb[0].mxu0
  %1769 = vmatprep.mubr.bf16.mxu0 0
  %1770 = vmatmul.mubr.bf16.gmra.mrb[0].mxu0 %v975
  %v1771 = vpop.f32.mrb[0].mxu0
  %v1772 = vadd.f32 0.0, %v1771
  %v1773 = vpop.f32.mrb[0].mxu0
  %v1774 = vpop.f32.mrb[0].mxu0
  %v1775 = vadd.f32 0.0, %v1774
  %v1776 = vpop.f32.mrb[0].mxu0
  %1777 = vmatprep.mubr.bf16.mxu0 0
  %1778 = vmatmul.mubr.bf16.gmra.mrb[0].mxu0 %v976
  %v1779 = vpop.f32.mrb[0].mxu0
  %v1780 = vadd.f32 0.0, %v1779
  %v1781 = vpop.f32.mrb[0].mxu0
  %v1782 = vpop.f32.mrb[0].mxu0
  %v1783 = vadd.f32 0.0, %v1782
  %v1784 = vpop.f32.mrb[0].mxu0
  %1785 = vmatprep.mubr.bf16.mxu0 0
  %1786 = vmatmul.mubr.bf16.gmra.mrb[0].mxu0 %v977
  %v1787 = vpop.f32.mrb[0].mxu0
  %v1788 = vadd.f32 0.0, %v1787
  %v1789 = vpop.f32.mrb[0].mxu0
  %v1790 = vpop.f32.mrb[0].mxu0
  %v1791 = vadd.f32 0.0, %v1790
  %v1792 = vpop.f32.mrb[0].mxu0
  %1793 = vmatprep.mubr.bf16.mxu0 0
  %1794 = vmatmul.mubr.bf16.gmra.mrb[0].mxu0 %v978
  %v1795 = vpop.f32.mrb[0].mxu0
  %v1796 = vadd.f32 0.0, %v1795
  %v1797 = vpop.f32.mrb[0].mxu0
  %v1798 = vpop.f32.mrb[0].mxu0
  %v1799 = vadd.f32 0.0, %v1798
  %v1800 = vpop.f32.mrb[0].mxu0
  %1801 = vmatprep.mubr.bf16.mxu0 0
  %1802 = vmatmul.mubr.bf16.gmra.mrb[0].mxu0 %v979
  %v1803 = vpop.f32.mrb[0].mxu0
  %v1804 = vadd.f32 0.0, %v1803
  %v1805 = vpop.f32.mrb[0].mxu0
  %v1806 = vpop.f32.mrb[0].mxu0
  %v1807 = vadd.f32 0.0, %v1806
  %v1808 = vpop.f32.mrb[0].mxu0
  %1809 = vmatprep.mubr.bf16.mxu0 0
  %1810 = vmatmul.mubr.bf16.gmra.mrb[0].mxu0 %v980
  %v1811 = vpop.f32.mrb[0].mxu0
  %v1812 = vadd.f32 0.0, %v1811
  %v1813 = vpop.f32.mrb[0].mxu0
  %v1814 = vpop.f32.mrb[0].mxu0
  %v1815 = vadd.f32 0.0, %v1814
  %v1816 = vpop.f32.mrb[0].mxu0
  %1817 = vdwg.mxu0
  %v1818 = vadd.f32 %v1150, %v1756
  %v1819 = vadd.f32 %v1151, %v1759
  %v1820 = vadd.f32 %v1152, %v1764
  %v1821 = vadd.f32 %v1153, %v1767
  %v1822 = vadd.f32 %v1154, %v1772
  %v1823 = vadd.f32 %v1155, %v1775
  %v1824 = vadd.f32 %v1156, %v1780
  %v1825 = vadd.f32 %v1157, %v1783
  %v1826 = vadd.f32 %v1158, %v1788
  %v1827 = vadd.f32 %v1159, %v1791
  %v1828 = vadd.f32 %v1160, %v1796
  %v1829 = vadd.f32 %v1161, %v1799
  %v1830 = vadd.f32 %v1162, %v1804
  %v1831 = vadd.f32 %v1163, %v1807
  %v1832 = vadd.f32 %v1164, %v1812
  %v1833 = vadd.f32 %v1165, %v1815
  %vm1834 = vcmp.gt.f32.partialorder %v1818, 0.0
  %vm1835 = vcmp.gt.f32.partialorder %v1819, 0.0
  %vm1836 = vcmp.gt.f32.partialorder %v1820, 0.0
  %vm1837 = vcmp.gt.f32.partialorder %v1821, 0.0
  %vm1838 = vcmp.gt.f32.partialorder %v1822, 0.0
  %vm1839 = vcmp.gt.f32.partialorder %v1823, 0.0
  %vm1840 = vcmp.gt.f32.partialorder %v1824, 0.0
  %vm1841 = vcmp.gt.f32.partialorder %v1825, 0.0
  %vm1842 = vcmp.gt.f32.partialorder %v1826, 0.0
  %vm1843 = vcmp.gt.f32.partialorder %v1827, 0.0
  %vm1844 = vcmp.gt.f32.partialorder %v1828, 0.0
  %vm1845 = vcmp.gt.f32.partialorder %v1829, 0.0
  %vm1846 = vcmp.gt.f32.partialorder %v1830, 0.0
  %vm1847 = vcmp.gt.f32.partialorder %v1831, 0.0
  %vm1848 = vcmp.gt.f32.partialorder %v1832, 0.0
  %vm1849 = vcmp.gt.f32.partialorder %v1833, 0.0
  %v1850 = vmul.f32 %v1818, 0.2
  %v1851 = vmul.f32 %v1819, 0.2
  %v1852 = vmul.f32 %v1820, 0.2
  %v1853 = vmul.f32 %v1821, 0.2
  %v1854 = vmul.f32 %v1822, 0.2
  %v1855 = vmul.f32 %v1823, 0.2
  %v1856 = vmul.f32 %v1824, 0.2
  %v1857 = vmul.f32 %v1825, 0.2
  %v1858 = vmul.f32 %v1826, 0.2
  %v1859 = vmul.f32 %v1827, 0.2
  %v1860 = vmul.f32 %v1828, 0.2
  %v1861 = vmul.f32 %v1829, 0.2
  %v1862 = vmul.f32 %v1830, 0.2
  %v1863 = vmul.f32 %v1831, 0.2
  %v1864 = vmul.f32 %v1832, 0.2
  %v1865 = vmul.f32 %v1833, 0.2
  %v1866 = vsel %vm1834, %v1818, %v1850
  %v1867 = vsel %vm1835, %v1819, %v1851
  %v1868 = vsel %vm1836, %v1820, %v1852
  %v1869 = vsel %vm1837, %v1821, %v1853
  %v1870 = vsel %vm1838, %v1822, %v1854
  %v1871 = vsel %vm1839, %v1823, %v1855
  %v1872 = vsel %vm1840, %v1824, %v1856
  %v1873 = vsel %vm1841, %v1825, %v1857
  %v1874 = vsel %vm1842, %v1826, %v1858
  %v1875 = vsel %vm1843, %v1827, %v1859
  %v1876 = vsel %vm1844, %v1828, %v1860
  %v1877 = vsel %vm1845, %v1829, %v1861
  %v1878 = vsel %vm1846, %v1830, %v1862
  %v1879 = vsel %vm1847, %v1831, %v1863
  %v1880 = vsel %vm1848, %v1832, %v1864
  %v1881 = vsel %vm1849, %v1833, %v1865
  %v1882 = vmax.f32 %v1705, %v1866
  %v1883 = vmax.f32 %v1706, %v1867
  %v1884 = vmax.f32 %v1707, %v1868
  %v1885 = vmax.f32 %v1708, %v1869
  %v1886 = vmax.f32 %v1709, %v1870
  %v1887 = vmax.f32 %v1710, %v1871
  %v1888 = vmax.f32 %v1711, %v1872
  %v1889 = vmax.f32 %v1712, %v1873
  %v1890 = vmax.f32 %v1713, %v1874
  %v1891 = vmax.f32 %v1714, %v1875
  %v1892 = vmax.f32 %v1715, %v1876
  %v1893 = vmax.f32 %v1716, %v1877
  %v1894 = vmax.f32 %v1717, %v1878
  %v1895 = vmax.f32 %v1718, %v1879
  %v1896 = vmax.f32 %v1719, %v1880
  %v1897 = vmax.f32 %v1720, %v1881
  %1898 = vmatprep.subr.bf16.mxu0 0
  %1899 = vmatpush1.bf16.msra.mxu0 %v1183
  %1900 = vmatprep.subr.bf16.mxu0 0
  %1901 = vmatpush1.bf16.msra.mxu0 %v1185
  %1902 = vmatprep.subr.bf16.mxu0 0
  %1903 = vmatpush1.bf16.msra.mxu0 %v1187
  %1904 = vmatprep.subr.bf16.mxu0 0
  %1905 = vmatpush1.bf16.msra.mxu0 %v1189
  %1906 = vmatprep.subr.bf16.mxu0 0
  %1907 = vmatpush1.bf16.msra.mxu0 %v1191
  %1908 = vmatprep.subr.bf16.mxu0 0
  %1909 = vmatpush1.bf16.msra.mxu0 %v1193
  %1910 = vmatprep.subr.bf16.mxu0 0
  %1911 = vmatpush1.bf16.msra.mxu0 %v1195
  %1912 = vmatprep.subr.bf16.mxu0 0
  %1913 = vmatpush1.bf16.msra.mxu0 %v1197
  %1914 = vmatprep.subr.bf16.mxu0 0
  %1915 = vmatpush1.bf16.msra.mxu0 0
  %1916 = vmatprep.subr.bf16.mxu0 0
  %1917 = vmatpush1.bf16.msra.mxu0 0
  %1918 = vmatprep.subr.bf16.mxu0 0
  %1919 = vmatpush1.bf16.msra.mxu0 0
  %1920 = vmatprep.subr.bf16.mxu0 0
  %1921 = vmatpush1.bf16.msra.mxu0 0
  %1922 = vmatprep.subr.bf16.mxu0 0
  %1923 = vmatpush1.bf16.msra.mxu0 0
  %1924 = vmatprep.subr.bf16.mxu0 0
  %1925 = vmatpush1.bf16.msra.mxu0 0
  %1926 = vmatprep.subr.bf16.mxu0 0
  %1927 = vmatpush1.bf16.msra.mxu0 0
  %1928 = vmatprep.subr.bf16.mxu0 0
  %1929 = vmatpush1.bf16.msra.mxu0 0
  %1930 = vmatprep.mubr.bf16.mxu0 0
  %1931 = vmatmul.mubr.bf16.gmra.mrb[0].mxu0 %v981
  %v1932 = vpop.f32.mrb[0].mxu0
  %v1933 = vadd.f32 0.0, %v1932
  %v1934 = vpop.f32.mrb[0].mxu0
  %v1935 = vpop.f32.mrb[0].mxu0
  %v1936 = vadd.f32 0.0, %v1935
  %v1937 = vpop.f32.mrb[0].mxu0
  %1938 = vmatprep.mubr.bf16.mxu0 0
  %1939 = vmatmul.mubr.bf16.gmra.mrb[0].mxu0 %v982
  %v1940 = vpop.f32.mrb[0].mxu0
  %v1941 = vadd.f32 0.0, %v1940
  %v1942 = vpop.f32.mrb[0].mxu0
  %v1943 = vpop.f32.mrb[0].mxu0
  %v1944 = vadd.f32 0.0, %v1943
  %v1945 = vpop.f32.mrb[0].mxu0
  %1946 = vmatprep.mubr.bf16.mxu0 0
  %1947 = vmatmul.mubr.bf16.gmra.mrb[0].mxu0 %v983
  %v1948 = vpop.f32.mrb[0].mxu0
  %v1949 = vadd.f32 0.0, %v1948
  %v1950 = vpop.f32.mrb[0].mxu0
  %v1951 = vpop.f32.mrb[0].mxu0
  %v1952 = vadd.f32 0.0, %v1951
  %v1953 = vpop.f32.mrb[0].mxu0
  %1954 = vmatprep.mubr.bf16.mxu0 0
  %1955 = vmatmul.mubr.bf16.gmra.mrb[0].mxu0 %v984
  %v1956 = vpop.f32.mrb[0].mxu0
  %v1957 = vadd.f32 0.0, %v1956
  %v1958 = vpop.f32.mrb[0].mxu0
  %v1959 = vpop.f32.mrb[0].mxu0
  %v1960 = vadd.f32 0.0, %v1959
  %v1961 = vpop.f32.mrb[0].mxu0
  %1962 = vmatprep.mubr.bf16.mxu0 0
  %1963 = vmatmul.mubr.bf16.gmra.mrb[0].mxu0 %v985
  %v1964 = vpop.f32.mrb[0].mxu0
  %v1965 = vadd.f32 0.0, %v1964
  %v1966 = vpop.f32.mrb[0].mxu0
  %v1967 = vpop.f32.mrb[0].mxu0
  %v1968 = vadd.f32 0.0, %v1967
  %v1969 = vpop.f32.mrb[0].mxu0
  %1970 = vmatprep.mubr.bf16.mxu0 0
  %1971 = vmatmul.mubr.bf16.gmra.mrb[0].mxu0 %v986
  %v1972 = vpop.f32.mrb[0].mxu0
  %v1973 = vadd.f32 0.0, %v1972
  %v1974 = vpop.f32.mrb[0].mxu0
  %v1975 = vpop.f32.mrb[0].mxu0
  %v1976 = vadd.f32 0.0, %v1975
  %v1977 = vpop.f32.mrb[0].mxu0
  %1978 = vmatprep.mubr.bf16.mxu0 0
  %1979 = vmatmul.mubr.bf16.gmra.mrb[0].mxu0 %v987
  %v1980 = vpop.f32.mrb[0].mxu0
  %v1981 = vadd.f32 0.0, %v1980
  %v1982 = vpop.f32.mrb[0].mxu0
  %v1983 = vpop.f32.mrb[0].mxu0
  %v1984 = vadd.f32 0.0, %v1983
  %v1985 = vpop.f32.mrb[0].mxu0
  %1986 = vmatprep.mubr.bf16.mxu0 0
  %1987 = vmatmul.mubr.bf16.gmra.mrb[0].mxu0 %v988
  %v1988 = vpop.f32.mrb[0].mxu0
  %v1989 = vadd.f32 0.0, %v1988
  %v1990 = vpop.f32.mrb[0].mxu0
  %v1991 = vpop.f32.mrb[0].mxu0
  %v1992 = vadd.f32 0.0, %v1991
  %v1993 = vpop.f32.mrb[0].mxu0
  %1994 = vdwg.mxu0
  %v1995 = vadd.f32 %v1150, %v1933
  %v1996 = vadd.f32 %v1151, %v1936
  %v1997 = vadd.f32 %v1152, %v1941
  %v1998 = vadd.f32 %v1153, %v1944
  %v1999 = vadd.f32 %v1154, %v1949
  %v2000 = vadd.f32 %v1155, %v1952
  %v2001 = vadd.f32 %v1156, %v1957
  %v2002 = vadd.f32 %v1157, %v1960
  %v2003 = vadd.f32 %v1158, %v1965
  %v2004 = vadd.f32 %v1159, %v1968
  %v2005 = vadd.f32 %v1160, %v1973
  %v2006 = vadd.f32 %v1161, %v1976
  %v2007 = vadd.f32 %v1162, %v1981
  %v2008 = vadd.f32 %v1163, %v1984
  %v2009 = vadd.f32 %v1164, %v1989
  %v2010 = vadd.f32 %v1165, %v1992
  %vm2011 = vcmp.gt.f32.partialorder %v1995, 0.0
  %vm2012 = vcmp.gt.f32.partialorder %v1996, 0.0
  %vm2013 = vcmp.gt.f32.partialorder %v1997, 0.0
  %vm2014 = vcmp.gt.f32.partialorder %v1998, 0.0
  %vm2015 = vcmp.gt.f32.partialorder %v1999, 0.0
  %vm2016 = vcmp.gt.f32.partialorder %v2000, 0.0
  %vm2017 = vcmp.gt.f32.partialorder %v2001, 0.0
  %vm2018 = vcmp.gt.f32.partialorder %v2002, 0.0
  %vm2019 = vcmp.gt.f32.partialorder %v2003, 0.0
  %vm2020 = vcmp.gt.f32.partialorder %v2004, 0.0
  %vm2021 = vcmp.gt.f32.partialorder %v2005, 0.0
  %vm2022 = vcmp.gt.f32.partialorder %v2006, 0.0
  %vm2023 = vcmp.gt.f32.partialorder %v2007, 0.0
  %vm2024 = vcmp.gt.f32.partialorder %v2008, 0.0
  %vm2025 = vcmp.gt.f32.partialorder %v2009, 0.0
  %vm2026 = vcmp.gt.f32.partialorder %v2010, 0.0
  %v2027 = vmul.f32 %v1995, 0.2
  %v2028 = vmul.f32 %v1996, 0.2
  %v2029 = vmul.f32 %v1997, 0.2
  %v2030 = vmul.f32 %v1998, 0.2
  %v2031 = vmul.f32 %v1999, 0.2
  %v2032 = vmul.f32 %v2000, 0.2
  %v2033 = vmul.f32 %v2001, 0.2
  %v2034 = vmul.f32 %v2002, 0.2
  %v2035 = vmul.f32 %v2003, 0.2
  %v2036 = vmul.f32 %v2004, 0.2
  %v2037 = vmul.f32 %v2005, 0.2
  %v2038 = vmul.f32 %v2006, 0.2
  %v2039 = vmul.f32 %v2007, 0.2
  %v2040 = vmul.f32 %v2008, 0.2
  %v2041 = vmul.f32 %v2009, 0.2
  %v2042 = vmul.f32 %v2010, 0.2
  %v2043 = vsel %vm2011, %v1995, %v2027
  %v2044 = vsel %vm2012, %v1996, %v2028
  %v2045 = vsel %vm2013, %v1997, %v2029
  %v2046 = vsel %vm2014, %v1998, %v2030
  %v2047 = vsel %vm2015, %v1999, %v2031
  %v2048 = vsel %vm2016, %v2000, %v2032
  %v2049 = vsel %vm2017, %v2001, %v2033
  %v2050 = vsel %vm2018, %v2002, %v2034
  %v2051 = vsel %vm2019, %v2003, %v2035
  %v2052 = vsel %vm2020, %v2004, %v2036
  %v2053 = vsel %vm2021, %v2005, %v2037
  %v2054 = vsel %vm2022, %v2006, %v2038
  %v2055 = vsel %vm2023, %v2007, %v2039
  %v2056 = vsel %vm2024, %v2008, %v2040
  %v2057 = vsel %vm2025, %v2009, %v2041
  %v2058 = vsel %vm2026, %v2010, %v2042
  %v2059 = vmax.f32 %v1882, %v2043
  %v2060 = vmax.f32 %v1883, %v2044
  %v2061 = vmax.f32 %v1884, %v2045
  %v2062 = vmax.f32 %v1885, %v2046
  %v2063 = vmax.f32 %v1886, %v2047
  %v2064 = vmax.f32 %v1887, %v2048
  %v2065 = vmax.f32 %v1888, %v2049
  %v2066 = vmax.f32 %v1889, %v2050
  %v2067 = vmax.f32 %v1890, %v2051
  %v2068 = vmax.f32 %v1891, %v2052
  %v2069 = vmax.f32 %v1892, %v2053
  %v2070 = vmax.f32 %v1893, %v2054
  %v2071 = vmax.f32 %v1894, %v2055
  %v2072 = vmax.f32 %v1895, %v2056
  %v2073 = vmax.f32 %v1896, %v2057
  %v2074 = vmax.f32 %v1897, %v2058
  %2075 = vmatprep.subr.bf16.mxu0 0
  %2076 = vmatpush1.bf16.msra.mxu0 %v1183
  %2077 = vmatprep.subr.bf16.mxu0 0
  %2078 = vmatpush1.bf16.msra.mxu0 %v1185
  %2079 = vmatprep.subr.bf16.mxu0 0
  %2080 = vmatpush1.bf16.msra.mxu0 %v1187
  %2081 = vmatprep.subr.bf16.mxu0 0
  %2082 = vmatpush1.bf16.msra.mxu0 %v1189
  %2083 = vmatprep.subr.bf16.mxu0 0
  %2084 = vmatpush1.bf16.msra.mxu0 %v1191
  %2085 = vmatprep.subr.bf16.mxu0 0
  %2086 = vmatpush1.bf16.msra.mxu0 %v1193
  %2087 = vmatprep.subr.bf16.mxu0 0
  %2088 = vmatpush1.bf16.msra.mxu0 %v1195
  %2089 = vmatprep.subr.bf16.mxu0 0
  %2090 = vmatpush1.bf16.msra.mxu0 %v1197
  %2091 = vmatprep.subr.bf16.mxu0 0
  %2092 = vmatpush1.bf16.msra.mxu0 0
  %2093 = vmatprep.subr.bf16.mxu0 0
  %2094 = vmatpush1.bf16.msra.mxu0 0
  %2095 = vmatprep.subr.bf16.mxu0 0
  %2096 = vmatpush1.bf16.msra.mxu0 0
  %2097 = vmatprep.subr.bf16.mxu0 0
  %2098 = vmatpush1.bf16.msra.mxu0 0
  %2099 = vmatprep.subr.bf16.mxu0 0
  %2100 = vmatpush1.bf16.msra.mxu0 0
  %2101 = vmatprep.subr.bf16.mxu0 0
  %2102 = vmatpush1.bf16.msra.mxu0 0
  %2103 = vmatprep.subr.bf16.mxu0 0
  %2104 = vmatpush1.bf16.msra.mxu0 0
  %2105 = vmatprep.subr.bf16.mxu0 0
  %2106 = vmatpush1.bf16.msra.mxu0 0
  %2107 = vmatprep.mubr.bf16.mxu0 0
  %2108 = vmatmul.mubr.bf16.gmra.mrb[0].mxu0 %v989
  %v2109 = vpop.f32.mrb[0].mxu0
  %v2110 = vadd.f32 0.0, %v2109
  %v2111 = vpop.f32.mrb[0].mxu0
  %v2112 = vpop.f32.mrb[0].mxu0
  %v2113 = vadd.f32 0.0, %v2112
  %v2114 = vpop.f32.mrb[0].mxu0
  %2115 = vmatprep.mubr.bf16.mxu0 0
  %2116 = vmatmul.mubr.bf16.gmra.mrb[0].mxu0 %v990
  %v2117 = vpop.f32.mrb[0].mxu0
  %v2118 = vadd.f32 0.0, %v2117
  %v2119 = vpop.f32.mrb[0].mxu0
  %v2120 = vpop.f32.mrb[0].mxu0
  %v2121 = vadd.f32 0.0, %v2120
  %v2122 = vpop.f32.mrb[0].mxu0
  %2123 = vmatprep.mubr.bf16.mxu0 0
  %2124 = vmatmul.mubr.bf16.gmra.mrb[0].mxu0 %v991
  %v2125 = vpop.f32.mrb[0].mxu0
  %v2126 = vadd.f32 0.0, %v2125
  %v2127 = vpop.f32.mrb[0].mxu0
  %v2128 = vpop.f32.mrb[0].mxu0
  %v2129 = vadd.f32 0.0, %v2128
  %v2130 = vpop.f32.mrb[0].mxu0
  %2131 = vmatprep.mubr.bf16.mxu0 0
  %2132 = vmatmul.mubr.bf16.gmra.mrb[0].mxu0 %v992
  %v2133 = vpop.f32.mrb[0].mxu0
  %v2134 = vadd.f32 0.0, %v2133
  %v2135 = vpop.f32.mrb[0].mxu0
  %v2136 = vpop.f32.mrb[0].mxu0
  %v2137 = vadd.f32 0.0, %v2136
  %v2138 = vpop.f32.mrb[0].mxu0
  %2139 = vmatprep.mubr.bf16.mxu0 0
  %2140 = vmatmul.mubr.bf16.gmra.mrb[0].mxu0 %v993
  %v2141 = vpop.f32.mrb[0].mxu0
  %v2142 = vadd.f32 0.0, %v2141
  %v2143 = vpop.f32.mrb[0].mxu0
  %v2144 = vpop.f32.mrb[0].mxu0
  %v2145 = vadd.f32 0.0, %v2144
  %v2146 = vpop.f32.mrb[0].mxu0
  %2147 = vmatprep.mubr.bf16.mxu0 0
  %2148 = vmatmul.mubr.bf16.gmra.mrb[0].mxu0 %v994
  %v2149 = vpop.f32.mrb[0].mxu0
  %v2150 = vadd.f32 0.0, %v2149
  %v2151 = vpop.f32.mrb[0].mxu0
  %v2152 = vpop.f32.mrb[0].mxu0
  %v2153 = vadd.f32 0.0, %v2152
  %v2154 = vpop.f32.mrb[0].mxu0
  %2155 = vmatprep.mubr.bf16.mxu0 0
  %2156 = vmatmul.mubr.bf16.gmra.mrb[0].mxu0 %v995
  %v2157 = vpop.f32.mrb[0].mxu0
  %v2158 = vadd.f32 0.0, %v2157
  %v2159 = vpop.f32.mrb[0].mxu0
  %v2160 = vpop.f32.mrb[0].mxu0
  %v2161 = vadd.f32 0.0, %v2160
  %v2162 = vpop.f32.mrb[0].mxu0
  %2163 = vmatprep.mubr.bf16.mxu0 0
  %2164 = vmatmul.mubr.bf16.gmra.mrb[0].mxu0 %v996
  %v2165 = vpop.f32.mrb[0].mxu0
  %v2166 = vadd.f32 0.0, %v2165
  %v2167 = vpop.f32.mrb[0].mxu0
  %v2168 = vpop.f32.mrb[0].mxu0
  %v2169 = vadd.f32 0.0, %v2168
  %v2170 = vpop.f32.mrb[0].mxu0
  %2171 = vdwg.mxu0
  %v2172 = vadd.f32 %v1150, %v2110
  %v2173 = vadd.f32 %v1151, %v2113
  %v2174 = vadd.f32 %v1152, %v2118
  %v2175 = vadd.f32 %v1153, %v2121
  %v2176 = vadd.f32 %v1154, %v2126
  %v2177 = vadd.f32 %v1155, %v2129
  %v2178 = vadd.f32 %v1156, %v2134
  %v2179 = vadd.f32 %v1157, %v2137
  %v2180 = vadd.f32 %v1158, %v2142
  %v2181 = vadd.f32 %v1159, %v2145
  %v2182 = vadd.f32 %v1160, %v2150
  %v2183 = vadd.f32 %v1161, %v2153
  %v2184 = vadd.f32 %v1162, %v2158
  %v2185 = vadd.f32 %v1163, %v2161
  %v2186 = vadd.f32 %v1164, %v2166
  %v2187 = vadd.f32 %v1165, %v2169
  %vm2188 = vcmp.gt.f32.partialorder %v2172, 0.0
  %vm2189 = vcmp.gt.f32.partialorder %v2173, 0.0
  %vm2190 = vcmp.gt.f32.partialorder %v2174, 0.0
  %vm2191 = vcmp.gt.f32.partialorder %v2175, 0.0
  %vm2192 = vcmp.gt.f32.partialorder %v2176, 0.0
  %vm2193 = vcmp.gt.f32.partialorder %v2177, 0.0
  %vm2194 = vcmp.gt.f32.partialorder %v2178, 0.0
  %vm2195 = vcmp.gt.f32.partialorder %v2179, 0.0
  %vm2196 = vcmp.gt.f32.partialorder %v2180, 0.0
  %vm2197 = vcmp.gt.f32.partialorder %v2181, 0.0
  %vm2198 = vcmp.gt.f32.partialorder %v2182, 0.0
  %vm2199 = vcmp.gt.f32.partialorder %v2183, 0.0
  %vm2200 = vcmp.gt.f32.partialorder %v2184, 0.0
  %vm2201 = vcmp.gt.f32.partialorder %v2185, 0.0
  %vm2202 = vcmp.gt.f32.partialorder %v2186, 0.0
  %vm2203 = vcmp.gt.f32.partialorder %v2187, 0.0
  %v2204 = vmul.f32 %v2172, 0.2
  %v2205 = vmul.f32 %v2173, 0.2
  %v2206 = vmul.f32 %v2174, 0.2
  %v2207 = vmul.f32 %v2175, 0.2
  %v2208 = vmul.f32 %v2176, 0.2
  %v2209 = vmul.f32 %v2177, 0.2
  %v2210 = vmul.f32 %v2178, 0.2
  %v2211 = vmul.f32 %v2179, 0.2
  %v2212 = vmul.f32 %v2180, 0.2
  %v2213 = vmul.f32 %v2181, 0.2
  %v2214 = vmul.f32 %v2182, 0.2
  %v2215 = vmul.f32 %v2183, 0.2
  %v2216 = vmul.f32 %v2184, 0.2
  %v2217 = vmul.f32 %v2185, 0.2
  %v2218 = vmul.f32 %v2186, 0.2
  %v2219 = vmul.f32 %v2187, 0.2
  %v2220 = vsel %vm2188, %v2172, %v2204
  %v2221 = vsel %vm2189, %v2173, %v2205
  %v2222 = vsel %vm2190, %v2174, %v2206
  %v2223 = vsel %vm2191, %v2175, %v2207
  %v2224 = vsel %vm2192, %v2176, %v2208
  %v2225 = vsel %vm2193, %v2177, %v2209
  %v2226 = vsel %vm2194, %v2178, %v2210
  %v2227 = vsel %vm2195, %v2179, %v2211
  %v2228 = vsel %vm2196, %v2180, %v2212
  %v2229 = vsel %vm2197, %v2181, %v2213
  %v2230 = vsel %vm2198, %v2182, %v2214
  %v2231 = vsel %vm2199, %v2183, %v2215
  %v2232 = vsel %vm2200, %v2184, %v2216
  %v2233 = vsel %vm2201, %v2185, %v2217
  %v2234 = vsel %vm2202, %v2186, %v2218
  %v2235 = vsel %vm2203, %v2187, %v2219
  %v2236 = vmax.f32 %v2059, %v2220
  %v2237 = vmax.f32 %v2060, %v2221
  %v2238 = vmax.f32 %v2061, %v2222
  %v2239 = vmax.f32 %v2062, %v2223
  %v2240 = vmax.f32 %v2063, %v2224
  %v2241 = vmax.f32 %v2064, %v2225
  %v2242 = vmax.f32 %v2065, %v2226
  %v2243 = vmax.f32 %v2066, %v2227
  %v2244 = vmax.f32 %v2067, %v2228
  %v2245 = vmax.f32 %v2068, %v2229
  %v2246 = vmax.f32 %v2069, %v2230
  %v2247 = vmax.f32 %v2070, %v2231
  %v2248 = vmax.f32 %v2071, %v2232
  %v2249 = vmax.f32 %v2072, %v2233
  %v2250 = vmax.f32 %v2073, %v2234
  %v2251 = vmax.f32 %v2074, %v2235
  %2252 = vmatprep.subr.bf16.mxu0 0
  %2253 = vmatpush1.bf16.msra.mxu0 %v1183
  %2254 = vmatprep.subr.bf16.mxu0 0
  %2255 = vmatpush1.bf16.msra.mxu0 %v1185
  %2256 = vmatprep.subr.bf16.mxu0 0
  %2257 = vmatpush1.bf16.msra.mxu0 %v1187
  %2258 = vmatprep.subr.bf16.mxu0 0
  %2259 = vmatpush1.bf16.msra.mxu0 %v1189
  %2260 = vmatprep.subr.bf16.mxu0 0
  %2261 = vmatpush1.bf16.msra.mxu0 %v1191
  %2262 = vmatprep.subr.bf16.mxu0 0
  %2263 = vmatpush1.bf16.msra.mxu0 %v1193
  %2264 = vmatprep.subr.bf16.mxu0 0
  %2265 = vmatpush1.bf16.msra.mxu0 %v1195
  %2266 = vmatprep.subr.bf16.mxu0 0
  %2267 = vmatpush1.bf16.msra.mxu0 %v1197
  %2268 = vmatprep.subr.bf16.mxu0 0
  %2269 = vmatpush1.bf16.msra.mxu0 0
  %2270 = vmatprep.subr.bf16.mxu0 0
  %2271 = vmatpush1.bf16.msra.mxu0 0
  %2272 = vmatprep.subr.bf16.mxu0 0
  %2273 = vmatpush1.bf16.msra.mxu0 0
  %2274 = vmatprep.subr.bf16.mxu0 0
  %2275 = vmatpush1.bf16.msra.mxu0 0
  %2276 = vmatprep.subr.bf16.mxu0 0
  %2277 = vmatpush1.bf16.msra.mxu0 0
  %2278 = vmatprep.subr.bf16.mxu0 0
  %2279 = vmatpush1.bf16.msra.mxu0 0
  %2280 = vmatprep.subr.bf16.mxu0 0
  %2281 = vmatpush1.bf16.msra.mxu0 0
  %2282 = vmatprep.subr.bf16.mxu0 0
  %2283 = vmatpush1.bf16.msra.mxu0 0
  %2284 = vmatprep.mubr.bf16.mxu0 0
  %2285 = vmatmul.mubr.bf16.gmra.mrb[0].mxu0 %v997
  %v2286 = vpop.f32.mrb[0].mxu0
  %v2287 = vadd.f32 0.0, %v2286
  %v2288 = vpop.f32.mrb[0].mxu0
  %v2289 = vpop.f32.mrb[0].mxu0
  %v2290 = vadd.f32 0.0, %v2289
  %v2291 = vpop.f32.mrb[0].mxu0
  %2292 = vmatprep.mubr.bf16.mxu0 0
  %2293 = vmatmul.mubr.bf16.gmra.mrb[0].mxu0 %v998
  %v2294 = vpop.f32.mrb[0].mxu0
  %v2295 = vadd.f32 0.0, %v2294
  %v2296 = vpop.f32.mrb[0].mxu0
  %v2297 = vpop.f32.mrb[0].mxu0
  %v2298 = vadd.f32 0.0, %v2297
  %v2299 = vpop.f32.mrb[0].mxu0
  %2300 = vmatprep.mubr.bf16.mxu0 0
  %2301 = vmatmul.mubr.bf16.gmra.mrb[0].mxu0 %v999
  %v2302 = vpop.f32.mrb[0].mxu0
  %v2303 = vadd.f32 0.0, %v2302
  %v2304 = vpop.f32.mrb[0].mxu0
  %v2305 = vpop.f32.mrb[0].mxu0
  %v2306 = vadd.f32 0.0, %v2305
  %v2307 = vpop.f32.mrb[0].mxu0
  %2308 = vmatprep.mubr.bf16.mxu0 0
  %2309 = vmatmul.mubr.bf16.gmra.mrb[0].mxu0 %v1000
  %v2310 = vpop.f32.mrb[0].mxu0
  %v2311 = vadd.f32 0.0, %v2310
  %v2312 = vpop.f32.mrb[0].mxu0
  %v2313 = vpop.f32.mrb[0].mxu0
  %v2314 = vadd.f32 0.0, %v2313
  %v2315 = vpop.f32.mrb[0].mxu0
  %2316 = vmatprep.mubr.bf16.mxu0 0
  %2317 = vmatmul.mubr.bf16.gmra.mrb[0].mxu0 %v1001
  %v2318 = vpop.f32.mrb[0].mxu0
  %v2319 = vadd.f32 0.0, %v2318
  %v2320 = vpop.f32.mrb[0].mxu0
  %v2321 = vpop.f32.mrb[0].mxu0
  %v2322 = vadd.f32 0.0, %v2321
  %v2323 = vpop.f32.mrb[0].mxu0
  %2324 = vmatprep.mubr.bf16.mxu0 0
  %2325 = vmatmul.mubr.bf16.gmra.mrb[0].mxu0 %v1002
  %v2326 = vpop.f32.mrb[0].mxu0
  %v2327 = vadd.f32 0.0, %v2326
  %v2328 = vpop.f32.mrb[0].mxu0
  %v2329 = vpop.f32.mrb[0].mxu0
  %v2330 = vadd.f32 0.0, %v2329
  %v2331 = vpop.f32.mrb[0].mxu0
  %2332 = vmatprep.mubr.bf16.mxu0 0
  %2333 = vmatmul.mubr.bf16.gmra.mrb[0].mxu0 %v1003
  %v2334 = vpop.f32.mrb[0].mxu0
  %v2335 = vadd.f32 0.0, %v2334
  %v2336 = vpop.f32.mrb[0].mxu0
  %v2337 = vpop.f32.mrb[0].mxu0
  %v2338 = vadd.f32 0.0, %v2337
  %v2339 = vpop.f32.mrb[0].mxu0
  %2340 = vmatprep.mubr.bf16.mxu0 0
  %2341 = vmatmul.mubr.bf16.gmra.mrb[0].mxu0 %v1004
  %v2342 = vpop.f32.mrb[0].mxu0
  %v2343 = vadd.f32 0.0, %v2342
  %v2344 = vpop.f32.mrb[0].mxu0
  %v2345 = vpop.f32.mrb[0].mxu0
  %v2346 = vadd.f32 0.0, %v2345
  %v2347 = vpop.f32.mrb[0].mxu0
  %2348 = vdwg.mxu0
  %v2349 = vadd.f32 %v1150, %v2287
  %v2350 = vadd.f32 %v1151, %v2290
  %v2351 = vadd.f32 %v1152, %v2295
  %v2352 = vadd.f32 %v1153, %v2298
  %v2353 = vadd.f32 %v1154, %v2303
  %v2354 = vadd.f32 %v1155, %v2306
  %v2355 = vadd.f32 %v1156, %v2311
  %v2356 = vadd.f32 %v1157, %v2314
  %v2357 = vadd.f32 %v1158, %v2319
  %v2358 = vadd.f32 %v1159, %v2322
  %v2359 = vadd.f32 %v1160, %v2327
  %v2360 = vadd.f32 %v1161, %v2330
  %v2361 = vadd.f32 %v1162, %v2335
  %v2362 = vadd.f32 %v1163, %v2338
  %v2363 = vadd.f32 %v1164, %v2343
  %v2364 = vadd.f32 %v1165, %v2346
  %vm2365 = vcmp.gt.f32.partialorder %v2349, 0.0
  %vm2366 = vcmp.gt.f32.partialorder %v2350, 0.0
  %vm2367 = vcmp.gt.f32.partialorder %v2351, 0.0
  %vm2368 = vcmp.gt.f32.partialorder %v2352, 0.0
  %vm2369 = vcmp.gt.f32.partialorder %v2353, 0.0
  %vm2370 = vcmp.gt.f32.partialorder %v2354, 0.0
  %vm2371 = vcmp.gt.f32.partialorder %v2355, 0.0
  %vm2372 = vcmp.gt.f32.partialorder %v2356, 0.0
  %vm2373 = vcmp.gt.f32.partialorder %v2357, 0.0
  %vm2374 = vcmp.gt.f32.partialorder %v2358, 0.0
  %vm2375 = vcmp.gt.f32.partialorder %v2359, 0.0
  %vm2376 = vcmp.gt.f32.partialorder %v2360, 0.0
  %vm2377 = vcmp.gt.f32.partialorder %v2361, 0.0
  %vm2378 = vcmp.gt.f32.partialorder %v2362, 0.0
  %vm2379 = vcmp.gt.f32.partialorder %v2363, 0.0
  %vm2380 = vcmp.gt.f32.partialorder %v2364, 0.0
  %v2381 = vmul.f32 %v2349, 0.2
  %v2382 = vmul.f32 %v2350, 0.2
  %v2383 = vmul.f32 %v2351, 0.2
  %v2384 = vmul.f32 %v2352, 0.2
  %v2385 = vmul.f32 %v2353, 0.2
  %v2386 = vmul.f32 %v2354, 0.2
  %v2387 = vmul.f32 %v2355, 0.2
  %v2388 = vmul.f32 %v2356, 0.2
  %v2389 = vmul.f32 %v2357, 0.2
  %v2390 = vmul.f32 %v2358, 0.2
  %v2391 = vmul.f32 %v2359, 0.2
  %v2392 = vmul.f32 %v2360, 0.2
  %v2393 = vmul.f32 %v2361, 0.2
  %v2394 = vmul.f32 %v2362, 0.2
  %v2395 = vmul.f32 %v2363, 0.2
  %v2396 = vmul.f32 %v2364, 0.2
  %v2397 = vsel %vm2365, %v2349, %v2381
  %v2398 = vsel %vm2366, %v2350, %v2382
  %v2399 = vsel %vm2367, %v2351, %v2383
  %v2400 = vsel %vm2368, %v2352, %v2384
  %v2401 = vsel %vm2369, %v2353, %v2385
  %v2402 = vsel %vm2370, %v2354, %v2386
  %v2403 = vsel %vm2371, %v2355, %v2387
  %v2404 = vsel %vm2372, %v2356, %v2388
  %v2405 = vsel %vm2373, %v2357, %v2389
  %v2406 = vsel %vm2374, %v2358, %v2390
  %v2407 = vsel %vm2375, %v2359, %v2391
  %v2408 = vsel %vm2376, %v2360, %v2392
  %v2409 = vsel %vm2377, %v2361, %v2393
  %v2410 = vsel %vm2378, %v2362, %v2394
  %v2411 = vsel %vm2379, %v2363, %v2395
  %v2412 = vsel %vm2380, %v2364, %v2396
  %v2413 = vmax.f32 %v2236, %v2397
  %v2414 = vmax.f32 %v2237, %v2398
  %v2415 = vmax.f32 %v2238, %v2399
  %v2416 = vmax.f32 %v2239, %v2400
  %v2417 = vmax.f32 %v2240, %v2401
  %v2418 = vmax.f32 %v2241, %v2402
  %v2419 = vmax.f32 %v2242, %v2403
  %v2420 = vmax.f32 %v2243, %v2404
  %v2421 = vmax.f32 %v2244, %v2405
  %v2422 = vmax.f32 %v2245, %v2406
  %v2423 = vmax.f32 %v2246, %v2407
  %v2424 = vmax.f32 %v2247, %v2408
  %v2425 = vmax.f32 %v2248, %v2409
  %v2426 = vmax.f32 %v2249, %v2410
  %v2427 = vmax.f32 %v2250, %v2411
  %v2428 = vmax.f32 %v2251, %v2412
  %2429 = vmatprep.subr.bf16.mxu0 0
  %2430 = vmatpush1.bf16.msra.mxu0 %v1183
  %2431 = vmatprep.subr.bf16.mxu0 0
  %2432 = vmatpush1.bf16.msra.mxu0 %v1185
  %2433 = vmatprep.subr.bf16.mxu0 0
  %2434 = vmatpush1.bf16.msra.mxu0 %v1187
  %2435 = vmatprep.subr.bf16.mxu0 0
  %2436 = vmatpush1.bf16.msra.mxu0 %v1189
  %2437 = vmatprep.subr.bf16.mxu0 0
  %2438 = vmatpush1.bf16.msra.mxu0 %v1191
  %2439 = vmatprep.subr.bf16.mxu0 0
  %2440 = vmatpush1.bf16.msra.mxu0 %v1193
  %2441 = vmatprep.subr.bf16.mxu0 0
  %2442 = vmatpush1.bf16.msra.mxu0 %v1195
  %2443 = vmatprep.subr.bf16.mxu0 0
  %2444 = vmatpush1.bf16.msra.mxu0 %v1197
  %2445 = vmatprep.subr.bf16.mxu0 0
  %2446 = vmatpush1.bf16.msra.mxu0 0
  %2447 = vmatprep.subr.bf16.mxu0 0
  %2448 = vmatpush1.bf16.msra.mxu0 0
  %2449 = vmatprep.subr.bf16.mxu0 0
  %2450 = vmatpush1.bf16.msra.mxu0 0
  %2451 = vmatprep.subr.bf16.mxu0 0
  %2452 = vmatpush1.bf16.msra.mxu0 0
  %2453 = vmatprep.subr.bf16.mxu0 0
  %2454 = vmatpush1.bf16.msra.mxu0 0
  %2455 = vmatprep.subr.bf16.mxu0 0
  %2456 = vmatpush1.bf16.msra.mxu0 0
  %2457 = vmatprep.subr.bf16.mxu0 0
  %2458 = vmatpush1.bf16.msra.mxu0 0
  %2459 = vmatprep.subr.bf16.mxu0 0
  %2460 = vmatpush1.bf16.msra.mxu0 0
  %2461 = vmatprep.mubr.bf16.mxu0 0
  %2462 = vmatmul.mubr.bf16.gmra.mrb[0].mxu0 %v1005
  %v2463 = vpop.f32.mrb[0].mxu0
  %v2464 = vadd.f32 0.0, %v2463
  %v2465 = vpop.f32.mrb[0].mxu0
  %v2466 = vpop.f32.mrb[0].mxu0
  %v2467 = vadd.f32 0.0, %v2466
  %v2468 = vpop.f32.mrb[0].mxu0
  %2469 = vmatprep.mubr.bf16.mxu0 0
  %2470 = vmatmul.mubr.bf16.gmra.mrb[0].mxu0 %v1006
  %v2471 = vpop.f32.mrb[0].mxu0
  %v2472 = vadd.f32 0.0, %v2471
  %v2473 = vpop.f32.mrb[0].mxu0
  %v2474 = vpop.f32.mrb[0].mxu0
  %v2475 = vadd.f32 0.0, %v2474
  %v2476 = vpop.f32.mrb[0].mxu0
  %2477 = vmatprep.mubr.bf16.mxu0 0
  %2478 = vmatmul.mubr.bf16.gmra.mrb[0].mxu0 %v1007
  %v2479 = vpop.f32.mrb[0].mxu0
  %v2480 = vadd.f32 0.0, %v2479
  %v2481 = vpop.f32.mrb[0].mxu0
  %v2482 = vpop.f32.mrb[0].mxu0
  %v2483 = vadd.f32 0.0, %v2482
  %v2484 = vpop.f32.mrb[0].mxu0
  %2485 = vmatprep.mubr.bf16.mxu0 0
  %2486 = vmatmul.mubr.bf16.gmra.mrb[0].mxu0 %v1008
  %v2487 = vpop.f32.mrb[0].mxu0
  %v2488 = vadd.f32 0.0, %v2487
  %v2489 = vpop.f32.mrb[0].mxu0
  %v2490 = vpop.f32.mrb[0].mxu0
  %v2491 = vadd.f32 0.0, %v2490
  %v2492 = vpop.f32.mrb[0].mxu0
  %2493 = vmatprep.mubr.bf16.mxu0 0
  %2494 = vmatmul.mubr.bf16.gmra.mrb[0].mxu0 %v1009
  %v2495 = vpop.f32.mrb[0].mxu0
  %v2496 = vadd.f32 0.0, %v2495
  %v2497 = vpop.f32.mrb[0].mxu0
  %v2498 = vpop.f32.mrb[0].mxu0
  %v2499 = vadd.f32 0.0, %v2498
  %v2500 = vpop.f32.mrb[0].mxu0
  %2501 = vmatprep.mubr.bf16.mxu0 0
  %2502 = vmatmul.mubr.bf16.gmra.mrb[0].mxu0 %v1010
  %v2503 = vpop.f32.mrb[0].mxu0
  %v2504 = vadd.f32 0.0, %v2503
  %v2505 = vpop.f32.mrb[0].mxu0
  %v2506 = vpop.f32.mrb[0].mxu0
  %v2507 = vadd.f32 0.0, %v2506
  %v2508 = vpop.f32.mrb[0].mxu0
  %2509 = vmatprep.mubr.bf16.mxu0 0
  %2510 = vmatmul.mubr.bf16.gmra.mrb[0].mxu0 %v1011
  %v2511 = vpop.f32.mrb[0].mxu0
  %v2512 = vadd.f32 0.0, %v2511
  %v2513 = vpop.f32.mrb[0].mxu0
  %v2514 = vpop.f32.mrb[0].mxu0
  %v2515 = vadd.f32 0.0, %v2514
  %v2516 = vpop.f32.mrb[0].mxu0
  %2517 = vmatprep.mubr.bf16.mxu0 0
  %2518 = vmatmul.mubr.bf16.gmra.mrb[0].mxu0 %v1012
  %v2519 = vpop.f32.mrb[0].mxu0
  %v2520 = vadd.f32 0.0, %v2519
  %v2521 = vpop.f32.mrb[0].mxu0
  %v2522 = vpop.f32.mrb[0].mxu0
  %v2523 = vadd.f32 0.0, %v2522
  %v2524 = vpop.f32.mrb[0].mxu0
  %2525 = vdwg.mxu0
  %v2526 = vadd.f32 %v1150, %v2464
  %v2527 = vadd.f32 %v1151, %v2467
  %v2528 = vadd.f32 %v1152, %v2472
  %v2529 = vadd.f32 %v1153, %v2475
  %v2530 = vadd.f32 %v1154, %v2480
  %v2531 = vadd.f32 %v1155, %v2483
  %v2532 = vadd.f32 %v1156, %v2488
  %v2533 = vadd.f32 %v1157, %v2491
  %v2534 = vadd.f32 %v1158, %v2496
  %v2535 = vadd.f32 %v1159, %v2499
  %v2536 = vadd.f32 %v1160, %v2504
  %v2537 = vadd.f32 %v1161, %v2507
  %v2538 = vadd.f32 %v1162, %v2512
  %v2539 = vadd.f32 %v1163, %v2515
  %v2540 = vadd.f32 %v1164, %v2520
  %v2541 = vadd.f32 %v1165, %v2523
  %vm2542 = vcmp.gt.f32.partialorder %v2526, 0.0
  %vm2543 = vcmp.gt.f32.partialorder %v2527, 0.0
  %vm2544 = vcmp.gt.f32.partialorder %v2528, 0.0
  %vm2545 = vcmp.gt.f32.partialorder %v2529, 0.0
  %vm2546 = vcmp.gt.f32.partialorder %v2530, 0.0
  %vm2547 = vcmp.gt.f32.partialorder %v2531, 0.0
  %vm2548 = vcmp.gt.f32.partialorder %v2532, 0.0
  %vm2549 = vcmp.gt.f32.partialorder %v2533, 0.0
  %vm2550 = vcmp.gt.f32.partialorder %v2534, 0.0
  %vm2551 = vcmp.gt.f32.partialorder %v2535, 0.0
  %vm2552 = vcmp.gt.f32.partialorder %v2536, 0.0
  %vm2553 = vcmp.gt.f32.partialorder %v2537, 0.0
  %vm2554 = vcmp.gt.f32.partialorder %v2538, 0.0
  %vm2555 = vcmp.gt.f32.partialorder %v2539, 0.0
  %vm2556 = vcmp.gt.f32.partialorder %v2540, 0.0
  %vm2557 = vcmp.gt.f32.partialorder %v2541, 0.0
  %v2558 = vmul.f32 %v2526, 0.2
  %v2559 = vmul.f32 %v2527, 0.2
  %v2560 = vmul.f32 %v2528, 0.2
  %v2561 = vmul.f32 %v2529, 0.2
  %v2562 = vmul.f32 %v2530, 0.2
  %v2563 = vmul.f32 %v2531, 0.2
  %v2564 = vmul.f32 %v2532, 0.2
  %v2565 = vmul.f32 %v2533, 0.2
  %v2566 = vmul.f32 %v2534, 0.2
  %v2567 = vmul.f32 %v2535, 0.2
  %v2568 = vmul.f32 %v2536, 0.2
  %v2569 = vmul.f32 %v2537, 0.2
  %v2570 = vmul.f32 %v2538, 0.2
  %v2571 = vmul.f32 %v2539, 0.2
  %v2572 = vmul.f32 %v2540, 0.2
  %v2573 = vmul.f32 %v2541, 0.2
  %v2574 = vsel %vm2542, %v2526, %v2558
  %v2575 = vsel %vm2543, %v2527, %v2559
  %v2576 = vsel %vm2544, %v2528, %v2560
  %v2577 = vsel %vm2545, %v2529, %v2561
  %v2578 = vsel %vm2546, %v2530, %v2562
  %v2579 = vsel %vm2547, %v2531, %v2563
  %v2580 = vsel %vm2548, %v2532, %v2564
  %v2581 = vsel %vm2549, %v2533, %v2565
  %v2582 = vsel %vm2550, %v2534, %v2566
  %v2583 = vsel %vm2551, %v2535, %v2567
  %v2584 = vsel %vm2552, %v2536, %v2568
  %v2585 = vsel %vm2553, %v2537, %v2569
  %v2586 = vsel %vm2554, %v2538, %v2570
  %v2587 = vsel %vm2555, %v2539, %v2571
  %v2588 = vsel %vm2556, %v2540, %v2572
  %v2589 = vsel %vm2557, %v2541, %v2573
  %v2590 = vmax.f32 %v2413, %v2574
  %v2591 = vmax.f32 %v2414, %v2575
  %v2592 = vmax.f32 %v2415, %v2576
  %v2593 = vmax.f32 %v2416, %v2577
  %v2594 = vmax.f32 %v2417, %v2578
  %v2595 = vmax.f32 %v2418, %v2579
  %v2596 = vmax.f32 %v2419, %v2580
  %v2597 = vmax.f32 %v2420, %v2581
  %v2598 = vmax.f32 %v2421, %v2582
  %v2599 = vmax.f32 %v2422, %v2583
  %v2600 = vmax.f32 %v2423, %v2584
  %v2601 = vmax.f32 %v2424, %v2585
  %v2602 = vmax.f32 %v2425, %v2586
  %v2603 = vmax.f32 %v2426, %v2587
  %v2604 = vmax.f32 %v2427, %v2588
  %v2605 = vmax.f32 %v2428, %v2589
  %v2606 = vld [vmem:[%s5] sm:$0xff]
  %v2608 = vcombine.high %v2606, %v2606
  %v2610 = vunpack.c.l.s4 1983009808
  %v2611 = vunpack.c.0.s8 %v2610
  %v2612 = vlaneseq
  %v2613 = vshrl.u32 %v2612, 7
  %v2614 = vsub.s32 %v2611, %v2613
  %v2615 = vrot.slane %v2606, %v2614
  %v2617 = vunpack.c.l.s4 1983009808
  %v2618 = vunpack.c.0.s8 %v2617
  %v2619 = vlaneseq
  %v2620 = vshrl.u32 %v2619, 7
  %v2621 = vsub.s32 %v2618, %v2620
  %v2622 = vrot.slane %v2608, %v2621
  %v2623 = vcombine.high %v2615, %v2615
  %v2624 = vcombine.high %v2622, %v2622
  %v2626 = vand.u32 %v2615, %v1042
  %v2629 = vand.u32 %v2623, %v1042
  %v2632 = vand.u32 %v2622, %v1042
  %v2635 = vand.u32 %v2624, %v1042
  %2637 = vmatprep.subr.bf16.mxu0 %v2629
  %2638 = vmatpush1.bf16.msra.mxu0 %v2626
  %2639 = vmatprep.subr.bf16.mxu0 0
  %2640 = vmatpush1.bf16.msra.mxu0 0
  %2641 = vmatprep.subr.bf16.mxu0 0
  %2642 = vmatpush1.bf16.msra.mxu0 0
  %2643 = vmatprep.subr.bf16.mxu0 0
  %2644 = vmatpush1.bf16.msra.mxu0 0
  %2645 = vmatprep.subr.bf16.mxu0 0
  %2646 = vmatpush1.bf16.msra.mxu0 0
  %2647 = vmatprep.subr.bf16.mxu0 0
  %2648 = vmatpush1.bf16.msra.mxu0 0
  %2649 = vmatprep.subr.bf16.mxu0 0
  %2650 = vmatpush1.bf16.msra.mxu0 0
  %2651 = vmatprep.subr.bf16.mxu0 0
  %2652 = vmatpush1.bf16.msra.mxu0 0
  %2653 = vmatprep.subr.bf16.mxu0 0
  %2654 = vmatpush1.bf16.msra.mxu0 0
  %2655 = vmatprep.subr.bf16.mxu0 0
  %2656 = vmatpush1.bf16.msra.mxu0 0
  %2657 = vmatprep.subr.bf16.mxu0 0
  %2658 = vmatpush1.bf16.msra.mxu0 0
  %2659 = vmatprep.subr.bf16.mxu0 0
  %2660 = vmatpush1.bf16.msra.mxu0 0
  %2661 = vmatprep.subr.bf16.mxu0 0
  %2662 = vmatpush1.bf16.msra.mxu0 0
  %2663 = vmatprep.subr.bf16.mxu0 0
  %2664 = vmatpush1.bf16.msra.mxu0 0
  %2665 = vmatprep.subr.bf16.mxu0 0
  %2666 = vmatpush1.bf16.msra.mxu0 0
  %2667 = vmatprep.subr.bf16.mxu0 0
  %2668 = vmatpush1.bf16.msra.mxu0 0
  %2669 = vmatprep.mubr.bf16.mxu0 0
  %2670 = vmatmul.mubr.bf16.gmra.mrb[0].mxu0 %v1016
  %v2671 = vpop.f32.mrb[0].mxu0
  %v2672 = vadd.f32 0.0, %v2671
  %v2673 = vpop.f32.mrb[0].mxu0
  %v2674 = vadd.f32 0.0, %v2673
  %v2675 = vpop.f32.mrb[0].mxu0
  %v2676 = vadd.f32 0.0, %v2675
  %v2677 = vpop.f32.mrb[0].mxu0
  %v2678 = vadd.f32 0.0, %v2677
  %2679 = vmatprep.mubr.bf16.mxu0 0
  %2680 = vmatmul.mubr.bf16.gmra.mrb[0].mxu0 %v1019
  %v2681 = vpop.f32.mrb[0].mxu0
  %v2682 = vadd.f32 0.0, %v2681
  %v2683 = vpop.f32.mrb[0].mxu0
  %v2684 = vadd.f32 0.0, %v2683
  %v2685 = vpop.f32.mrb[0].mxu0
  %v2686 = vadd.f32 0.0, %v2685
  %v2687 = vpop.f32.mrb[0].mxu0
  %v2688 = vadd.f32 0.0, %v2687
  %2689 = vmatprep.mubr.bf16.mxu0 0
  %2690 = vmatmul.mubr.bf16.gmra.mrb[0].mxu0 %v1022
  %v2691 = vpop.f32.mrb[0].mxu0
  %v2692 = vadd.f32 0.0, %v2691
  %v2693 = vpop.f32.mrb[0].mxu0
  %v2694 = vadd.f32 0.0, %v2693
  %v2695 = vpop.f32.mrb[0].mxu0
  %v2696 = vadd.f32 0.0, %v2695
  %v2697 = vpop.f32.mrb[0].mxu0
  %v2698 = vadd.f32 0.0, %v2697
  %2699 = vmatprep.mubr.bf16.mxu0 0
  %2700 = vmatmul.mubr.bf16.gmra.mrb[0].mxu0 %v1025
  %v2701 = vpop.f32.mrb[0].mxu0
  %v2702 = vadd.f32 0.0, %v2701
  %v2703 = vpop.f32.mrb[0].mxu0
  %v2704 = vadd.f32 0.0, %v2703
  %v2705 = vpop.f32.mrb[0].mxu0
  %v2706 = vadd.f32 0.0, %v2705
  %v2707 = vpop.f32.mrb[0].mxu0
  %v2708 = vadd.f32 0.0, %v2707
  %2709 = vmatprep.mubr.bf16.mxu0 0
  %2710 = vmatmul.mubr.bf16.gmra.mrb[0].mxu0 %v1028
  %v2711 = vpop.f32.mrb[0].mxu0
  %v2712 = vadd.f32 0.0, %v2711
  %v2713 = vpop.f32.mrb[0].mxu0
  %v2714 = vadd.f32 0.0, %v2713
  %v2715 = vpop.f32.mrb[0].mxu0
  %v2716 = vadd.f32 0.0, %v2715
  %v2717 = vpop.f32.mrb[0].mxu0
  %v2718 = vadd.f32 0.0, %v2717
  %2719 = vmatprep.mubr.bf16.mxu0 0
  %2720 = vmatmul.mubr.bf16.gmra.mrb[0].mxu0 %v1031
  %v2721 = vpop.f32.mrb[0].mxu0
  %v2722 = vadd.f32 0.0, %v2721
  %v2723 = vpop.f32.mrb[0].mxu0
  %v2724 = vadd.f32 0.0, %v2723
  %v2725 = vpop.f32.mrb[0].mxu0
  %v2726 = vadd.f32 0.0, %v2725
  %v2727 = vpop.f32.mrb[0].mxu0
  %v2728 = vadd.f32 0.0, %v2727
  %2729 = vmatprep.mubr.bf16.mxu0 0
  %2730 = vmatmul.mubr.bf16.gmra.mrb[0].mxu0 %v1034
  %v2731 = vpop.f32.mrb[0].mxu0
  %v2732 = vadd.f32 0.0, %v2731
  %v2733 = vpop.f32.mrb[0].mxu0
  %v2734 = vadd.f32 0.0, %v2733
  %v2735 = vpop.f32.mrb[0].mxu0
  %v2736 = vadd.f32 0.0, %v2735
  %v2737 = vpop.f32.mrb[0].mxu0
  %v2738 = vadd.f32 0.0, %v2737
  %2739 = vmatprep.mubr.bf16.mxu0 0
  %2740 = vmatmul.mubr.bf16.gmra.mrb[0].mxu0 %v1037
  %v2741 = vpop.f32.mrb[0].mxu0
  %v2742 = vadd.f32 0.0, %v2741
  %v2743 = vpop.f32.mrb[0].mxu0
  %v2744 = vadd.f32 0.0, %v2743
  %v2745 = vpop.f32.mrb[0].mxu0
  %v2746 = vadd.f32 0.0, %v2745
  %v2747 = vpop.f32.mrb[0].mxu0
  %v2748 = vadd.f32 0.0, %v2747
  %2749 = vdwg.mxu0
  %2750 = vmatprep.subr.bf16.mxu0 %v2635
  %2751 = vmatpush1.bf16.msra.mxu0 %v2632
  %2752 = vmatprep.subr.bf16.mxu0 0
  %2753 = vmatpush1.bf16.msra.mxu0 0
  %2754 = vmatprep.subr.bf16.mxu0 0
  %2755 = vmatpush1.bf16.msra.mxu0 0
  %2756 = vmatprep.subr.bf16.mxu0 0
  %2757 = vmatpush1.bf16.msra.mxu0 0
  %2758 = vmatprep.subr.bf16.mxu0 0
  %2759 = vmatpush1.bf16.msra.mxu0 0
  %2760 = vmatprep.subr.bf16.mxu0 0
  %2761 = vmatpush1.bf16.msra.mxu0 0
  %2762 = vmatprep.subr.bf16.mxu0 0
  %2763 = vmatpush1.bf16.msra.mxu0 0
  %2764 = vmatprep.subr.bf16.mxu0 0
  %2765 = vmatpush1.bf16.msra.mxu0 0
  %2766 = vmatprep.subr.bf16.mxu0 0
  %2767 = vmatpush1.bf16.msra.mxu0 0
  %2768 = vmatprep.subr.bf16.mxu0 0
  %2769 = vmatpush1.bf16.msra.mxu0 0
  %2770 = vmatprep.subr.bf16.mxu0 0
  %2771 = vmatpush1.bf16.msra.mxu0 0
  %2772 = vmatprep.subr.bf16.mxu0 0
  %2773 = vmatpush1.bf16.msra.mxu0 0
  %2774 = vmatprep.subr.bf16.mxu0 0
  %2775 = vmatpush1.bf16.msra.mxu0 0
  %2776 = vmatprep.subr.bf16.mxu0 0
  %2777 = vmatpush1.bf16.msra.mxu0 0
  %2778 = vmatprep.subr.bf16.mxu0 0
  %2779 = vmatpush1.bf16.msra.mxu0 0
  %2780 = vmatprep.subr.bf16.mxu0 0
  %2781 = vmatpush1.bf16.msra.mxu0 0
  %2782 = vmatprep.mubr.bf16.mxu0 0
  %2783 = vmatmul.mubr.bf16.gmra.mrb[0].mxu0 %v1016
  %v2784 = vpop.f32.mrb[0].mxu0
  %v2785 = vadd.f32 0.0, %v2784
  %v2786 = vpop.f32.mrb[0].mxu0
  %v2787 = vadd.f32 0.0, %v2786
  %v2788 = vpop.f32.mrb[0].mxu0
  %v2789 = vadd.f32 0.0, %v2788
  %v2790 = vpop.f32.mrb[0].mxu0
  %v2791 = vadd.f32 0.0, %v2790
  %2792 = vmatprep.mubr.bf16.mxu0 0
  %2793 = vmatmul.mubr.bf16.gmra.mrb[0].mxu0 %v1019
  %v2794 = vpop.f32.mrb[0].mxu0
  %v2795 = vadd.f32 0.0, %v2794
  %v2796 = vpop.f32.mrb[0].mxu0
  %v2797 = vadd.f32 0.0, %v2796
  %v2798 = vpop.f32.mrb[0].mxu0
  %v2799 = vadd.f32 0.0, %v2798
  %v2800 = vpop.f32.mrb[0].mxu0
  %v2801 = vadd.f32 0.0, %v2800
  %2802 = vmatprep.mubr.bf16.mxu0 0
  %2803 = vmatmul.mubr.bf16.gmra.mrb[0].mxu0 %v1022
  %v2804 = vpop.f32.mrb[0].mxu0
  %v2805 = vadd.f32 0.0, %v2804
  %v2806 = vpop.f32.mrb[0].mxu0
  %v2807 = vadd.f32 0.0, %v2806
  %v2808 = vpop.f32.mrb[0].mxu0
  %v2809 = vadd.f32 0.0, %v2808
  %v2810 = vpop.f32.mrb[0].mxu0
  %v2811 = vadd.f32 0.0, %v2810
  %2812 = vmatprep.mubr.bf16.mxu0 0
  %2813 = vmatmul.mubr.bf16.gmra.mrb[0].mxu0 %v1025
  %v2814 = vpop.f32.mrb[0].mxu0
  %v2815 = vadd.f32 0.0, %v2814
  %v2816 = vpop.f32.mrb[0].mxu0
  %v2817 = vadd.f32 0.0, %v2816
  %v2818 = vpop.f32.mrb[0].mxu0
  %v2819 = vadd.f32 0.0, %v2818
  %v2820 = vpop.f32.mrb[0].mxu0
  %v2821 = vadd.f32 0.0, %v2820
  %2822 = vmatprep.mubr.bf16.mxu0 0
  %2823 = vmatmul.mubr.bf16.gmra.mrb[0].mxu0 %v1028
  %v2824 = vpop.f32.mrb[0].mxu0
  %v2825 = vadd.f32 0.0, %v2824
  %v2826 = vpop.f32.mrb[0].mxu0
  %v2827 = vadd.f32 0.0, %v2826
  %v2828 = vpop.f32.mrb[0].mxu0
  %v2829 = vadd.f32 0.0, %v2828
  %v2830 = vpop.f32.mrb[0].mxu0
  %v2831 = vadd.f32 0.0, %v2830
  %2832 = vmatprep.mubr.bf16.mxu0 0
  %2833 = vmatmul.mubr.bf16.gmra.mrb[0].mxu0 %v1031
  %v2834 = vpop.f32.mrb[0].mxu0
  %v2835 = vadd.f32 0.0, %v2834
  %v2836 = vpop.f32.mrb[0].mxu0
  %v2837 = vadd.f32 0.0, %v2836
  %v2838 = vpop.f32.mrb[0].mxu0
  %v2839 = vadd.f32 0.0, %v2838
  %v2840 = vpop.f32.mrb[0].mxu0
  %v2841 = vadd.f32 0.0, %v2840
  %2842 = vmatprep.mubr.bf16.mxu0 0
  %2843 = vmatmul.mubr.bf16.gmra.mrb[0].mxu0 %v1034
  %v2844 = vpop.f32.mrb[0].mxu0
  %v2845 = vadd.f32 0.0, %v2844
  %v2846 = vpop.f32.mrb[0].mxu0
  %v2847 = vadd.f32 0.0, %v2846
  %v2848 = vpop.f32.mrb[0].mxu0
  %v2849 = vadd.f32 0.0, %v2848
  %v2850 = vpop.f32.mrb[0].mxu0
  %v2851 = vadd.f32 0.0, %v2850
  %2852 = vmatprep.mubr.bf16.mxu0 0
  %2853 = vmatmul.mubr.bf16.gmra.mrb[0].mxu0 %v1037
  %v2854 = vpop.f32.mrb[0].mxu0
  %v2855 = vadd.f32 0.0, %v2854
  %v2856 = vpop.f32.mrb[0].mxu0
  %v2857 = vadd.f32 0.0, %v2856
  %v2858 = vpop.f32.mrb[0].mxu0
  %v2859 = vadd.f32 0.0, %v2858
  %v2860 = vpop.f32.mrb[0].mxu0
  %v2861 = vadd.f32 0.0, %v2860
  %2862 = vdwg.mxu0
  %v2863 = vpack.c.bf16 %v2591, %v2590
  %v2864 = vpack.c.bf16 %v2593, %v2592
  %v2865 = vpack.c.bf16 %v2595, %v2594
  %v2866 = vpack.c.bf16 %v2597, %v2596
  %v2867 = vpack.c.bf16 %v2599, %v2598
  %v2868 = vpack.c.bf16 %v2601, %v2600
  %v2869 = vpack.c.bf16 %v2603, %v2602
  %v2870 = vpack.c.bf16 %v2605, %v2604
  %v2871 = vld [vmem:[%s4] sm:$0xff]
  %v2872 = vld [vmem:[%s4 + $0x8] sm:$0xff]
  %v2873 = vld [vmem:[%s4 + $0x10] sm:$0xff]
  %v2874 = vld [vmem:[%s4 + $0x18] sm:$0xff]
  %v2879 = vunpack.c.l.b16 %v2871
  %v2880 = vunpack.c.h.b16 %v2871
  %v2881 = vunpack.c.l.b16 %v2872
  %v2882 = vunpack.c.h.b16 %v2872
  %v2883 = vunpack.c.l.b16 %v2873
  %v2884 = vunpack.c.h.b16 %v2873
  %v2885 = vunpack.c.l.b16 %v2874
  %v2886 = vunpack.c.h.b16 %v2874
  %v2887 = vpack.c.b16 %v2881, %v2879
  %v2888 = vpack.c.b16 %v2882, %v2880
  %v2889 = vpack.c.b16 %v2885, %v2883
  %v2890 = vpack.c.b16 %v2886, %v2884
  %vm2895 = vcmask 261120
  %v2897 = vsel %vm2895, %v2863, 0
  %v2900 = vsel %vm2895, %v2864, 0
  %v2903 = vsel %vm2895, %v2865, 0
  %v2906 = vsel %vm2895, %v2866, 0
  %v2909 = vsel %vm2895, %v2867, 0
  %v2912 = vsel %vm2895, %v2868, 0
  %v2915 = vsel %vm2895, %v2869, 0
  %v2918 = vsel %vm2895, %v2870, 0
  %2920 = vmatprep.subr.bf16.mxu0 %v2888
  %2921 = vmatpush1.bf16.msra.mxu0 %v2887
  %2922 = vmatprep.subr.bf16.mxu0 %v2890
  %2923 = vmatpush1.bf16.msra.mxu0 %v2889
  %2924 = vmatprep.subr.bf16.mxu0 0
  %2925 = vmatpush1.bf16.msra.mxu0 0
  %2926 = vmatprep.subr.bf16.mxu0 0
  %2927 = vmatpush1.bf16.msra.mxu0 0
  %2928 = vmatprep.subr.bf16.mxu0 0
  %2929 = vmatpush1.bf16.msra.mxu0 0
  %2930 = vmatprep.subr.bf16.mxu0 0
  %2931 = vmatpush1.bf16.msra.mxu0 0
  %2932 = vmatprep.subr.bf16.mxu0 0
  %2933 = vmatpush1.bf16.msra.mxu0 0
  %2934 = vmatprep.subr.bf16.mxu0 0
  %2935 = vmatpush1.bf16.msra.mxu0 0
  %2936 = vmatprep.subr.bf16.mxu0 0
  %2937 = vmatpush1.bf16.msra.mxu0 0
  %2938 = vmatprep.subr.bf16.mxu0 0
  %2939 = vmatpush1.bf16.msra.mxu0 0
  %2940 = vmatprep.subr.bf16.mxu0 0
  %2941 = vmatpush1.bf16.msra.mxu0 0
  %2942 = vmatprep.subr.bf16.mxu0 0
  %2943 = vmatpush1.bf16.msra.mxu0 0
  %2944 = vmatprep.subr.bf16.mxu0 0
  %2945 = vmatpush1.bf16.msra.mxu0 0
  %2946 = vmatprep.subr.bf16.mxu0 0
  %2947 = vmatpush1.bf16.msra.mxu0 0
  %2948 = vmatprep.subr.bf16.mxu0 0
  %2949 = vmatpush1.bf16.msra.mxu0 0
  %2950 = vmatprep.subr.bf16.mxu0 0
  %2951 = vmatpush1.bf16.msra.mxu0 0
  %2952 = vmatprep.mubr.bf16.mxu0 0
  %2953 = vmatmul.mubr.bf16.gmra.mrb[0].mxu0 %v2897
  %v2954 = vpop.f32.mrb[0].mxu0
  %v2955 = vadd.f32 0.0, %v2954
  %v2956 = vpop.f32.mrb[0].mxu0
  %v2957 = vadd.f32 0.0, %v2956
  %v2958 = vpop.f32.mrb[0].mxu0
  %v2959 = vadd.f32 0.0, %v2958
  %v2960 = vpop.f32.mrb[0].mxu0
  %v2961 = vadd.f32 0.0, %v2960
  %2962 = vmatprep.mubr.bf16.mxu0 0
  %2963 = vmatmul.mubr.bf16.gmra.mrb[0].mxu0 %v2900
  %v2964 = vpop.f32.mrb[0].mxu0
  %v2965 = vadd.f32 0.0, %v2964
  %v2966 = vpop.f32.mrb[0].mxu0
  %v2967 = vadd.f32 0.0, %v2966
  %v2968 = vpop.f32.mrb[0].mxu0
  %v2969 = vadd.f32 0.0, %v2968
  %v2970 = vpop.f32.mrb[0].mxu0
  %v2971 = vadd.f32 0.0, %v2970
  %2972 = vmatprep.mubr.bf16.mxu0 0
  %2973 = vmatmul.mubr.bf16.gmra.mrb[0].mxu0 %v2903
  %v2974 = vpop.f32.mrb[0].mxu0
  %v2975 = vadd.f32 0.0, %v2974
  %v2976 = vpop.f32.mrb[0].mxu0
  %v2977 = vadd.f32 0.0, %v2976
  %v2978 = vpop.f32.mrb[0].mxu0
  %v2979 = vadd.f32 0.0, %v2978
  %v2980 = vpop.f32.mrb[0].mxu0
  %v2981 = vadd.f32 0.0, %v2980
  %2982 = vmatprep.mubr.bf16.mxu0 0
  %2983 = vmatmul.mubr.bf16.gmra.mrb[0].mxu0 %v2906
  %v2984 = vpop.f32.mrb[0].mxu0
  %v2985 = vadd.f32 0.0, %v2984
  %v2986 = vpop.f32.mrb[0].mxu0
  %v2987 = vadd.f32 0.0, %v2986
  %v2988 = vpop.f32.mrb[0].mxu0
  %v2989 = vadd.f32 0.0, %v2988
  %v2990 = vpop.f32.mrb[0].mxu0
  %v2991 = vadd.f32 0.0, %v2990
  %2992 = vmatprep.mubr.bf16.mxu0 0
  %2993 = vmatmul.mubr.bf16.gmra.mrb[0].mxu0 %v2909
  %v2994 = vpop.f32.mrb[0].mxu0
  %v2995 = vadd.f32 0.0, %v2994
  %v2996 = vpop.f32.mrb[0].mxu0
  %v2997 = vadd.f32 0.0, %v2996
  %v2998 = vpop.f32.mrb[0].mxu0
  %v2999 = vadd.f32 0.0, %v2998
  %v3000 = vpop.f32.mrb[0].mxu0
  %v3001 = vadd.f32 0.0, %v3000
  %3002 = vmatprep.mubr.bf16.mxu0 0
  %3003 = vmatmul.mubr.bf16.gmra.mrb[0].mxu0 %v2912
  %v3004 = vpop.f32.mrb[0].mxu0
  %v3005 = vadd.f32 0.0, %v3004
  %v3006 = vpop.f32.mrb[0].mxu0
  %v3007 = vadd.f32 0.0, %v3006
  %v3008 = vpop.f32.mrb[0].mxu0
  %v3009 = vadd.f32 0.0, %v3008
  %v3010 = vpop.f32.mrb[0].mxu0
  %v3011 = vadd.f32 0.0, %v3010
  %3012 = vmatprep.mubr.bf16.mxu0 0
  %3013 = vmatmul.mubr.bf16.gmra.mrb[0].mxu0 %v2915
  %v3014 = vpop.f32.mrb[0].mxu0
  %v3015 = vadd.f32 0.0, %v3014
  %v3016 = vpop.f32.mrb[0].mxu0
  %v3017 = vadd.f32 0.0, %v3016
  %v3018 = vpop.f32.mrb[0].mxu0
  %v3019 = vadd.f32 0.0, %v3018
  %v3020 = vpop.f32.mrb[0].mxu0
  %v3021 = vadd.f32 0.0, %v3020
  %3022 = vmatprep.mubr.bf16.mxu0 0
  %3023 = vmatmul.mubr.bf16.gmra.mrb[0].mxu0 %v2918
  %v3024 = vpop.f32.mrb[0].mxu0
  %v3025 = vadd.f32 0.0, %v3024
  %v3026 = vpop.f32.mrb[0].mxu0
  %v3027 = vadd.f32 0.0, %v3026
  %v3028 = vpop.f32.mrb[0].mxu0
  %v3029 = vadd.f32 0.0, %v3028
  %v3030 = vpop.f32.mrb[0].mxu0
  %v3031 = vadd.f32 0.0, %v3030
  %3032 = vdwg.mxu0
  %v3033 = vadd.f32 %v2955, %v2672
  %v3034 = vadd.f32 %v2959, %v2676
  %v3035 = vadd.f32 %v2965, %v2682
  %v3036 = vadd.f32 %v2969, %v2686
  %v3037 = vadd.f32 %v2975, %v2692
  %v3038 = vadd.f32 %v2979, %v2696
  %v3039 = vadd.f32 %v2985, %v2702
  %v3040 = vadd.f32 %v2989, %v2706
  %v3041 = vadd.f32 %v2995, %v2712
  %v3042 = vadd.f32 %v2999, %v2716
  %v3043 = vadd.f32 %v3005, %v2722
  %v3044 = vadd.f32 %v3009, %v2726
  %v3045 = vadd.f32 %v3015, %v2732
  %v3046 = vadd.f32 %v3019, %v2736
  %v3047 = vadd.f32 %v3025, %v2742
  %v3048 = vadd.f32 %v3029, %v2746
  %v3049 = vld [vmem:[%s6] sm:$0x1]
  %v3050 = vpack.c.bf16 %v3034, %v3033
  %v3051 = vpack.c.bf16 %v3036, %v3035
  %v3052 = vpack.c.bf16 %v3038, %v3037
  %v3053 = vpack.c.bf16 %v3040, %v3039
  %v3054 = vpack.c.bf16 %v3042, %v3041
  %v3055 = vpack.c.bf16 %v3044, %v3043
  %v3056 = vpack.c.bf16 %v3046, %v3045
  %v3057 = vpack.c.bf16 %v3048, %v3047
  %3074 = vrot.lane.b32.xlu0 %v3033, 96
  %v3075 = vpop.permute.xlu0 %3074
  %3076 = vrot.lane.b32.xlu0 %v3034, 96
  %v3077 = vpop.permute.xlu0 %3076
  %3078 = vrot.lane.b32.xlu0 %v3035, 96
  %v3079 = vpop.permute.xlu0 %3078
  %3080 = vrot.lane.b32.xlu0 %v3036, 96
  %v3081 = vpop.permute.xlu0 %3080
  %3082 = vrot.lane.b32.xlu0 %v3037, 96
  %v3083 = vpop.permute.xlu0 %3082
  %3084 = vrot.lane.b32.xlu0 %v3038, 96
  %v3085 = vpop.permute.xlu0 %3084
  %3086 = vrot.lane.b32.xlu0 %v3039, 96
  %v3087 = vpop.permute.xlu0 %3086
  %3088 = vrot.lane.b32.xlu0 %v3040, 96
  %v3089 = vpop.permute.xlu0 %3088
  %3090 = vrot.lane.b32.xlu0 %v3041, 96
  %v3091 = vpop.permute.xlu0 %3090
  %3092 = vrot.lane.b32.xlu0 %v3042, 96
  %v3093 = vpop.permute.xlu0 %3092
  %3094 = vrot.lane.b32.xlu0 %v3043, 96
  %v3095 = vpop.permute.xlu0 %3094
  %3096 = vrot.lane.b32.xlu0 %v3044, 96
  %v3097 = vpop.permute.xlu0 %3096
  %3098 = vrot.lane.b32.xlu0 %v3045, 96
  %v3099 = vpop.permute.xlu0 %3098
  %3100 = vrot.lane.b32.xlu0 %v3046, 96
  %v3101 = vpop.permute.xlu0 %3100
  %3102 = vrot.lane.b32.xlu0 %v3047, 96
  %v3103 = vpop.permute.xlu0 %3102
  %3104 = vrot.lane.b32.xlu0 %v3048, 96
  %v3105 = vpop.permute.xlu0 %3104
  %v3122 = vsub.f32 %v3033, %v3075
  %v3123 = vsub.f32 %v3034, %v3077
  %v3124 = vsub.f32 %v3035, %v3079
  %v3125 = vsub.f32 %v3036, %v3081
  %v3126 = vsub.f32 %v3037, %v3083
  %v3127 = vsub.f32 %v3038, %v3085
  %v3128 = vsub.f32 %v3039, %v3087
  %v3129 = vsub.f32 %v3040, %v3089
  %v3130 = vsub.f32 %v3041, %v3091
  %v3131 = vsub.f32 %v3042, %v3093
  %v3132 = vsub.f32 %v3043, %v3095
  %v3133 = vsub.f32 %v3044, %v3097
  %v3134 = vsub.f32 %v3045, %v3099
  %v3135 = vsub.f32 %v3046, %v3101
  %v3136 = vsub.f32 %v3047, %v3103
  %v3137 = vsub.f32 %v3048, %v3105
  %v3138 = vlaneseq
  %v3139 = vshrl.u32 %v3138, 7
  %v3140 = vsub.s32 0, %v3139
  %v3141 = vrot.slane %v3049, %v3140
  %v3142 = vadd.f32 %v3122, %v3141
  %v3143 = vadd.f32 %v3123, %v3141
  %v3144 = vadd.f32 %v3124, %v3141
  %v3145 = vadd.f32 %v3125, %v3141
  %v3146 = vadd.f32 %v3126, %v3141
  %v3147 = vadd.f32 %v3127, %v3141
  %v3148 = vadd.f32 %v3128, %v3141
  %v3149 = vadd.f32 %v3129, %v3141
  %v3150 = vadd.f32 %v3130, %v3141
  %v3151 = vadd.f32 %v3131, %v3141
  %v3152 = vadd.f32 %v3132, %v3141
  %v3153 = vadd.f32 %v3133, %v3141
  %v3154 = vadd.f32 %v3134, %v3141
  %v3155 = vadd.f32 %v3135, %v3141
  %v3156 = vadd.f32 %v3136, %v3141
  %v3157 = vadd.f32 %v3137, %v3141
  %3159 = vrot.lane.b32.xlu0 %v3141, 64
  %v3160 = vpop.permute.xlu0 %3159
  %v3162 = vadd.f32 %v3033, %v3160
  %v3163 = vadd.f32 %v3034, %v3160
  %v3164 = vadd.f32 %v3035, %v3160
  %v3165 = vadd.f32 %v3036, %v3160
  %v3166 = vadd.f32 %v3037, %v3160
  %v3167 = vadd.f32 %v3038, %v3160
  %v3168 = vadd.f32 %v3039, %v3160
  %v3169 = vadd.f32 %v3040, %v3160
  %v3170 = vadd.f32 %v3041, %v3160
  %v3171 = vadd.f32 %v3042, %v3160
  %v3172 = vadd.f32 %v3043, %v3160
  %v3173 = vadd.f32 %v3044, %v3160
  %v3174 = vadd.f32 %v3045, %v3160
  %v3175 = vadd.f32 %v3046, %v3160
  %v3176 = vadd.f32 %v3047, %v3160
  %v3177 = vadd.f32 %v3048, %v3160
  %3178 = vmatprep.subr.bf16.mxu0 0
  %3179 = vmatpush1.bf16.msra.mxu0 %v3050
  %3180 = vmatprep.subr.bf16.mxu0 0
  %3181 = vmatpush1.bf16.msra.mxu0 %v3051
  %3182 = vmatprep.subr.bf16.mxu0 0
  %3183 = vmatpush1.bf16.msra.mxu0 %v3052
  %3184 = vmatprep.subr.bf16.mxu0 0
  %3185 = vmatpush1.bf16.msra.mxu0 %v3053
  %3186 = vmatprep.subr.bf16.mxu0 0
  %3187 = vmatpush1.bf16.msra.mxu0 %v3054
  %3188 = vmatprep.subr.bf16.mxu0 0
  %3189 = vmatpush1.bf16.msra.mxu0 %v3055
  %3190 = vmatprep.subr.bf16.mxu0 0
  %3191 = vmatpush1.bf16.msra.mxu0 %v3056
  %3192 = vmatprep.subr.bf16.mxu0 0
  %3193 = vmatpush1.bf16.msra.mxu0 %v3057
  %3194 = vmatprep.subr.bf16.mxu0 0
  %3195 = vmatpush1.bf16.msra.mxu0 0
  %3196 = vmatprep.subr.bf16.mxu0 0
  %3197 = vmatpush1.bf16.msra.mxu0 0
  %3198 = vmatprep.subr.bf16.mxu0 0
  %3199 = vmatpush1.bf16.msra.mxu0 0
  %3200 = vmatprep.subr.bf16.mxu0 0
  %3201 = vmatpush1.bf16.msra.mxu0 0
  %3202 = vmatprep.subr.bf16.mxu0 0
  %3203 = vmatpush1.bf16.msra.mxu0 0
  %3204 = vmatprep.subr.bf16.mxu0 0
  %3205 = vmatpush1.bf16.msra.mxu0 0
  %3206 = vmatprep.subr.bf16.mxu0 0
  %3207 = vmatpush1.bf16.msra.mxu0 0
  %3208 = vmatprep.subr.bf16.mxu0 0
  %3209 = vmatpush1.bf16.msra.mxu0 0
  %3210 = vmatprep.mubr.bf16.mxu0 0
  %3211 = vmatmul.mubr.bf16.gmra.mrb[0].mxu0 %v949
  %v3212 = vpop.f32.mrb[0].mxu0
  %v3213 = vadd.f32 0.0, %v3212
  %v3214 = vpop.f32.mrb[0].mxu0
  %v3215 = vpop.f32.mrb[0].mxu0
  %v3216 = vadd.f32 0.0, %v3215
  %v3217 = vpop.f32.mrb[0].mxu0
  %3218 = vmatprep.mubr.bf16.mxu0 0
  %3219 = vmatmul.mubr.bf16.gmra.mrb[0].mxu0 %v950
  %v3220 = vpop.f32.mrb[0].mxu0
  %v3221 = vadd.f32 0.0, %v3220
  %v3222 = vpop.f32.mrb[0].mxu0
  %v3223 = vpop.f32.mrb[0].mxu0
  %v3224 = vadd.f32 0.0, %v3223
  %v3225 = vpop.f32.mrb[0].mxu0
  %3226 = vmatprep.mubr.bf16.mxu0 0
  %3227 = vmatmul.mubr.bf16.gmra.mrb[0].mxu0 %v951
  %v3228 = vpop.f32.mrb[0].mxu0
  %v3229 = vadd.f32 0.0, %v3228
  %v3230 = vpop.f32.mrb[0].mxu0
  %v3231 = vpop.f32.mrb[0].mxu0
  %v3232 = vadd.f32 0.0, %v3231
  %v3233 = vpop.f32.mrb[0].mxu0
  %3234 = vmatprep.mubr.bf16.mxu0 0
  %3235 = vmatmul.mubr.bf16.gmra.mrb[0].mxu0 %v952
  %v3236 = vpop.f32.mrb[0].mxu0
  %v3237 = vadd.f32 0.0, %v3236
  %v3238 = vpop.f32.mrb[0].mxu0
  %v3239 = vpop.f32.mrb[0].mxu0
  %v3240 = vadd.f32 0.0, %v3239
  %v3241 = vpop.f32.mrb[0].mxu0
  %3242 = vmatprep.mubr.bf16.mxu0 0
  %3243 = vmatmul.mubr.bf16.gmra.mrb[0].mxu0 %v953
  %v3244 = vpop.f32.mrb[0].mxu0
  %v3245 = vadd.f32 0.0, %v3244
  %v3246 = vpop.f32.mrb[0].mxu0
  %v3247 = vpop.f32.mrb[0].mxu0
  %v3248 = vadd.f32 0.0, %v3247
  %v3249 = vpop.f32.mrb[0].mxu0
  %3250 = vmatprep.mubr.bf16.mxu0 0
  %3251 = vmatmul.mubr.bf16.gmra.mrb[0].mxu0 %v954
  %v3252 = vpop.f32.mrb[0].mxu0
  %v3253 = vadd.f32 0.0, %v3252
  %v3254 = vpop.f32.mrb[0].mxu0
  %v3255 = vpop.f32.mrb[0].mxu0
  %v3256 = vadd.f32 0.0, %v3255
  %v3257 = vpop.f32.mrb[0].mxu0
  %3258 = vmatprep.mubr.bf16.mxu0 0
  %3259 = vmatmul.mubr.bf16.gmra.mrb[0].mxu0 %v955
  %v3260 = vpop.f32.mrb[0].mxu0
  %v3261 = vadd.f32 0.0, %v3260
  %v3262 = vpop.f32.mrb[0].mxu0
  %v3263 = vpop.f32.mrb[0].mxu0
  %v3264 = vadd.f32 0.0, %v3263
  %v3265 = vpop.f32.mrb[0].mxu0
  %3266 = vmatprep.mubr.bf16.mxu0 0
  %3267 = vmatmul.mubr.bf16.gmra.mrb[0].mxu0 %v956
  %v3268 = vpop.f32.mrb[0].mxu0
  %v3269 = vadd.f32 0.0, %v3268
  %v3270 = vpop.f32.mrb[0].mxu0
  %v3271 = vpop.f32.mrb[0].mxu0
  %v3272 = vadd.f32 0.0, %v3271
  %v3273 = vpop.f32.mrb[0].mxu0
  %3274 = vdwg.mxu0
  %v3275 = vsub.f32 %v3033, %v3213
  %v3276 = vsub.f32 %v3034, %v3216
  %v3277 = vsub.f32 %v3035, %v3221
  %v3278 = vsub.f32 %v3036, %v3224
  %v3279 = vsub.f32 %v3037, %v3229
  %v3280 = vsub.f32 %v3038, %v3232
  %v3281 = vsub.f32 %v3039, %v3237
  %v3282 = vsub.f32 %v3040, %v3240
  %v3283 = vsub.f32 %v3041, %v3245
  %v3284 = vsub.f32 %v3042, %v3248
  %v3285 = vsub.f32 %v3043, %v3253
  %v3286 = vsub.f32 %v3044, %v3256
  %v3287 = vsub.f32 %v3045, %v3261
  %v3288 = vsub.f32 %v3046, %v3264
  %v3289 = vsub.f32 %v3047, %v3269
  %v3290 = vsub.f32 %v3048, %v3272
  %3291 = vrot.lane.b32.xlu0 %v3141, 96
  %v3292 = vpop.permute.xlu0 %3291
  %v3294 = vadd.f32 %v3275, %v3292
  %v3295 = vadd.f32 %v3276, %v3292
  %v3296 = vadd.f32 %v3277, %v3292
  %v3297 = vadd.f32 %v3278, %v3292
  %v3298 = vadd.f32 %v3279, %v3292
  %v3299 = vadd.f32 %v3280, %v3292
  %v3300 = vadd.f32 %v3281, %v3292
  %v3301 = vadd.f32 %v3282, %v3292
  %v3302 = vadd.f32 %v3283, %v3292
  %v3303 = vadd.f32 %v3284, %v3292
  %v3304 = vadd.f32 %v3285, %v3292
  %v3305 = vadd.f32 %v3286, %v3292
  %v3306 = vadd.f32 %v3287, %v3292
  %v3307 = vadd.f32 %v3288, %v3292
  %v3308 = vadd.f32 %v3289, %v3292
  %v3309 = vadd.f32 %v3290, %v3292
  %3326 = vrot.lane.b32.xlu0 %v3213, 96
  %v3327 = vpop.permute.xlu0 %3326
  %3328 = vrot.lane.b32.xlu0 %v3216, 96
  %v3329 = vpop.permute.xlu0 %3328
  %3330 = vrot.lane.b32.xlu0 %v3221, 96
  %v3331 = vpop.permute.xlu0 %3330
  %3332 = vrot.lane.b32.xlu0 %v3224, 96
  %v3333 = vpop.permute.xlu0 %3332
  %3334 = vrot.lane.b32.xlu0 %v3229, 96
  %v3335 = vpop.permute.xlu0 %3334
  %3336 = vrot.lane.b32.xlu0 %v3232, 96
  %v3337 = vpop.permute.xlu0 %3336
  %3338 = vrot.lane.b32.xlu0 %v3237, 96
  %v3339 = vpop.permute.xlu0 %3338
  %3340 = vrot.lane.b32.xlu0 %v3240, 96
  %v3341 = vpop.permute.xlu0 %3340
  %3342 = vrot.lane.b32.xlu0 %v3245, 96
  %v3343 = vpop.permute.xlu0 %3342
  %3344 = vrot.lane.b32.xlu0 %v3248, 96
  %v3345 = vpop.permute.xlu0 %3344
  %3346 = vrot.lane.b32.xlu0 %v3253, 96
  %v3347 = vpop.permute.xlu0 %3346
  %3348 = vrot.lane.b32.xlu0 %v3256, 96
  %v3349 = vpop.permute.xlu0 %3348
  %3350 = vrot.lane.b32.xlu0 %v3261, 96
  %v3351 = vpop.permute.xlu0 %3350
  %3352 = vrot.lane.b32.xlu0 %v3264, 96
  %v3353 = vpop.permute.xlu0 %3352
  %3354 = vrot.lane.b32.xlu0 %v3269, 96
  %v3355 = vpop.permute.xlu0 %3354
  %3356 = vrot.lane.b32.xlu0 %v3272, 96
  %v3357 = vpop.permute.xlu0 %3356
  %v3374 = vsub.f32 %v3033, %v3327
  %v3375 = vsub.f32 %v3034, %v3329
  %v3376 = vsub.f32 %v3035, %v3331
  %v3377 = vsub.f32 %v3036, %v3333
  %v3378 = vsub.f32 %v3037, %v3335
  %v3379 = vsub.f32 %v3038, %v3337
  %v3380 = vsub.f32 %v3039, %v3339
  %v3381 = vsub.f32 %v3040, %v3341
  %v3382 = vsub.f32 %v3041, %v3343
  %v3383 = vsub.f32 %v3042, %v3345
  %v3384 = vsub.f32 %v3043, %v3347
  %v3385 = vsub.f32 %v3044, %v3349
  %v3386 = vsub.f32 %v3045, %v3351
  %v3387 = vsub.f32 %v3046, %v3353
  %v3388 = vsub.f32 %v3047, %v3355
  %v3389 = vsub.f32 %v3048, %v3357
  %3406 = vrot.lane.b32.xlu0 %v3294, 32
  %v3407 = vpop.permute.xlu0 %3406
  %3408 = vrot.lane.b32.xlu0 %v3295, 32
  %v3409 = vpop.permute.xlu0 %3408
  %3410 = vrot.lane.b32.xlu0 %v3296, 32
  %v3411 = vpop.permute.xlu0 %3410
  %3412 = vrot.lane.b32.xlu0 %v3297, 32
  %v3413 = vpop.permute.xlu0 %3412
  %3414 = vrot.lane.b32.xlu0 %v3298, 32
  %v3415 = vpop.permute.xlu0 %3414
  %3416 = vrot.lane.b32.xlu0 %v3299, 32
  %v3417 = vpop.permute.xlu0 %3416
  %3418 = vrot.lane.b32.xlu0 %v3300, 32
  %v3419 = vpop.permute.xlu0 %3418
  %3420 = vrot.lane.b32.xlu0 %v3301, 32
  %v3421 = vpop.permute.xlu0 %3420
  %3422 = vrot.lane.b32.xlu0 %v3302, 32
  %v3423 = vpop.permute.xlu0 %3422
  %3424 = vrot.lane.b32.xlu0 %v3303, 32
  %v3425 = vpop.permute.xlu0 %3424
  %3426 = vrot.lane.b32.xlu0 %v3304, 32
  %v3427 = vpop.permute.xlu0 %3426
  %3428 = vrot.lane.b32.xlu0 %v3305, 32
  %v3429 = vpop.permute.xlu0 %3428
  %3430 = vrot.lane.b32.xlu0 %v3306, 32
  %v3431 = vpop.permute.xlu0 %3430
  %3432 = vrot.lane.b32.xlu0 %v3307, 32
  %v3433 = vpop.permute.xlu0 %3432
  %3434 = vrot.lane.b32.xlu0 %v3308, 32
  %v3435 = vpop.permute.xlu0 %3434
  %3436 = vrot.lane.b32.xlu0 %v3309, 32
  %v3437 = vpop.permute.xlu0 %3436
  %v3454 = vadd.f32 %v3374, %v3407
  %v3455 = vadd.f32 %v3375, %v3409
  %v3456 = vadd.f32 %v3376, %v3411
  %v3457 = vadd.f32 %v3377, %v3413
  %v3458 = vadd.f32 %v3378, %v3415
  %v3459 = vadd.f32 %v3379, %v3417
  %v3460 = vadd.f32 %v3380, %v3419
  %v3461 = vadd.f32 %v3381, %v3421
  %v3462 = vadd.f32 %v3382, %v3423
  %v3463 = vadd.f32 %v3383, %v3425
  %v3464 = vadd.f32 %v3384, %v3427
  %v3465 = vadd.f32 %v3385, %v3429
  %v3466 = vadd.f32 %v3386, %v3431
  %v3467 = vadd.f32 %v3387, %v3433
  %v3468 = vadd.f32 %v3388, %v3435
  %v3469 = vadd.f32 %v3389, %v3437
  %3470 = vrot.lane.b32.xlu0 %v3294, 96
  %v3471 = vpop.permute.xlu0 %3470
  %3472 = vrot.lane.b32.xlu0 %v3295, 96
  %v3473 = vpop.permute.xlu0 %3472
  %3474 = vrot.lane.b32.xlu0 %v3296, 96
  %v3475 = vpop.permute.xlu0 %3474
  %3476 = vrot.lane.b32.xlu0 %v3297, 96
  %v3477 = vpop.permute.xlu0 %3476
  %3478 = vrot.lane.b32.xlu0 %v3298, 96
  %v3479 = vpop.permute.xlu0 %3478
  %3480 = vrot.lane.b32.xlu0 %v3299, 96
  %v3481 = vpop.permute.xlu0 %3480
  %3482 = vrot.lane.b32.xlu0 %v3300, 96
  %v3483 = vpop.permute.xlu0 %3482
  %3484 = vrot.lane.b32.xlu0 %v3301, 96
  %v3485 = vpop.permute.xlu0 %3484
  %3486 = vrot.lane.b32.xlu0 %v3302, 96
  %v3487 = vpop.permute.xlu0 %3486
  %3488 = vrot.lane.b32.xlu0 %v3303, 96
  %v3489 = vpop.permute.xlu0 %3488
  %3490 = vrot.lane.b32.xlu0 %v3304, 96
  %v3491 = vpop.permute.xlu0 %3490
  %3492 = vrot.lane.b32.xlu0 %v3305, 96
  %v3493 = vpop.permute.xlu0 %3492
  %3494 = vrot.lane.b32.xlu0 %v3306, 96
  %v3495 = vpop.permute.xlu0 %3494
  %3496 = vrot.lane.b32.xlu0 %v3307, 96
  %v3497 = vpop.permute.xlu0 %3496
  %3498 = vrot.lane.b32.xlu0 %v3308, 96
  %v3499 = vpop.permute.xlu0 %3498
  %3500 = vrot.lane.b32.xlu0 %v3309, 96
  %v3501 = vpop.permute.xlu0 %3500
  %v3518 = vadd.f32 %v3213, %v3471
  %v3519 = vadd.f32 %v3216, %v3473
  %v3520 = vadd.f32 %v3221, %v3475
  %v3521 = vadd.f32 %v3224, %v3477
  %v3522 = vadd.f32 %v3229, %v3479
  %v3523 = vadd.f32 %v3232, %v3481
  %v3524 = vadd.f32 %v3237, %v3483
  %v3525 = vadd.f32 %v3240, %v3485
  %v3526 = vadd.f32 %v3245, %v3487
  %v3527 = vadd.f32 %v3248, %v3489
  %v3528 = vadd.f32 %v3253, %v3491
  %v3529 = vadd.f32 %v3256, %v3493
  %v3530 = vadd.f32 %v3261, %v3495
  %v3531 = vadd.f32 %v3264, %v3497
  %v3532 = vadd.f32 %v3269, %v3499
  %v3533 = vadd.f32 %v3272, %v3501
  %3534 = vmatprep.subr.bf16.mxu0 0
  %3535 = vmatpush1.bf16.msra.mxu0 %v3050
  %3536 = vmatprep.subr.bf16.mxu0 0
  %3537 = vmatpush1.bf16.msra.mxu0 %v3051
  %3538 = vmatprep.subr.bf16.mxu0 0
  %3539 = vmatpush1.bf16.msra.mxu0 %v3052
  %3540 = vmatprep.subr.bf16.mxu0 0
  %3541 = vmatpush1.bf16.msra.mxu0 %v3053
  %3542 = vmatprep.subr.bf16.mxu0 0
  %3543 = vmatpush1.bf16.msra.mxu0 %v3054
  %3544 = vmatprep.subr.bf16.mxu0 0
  %3545 = vmatpush1.bf16.msra.mxu0 %v3055
  %3546 = vmatprep.subr.bf16.mxu0 0
  %3547 = vmatpush1.bf16.msra.mxu0 %v3056
  %3548 = vmatprep.subr.bf16.mxu0 0
  %3549 = vmatpush1.bf16.msra.mxu0 %v3057
  %3550 = vmatprep.subr.bf16.mxu0 0
  %3551 = vmatpush1.bf16.msra.mxu0 0
  %3552 = vmatprep.subr.bf16.mxu0 0
  %3553 = vmatpush1.bf16.msra.mxu0 0
  %3554 = vmatprep.subr.bf16.mxu0 0
  %3555 = vmatpush1.bf16.msra.mxu0 0
  %3556 = vmatprep.subr.bf16.mxu0 0
  %3557 = vmatpush1.bf16.msra.mxu0 0
  %3558 = vmatprep.subr.bf16.mxu0 0
  %3559 = vmatpush1.bf16.msra.mxu0 0
  %3560 = vmatprep.subr.bf16.mxu0 0
  %3561 = vmatpush1.bf16.msra.mxu0 0
  %3562 = vmatprep.subr.bf16.mxu0 0
  %3563 = vmatpush1.bf16.msra.mxu0 0
  %3564 = vmatprep.subr.bf16.mxu0 0
  %3565 = vmatpush1.bf16.msra.mxu0 0
  %3566 = vmatprep.mubr.bf16.mxu0 0
  %3567 = vmatmul.mubr.bf16.gmra.mrb[0].mxu0 %v957
  %v3568 = vpop.f32.mrb[0].mxu0
  %v3569 = vadd.f32 0.0, %v3568
  %v3570 = vpop.f32.mrb[0].mxu0
  %v3571 = vpop.f32.mrb[0].mxu0
  %v3572 = vadd.f32 0.0, %v3571
  %v3573 = vpop.f32.mrb[0].mxu0
  %3574 = vmatprep.mubr.bf16.mxu0 0
  %3575 = vmatmul.mubr.bf16.gmra.mrb[0].mxu0 %v958
  %v3576 = vpop.f32.mrb[0].mxu0
  %v3577 = vadd.f32 0.0, %v3576
  %v3578 = vpop.f32.mrb[0].mxu0
  %v3579 = vpop.f32.mrb[0].mxu0
  %v3580 = vadd.f32 0.0, %v3579
  %v3581 = vpop.f32.mrb[0].mxu0
  %3582 = vmatprep.mubr.bf16.mxu0 0
  %3583 = vmatmul.mubr.bf16.gmra.mrb[0].mxu0 %v959
  %v3584 = vpop.f32.mrb[0].mxu0
  %v3585 = vadd.f32 0.0, %v3584
  %v3586 = vpop.f32.mrb[0].mxu0
  %v3587 = vpop.f32.mrb[0].mxu0
  %v3588 = vadd.f32 0.0, %v3587
  %v3589 = vpop.f32.mrb[0].mxu0
  %3590 = vmatprep.mubr.bf16.mxu0 0
  %3591 = vmatmul.mubr.bf16.gmra.mrb[0].mxu0 %v960
  %v3592 = vpop.f32.mrb[0].mxu0
  %v3593 = vadd.f32 0.0, %v3592
  %v3594 = vpop.f32.mrb[0].mxu0
  %v3595 = vpop.f32.mrb[0].mxu0
  %v3596 = vadd.f32 0.0, %v3595
  %v3597 = vpop.f32.mrb[0].mxu0
  %3598 = vmatprep.mubr.bf16.mxu0 0
  %3599 = vmatmul.mubr.bf16.gmra.mrb[0].mxu0 %v961
  %v3600 = vpop.f32.mrb[0].mxu0
  %v3601 = vadd.f32 0.0, %v3600
  %v3602 = vpop.f32.mrb[0].mxu0
  %v3603 = vpop.f32.mrb[0].mxu0
  %v3604 = vadd.f32 0.0, %v3603
  %v3605 = vpop.f32.mrb[0].mxu0
  %3606 = vmatprep.mubr.bf16.mxu0 0
  %3607 = vmatmul.mubr.bf16.gmra.mrb[0].mxu0 %v962
  %v3608 = vpop.f32.mrb[0].mxu0
  %v3609 = vadd.f32 0.0, %v3608
  %v3610 = vpop.f32.mrb[0].mxu0
  %v3611 = vpop.f32.mrb[0].mxu0
  %v3612 = vadd.f32 0.0, %v3611
  %v3613 = vpop.f32.mrb[0].mxu0
  %3614 = vmatprep.mubr.bf16.mxu0 0
  %3615 = vmatmul.mubr.bf16.gmra.mrb[0].mxu0 %v963
  %v3616 = vpop.f32.mrb[0].mxu0
  %v3617 = vadd.f32 0.0, %v3616
  %v3618 = vpop.f32.mrb[0].mxu0
  %v3619 = vpop.f32.mrb[0].mxu0
  %v3620 = vadd.f32 0.0, %v3619
  %v3621 = vpop.f32.mrb[0].mxu0
  %3622 = vmatprep.mubr.bf16.mxu0 0
  %3623 = vmatmul.mubr.bf16.gmra.mrb[0].mxu0 %v964
  %v3624 = vpop.f32.mrb[0].mxu0
  %v3625 = vadd.f32 0.0, %v3624
  %v3626 = vpop.f32.mrb[0].mxu0
  %v3627 = vpop.f32.mrb[0].mxu0
  %v3628 = vadd.f32 0.0, %v3627
  %v3629 = vpop.f32.mrb[0].mxu0
  %3630 = vdwg.mxu0
  %v3631 = vsub.f32 %v3033, %v3569
  %v3632 = vsub.f32 %v3034, %v3572
  %v3633 = vsub.f32 %v3035, %v3577
  %v3634 = vsub.f32 %v3036, %v3580
  %v3635 = vsub.f32 %v3037, %v3585
  %v3636 = vsub.f32 %v3038, %v3588
  %v3637 = vsub.f32 %v3039, %v3593
  %v3638 = vsub.f32 %v3040, %v3596
  %v3639 = vsub.f32 %v3041, %v3601
  %v3640 = vsub.f32 %v3042, %v3604
  %v3641 = vsub.f32 %v3043, %v3609
  %v3642 = vsub.f32 %v3044, %v3612
  %v3643 = vsub.f32 %v3045, %v3617
  %v3644 = vsub.f32 %v3046, %v3620
  %v3645 = vsub.f32 %v3047, %v3625
  %v3646 = vsub.f32 %v3048, %v3628
  %v3647 = vadd.f32 %v3631, %v3292
  %v3648 = vadd.f32 %v3632, %v3292
  %v3649 = vadd.f32 %v3633, %v3292
  %v3650 = vadd.f32 %v3634, %v3292
  %v3651 = vadd.f32 %v3635, %v3292
  %v3652 = vadd.f32 %v3636, %v3292
  %v3653 = vadd.f32 %v3637, %v3292
  %v3654 = vadd.f32 %v3638, %v3292
  %v3655 = vadd.f32 %v3639, %v3292
  %v3656 = vadd.f32 %v3640, %v3292
  %v3657 = vadd.f32 %v3641, %v3292
  %v3658 = vadd.f32 %v3642, %v3292
  %v3659 = vadd.f32 %v3643, %v3292
  %v3660 = vadd.f32 %v3644, %v3292
  %v3661 = vadd.f32 %v3645, %v3292
  %v3662 = vadd.f32 %v3646, %v3292
  %3679 = vrot.lane.b32.xlu0 %v3569, 96
  %v3680 = vpop.permute.xlu0 %3679
  %3681 = vrot.lane.b32.xlu0 %v3572, 96
  %v3682 = vpop.permute.xlu0 %3681
  %3683 = vrot.lane.b32.xlu0 %v3577, 96
  %v3684 = vpop.permute.xlu0 %3683
  %3685 = vrot.lane.b32.xlu0 %v3580, 96
  %v3686 = vpop.permute.xlu0 %3685
  %3687 = vrot.lane.b32.xlu0 %v3585, 96
  %v3688 = vpop.permute.xlu0 %3687
  %3689 = vrot.lane.b32.xlu0 %v3588, 96
  %v3690 = vpop.permute.xlu0 %3689
  %3691 = vrot.lane.b32.xlu0 %v3593, 96
  %v3692 = vpop.permute.xlu0 %3691
  %3693 = vrot.lane.b32.xlu0 %v3596, 96
  %v3694 = vpop.permute.xlu0 %3693
  %3695 = vrot.lane.b32.xlu0 %v3601, 96
  %v3696 = vpop.permute.xlu0 %3695
  %3697 = vrot.lane.b32.xlu0 %v3604, 96
  %v3698 = vpop.permute.xlu0 %3697
  %3699 = vrot.lane.b32.xlu0 %v3609, 96
  %v3700 = vpop.permute.xlu0 %3699
  %3701 = vrot.lane.b32.xlu0 %v3612, 96
  %v3702 = vpop.permute.xlu0 %3701
  %3703 = vrot.lane.b32.xlu0 %v3617, 96
  %v3704 = vpop.permute.xlu0 %3703
  %3705 = vrot.lane.b32.xlu0 %v3620, 96
  %v3706 = vpop.permute.xlu0 %3705
  %3707 = vrot.lane.b32.xlu0 %v3625, 96
  %v3708 = vpop.permute.xlu0 %3707
  %3709 = vrot.lane.b32.xlu0 %v3628, 96
  %v3710 = vpop.permute.xlu0 %3709
  %v3727 = vsub.f32 %v3033, %v3680
  %v3728 = vsub.f32 %v3034, %v3682
  %v3729 = vsub.f32 %v3035, %v3684
  %v3730 = vsub.f32 %v3036, %v3686
  %v3731 = vsub.f32 %v3037, %v3688
  %v3732 = vsub.f32 %v3038, %v3690
  %v3733 = vsub.f32 %v3039, %v3692
  %v3734 = vsub.f32 %v3040, %v3694
  %v3735 = vsub.f32 %v3041, %v3696
  %v3736 = vsub.f32 %v3042, %v3698
  %v3737 = vsub.f32 %v3043, %v3700
  %v3738 = vsub.f32 %v3044, %v3702
  %v3739 = vsub.f32 %v3045, %v3704
  %v3740 = vsub.f32 %v3046, %v3706
  %v3741 = vsub.f32 %v3047, %v3708
  %v3742 = vsub.f32 %v3048, %v3710
  %3759 = vrot.lane.b32.xlu0 %v3647, 32
  %v3760 = vpop.permute.xlu0 %3759
  %3761 = vrot.lane.b32.xlu0 %v3648, 32
  %v3762 = vpop.permute.xlu0 %3761
  %3763 = vrot.lane.b32.xlu0 %v3649, 32
  %v3764 = vpop.permute.xlu0 %3763
  %3765 = vrot.lane.b32.xlu0 %v3650, 32
  %v3766 = vpop.permute.xlu0 %3765
  %3767 = vrot.lane.b32.xlu0 %v3651, 32
  %v3768 = vpop.permute.xlu0 %3767
  %3769 = vrot.lane.b32.xlu0 %v3652, 32
  %v3770 = vpop.permute.xlu0 %3769
  %3771 = vrot.lane.b32.xlu0 %v3653, 32
  %v3772 = vpop.permute.xlu0 %3771
  %3773 = vrot.lane.b32.xlu0 %v3654, 32
  %v3774 = vpop.permute.xlu0 %3773
  %3775 = vrot.lane.b32.xlu0 %v3655, 32
  %v3776 = vpop.permute.xlu0 %3775
  %3777 = vrot.lane.b32.xlu0 %v3656, 32
  %v3778 = vpop.permute.xlu0 %3777
  %3779 = vrot.lane.b32.xlu0 %v3657, 32
  %v3780 = vpop.permute.xlu0 %3779
  %3781 = vrot.lane.b32.xlu0 %v3658, 32
  %v3782 = vpop.permute.xlu0 %3781
  %3783 = vrot.lane.b32.xlu0 %v3659, 32
  %v3784 = vpop.permute.xlu0 %3783
  %3785 = vrot.lane.b32.xlu0 %v3660, 32
  %v3786 = vpop.permute.xlu0 %3785
  %3787 = vrot.lane.b32.xlu0 %v3661, 32
  %v3788 = vpop.permute.xlu0 %3787
  %3789 = vrot.lane.b32.xlu0 %v3662, 32
  %v3790 = vpop.permute.xlu0 %3789
  %v3807 = vadd.f32 %v3727, %v3760
  %v3808 = vadd.f32 %v3728, %v3762
  %v3809 = vadd.f32 %v3729, %v3764
  %v3810 = vadd.f32 %v3730, %v3766
  %v3811 = vadd.f32 %v3731, %v3768
  %v3812 = vadd.f32 %v3732, %v3770
  %v3813 = vadd.f32 %v3733, %v3772
  %v3814 = vadd.f32 %v3734, %v3774
  %v3815 = vadd.f32 %v3735, %v3776
  %v3816 = vadd.f32 %v3736, %v3778
  %v3817 = vadd.f32 %v3737, %v3780
  %v3818 = vadd.f32 %v3738, %v3782
  %v3819 = vadd.f32 %v3739, %v3784
  %v3820 = vadd.f32 %v3740, %v3786
  %v3821 = vadd.f32 %v3741, %v3788
  %v3822 = vadd.f32 %v3742, %v3790
  %3823 = vrot.lane.b32.xlu0 %v3647, 96
  %v3824 = vpop.permute.xlu0 %3823
  %3825 = vrot.lane.b32.xlu0 %v3648, 96
  %v3826 = vpop.permute.xlu0 %3825
  %3827 = vrot.lane.b32.xlu0 %v3649, 96
  %v3828 = vpop.permute.xlu0 %3827
  %3829 = vrot.lane.b32.xlu0 %v3650, 96
  %v3830 = vpop.permute.xlu0 %3829
  %3831 = vrot.lane.b32.xlu0 %v3651, 96
  %v3832 = vpop.permute.xlu0 %3831
  %3833 = vrot.lane.b32.xlu0 %v3652, 96
  %v3834 = vpop.permute.xlu0 %3833
  %3835 = vrot.lane.b32.xlu0 %v3653, 96
  %v3836 = vpop.permute.xlu0 %3835
  %3837 = vrot.lane.b32.xlu0 %v3654, 96
  %v3838 = vpop.permute.xlu0 %3837
  %3839 = vrot.lane.b32.xlu0 %v3655, 96
  %v3840 = vpop.permute.xlu0 %3839
  %3841 = vrot.lane.b32.xlu0 %v3656, 96
  %v3842 = vpop.permute.xlu0 %3841
  %3843 = vrot.lane.b32.xlu0 %v3657, 96
  %v3844 = vpop.permute.xlu0 %3843
  %3845 = vrot.lane.b32.xlu0 %v3658, 96
  %v3846 = vpop.permute.xlu0 %3845
  %3847 = vrot.lane.b32.xlu0 %v3659, 96
  %v3848 = vpop.permute.xlu0 %3847
  %3849 = vrot.lane.b32.xlu0 %v3660, 96
  %v3850 = vpop.permute.xlu0 %3849
  %3851 = vrot.lane.b32.xlu0 %v3661, 96
  %v3852 = vpop.permute.xlu0 %3851
  %3853 = vrot.lane.b32.xlu0 %v3662, 96
  %v3854 = vpop.permute.xlu0 %3853
  %v3871 = vadd.f32 %v3569, %v3824
  %v3872 = vadd.f32 %v3572, %v3826
  %v3873 = vadd.f32 %v3577, %v3828
  %v3874 = vadd.f32 %v3580, %v3830
  %v3875 = vadd.f32 %v3585, %v3832
  %v3876 = vadd.f32 %v3588, %v3834
  %v3877 = vadd.f32 %v3593, %v3836
  %v3878 = vadd.f32 %v3596, %v3838
  %v3879 = vadd.f32 %v3601, %v3840
  %v3880 = vadd.f32 %v3604, %v3842
  %v3881 = vadd.f32 %v3609, %v3844
  %v3882 = vadd.f32 %v3612, %v3846
  %v3883 = vadd.f32 %v3617, %v3848
  %v3884 = vadd.f32 %v3620, %v3850
  %v3885 = vadd.f32 %v3625, %v3852
  %v3886 = vadd.f32 %v3628, %v3854
  %3887 = vmatprep.subr.bf16.mxu0 0
  %3888 = vmatpush1.bf16.msra.mxu0 %v3050
  %3889 = vmatprep.subr.bf16.mxu0 0
  %3890 = vmatpush1.bf16.msra.mxu0 %v3051
  %3891 = vmatprep.subr.bf16.mxu0 0
  %3892 = vmatpush1.bf16.msra.mxu0 %v3052
  %3893 = vmatprep.subr.bf16.mxu0 0
  %3894 = vmatpush1.bf16.msra.mxu0 %v3053
  %3895 = vmatprep.subr.bf16.mxu0 0
  %3896 = vmatpush1.bf16.msra.mxu0 %v3054
  %3897 = vmatprep.subr.bf16.mxu0 0
  %3898 = vmatpush1.bf16.msra.mxu0 %v3055
  %3899 = vmatprep.subr.bf16.mxu0 0
  %3900 = vmatpush1.bf16.msra.mxu0 %v3056
  %3901 = vmatprep.subr.bf16.mxu0 0
  %3902 = vmatpush1.bf16.msra.mxu0 %v3057
  %3903 = vmatprep.subr.bf16.mxu0 0
  %3904 = vmatpush1.bf16.msra.mxu0 0
  %3905 = vmatprep.subr.bf16.mxu0 0
  %3906 = vmatpush1.bf16.msra.mxu0 0
  %3907 = vmatprep.subr.bf16.mxu0 0
  %3908 = vmatpush1.bf16.msra.mxu0 0
  %3909 = vmatprep.subr.bf16.mxu0 0
  %3910 = vmatpush1.bf16.msra.mxu0 0
  %3911 = vmatprep.subr.bf16.mxu0 0
  %3912 = vmatpush1.bf16.msra.mxu0 0
  %3913 = vmatprep.subr.bf16.mxu0 0
  %3914 = vmatpush1.bf16.msra.mxu0 0
  %3915 = vmatprep.subr.bf16.mxu0 0
  %3916 = vmatpush1.bf16.msra.mxu0 0
  %3917 = vmatprep.subr.bf16.mxu0 0
  %3918 = vmatpush1.bf16.msra.mxu0 0
  %3919 = vmatprep.mubr.bf16.mxu0 0
  %3920 = vmatmul.mubr.bf16.gmra.mrb[0].mxu0 %v965
  %v3921 = vpop.f32.mrb[0].mxu0
  %v3922 = vadd.f32 0.0, %v3921
  %v3923 = vpop.f32.mrb[0].mxu0
  %v3924 = vpop.f32.mrb[0].mxu0
  %v3925 = vadd.f32 0.0, %v3924
  %v3926 = vpop.f32.mrb[0].mxu0
  %3927 = vmatprep.mubr.bf16.mxu0 0
  %3928 = vmatmul.mubr.bf16.gmra.mrb[0].mxu0 %v966
  %v3929 = vpop.f32.mrb[0].mxu0
  %v3930 = vadd.f32 0.0, %v3929
  %v3931 = vpop.f32.mrb[0].mxu0
  %v3932 = vpop.f32.mrb[0].mxu0
  %v3933 = vadd.f32 0.0, %v3932
  %v3934 = vpop.f32.mrb[0].mxu0
  %3935 = vmatprep.mubr.bf16.mxu0 0
  %3936 = vmatmul.mubr.bf16.gmra.mrb[0].mxu0 %v967
  %v3937 = vpop.f32.mrb[0].mxu0
  %v3938 = vadd.f32 0.0, %v3937
  %v3939 = vpop.f32.mrb[0].mxu0
  %v3940 = vpop.f32.mrb[0].mxu0
  %v3941 = vadd.f32 0.0, %v3940
  %v3942 = vpop.f32.mrb[0].mxu0
  %3943 = vmatprep.mubr.bf16.mxu0 0
  %3944 = vmatmul.mubr.bf16.gmra.mrb[0].mxu0 %v968
  %v3945 = vpop.f32.mrb[0].mxu0
  %v3946 = vadd.f32 0.0, %v3945
  %v3947 = vpop.f32.mrb[0].mxu0
  %v3948 = vpop.f32.mrb[0].mxu0
  %v3949 = vadd.f32 0.0, %v3948
  %v3950 = vpop.f32.mrb[0].mxu0
  %3951 = vmatprep.mubr.bf16.mxu0 0
  %3952 = vmatmul.mubr.bf16.gmra.mrb[0].mxu0 %v969
  %v3953 = vpop.f32.mrb[0].mxu0
  %v3954 = vadd.f32 0.0, %v3953
  %v3955 = vpop.f32.mrb[0].mxu0
  %v3956 = vpop.f32.mrb[0].mxu0
  %v3957 = vadd.f32 0.0, %v3956
  %v3958 = vpop.f32.mrb[0].mxu0
  %3959 = vmatprep.mubr.bf16.mxu0 0
  %3960 = vmatmul.mubr.bf16.gmra.mrb[0].mxu0 %v970
  %v3961 = vpop.f32.mrb[0].mxu0
  %v3962 = vadd.f32 0.0, %v3961
  %v3963 = vpop.f32.mrb[0].mxu0
  %v3964 = vpop.f32.mrb[0].mxu0
  %v3965 = vadd.f32 0.0, %v3964
  %v3966 = vpop.f32.mrb[0].mxu0
  %3967 = vmatprep.mubr.bf16.mxu0 0
  %3968 = vmatmul.mubr.bf16.gmra.mrb[0].mxu0 %v971
  %v3969 = vpop.f32.mrb[0].mxu0
  %v3970 = vadd.f32 0.0, %v3969
  %v3971 = vpop.f32.mrb[0].mxu0
  %v3972 = vpop.f32.mrb[0].mxu0
  %v3973 = vadd.f32 0.0, %v3972
  %v3974 = vpop.f32.mrb[0].mxu0
  %3975 = vmatprep.mubr.bf16.mxu0 0
  %3976 = vmatmul.mubr.bf16.gmra.mrb[0].mxu0 %v972
  %v3977 = vpop.f32.mrb[0].mxu0
  %v3978 = vadd.f32 0.0, %v3977
  %v3979 = vpop.f32.mrb[0].mxu0
  %v3980 = vpop.f32.mrb[0].mxu0
  %v3981 = vadd.f32 0.0, %v3980
  %v3982 = vpop.f32.mrb[0].mxu0
  %3983 = vdwg.mxu0
  %v3984 = vsub.f32 %v3033, %v3922
  %v3985 = vsub.f32 %v3034, %v3925
  %v3986 = vsub.f32 %v3035, %v3930
  %v3987 = vsub.f32 %v3036, %v3933
  %v3988 = vsub.f32 %v3037, %v3938
  %v3989 = vsub.f32 %v3038, %v3941
  %v3990 = vsub.f32 %v3039, %v3946
  %v3991 = vsub.f32 %v3040, %v3949
  %v3992 = vsub.f32 %v3041, %v3954
  %v3993 = vsub.f32 %v3042, %v3957
  %v3994 = vsub.f32 %v3043, %v3962
  %v3995 = vsub.f32 %v3044, %v3965
  %v3996 = vsub.f32 %v3045, %v3970
  %v3997 = vsub.f32 %v3046, %v3973
  %v3998 = vsub.f32 %v3047, %v3978
  %v3999 = vsub.f32 %v3048, %v3981
  %v4000 = vadd.f32 %v3984, %v3292
  %v4001 = vadd.f32 %v3985, %v3292
  %v4002 = vadd.f32 %v3986, %v3292
  %v4003 = vadd.f32 %v3987, %v3292
  %v4004 = vadd.f32 %v3988, %v3292
  %v4005 = vadd.f32 %v3989, %v3292
  %v4006 = vadd.f32 %v3990, %v3292
  %v4007 = vadd.f32 %v3991, %v3292
  %v4008 = vadd.f32 %v3992, %v3292
  %v4009 = vadd.f32 %v3993, %v3292
  %v4010 = vadd.f32 %v3994, %v3292
  %v4011 = vadd.f32 %v3995, %v3292
  %v4012 = vadd.f32 %v3996, %v3292
  %v4013 = vadd.f32 %v3997, %v3292
  %v4014 = vadd.f32 %v3998, %v3292
  %v4015 = vadd.f32 %v3999, %v3292
  %4032 = vrot.lane.b32.xlu0 %v3922, 96
  %v4033 = vpop.permute.xlu0 %4032
  %4034 = vrot.lane.b32.xlu0 %v3925, 96
  %v4035 = vpop.permute.xlu0 %4034
  %4036 = vrot.lane.b32.xlu0 %v3930, 96
  %v4037 = vpop.permute.xlu0 %4036
  %4038 = vrot.lane.b32.xlu0 %v3933, 96
  %v4039 = vpop.permute.xlu0 %4038
  %4040 = vrot.lane.b32.xlu0 %v3938, 96
  %v4041 = vpop.permute.xlu0 %4040
  %4042 = vrot.lane.b32.xlu0 %v3941, 96
  %v4043 = vpop.permute.xlu0 %4042
  %4044 = vrot.lane.b32.xlu0 %v3946, 96
  %v4045 = vpop.permute.xlu0 %4044
  %4046 = vrot.lane.b32.xlu0 %v3949, 96
  %v4047 = vpop.permute.xlu0 %4046
  %4048 = vrot.lane.b32.xlu0 %v3954, 96
  %v4049 = vpop.permute.xlu0 %4048
  %4050 = vrot.lane.b32.xlu0 %v3957, 96
  %v4051 = vpop.permute.xlu0 %4050
  %4052 = vrot.lane.b32.xlu0 %v3962, 96
  %v4053 = vpop.permute.xlu0 %4052
  %4054 = vrot.lane.b32.xlu0 %v3965, 96
  %v4055 = vpop.permute.xlu0 %4054
  %4056 = vrot.lane.b32.xlu0 %v3970, 96
  %v4057 = vpop.permute.xlu0 %4056
  %4058 = vrot.lane.b32.xlu0 %v3973, 96
  %v4059 = vpop.permute.xlu0 %4058
  %4060 = vrot.lane.b32.xlu0 %v3978, 96
  %v4061 = vpop.permute.xlu0 %4060
  %4062 = vrot.lane.b32.xlu0 %v3981, 96
  %v4063 = vpop.permute.xlu0 %4062
  %v4080 = vsub.f32 %v3033, %v4033
  %v4081 = vsub.f32 %v3034, %v4035
  %v4082 = vsub.f32 %v3035, %v4037
  %v4083 = vsub.f32 %v3036, %v4039
  %v4084 = vsub.f32 %v3037, %v4041
  %v4085 = vsub.f32 %v3038, %v4043
  %v4086 = vsub.f32 %v3039, %v4045
  %v4087 = vsub.f32 %v3040, %v4047
  %v4088 = vsub.f32 %v3041, %v4049
  %v4089 = vsub.f32 %v3042, %v4051
  %v4090 = vsub.f32 %v3043, %v4053
  %v4091 = vsub.f32 %v3044, %v4055
  %v4092 = vsub.f32 %v3045, %v4057
  %v4093 = vsub.f32 %v3046, %v4059
  %v4094 = vsub.f32 %v3047, %v4061
  %v4095 = vsub.f32 %v3048, %v4063
  %4112 = vrot.lane.b32.xlu0 %v4000, 32
  %v4113 = vpop.permute.xlu0 %4112
  %4114 = vrot.lane.b32.xlu0 %v4001, 32
  %v4115 = vpop.permute.xlu0 %4114
  %4116 = vrot.lane.b32.xlu0 %v4002, 32
  %v4117 = vpop.permute.xlu0 %4116
  %4118 = vrot.lane.b32.xlu0 %v4003, 32
  %v4119 = vpop.permute.xlu0 %4118
  %4120 = vrot.lane.b32.xlu0 %v4004, 32
  %v4121 = vpop.permute.xlu0 %4120
  %4122 = vrot.lane.b32.xlu0 %v4005, 32
  %v4123 = vpop.permute.xlu0 %4122
  %4124 = vrot.lane.b32.xlu0 %v4006, 32
  %v4125 = vpop.permute.xlu0 %4124
  %4126 = vrot.lane.b32.xlu0 %v4007, 32
  %v4127 = vpop.permute.xlu0 %4126
  %4128 = vrot.lane.b32.xlu0 %v4008, 32
  %v4129 = vpop.permute.xlu0 %4128
  %4130 = vrot.lane.b32.xlu0 %v4009, 32
  %v4131 = vpop.permute.xlu0 %4130
  %4132 = vrot.lane.b32.xlu0 %v4010, 32
  %v4133 = vpop.permute.xlu0 %4132
  %4134 = vrot.lane.b32.xlu0 %v4011, 32
  %v4135 = vpop.permute.xlu0 %4134
  %4136 = vrot.lane.b32.xlu0 %v4012, 32
  %v4137 = vpop.permute.xlu0 %4136
  %4138 = vrot.lane.b32.xlu0 %v4013, 32
  %v4139 = vpop.permute.xlu0 %4138
  %4140 = vrot.lane.b32.xlu0 %v4014, 32
  %v4141 = vpop.permute.xlu0 %4140
  %4142 = vrot.lane.b32.xlu0 %v4015, 32
  %v4143 = vpop.permute.xlu0 %4142
  %v4160 = vadd.f32 %v4080, %v4113
  %v4161 = vadd.f32 %v4081, %v4115
  %v4162 = vadd.f32 %v4082, %v4117
  %v4163 = vadd.f32 %v4083, %v4119
  %v4164 = vadd.f32 %v4084, %v4121
  %v4165 = vadd.f32 %v4085, %v4123
  %v4166 = vadd.f32 %v4086, %v4125
  %v4167 = vadd.f32 %v4087, %v4127
  %v4168 = vadd.f32 %v4088, %v4129
  %v4169 = vadd.f32 %v4089, %v4131
  %v4170 = vadd.f32 %v4090, %v4133
  %v4171 = vadd.f32 %v4091, %v4135
  %v4172 = vadd.f32 %v4092, %v4137
  %v4173 = vadd.f32 %v4093, %v4139
  %v4174 = vadd.f32 %v4094, %v4141
  %v4175 = vadd.f32 %v4095, %v4143
  %4176 = vrot.lane.b32.xlu0 %v4000, 96
  %v4177 = vpop.permute.xlu0 %4176
  %4178 = vrot.lane.b32.xlu0 %v4001, 96
  %v4179 = vpop.permute.xlu0 %4178
  %4180 = vrot.lane.b32.xlu0 %v4002, 96
  %v4181 = vpop.permute.xlu0 %4180
  %4182 = vrot.lane.b32.xlu0 %v4003, 96
  %v4183 = vpop.permute.xlu0 %4182
  %4184 = vrot.lane.b32.xlu0 %v4004, 96
  %v4185 = vpop.permute.xlu0 %4184
  %4186 = vrot.lane.b32.xlu0 %v4005, 96
  %v4187 = vpop.permute.xlu0 %4186
  %4188 = vrot.lane.b32.xlu0 %v4006, 96
  %v4189 = vpop.permute.xlu0 %4188
  %4190 = vrot.lane.b32.xlu0 %v4007, 96
  %v4191 = vpop.permute.xlu0 %4190
  %4192 = vrot.lane.b32.xlu0 %v4008, 96
  %v4193 = vpop.permute.xlu0 %4192
  %4194 = vrot.lane.b32.xlu0 %v4009, 96
  %v4195 = vpop.permute.xlu0 %4194
  %4196 = vrot.lane.b32.xlu0 %v4010, 96
  %v4197 = vpop.permute.xlu0 %4196
  %4198 = vrot.lane.b32.xlu0 %v4011, 96
  %v4199 = vpop.permute.xlu0 %4198
  %4200 = vrot.lane.b32.xlu0 %v4012, 96
  %v4201 = vpop.permute.xlu0 %4200
  %4202 = vrot.lane.b32.xlu0 %v4013, 96
  %v4203 = vpop.permute.xlu0 %4202
  %4204 = vrot.lane.b32.xlu0 %v4014, 96
  %v4205 = vpop.permute.xlu0 %4204
  %4206 = vrot.lane.b32.xlu0 %v4015, 96
  %v4207 = vpop.permute.xlu0 %4206
  %v4224 = vadd.f32 %v3922, %v4177
  %v4225 = vadd.f32 %v3925, %v4179
  %v4226 = vadd.f32 %v3930, %v4181
  %v4227 = vadd.f32 %v3933, %v4183
  %v4228 = vadd.f32 %v3938, %v4185
  %v4229 = vadd.f32 %v3941, %v4187
  %v4230 = vadd.f32 %v3946, %v4189
  %v4231 = vadd.f32 %v3949, %v4191
  %v4232 = vadd.f32 %v3954, %v4193
  %v4233 = vadd.f32 %v3957, %v4195
  %v4234 = vadd.f32 %v3962, %v4197
  %v4235 = vadd.f32 %v3965, %v4199
  %v4236 = vadd.f32 %v3970, %v4201
  %v4237 = vadd.f32 %v3973, %v4203
  %v4238 = vadd.f32 %v3978, %v4205
  %v4239 = vadd.f32 %v3981, %v4207
  %4240 = vmatprep.subr.bf16.mxu0 0
  %4241 = vmatpush1.bf16.msra.mxu0 %v3050
  %4242 = vmatprep.subr.bf16.mxu0 0
  %4243 = vmatpush1.bf16.msra.mxu0 %v3051
  %4244 = vmatprep.subr.bf16.mxu0 0
  %4245 = vmatpush1.bf16.msra.mxu0 %v3052
  %4246 = vmatprep.subr.bf16.mxu0 0
  %4247 = vmatpush1.bf16.msra.mxu0 %v3053
  %4248 = vmatprep.subr.bf16.mxu0 0
  %4249 = vmatpush1.bf16.msra.mxu0 %v3054
  %4250 = vmatprep.subr.bf16.mxu0 0
  %4251 = vmatpush1.bf16.msra.mxu0 %v3055
  %4252 = vmatprep.subr.bf16.mxu0 0
  %4253 = vmatpush1.bf16.msra.mxu0 %v3056
  %4254 = vmatprep.subr.bf16.mxu0 0
  %4255 = vmatpush1.bf16.msra.mxu0 %v3057
  %4256 = vmatprep.subr.bf16.mxu0 0
  %4257 = vmatpush1.bf16.msra.mxu0 0
  %4258 = vmatprep.subr.bf16.mxu0 0
  %4259 = vmatpush1.bf16.msra.mxu0 0
  %4260 = vmatprep.subr.bf16.mxu0 0
  %4261 = vmatpush1.bf16.msra.mxu0 0
  %4262 = vmatprep.subr.bf16.mxu0 0
  %4263 = vmatpush1.bf16.msra.mxu0 0
  %4264 = vmatprep.subr.bf16.mxu0 0
  %4265 = vmatpush1.bf16.msra.mxu0 0
  %4266 = vmatprep.subr.bf16.mxu0 0
  %4267 = vmatpush1.bf16.msra.mxu0 0
  %4268 = vmatprep.subr.bf16.mxu0 0
  %4269 = vmatpush1.bf16.msra.mxu0 0
  %4270 = vmatprep.subr.bf16.mxu0 0
  %4271 = vmatpush1.bf16.msra.mxu0 0
  %4272 = vmatprep.mubr.bf16.mxu0 0
  %4273 = vmatmul.mubr.bf16.gmra.mrb[0].mxu0 %v973
  %v4274 = vpop.f32.mrb[0].mxu0
  %v4275 = vadd.f32 0.0, %v4274
  %v4276 = vpop.f32.mrb[0].mxu0
  %v4277 = vpop.f32.mrb[0].mxu0
  %v4278 = vadd.f32 0.0, %v4277
  %v4279 = vpop.f32.mrb[0].mxu0
  %4280 = vmatprep.mubr.bf16.mxu0 0
  %4281 = vmatmul.mubr.bf16.gmra.mrb[0].mxu0 %v974
  %v4282 = vpop.f32.mrb[0].mxu0
  %v4283 = vadd.f32 0.0, %v4282
  %v4284 = vpop.f32.mrb[0].mxu0
  %v4285 = vpop.f32.mrb[0].mxu0
  %v4286 = vadd.f32 0.0, %v4285
  %v4287 = vpop.f32.mrb[0].mxu0
  %4288 = vmatprep.mubr.bf16.mxu0 0
  %4289 = vmatmul.mubr.bf16.gmra.mrb[0].mxu0 %v975
  %v4290 = vpop.f32.mrb[0].mxu0
  %v4291 = vadd.f32 0.0, %v4290
  %v4292 = vpop.f32.mrb[0].mxu0
  %v4293 = vpop.f32.mrb[0].mxu0
  %v4294 = vadd.f32 0.0, %v4293
  %v4295 = vpop.f32.mrb[0].mxu0
  %4296 = vmatprep.mubr.bf16.mxu0 0
  %4297 = vmatmul.mubr.bf16.gmra.mrb[0].mxu0 %v976
  %v4298 = vpop.f32.mrb[0].mxu0
  %v4299 = vadd.f32 0.0, %v4298
  %v4300 = vpop.f32.mrb[0].mxu0
  %v4301 = vpop.f32.mrb[0].mxu0
  %v4302 = vadd.f32 0.0, %v4301
  %v4303 = vpop.f32.mrb[0].mxu0
  %4304 = vmatprep.mubr.bf16.mxu0 0
  %4305 = vmatmul.mubr.bf16.gmra.mrb[0].mxu0 %v977
  %v4306 = vpop.f32.mrb[0].mxu0
  %v4307 = vadd.f32 0.0, %v4306
  %v4308 = vpop.f32.mrb[0].mxu0
  %v4309 = vpop.f32.mrb[0].mxu0
  %v4310 = vadd.f32 0.0, %v4309
  %v4311 = vpop.f32.mrb[0].mxu0
  %4312 = vmatprep.mubr.bf16.mxu0 0
  %4313 = vmatmul.mubr.bf16.gmra.mrb[0].mxu0 %v978
  %v4314 = vpop.f32.mrb[0].mxu0
  %v4315 = vadd.f32 0.0, %v4314
  %v4316 = vpop.f32.mrb[0].mxu0
  %v4317 = vpop.f32.mrb[0].mxu0
  %v4318 = vadd.f32 0.0, %v4317
  %v4319 = vpop.f32.mrb[0].mxu0
  %4320 = vmatprep.mubr.bf16.mxu0 0
  %4321 = vmatmul.mubr.bf16.gmra.mrb[0].mxu0 %v979
  %v4322 = vpop.f32.mrb[0].mxu0
  %v4323 = vadd.f32 0.0, %v4322
  %v4324 = vpop.f32.mrb[0].mxu0
  %v4325 = vpop.f32.mrb[0].mxu0
  %v4326 = vadd.f32 0.0, %v4325
  %v4327 = vpop.f32.mrb[0].mxu0
  %4328 = vmatprep.mubr.bf16.mxu0 0
  %4329 = vmatmul.mubr.bf16.gmra.mrb[0].mxu0 %v980
  %v4330 = vpop.f32.mrb[0].mxu0
  %v4331 = vadd.f32 0.0, %v4330
  %v4332 = vpop.f32.mrb[0].mxu0
  %v4333 = vpop.f32.mrb[0].mxu0
  %v4334 = vadd.f32 0.0, %v4333
  %v4335 = vpop.f32.mrb[0].mxu0
  %4336 = vdwg.mxu0
  %v4337 = vsub.f32 %v3033, %v4275
  %v4338 = vsub.f32 %v3034, %v4278
  %v4339 = vsub.f32 %v3035, %v4283
  %v4340 = vsub.f32 %v3036, %v4286
  %v4341 = vsub.f32 %v3037, %v4291
  %v4342 = vsub.f32 %v3038, %v4294
  %v4343 = vsub.f32 %v3039, %v4299
  %v4344 = vsub.f32 %v3040, %v4302
  %v4345 = vsub.f32 %v3041, %v4307
  %v4346 = vsub.f32 %v3042, %v4310
  %v4347 = vsub.f32 %v3043, %v4315
  %v4348 = vsub.f32 %v3044, %v4318
  %v4349 = vsub.f32 %v3045, %v4323
  %v4350 = vsub.f32 %v3046, %v4326
  %v4351 = vsub.f32 %v3047, %v4331
  %v4352 = vsub.f32 %v3048, %v4334
  %v4353 = vadd.f32 %v4337, %v3292
  %v4354 = vadd.f32 %v4338, %v3292
  %v4355 = vadd.f32 %v4339, %v3292
  %v4356 = vadd.f32 %v4340, %v3292
  %v4357 = vadd.f32 %v4341, %v3292
  %v4358 = vadd.f32 %v4342, %v3292
  %v4359 = vadd.f32 %v4343, %v3292
  %v4360 = vadd.f32 %v4344, %v3292
  %v4361 = vadd.f32 %v4345, %v3292
  %v4362 = vadd.f32 %v4346, %v3292
  %v4363 = vadd.f32 %v4347, %v3292
  %v4364 = vadd.f32 %v4348, %v3292
  %v4365 = vadd.f32 %v4349, %v3292
  %v4366 = vadd.f32 %v4350, %v3292
  %v4367 = vadd.f32 %v4351, %v3292
  %v4368 = vadd.f32 %v4352, %v3292
  %4385 = vrot.lane.b32.xlu0 %v4275, 96
  %v4386 = vpop.permute.xlu0 %4385
  %4387 = vrot.lane.b32.xlu0 %v4278, 96
  %v4388 = vpop.permute.xlu0 %4387
  %4389 = vrot.lane.b32.xlu0 %v4283, 96
  %v4390 = vpop.permute.xlu0 %4389
  %4391 = vrot.lane.b32.xlu0 %v4286, 96
  %v4392 = vpop.permute.xlu0 %4391
  %4393 = vrot.lane.b32.xlu0 %v4291, 96
  %v4394 = vpop.permute.xlu0 %4393
  %4395 = vrot.lane.b32.xlu0 %v4294, 96
  %v4396 = vpop.permute.xlu0 %4395
  %4397 = vrot.lane.b32.xlu0 %v4299, 96
  %v4398 = vpop.permute.xlu0 %4397
  %4399 = vrot.lane.b32.xlu0 %v4302, 96
  %v4400 = vpop.permute.xlu0 %4399
  %4401 = vrot.lane.b32.xlu0 %v4307, 96
  %v4402 = vpop.permute.xlu0 %4401
  %4403 = vrot.lane.b32.xlu0 %v4310, 96
  %v4404 = vpop.permute.xlu0 %4403
  %4405 = vrot.lane.b32.xlu0 %v4315, 96
  %v4406 = vpop.permute.xlu0 %4405
  %4407 = vrot.lane.b32.xlu0 %v4318, 96
  %v4408 = vpop.permute.xlu0 %4407
  %4409 = vrot.lane.b32.xlu0 %v4323, 96
  %v4410 = vpop.permute.xlu0 %4409
  %4411 = vrot.lane.b32.xlu0 %v4326, 96
  %v4412 = vpop.permute.xlu0 %4411
  %4413 = vrot.lane.b32.xlu0 %v4331, 96
  %v4414 = vpop.permute.xlu0 %4413
  %4415 = vrot.lane.b32.xlu0 %v4334, 96
  %v4416 = vpop.permute.xlu0 %4415
  %v4433 = vsub.f32 %v3033, %v4386
  %v4434 = vsub.f32 %v3034, %v4388
  %v4435 = vsub.f32 %v3035, %v4390
  %v4436 = vsub.f32 %v3036, %v4392
  %v4437 = vsub.f32 %v3037, %v4394
  %v4438 = vsub.f32 %v3038, %v4396
  %v4439 = vsub.f32 %v3039, %v4398
  %v4440 = vsub.f32 %v3040, %v4400
  %v4441 = vsub.f32 %v3041, %v4402
  %v4442 = vsub.f32 %v3042, %v4404
  %v4443 = vsub.f32 %v3043, %v4406
  %v4444 = vsub.f32 %v3044, %v4408
  %v4445 = vsub.f32 %v3045, %v4410
  %v4446 = vsub.f32 %v3046, %v4412
  %v4447 = vsub.f32 %v3047, %v4414
  %v4448 = vsub.f32 %v3048, %v4416
  %4465 = vrot.lane.b32.xlu0 %v4353, 32
  %v4466 = vpop.permute.xlu0 %4465
  %4467 = vrot.lane.b32.xlu0 %v4354, 32
  %v4468 = vpop.permute.xlu0 %4467
  %4469 = vrot.lane.b32.xlu0 %v4355, 32
  %v4470 = vpop.permute.xlu0 %4469
  %4471 = vrot.lane.b32.xlu0 %v4356, 32
  %v4472 = vpop.permute.xlu0 %4471
  %4473 = vrot.lane.b32.xlu0 %v4357, 32
  %v4474 = vpop.permute.xlu0 %4473
  %4475 = vrot.lane.b32.xlu0 %v4358, 32
  %v4476 = vpop.permute.xlu0 %4475
  %4477 = vrot.lane.b32.xlu0 %v4359, 32
  %v4478 = vpop.permute.xlu0 %4477
  %4479 = vrot.lane.b32.xlu0 %v4360, 32
  %v4480 = vpop.permute.xlu0 %4479
  %4481 = vrot.lane.b32.xlu0 %v4361, 32
  %v4482 = vpop.permute.xlu0 %4481
  %4483 = vrot.lane.b32.xlu0 %v4362, 32
  %v4484 = vpop.permute.xlu0 %4483
  %4485 = vrot.lane.b32.xlu0 %v4363, 32
  %v4486 = vpop.permute.xlu0 %4485
  %4487 = vrot.lane.b32.xlu0 %v4364, 32
  %v4488 = vpop.permute.xlu0 %4487
  %4489 = vrot.lane.b32.xlu0 %v4365, 32
  %v4490 = vpop.permute.xlu0 %4489
  %4491 = vrot.lane.b32.xlu0 %v4366, 32
  %v4492 = vpop.permute.xlu0 %4491
  %4493 = vrot.lane.b32.xlu0 %v4367, 32
  %v4494 = vpop.permute.xlu0 %4493
  %4495 = vrot.lane.b32.xlu0 %v4368, 32
  %v4496 = vpop.permute.xlu0 %4495
  %v4513 = vadd.f32 %v4433, %v4466
  %v4514 = vadd.f32 %v4434, %v4468
  %v4515 = vadd.f32 %v4435, %v4470
  %v4516 = vadd.f32 %v4436, %v4472
  %v4517 = vadd.f32 %v4437, %v4474
  %v4518 = vadd.f32 %v4438, %v4476
  %v4519 = vadd.f32 %v4439, %v4478
  %v4520 = vadd.f32 %v4440, %v4480
  %v4521 = vadd.f32 %v4441, %v4482
  %v4522 = vadd.f32 %v4442, %v4484
  %v4523 = vadd.f32 %v4443, %v4486
  %v4524 = vadd.f32 %v4444, %v4488
  %v4525 = vadd.f32 %v4445, %v4490
  %v4526 = vadd.f32 %v4446, %v4492
  %v4527 = vadd.f32 %v4447, %v4494
  %v4528 = vadd.f32 %v4448, %v4496
  %4529 = vrot.lane.b32.xlu0 %v4353, 96
  %v4530 = vpop.permute.xlu0 %4529
  %4531 = vrot.lane.b32.xlu0 %v4354, 96
  %v4532 = vpop.permute.xlu0 %4531
  %4533 = vrot.lane.b32.xlu0 %v4355, 96
  %v4534 = vpop.permute.xlu0 %4533
  %4535 = vrot.lane.b32.xlu0 %v4356, 96
  %v4536 = vpop.permute.xlu0 %4535
  %4537 = vrot.lane.b32.xlu0 %v4357, 96
  %v4538 = vpop.permute.xlu0 %4537
  %4539 = vrot.lane.b32.xlu0 %v4358, 96
  %v4540 = vpop.permute.xlu0 %4539
  %4541 = vrot.lane.b32.xlu0 %v4359, 96
  %v4542 = vpop.permute.xlu0 %4541
  %4543 = vrot.lane.b32.xlu0 %v4360, 96
  %v4544 = vpop.permute.xlu0 %4543
  %4545 = vrot.lane.b32.xlu0 %v4361, 96
  %v4546 = vpop.permute.xlu0 %4545
  %4547 = vrot.lane.b32.xlu0 %v4362, 96
  %v4548 = vpop.permute.xlu0 %4547
  %4549 = vrot.lane.b32.xlu0 %v4363, 96
  %v4550 = vpop.permute.xlu0 %4549
  %4551 = vrot.lane.b32.xlu0 %v4364, 96
  %v4552 = vpop.permute.xlu0 %4551
  %4553 = vrot.lane.b32.xlu0 %v4365, 96
  %v4554 = vpop.permute.xlu0 %4553
  %4555 = vrot.lane.b32.xlu0 %v4366, 96
  %v4556 = vpop.permute.xlu0 %4555
  %4557 = vrot.lane.b32.xlu0 %v4367, 96
  %v4558 = vpop.permute.xlu0 %4557
  %4559 = vrot.lane.b32.xlu0 %v4368, 96
  %v4560 = vpop.permute.xlu0 %4559
  %v4577 = vadd.f32 %v4275, %v4530
  %v4578 = vadd.f32 %v4278, %v4532
  %v4579 = vadd.f32 %v4283, %v4534
  %v4580 = vadd.f32 %v4286, %v4536
  %v4581 = vadd.f32 %v4291, %v4538
  %v4582 = vadd.f32 %v4294, %v4540
  %v4583 = vadd.f32 %v4299, %v4542
  %v4584 = vadd.f32 %v4302, %v4544
  %v4585 = vadd.f32 %v4307, %v4546
  %v4586 = vadd.f32 %v4310, %v4548
  %v4587 = vadd.f32 %v4315, %v4550
  %v4588 = vadd.f32 %v4318, %v4552
  %v4589 = vadd.f32 %v4323, %v4554
  %v4590 = vadd.f32 %v4326, %v4556
  %v4591 = vadd.f32 %v4331, %v4558
  %v4592 = vadd.f32 %v4334, %v4560
  %v4593 = vmax.f32 %v3142, %v3454
  %v4594 = vmax.f32 %v3143, %v3455
  %v4595 = vmax.f32 %v3144, %v3456
  %v4596 = vmax.f32 %v3145, %v3457
  %v4597 = vmax.f32 %v3146, %v3458
  %v4598 = vmax.f32 %v3147, %v3459
  %v4599 = vmax.f32 %v3148, %v3460
  %v4600 = vmax.f32 %v3149, %v3461
  %v4601 = vmax.f32 %v3150, %v3462
  %v4602 = vmax.f32 %v3151, %v3463
  %v4603 = vmax.f32 %v3152, %v3464
  %v4604 = vmax.f32 %v3153, %v3465
  %v4605 = vmax.f32 %v3154, %v3466
  %v4606 = vmax.f32 %v3155, %v3467
  %v4607 = vmax.f32 %v3156, %v3468
  %v4608 = vmax.f32 %v3157, %v3469
  %v4609 = vmax.f32 %v4593, %v3807
  %v4610 = vmax.f32 %v4594, %v3808
  %v4611 = vmax.f32 %v4595, %v3809
  %v4612 = vmax.f32 %v4596, %v3810
  %v4613 = vmax.f32 %v4597, %v3811
  %v4614 = vmax.f32 %v4598, %v3812
  %v4615 = vmax.f32 %v4599, %v3813
  %v4616 = vmax.f32 %v4600, %v3814
  %v4617 = vmax.f32 %v4601, %v3815
  %v4618 = vmax.f32 %v4602, %v3816
  %v4619 = vmax.f32 %v4603, %v3817
  %v4620 = vmax.f32 %v4604, %v3818
  %v4621 = vmax.f32 %v4605, %v3819
  %v4622 = vmax.f32 %v4606, %v3820
  %v4623 = vmax.f32 %v4607, %v3821
  %v4624 = vmax.f32 %v4608, %v3822
  %v4625 = vmax.f32 %v4609, %v4160
  %v4626 = vmax.f32 %v4610, %v4161
  %v4627 = vmax.f32 %v4611, %v4162
  %v4628 = vmax.f32 %v4612, %v4163
  %v4629 = vmax.f32 %v4613, %v4164
  %v4630 = vmax.f32 %v4614, %v4165
  %v4631 = vmax.f32 %v4615, %v4166
  %v4632 = vmax.f32 %v4616, %v4167
  %v4633 = vmax.f32 %v4617, %v4168
  %v4634 = vmax.f32 %v4618, %v4169
  %v4635 = vmax.f32 %v4619, %v4170
  %v4636 = vmax.f32 %v4620, %v4171
  %v4637 = vmax.f32 %v4621, %v4172
  %v4638 = vmax.f32 %v4622, %v4173
  %v4639 = vmax.f32 %v4623, %v4174
  %v4640 = vmax.f32 %v4624, %v4175
  %v4641 = vmax.f32 %v4625, %v4513
  %v4642 = vmax.f32 %v4626, %v4514
  %v4643 = vmax.f32 %v4627, %v4515
  %v4644 = vmax.f32 %v4628, %v4516
  %v4645 = vmax.f32 %v4629, %v4517
  %v4646 = vmax.f32 %v4630, %v4518
  %v4647 = vmax.f32 %v4631, %v4519
  %v4648 = vmax.f32 %v4632, %v4520
  %v4649 = vmax.f32 %v4633, %v4521
  %v4650 = vmax.f32 %v4634, %v4522
  %v4651 = vmax.f32 %v4635, %v4523
  %v4652 = vmax.f32 %v4636, %v4524
  %v4653 = vmax.f32 %v4637, %v4525
  %v4654 = vmax.f32 %v4638, %v4526
  %v4655 = vmax.f32 %v4639, %v4527
  %v4656 = vmax.f32 %v4640, %v4528
  %v4657 = vsub.f32 %v3142, %v4641
  %v4658 = vsub.f32 %v3143, %v4642
  %v4659 = vsub.f32 %v3144, %v4643
  %v4660 = vsub.f32 %v3145, %v4644
  %v4661 = vsub.f32 %v3146, %v4645
  %v4662 = vsub.f32 %v3147, %v4646
  %v4663 = vsub.f32 %v3148, %v4647
  %v4664 = vsub.f32 %v3149, %v4648
  %v4665 = vsub.f32 %v3150, %v4649
  %v4666 = vsub.f32 %v3151, %v4650
  %v4667 = vsub.f32 %v3152, %v4651
  %v4668 = vsub.f32 %v3153, %v4652
  %v4669 = vsub.f32 %v3154, %v4653
  %v4670 = vsub.f32 %v3155, %v4654
  %v4671 = vsub.f32 %v3156, %v4655
  %v4672 = vsub.f32 %v3157, %v4656
  %v4673 = vmul.f32 %v4657, 1.442695
  %v4674 = vpow.pop %v4673
  %v4675 = vmul.f32 %v4658, 1.442695
  %v4676 = vpow.pop %v4675
  %v4677 = vmul.f32 %v4659, 1.442695
  %v4678 = vpow.pop %v4677
  %v4679 = vmul.f32 %v4660, 1.442695
  %v4680 = vpow.pop %v4679
  %v4681 = vmul.f32 %v4661, 1.442695
  %v4682 = vpow.pop %v4681
  %v4683 = vmul.f32 %v4662, 1.442695
  %v4684 = vpow.pop %v4683
  %v4685 = vmul.f32 %v4663, 1.442695
  %v4686 = vpow.pop %v4685
  %v4687 = vmul.f32 %v4664, 1.442695
  %v4688 = vpow.pop %v4687
  %v4689 = vmul.f32 %v4665, 1.442695
  %v4690 = vpow.pop %v4689
  %v4691 = vmul.f32 %v4666, 1.442695
  %v4692 = vpow.pop %v4691
  %v4693 = vmul.f32 %v4667, 1.442695
  %v4694 = vpow.pop %v4693
  %v4695 = vmul.f32 %v4668, 1.442695
  %v4696 = vpow.pop %v4695
  %v4697 = vmul.f32 %v4669, 1.442695
  %v4698 = vpow.pop %v4697
  %v4699 = vmul.f32 %v4670, 1.442695
  %v4700 = vpow.pop %v4699
  %v4701 = vmul.f32 %v4671, 1.442695
  %v4702 = vpow.pop %v4701
  %v4703 = vmul.f32 %v4672, 1.442695
  %v4704 = vpow.pop %v4703
  %v4705 = vadd.f32 %v4674, 0.0
  %v4706 = vadd.f32 %v4676, 0.0
  %v4707 = vadd.f32 %v4678, 0.0
  %v4708 = vadd.f32 %v4680, 0.0
  %v4709 = vadd.f32 %v4682, 0.0
  %v4710 = vadd.f32 %v4684, 0.0
  %v4711 = vadd.f32 %v4686, 0.0
  %v4712 = vadd.f32 %v4688, 0.0
  %v4713 = vadd.f32 %v4690, 0.0
  %v4714 = vadd.f32 %v4692, 0.0
  %v4715 = vadd.f32 %v4694, 0.0
  %v4716 = vadd.f32 %v4696, 0.0
  %v4717 = vadd.f32 %v4698, 0.0
  %v4718 = vadd.f32 %v4700, 0.0
  %v4719 = vadd.f32 %v4702, 0.0
  %v4720 = vadd.f32 %v4704, 0.0
  %4737 = vrot.lane.b32.xlu0 %v3162, 64
  %v4738 = vpop.permute.xlu0 %4737
  %4739 = vrot.lane.b32.xlu0 %v3163, 64
  %v4740 = vpop.permute.xlu0 %4739
  %4741 = vrot.lane.b32.xlu0 %v3164, 64
  %v4742 = vpop.permute.xlu0 %4741
  %4743 = vrot.lane.b32.xlu0 %v3165, 64
  %v4744 = vpop.permute.xlu0 %4743
  %4745 = vrot.lane.b32.xlu0 %v3166, 64
  %v4746 = vpop.permute.xlu0 %4745
  %4747 = vrot.lane.b32.xlu0 %v3167, 64
  %v4748 = vpop.permute.xlu0 %4747
  %4749 = vrot.lane.b32.xlu0 %v3168, 64
  %v4750 = vpop.permute.xlu0 %4749
  %4751 = vrot.lane.b32.xlu0 %v3169, 64
  %v4752 = vpop.permute.xlu0 %4751
  %4753 = vrot.lane.b32.xlu0 %v3170, 64
  %v4754 = vpop.permute.xlu0 %4753
  %4755 = vrot.lane.b32.xlu0 %v3171, 64
  %v4756 = vpop.permute.xlu0 %4755
  %4757 = vrot.lane.b32.xlu0 %v3172, 64
  %v4758 = vpop.permute.xlu0 %4757
  %4759 = vrot.lane.b32.xlu0 %v3173, 64
  %v4760 = vpop.permute.xlu0 %4759
  %4761 = vrot.lane.b32.xlu0 %v3174, 64
  %v4762 = vpop.permute.xlu0 %4761
  %4763 = vrot.lane.b32.xlu0 %v3175, 64
  %v4764 = vpop.permute.xlu0 %4763
  %4765 = vrot.lane.b32.xlu0 %v3176, 64
  %v4766 = vpop.permute.xlu0 %4765
  %4767 = vrot.lane.b32.xlu0 %v3177, 64
  %v4768 = vpop.permute.xlu0 %4767
  %v4785 = vmul.f32 %v4674, %v4738
  %v4786 = vmul.f32 %v4676, %v4740
  %v4787 = vmul.f32 %v4678, %v4742
  %v4788 = vmul.f32 %v4680, %v4744
  %v4789 = vmul.f32 %v4682, %v4746
  %v4790 = vmul.f32 %v4684, %v4748
  %v4791 = vmul.f32 %v4686, %v4750
  %v4792 = vmul.f32 %v4688, %v4752
  %v4793 = vmul.f32 %v4690, %v4754
  %v4794 = vmul.f32 %v4692, %v4756
  %v4795 = vmul.f32 %v4694, %v4758
  %v4796 = vmul.f32 %v4696, %v4760
  %v4797 = vmul.f32 %v4698, %v4762
  %v4798 = vmul.f32 %v4700, %v4764
  %v4799 = vmul.f32 %v4702, %v4766
  %v4800 = vmul.f32 %v4704, %v4768
  %v4801 = vadd.f32 %v4785, 0.0
  %v4802 = vadd.f32 %v4786, 0.0
  %v4803 = vadd.f32 %v4787, 0.0
  %v4804 = vadd.f32 %v4788, 0.0
  %v4805 = vadd.f32 %v4789, 0.0
  %v4806 = vadd.f32 %v4790, 0.0
  %v4807 = vadd.f32 %v4791, 0.0
  %v4808 = vadd.f32 %v4792, 0.0
  %v4809 = vadd.f32 %v4793, 0.0
  %v4810 = vadd.f32 %v4794, 0.0
  %v4811 = vadd.f32 %v4795, 0.0
  %v4812 = vadd.f32 %v4796, 0.0
  %v4813 = vadd.f32 %v4797, 0.0
  %v4814 = vadd.f32 %v4798, 0.0
  %v4815 = vadd.f32 %v4799, 0.0
  %v4816 = vadd.f32 %v4800, 0.0
  %v4817 = vsub.f32 %v3454, %v4641
  %v4818 = vsub.f32 %v3455, %v4642
  %v4819 = vsub.f32 %v3456, %v4643
  %v4820 = vsub.f32 %v3457, %v4644
  %v4821 = vsub.f32 %v3458, %v4645
  %v4822 = vsub.f32 %v3459, %v4646
  %v4823 = vsub.f32 %v3460, %v4647
  %v4824 = vsub.f32 %v3461, %v4648
  %v4825 = vsub.f32 %v3462, %v4649
  %v4826 = vsub.f32 %v3463, %v4650
  %v4827 = vsub.f32 %v3464, %v4651
  %v4828 = vsub.f32 %v3465, %v4652
  %v4829 = vsub.f32 %v3466, %v4653
  %v4830 = vsub.f32 %v3467, %v4654
  %v4831 = vsub.f32 %v3468, %v4655
  %v4832 = vsub.f32 %v3469, %v4656
  %v4833 = vmul.f32 %v4817, 1.442695
  %v4834 = vpow.pop %v4833
  %v4835 = vmul.f32 %v4818, 1.442695
  %v4836 = vpow.pop %v4835
  %v4837 = vmul.f32 %v4819, 1.442695
  %v4838 = vpow.pop %v4837
  %v4839 = vmul.f32 %v4820, 1.442695
  %v4840 = vpow.pop %v4839
  %v4841 = vmul.f32 %v4821, 1.442695
  %v4842 = vpow.pop %v4841
  %v4843 = vmul.f32 %v4822, 1.442695
  %v4844 = vpow.pop %v4843
  %v4845 = vmul.f32 %v4823, 1.442695
  %v4846 = vpow.pop %v4845
  %v4847 = vmul.f32 %v4824, 1.442695
  %v4848 = vpow.pop %v4847
  %v4849 = vmul.f32 %v4825, 1.442695
  %v4850 = vpow.pop %v4849
  %v4851 = vmul.f32 %v4826, 1.442695
  %v4852 = vpow.pop %v4851
  %v4853 = vmul.f32 %v4827, 1.442695
  %v4854 = vpow.pop %v4853
  %v4855 = vmul.f32 %v4828, 1.442695
  %v4856 = vpow.pop %v4855
  %v4857 = vmul.f32 %v4829, 1.442695
  %v4858 = vpow.pop %v4857
  %v4859 = vmul.f32 %v4830, 1.442695
  %v4860 = vpow.pop %v4859
  %v4861 = vmul.f32 %v4831, 1.442695
  %v4862 = vpow.pop %v4861
  %v4863 = vmul.f32 %v4832, 1.442695
  %v4864 = vpow.pop %v4863
  %v4865 = vadd.f32 %v4705, %v4834
  %v4866 = vadd.f32 %v4706, %v4836
  %v4867 = vadd.f32 %v4707, %v4838
  %v4868 = vadd.f32 %v4708, %v4840
  %v4869 = vadd.f32 %v4709, %v4842
  %v4870 = vadd.f32 %v4710, %v4844
  %v4871 = vadd.f32 %v4711, %v4846
  %v4872 = vadd.f32 %v4712, %v4848
  %v4873 = vadd.f32 %v4713, %v4850
  %v4874 = vadd.f32 %v4714, %v4852
  %v4875 = vadd.f32 %v4715, %v4854
  %v4876 = vadd.f32 %v4716, %v4856
  %v4877 = vadd.f32 %v4717, %v4858
  %v4878 = vadd.f32 %v4718, %v4860
  %v4879 = vadd.f32 %v4719, %v4862
  %v4880 = vadd.f32 %v4720, %v4864
  %4897 = vrot.lane.b32.xlu0 %v3518, 64
  %v4898 = vpop.permute.xlu0 %4897
  %4899 = vrot.lane.b32.xlu0 %v3519, 64
  %v4900 = vpop.permute.xlu0 %4899
  %4901 = vrot.lane.b32.xlu0 %v3520, 64
  %v4902 = vpop.permute.xlu0 %4901
  %4903 = vrot.lane.b32.xlu0 %v3521, 64
  %v4904 = vpop.permute.xlu0 %4903
  %4905 = vrot.lane.b32.xlu0 %v3522, 64
  %v4906 = vpop.permute.xlu0 %4905
  %4907 = vrot.lane.b32.xlu0 %v3523, 64
  %v4908 = vpop.permute.xlu0 %4907
  %4909 = vrot.lane.b32.xlu0 %v3524, 64
  %v4910 = vpop.permute.xlu0 %4909
  %4911 = vrot.lane.b32.xlu0 %v3525, 64
  %v4912 = vpop.permute.xlu0 %4911
  %4913 = vrot.lane.b32.xlu0 %v3526, 64
  %v4914 = vpop.permute.xlu0 %4913
  %4915 = vrot.lane.b32.xlu0 %v3527, 64
  %v4916 = vpop.permute.xlu0 %4915
  %4917 = vrot.lane.b32.xlu0 %v3528, 64
  %v4918 = vpop.permute.xlu0 %4917
  %4919 = vrot.lane.b32.xlu0 %v3529, 64
  %v4920 = vpop.permute.xlu0 %4919
  %4921 = vrot.lane.b32.xlu0 %v3530, 64
  %v4922 = vpop.permute.xlu0 %4921
  %4923 = vrot.lane.b32.xlu0 %v3531, 64
  %v4924 = vpop.permute.xlu0 %4923
  %4925 = vrot.lane.b32.xlu0 %v3532, 64
  %v4926 = vpop.permute.xlu0 %4925
  %4927 = vrot.lane.b32.xlu0 %v3533, 64
  %v4928 = vpop.permute.xlu0 %4927
  %v4945 = vmul.f32 %v4834, %v4898
  %v4946 = vmul.f32 %v4836, %v4900
  %v4947 = vmul.f32 %v4838, %v4902
  %v4948 = vmul.f32 %v4840, %v4904
  %v4949 = vmul.f32 %v4842, %v4906
  %v4950 = vmul.f32 %v4844, %v4908
  %v4951 = vmul.f32 %v4846, %v4910
  %v4952 = vmul.f32 %v4848, %v4912
  %v4953 = vmul.f32 %v4850, %v4914
  %v4954 = vmul.f32 %v4852, %v4916
  %v4955 = vmul.f32 %v4854, %v4918
  %v4956 = vmul.f32 %v4856, %v4920
  %v4957 = vmul.f32 %v4858, %v4922
  %v4958 = vmul.f32 %v4860, %v4924
  %v4959 = vmul.f32 %v4862, %v4926
  %v4960 = vmul.f32 %v4864, %v4928
  %v4961 = vadd.f32 %v4801, %v4945
  %v4962 = vadd.f32 %v4802, %v4946
  %v4963 = vadd.f32 %v4803, %v4947
  %v4964 = vadd.f32 %v4804, %v4948
  %v4965 = vadd.f32 %v4805, %v4949
  %v4966 = vadd.f32 %v4806, %v4950
  %v4967 = vadd.f32 %v4807, %v4951
  %v4968 = vadd.f32 %v4808, %v4952
  %v4969 = vadd.f32 %v4809, %v4953
  %v4970 = vadd.f32 %v4810, %v4954
  %v4971 = vadd.f32 %v4811, %v4955
  %v4972 = vadd.f32 %v4812, %v4956
  %v4973 = vadd.f32 %v4813, %v4957
  %v4974 = vadd.f32 %v4814, %v4958
  %v4975 = vadd.f32 %v4815, %v4959
  %v4976 = vadd.f32 %v4816, %v4960
  %v4977 = vsub.f32 %v3807, %v4641
  %v4978 = vsub.f32 %v3808, %v4642
  %v4979 = vsub.f32 %v3809, %v4643
  %v4980 = vsub.f32 %v3810, %v4644
  %v4981 = vsub.f32 %v3811, %v4645
  %v4982 = vsub.f32 %v3812, %v4646
  %v4983 = vsub.f32 %v3813, %v4647
  %v4984 = vsub.f32 %v3814, %v4648
  %v4985 = vsub.f32 %v3815, %v4649
  %v4986 = vsub.f32 %v3816, %v4650
  %v4987 = vsub.f32 %v3817, %v4651
  %v4988 = vsub.f32 %v3818, %v4652
  %v4989 = vsub.f32 %v3819, %v4653
  %v4990 = vsub.f32 %v3820, %v4654
  %v4991 = vsub.f32 %v3821, %v4655
  %v4992 = vsub.f32 %v3822, %v4656
  %v4993 = vmul.f32 %v4977, 1.442695
  %v4994 = vpow.pop %v4993
  %v4995 = vmul.f32 %v4978, 1.442695
  %v4996 = vpow.pop %v4995
  %v4997 = vmul.f32 %v4979, 1.442695
  %v4998 = vpow.pop %v4997
  %v4999 = vmul.f32 %v4980, 1.442695
  %v5000 = vpow.pop %v4999
  %v5001 = vmul.f32 %v4981, 1.442695
  %v5002 = vpow.pop %v5001
  %v5003 = vmul.f32 %v4982, 1.442695
  %v5004 = vpow.pop %v5003
  %v5005 = vmul.f32 %v4983, 1.442695
  %v5006 = vpow.pop %v5005
  %v5007 = vmul.f32 %v4984, 1.442695
  %v5008 = vpow.pop %v5007
  %v5009 = vmul.f32 %v4985, 1.442695
  %v5010 = vpow.pop %v5009
  %v5011 = vmul.f32 %v4986, 1.442695
  %v5012 = vpow.pop %v5011
  %v5013 = vmul.f32 %v4987, 1.442695
  %v5014 = vpow.pop %v5013
  %v5015 = vmul.f32 %v4988, 1.442695
  %v5016 = vpow.pop %v5015
  %v5017 = vmul.f32 %v4989, 1.442695
  %v5018 = vpow.pop %v5017
  %v5019 = vmul.f32 %v4990, 1.442695
  %v5020 = vpow.pop %v5019
  %v5021 = vmul.f32 %v4991, 1.442695
  %v5022 = vpow.pop %v5021
  %v5023 = vmul.f32 %v4992, 1.442695
  %v5024 = vpow.pop %v5023
  %v5025 = vadd.f32 %v4865, %v4994
  %v5026 = vadd.f32 %v4866, %v4996
  %v5027 = vadd.f32 %v4867, %v4998
  %v5028 = vadd.f32 %v4868, %v5000
  %v5029 = vadd.f32 %v4869, %v5002
  %v5030 = vadd.f32 %v4870, %v5004
  %v5031 = vadd.f32 %v4871, %v5006
  %v5032 = vadd.f32 %v4872, %v5008
  %v5033 = vadd.f32 %v4873, %v5010
  %v5034 = vadd.f32 %v4874, %v5012
  %v5035 = vadd.f32 %v4875, %v5014
  %v5036 = vadd.f32 %v4876, %v5016
  %v5037 = vadd.f32 %v4877, %v5018
  %v5038 = vadd.f32 %v4878, %v5020
  %v5039 = vadd.f32 %v4879, %v5022
  %v5040 = vadd.f32 %v4880, %v5024
  %5057 = vrot.lane.b32.xlu0 %v3871, 64
  %v5058 = vpop.permute.xlu0 %5057
  %5059 = vrot.lane.b32.xlu0 %v3872, 64
  %v5060 = vpop.permute.xlu0 %5059
  %5061 = vrot.lane.b32.xlu0 %v3873, 64
  %v5062 = vpop.permute.xlu0 %5061
  %5063 = vrot.lane.b32.xlu0 %v3874, 64
  %v5064 = vpop.permute.xlu0 %5063
  %5065 = vrot.lane.b32.xlu0 %v3875, 64
  %v5066 = vpop.permute.xlu0 %5065
  %5067 = vrot.lane.b32.xlu0 %v3876, 64
  %v5068 = vpop.permute.xlu0 %5067
  %5069 = vrot.lane.b32.xlu0 %v3877, 64
  %v5070 = vpop.permute.xlu0 %5069
  %5071 = vrot.lane.b32.xlu0 %v3878, 64
  %v5072 = vpop.permute.xlu0 %5071
  %5073 = vrot.lane.b32.xlu0 %v3879, 64
  %v5074 = vpop.permute.xlu0 %5073
  %5075 = vrot.lane.b32.xlu0 %v3880, 64
  %v5076 = vpop.permute.xlu0 %5075
  %5077 = vrot.lane.b32.xlu0 %v3881, 64
  %v5078 = vpop.permute.xlu0 %5077
  %5079 = vrot.lane.b32.xlu0 %v3882, 64
  %v5080 = vpop.permute.xlu0 %5079
  %5081 = vrot.lane.b32.xlu0 %v3883, 64
  %v5082 = vpop.permute.xlu0 %5081
  %5083 = vrot.lane.b32.xlu0 %v3884, 64
  %v5084 = vpop.permute.xlu0 %5083
  %5085 = vrot.lane.b32.xlu0 %v3885, 64
  %v5086 = vpop.permute.xlu0 %5085
  %5087 = vrot.lane.b32.xlu0 %v3886, 64
  %v5088 = vpop.permute.xlu0 %5087
  %v5105 = vmul.f32 %v4994, %v5058
  %v5106 = vmul.f32 %v4996, %v5060
  %v5107 = vmul.f32 %v4998, %v5062
  %v5108 = vmul.f32 %v5000, %v5064
  %v5109 = vmul.f32 %v5002, %v5066
  %v5110 = vmul.f32 %v5004, %v5068
  %v5111 = vmul.f32 %v5006, %v5070
  %v5112 = vmul.f32 %v5008, %v5072
  %v5113 = vmul.f32 %v5010, %v5074
  %v5114 = vmul.f32 %v5012, %v5076
  %v5115 = vmul.f32 %v5014, %v5078
  %v5116 = vmul.f32 %v5016, %v5080
  %v5117 = vmul.f32 %v5018, %v5082
  %v5118 = vmul.f32 %v5020, %v5084
  %v5119 = vmul.f32 %v5022, %v5086
  %v5120 = vmul.f32 %v5024, %v5088
  %v5121 = vadd.f32 %v4961, %v5105
  %v5122 = vadd.f32 %v4962, %v5106
  %v5123 = vadd.f32 %v4963, %v5107
  %v5124 = vadd.f32 %v4964, %v5108
  %v5125 = vadd.f32 %v4965, %v5109
  %v5126 = vadd.f32 %v4966, %v5110
  %v5127 = vadd.f32 %v4967, %v5111
  %v5128 = vadd.f32 %v4968, %v5112
  %v5129 = vadd.f32 %v4969, %v5113
  %v5130 = vadd.f32 %v4970, %v5114
  %v5131 = vadd.f32 %v4971, %v5115
  %v5132 = vadd.f32 %v4972, %v5116
  %v5133 = vadd.f32 %v4973, %v5117
  %v5134 = vadd.f32 %v4974, %v5118
  %v5135 = vadd.f32 %v4975, %v5119
  %v5136 = vadd.f32 %v4976, %v5120
  %v5137 = vsub.f32 %v4160, %v4641
  %v5138 = vsub.f32 %v4161, %v4642
  %v5139 = vsub.f32 %v4162, %v4643
  %v5140 = vsub.f32 %v4163, %v4644
  %v5141 = vsub.f32 %v4164, %v4645
  %v5142 = vsub.f32 %v4165, %v4646
  %v5143 = vsub.f32 %v4166, %v4647
  %v5144 = vsub.f32 %v4167, %v4648
  %v5145 = vsub.f32 %v4168, %v4649
  %v5146 = vsub.f32 %v4169, %v4650
  %v5147 = vsub.f32 %v4170, %v4651
  %v5148 = vsub.f32 %v4171, %v4652
  %v5149 = vsub.f32 %v4172, %v4653
  %v5150 = vsub.f32 %v4173, %v4654
  %v5151 = vsub.f32 %v4174, %v4655
  %v5152 = vsub.f32 %v4175, %v4656
  %v5153 = vmul.f32 %v5137, 1.442695
  %v5154 = vpow.pop %v5153
  %v5155 = vmul.f32 %v5138, 1.442695
  %v5156 = vpow.pop %v5155
  %v5157 = vmul.f32 %v5139, 1.442695
  %v5158 = vpow.pop %v5157
  %v5159 = vmul.f32 %v5140, 1.442695
  %v5160 = vpow.pop %v5159
  %v5161 = vmul.f32 %v5141, 1.442695
  %v5162 = vpow.pop %v5161
  %v5163 = vmul.f32 %v5142, 1.442695
  %v5164 = vpow.pop %v5163
  %v5165 = vmul.f32 %v5143, 1.442695
  %v5166 = vpow.pop %v5165
  %v5167 = vmul.f32 %v5144, 1.442695
  %v5168 = vpow.pop %v5167
  %v5169 = vmul.f32 %v5145, 1.442695
  %v5170 = vpow.pop %v5169
  %v5171 = vmul.f32 %v5146, 1.442695
  %v5172 = vpow.pop %v5171
  %v5173 = vmul.f32 %v5147, 1.442695
  %v5174 = vpow.pop %v5173
  %v5175 = vmul.f32 %v5148, 1.442695
  %v5176 = vpow.pop %v5175
  %v5177 = vmul.f32 %v5149, 1.442695
  %v5178 = vpow.pop %v5177
  %v5179 = vmul.f32 %v5150, 1.442695
  %v5180 = vpow.pop %v5179
  %v5181 = vmul.f32 %v5151, 1.442695
  %v5182 = vpow.pop %v5181
  %v5183 = vmul.f32 %v5152, 1.442695
  %v5184 = vpow.pop %v5183
  %v5185 = vadd.f32 %v5025, %v5154
  %v5186 = vadd.f32 %v5026, %v5156
  %v5187 = vadd.f32 %v5027, %v5158
  %v5188 = vadd.f32 %v5028, %v5160
  %v5189 = vadd.f32 %v5029, %v5162
  %v5190 = vadd.f32 %v5030, %v5164
  %v5191 = vadd.f32 %v5031, %v5166
  %v5192 = vadd.f32 %v5032, %v5168
  %v5193 = vadd.f32 %v5033, %v5170
  %v5194 = vadd.f32 %v5034, %v5172
  %v5195 = vadd.f32 %v5035, %v5174
  %v5196 = vadd.f32 %v5036, %v5176
  %v5197 = vadd.f32 %v5037, %v5178
  %v5198 = vadd.f32 %v5038, %v5180
  %v5199 = vadd.f32 %v5039, %v5182
  %v5200 = vadd.f32 %v5040, %v5184
  %5217 = vrot.lane.b32.xlu0 %v4224, 64
  %v5218 = vpop.permute.xlu0 %5217
  %5219 = vrot.lane.b32.xlu0 %v4225, 64
  %v5220 = vpop.permute.xlu0 %5219
  %5221 = vrot.lane.b32.xlu0 %v4226, 64
  %v5222 = vpop.permute.xlu0 %5221
  %5223 = vrot.lane.b32.xlu0 %v4227, 64
  %v5224 = vpop.permute.xlu0 %5223
  %5225 = vrot.lane.b32.xlu0 %v4228, 64
  %v5226 = vpop.permute.xlu0 %5225
  %5227 = vrot.lane.b32.xlu0 %v4229, 64
  %v5228 = vpop.permute.xlu0 %5227
  %5229 = vrot.lane.b32.xlu0 %v4230, 64
  %v5230 = vpop.permute.xlu0 %5229
  %5231 = vrot.lane.b32.xlu0 %v4231, 64
  %v5232 = vpop.permute.xlu0 %5231
  %5233 = vrot.lane.b32.xlu0 %v4232, 64
  %v5234 = vpop.permute.xlu0 %5233
  %5235 = vrot.lane.b32.xlu0 %v4233, 64
  %v5236 = vpop.permute.xlu0 %5235
  %5237 = vrot.lane.b32.xlu0 %v4234, 64
  %v5238 = vpop.permute.xlu0 %5237
  %5239 = vrot.lane.b32.xlu0 %v4235, 64
  %v5240 = vpop.permute.xlu0 %5239
  %5241 = vrot.lane.b32.xlu0 %v4236, 64
  %v5242 = vpop.permute.xlu0 %5241
  %5243 = vrot.lane.b32.xlu0 %v4237, 64
  %v5244 = vpop.permute.xlu0 %5243
  %5245 = vrot.lane.b32.xlu0 %v4238, 64
  %v5246 = vpop.permute.xlu0 %5245
  %5247 = vrot.lane.b32.xlu0 %v4239, 64
  %v5248 = vpop.permute.xlu0 %5247
  %v5265 = vmul.f32 %v5154, %v5218
  %v5266 = vmul.f32 %v5156, %v5220
  %v5267 = vmul.f32 %v5158, %v5222
  %v5268 = vmul.f32 %v5160, %v5224
  %v5269 = vmul.f32 %v5162, %v5226
  %v5270 = vmul.f32 %v5164, %v5228
  %v5271 = vmul.f32 %v5166, %v5230
  %v5272 = vmul.f32 %v5168, %v5232
  %v5273 = vmul.f32 %v5170, %v5234
  %v5274 = vmul.f32 %v5172, %v5236
  %v5275 = vmul.f32 %v5174, %v5238
  %v5276 = vmul.f32 %v5176, %v5240
  %v5277 = vmul.f32 %v5178, %v5242
  %v5278 = vmul.f32 %v5180, %v5244
  %v5279 = vmul.f32 %v5182, %v5246
  %v5280 = vmul.f32 %v5184, %v5248
  %v5281 = vadd.f32 %v5121, %v5265
  %v5282 = vadd.f32 %v5122, %v5266
  %v5283 = vadd.f32 %v5123, %v5267
  %v5284 = vadd.f32 %v5124, %v5268
  %v5285 = vadd.f32 %v5125, %v5269
  %v5286 = vadd.f32 %v5126, %v5270
  %v5287 = vadd.f32 %v5127, %v5271
  %v5288 = vadd.f32 %v5128, %v5272
  %v5289 = vadd.f32 %v5129, %v5273
  %v5290 = vadd.f32 %v5130, %v5274
  %v5291 = vadd.f32 %v5131, %v5275
  %v5292 = vadd.f32 %v5132, %v5276
  %v5293 = vadd.f32 %v5133, %v5277
  %v5294 = vadd.f32 %v5134, %v5278
  %v5295 = vadd.f32 %v5135, %v5279
  %v5296 = vadd.f32 %v5136, %v5280
  %v5297 = vsub.f32 %v4513, %v4641
  %v5298 = vsub.f32 %v4514, %v4642
  %v5299 = vsub.f32 %v4515, %v4643
  %v5300 = vsub.f32 %v4516, %v4644
  %v5301 = vsub.f32 %v4517, %v4645
  %v5302 = vsub.f32 %v4518, %v4646
  %v5303 = vsub.f32 %v4519, %v4647
  %v5304 = vsub.f32 %v4520, %v4648
  %v5305 = vsub.f32 %v4521, %v4649
  %v5306 = vsub.f32 %v4522, %v4650
  %v5307 = vsub.f32 %v4523, %v4651
  %v5308 = vsub.f32 %v4524, %v4652
  %v5309 = vsub.f32 %v4525, %v4653
  %v5310 = vsub.f32 %v4526, %v4654
  %v5311 = vsub.f32 %v4527, %v4655
  %v5312 = vsub.f32 %v4528, %v4656
  %v5313 = vmul.f32 %v5297, 1.442695
  %v5314 = vpow.pop %v5313
  %v5315 = vmul.f32 %v5298, 1.442695
  %v5316 = vpow.pop %v5315
  %v5317 = vmul.f32 %v5299, 1.442695
  %v5318 = vpow.pop %v5317
  %v5319 = vmul.f32 %v5300, 1.442695
  %v5320 = vpow.pop %v5319
  %v5321 = vmul.f32 %v5301, 1.442695
  %v5322 = vpow.pop %v5321
  %v5323 = vmul.f32 %v5302, 1.442695
  %v5324 = vpow.pop %v5323
  %v5325 = vmul.f32 %v5303, 1.442695
  %v5326 = vpow.pop %v5325
  %v5327 = vmul.f32 %v5304, 1.442695
  %v5328 = vpow.pop %v5327
  %v5329 = vmul.f32 %v5305, 1.442695
  %v5330 = vpow.pop %v5329
  %v5331 = vmul.f32 %v5306, 1.442695
  %v5332 = vpow.pop %v5331
  %v5333 = vmul.f32 %v5307, 1.442695
  %v5334 = vpow.pop %v5333
  %v5335 = vmul.f32 %v5308, 1.442695
  %v5336 = vpow.pop %v5335
  %v5337 = vmul.f32 %v5309, 1.442695
  %v5338 = vpow.pop %v5337
  %v5339 = vmul.f32 %v5310, 1.442695
  %v5340 = vpow.pop %v5339
  %v5341 = vmul.f32 %v5311, 1.442695
  %v5342 = vpow.pop %v5341
  %v5343 = vmul.f32 %v5312, 1.442695
  %v5344 = vpow.pop %v5343
  %v5345 = vadd.f32 %v5185, %v5314
  %v5346 = vadd.f32 %v5186, %v5316
  %v5347 = vadd.f32 %v5187, %v5318
  %v5348 = vadd.f32 %v5188, %v5320
  %v5349 = vadd.f32 %v5189, %v5322
  %v5350 = vadd.f32 %v5190, %v5324
  %v5351 = vadd.f32 %v5191, %v5326
  %v5352 = vadd.f32 %v5192, %v5328
  %v5353 = vadd.f32 %v5193, %v5330
  %v5354 = vadd.f32 %v5194, %v5332
  %v5355 = vadd.f32 %v5195, %v5334
  %v5356 = vadd.f32 %v5196, %v5336
  %v5357 = vadd.f32 %v5197, %v5338
  %v5358 = vadd.f32 %v5198, %v5340
  %v5359 = vadd.f32 %v5199, %v5342
  %v5360 = vadd.f32 %v5200, %v5344
  %5377 = vrot.lane.b32.xlu0 %v4577, 64
  %v5378 = vpop.permute.xlu0 %5377
  %5379 = vrot.lane.b32.xlu0 %v4578, 64
  %v5380 = vpop.permute.xlu0 %5379
  %5381 = vrot.lane.b32.xlu0 %v4579, 64
  %v5382 = vpop.permute.xlu0 %5381
  %5383 = vrot.lane.b32.xlu0 %v4580, 64
  %v5384 = vpop.permute.xlu0 %5383
  %5385 = vrot.lane.b32.xlu0 %v4581, 64
  %v5386 = vpop.permute.xlu0 %5385
  %5387 = vrot.lane.b32.xlu0 %v4582, 64
  %v5388 = vpop.permute.xlu0 %5387
  %5389 = vrot.lane.b32.xlu0 %v4583, 64
  %v5390 = vpop.permute.xlu0 %5389
  %5391 = vrot.lane.b32.xlu0 %v4584, 64
  %v5392 = vpop.permute.xlu0 %5391
  %5393 = vrot.lane.b32.xlu0 %v4585, 64
  %v5394 = vpop.permute.xlu0 %5393
  %5395 = vrot.lane.b32.xlu0 %v4586, 64
  %v5396 = vpop.permute.xlu0 %5395
  %5397 = vrot.lane.b32.xlu0 %v4587, 64
  %v5398 = vpop.permute.xlu0 %5397
  %5399 = vrot.lane.b32.xlu0 %v4588, 64
  %v5400 = vpop.permute.xlu0 %5399
  %5401 = vrot.lane.b32.xlu0 %v4589, 64
  %v5402 = vpop.permute.xlu0 %5401
  %5403 = vrot.lane.b32.xlu0 %v4590, 64
  %v5404 = vpop.permute.xlu0 %5403
  %5405 = vrot.lane.b32.xlu0 %v4591, 64
  %v5406 = vpop.permute.xlu0 %5405
  %5407 = vrot.lane.b32.xlu0 %v4592, 64
  %v5408 = vpop.permute.xlu0 %5407
  %v5425 = vmul.f32 %v5314, %v5378
  %v5426 = vmul.f32 %v5316, %v5380
  %v5427 = vmul.f32 %v5318, %v5382
  %v5428 = vmul.f32 %v5320, %v5384
  %v5429 = vmul.f32 %v5322, %v5386
  %v5430 = vmul.f32 %v5324, %v5388
  %v5431 = vmul.f32 %v5326, %v5390
  %v5432 = vmul.f32 %v5328, %v5392
  %v5433 = vmul.f32 %v5330, %v5394
  %v5434 = vmul.f32 %v5332, %v5396
  %v5435 = vmul.f32 %v5334, %v5398
  %v5436 = vmul.f32 %v5336, %v5400
  %v5437 = vmul.f32 %v5338, %v5402
  %v5438 = vmul.f32 %v5340, %v5404
  %v5439 = vmul.f32 %v5342, %v5406
  %v5440 = vmul.f32 %v5344, %v5408
  %v5441 = vadd.f32 %v5281, %v5425
  %v5442 = vadd.f32 %v5282, %v5426
  %v5443 = vadd.f32 %v5283, %v5427
  %v5444 = vadd.f32 %v5284, %v5428
  %v5445 = vadd.f32 %v5285, %v5429
  %v5446 = vadd.f32 %v5286, %v5430
  %v5447 = vadd.f32 %v5287, %v5431
  %v5448 = vadd.f32 %v5288, %v5432
  %v5449 = vadd.f32 %v5289, %v5433
  %v5450 = vadd.f32 %v5290, %v5434
  %v5451 = vadd.f32 %v5291, %v5435
  %v5452 = vadd.f32 %v5292, %v5436
  %v5453 = vadd.f32 %v5293, %v5437
  %v5454 = vadd.f32 %v5294, %v5438
  %v5455 = vadd.f32 %v5295, %v5439
  %v5456 = vadd.f32 %v5296, %v5440
  %v5457 = vrcp.pop %v5345
  %v5458 = vrcp.pop %v5346
  %v5459 = vrcp.pop %v5347
  %v5460 = vrcp.pop %v5348
  %v5461 = vrcp.pop %v5349
  %v5462 = vrcp.pop %v5350
  %v5463 = vrcp.pop %v5351
  %v5464 = vrcp.pop %v5352
  %v5465 = vrcp.pop %v5353
  %v5466 = vrcp.pop %v5354
  %v5467 = vrcp.pop %v5355
  %v5468 = vrcp.pop %v5356
  %v5469 = vrcp.pop %v5357
  %v5470 = vrcp.pop %v5358
  %v5471 = vrcp.pop %v5359
  %v5472 = vrcp.pop %v5360
  %v5473 = vmul.f32 %v5441, %v5457
  %v5474 = vmul.f32 %v5442, %v5458
  %v5475 = vmul.f32 %v5443, %v5459
  %v5476 = vmul.f32 %v5444, %v5460
  %v5477 = vmul.f32 %v5445, %v5461
  %v5478 = vmul.f32 %v5446, %v5462
  %v5479 = vmul.f32 %v5447, %v5463
  %v5480 = vmul.f32 %v5448, %v5464
  %v5481 = vmul.f32 %v5449, %v5465
  %v5482 = vmul.f32 %v5450, %v5466
  %v5483 = vmul.f32 %v5451, %v5467
  %v5484 = vmul.f32 %v5452, %v5468
  %v5485 = vmul.f32 %v5453, %v5469
  %v5486 = vmul.f32 %v5454, %v5470
  %v5487 = vmul.f32 %v5455, %v5471
  %v5488 = vmul.f32 %v5456, %v5472
  %v5489 = vadd.f32 %v2957, %v2674
  %v5490 = vadd.f32 %v2961, %v2678
  %v5491 = vadd.f32 %v2967, %v2684
  %v5492 = vadd.f32 %v2971, %v2688
  %v5493 = vadd.f32 %v2977, %v2694
  %v5494 = vadd.f32 %v2981, %v2698
  %v5495 = vadd.f32 %v2987, %v2704
  %v5496 = vadd.f32 %v2991, %v2708
  %v5497 = vadd.f32 %v2997, %v2714
  %v5498 = vadd.f32 %v3001, %v2718
  %v5499 = vadd.f32 %v3007, %v2724
  %v5500 = vadd.f32 %v3011, %v2728
  %v5501 = vadd.f32 %v3017, %v2734
  %v5502 = vadd.f32 %v3021, %v2738
  %v5503 = vadd.f32 %v3027, %v2744
  %v5504 = vadd.f32 %v3031, %v2748
  %v5505 = vld [vmem:[%s6 + $0x1] sm:$0x1]
  %v5506 = vpack.c.bf16 %v5490, %v5489
  %v5507 = vpack.c.bf16 %v5492, %v5491
  %v5508 = vpack.c.bf16 %v5494, %v5493
  %v5509 = vpack.c.bf16 %v5496, %v5495
  %v5510 = vpack.c.bf16 %v5498, %v5497
  %v5511 = vpack.c.bf16 %v5500, %v5499
  %v5512 = vpack.c.bf16 %v5502, %v5501
  %v5513 = vpack.c.bf16 %v5504, %v5503
  %5530 = vrot.lane.b32.xlu0 %v5489, 96
  %v5531 = vpop.permute.xlu0 %5530
  %5532 = vrot.lane.b32.xlu0 %v5490, 96
  %v5533 = vpop.permute.xlu0 %5532
  %5534 = vrot.lane.b32.xlu0 %v5491, 96
  %v5535 = vpop.permute.xlu0 %5534
  %5536 = vrot.lane.b32.xlu0 %v5492, 96
  %v5537 = vpop.permute.xlu0 %5536
  %5538 = vrot.lane.b32.xlu0 %v5493, 96
  %v5539 = vpop.permute.xlu0 %5538
  %5540 = vrot.lane.b32.xlu0 %v5494, 96
  %v5541 = vpop.permute.xlu0 %5540
  %5542 = vrot.lane.b32.xlu0 %v5495, 96
  %v5543 = vpop.permute.xlu0 %5542
  %5544 = vrot.lane.b32.xlu0 %v5496, 96
  %v5545 = vpop.permute.xlu0 %5544
  %5546 = vrot.lane.b32.xlu0 %v5497, 96
  %v5547 = vpop.permute.xlu0 %5546
  %5548 = vrot.lane.b32.xlu0 %v5498, 96
  %v5549 = vpop.permute.xlu0 %5548
  %5550 = vrot.lane.b32.xlu0 %v5499, 96
  %v5551 = vpop.permute.xlu0 %5550
  %5552 = vrot.lane.b32.xlu0 %v5500, 96
  %v5553 = vpop.permute.xlu0 %5552
  %5554 = vrot.lane.b32.xlu0 %v5501, 96
  %v5555 = vpop.permute.xlu0 %5554
  %5556 = vrot.lane.b32.xlu0 %v5502, 96
  %v5557 = vpop.permute.xlu0 %5556
  %5558 = vrot.lane.b32.xlu0 %v5503, 96
  %v5559 = vpop.permute.xlu0 %5558
  %5560 = vrot.lane.b32.xlu0 %v5504, 96
  %v5561 = vpop.permute.xlu0 %5560
  %v5578 = vsub.f32 %v5489, %v5531
  %v5579 = vsub.f32 %v5490, %v5533
  %v5580 = vsub.f32 %v5491, %v5535
  %v5581 = vsub.f32 %v5492, %v5537
  %v5582 = vsub.f32 %v5493, %v5539
  %v5583 = vsub.f32 %v5494, %v5541
  %v5584 = vsub.f32 %v5495, %v5543
  %v5585 = vsub.f32 %v5496, %v5545
  %v5586 = vsub.f32 %v5497, %v5547
  %v5587 = vsub.f32 %v5498, %v5549
  %v5588 = vsub.f32 %v5499, %v5551
  %v5589 = vsub.f32 %v5500, %v5553
  %v5590 = vsub.f32 %v5501, %v5555
  %v5591 = vsub.f32 %v5502, %v5557
  %v5592 = vsub.f32 %v5503, %v5559
  %v5593 = vsub.f32 %v5504, %v5561
  %v5594 = vlaneseq
  %v5595 = vshrl.u32 %v5594, 7
  %v5596 = vsub.s32 0, %v5595
  %v5597 = vrot.slane %v5505, %v5596
  %v5598 = vadd.f32 %v5578, %v5597
  %v5599 = vadd.f32 %v5579, %v5597
  %v5600 = vadd.f32 %v5580, %v5597
  %v5601 = vadd.f32 %v5581, %v5597
  %v5602 = vadd.f32 %v5582, %v5597
  %v5603 = vadd.f32 %v5583, %v5597
  %v5604 = vadd.f32 %v5584, %v5597
  %v5605 = vadd.f32 %v5585, %v5597
  %v5606 = vadd.f32 %v5586, %v5597
  %v5607 = vadd.f32 %v5587, %v5597
  %v5608 = vadd.f32 %v5588, %v5597
  %v5609 = vadd.f32 %v5589, %v5597
  %v5610 = vadd.f32 %v5590, %v5597
  %v5611 = vadd.f32 %v5591, %v5597
  %v5612 = vadd.f32 %v5592, %v5597
  %v5613 = vadd.f32 %v5593, %v5597
  %5615 = vrot.lane.b32.xlu0 %v5597, 64
  %v5616 = vpop.permute.xlu0 %5615
  %v5618 = vadd.f32 %v5489, %v5616
  %v5619 = vadd.f32 %v5490, %v5616
  %v5620 = vadd.f32 %v5491, %v5616
  %v5621 = vadd.f32 %v5492, %v5616
  %v5622 = vadd.f32 %v5493, %v5616
  %v5623 = vadd.f32 %v5494, %v5616
  %v5624 = vadd.f32 %v5495, %v5616
  %v5625 = vadd.f32 %v5496, %v5616
  %v5626 = vadd.f32 %v5497, %v5616
  %v5627 = vadd.f32 %v5498, %v5616
  %v5628 = vadd.f32 %v5499, %v5616
  %v5629 = vadd.f32 %v5500, %v5616
  %v5630 = vadd.f32 %v5501, %v5616
  %v5631 = vadd.f32 %v5502, %v5616
  %v5632 = vadd.f32 %v5503, %v5616
  %v5633 = vadd.f32 %v5504, %v5616
  %5634 = vmatprep.subr.bf16.mxu0 0
  %5635 = vmatpush1.bf16.msra.mxu0 %v5506
  %5636 = vmatprep.subr.bf16.mxu0 0
  %5637 = vmatpush1.bf16.msra.mxu0 %v5507
  %5638 = vmatprep.subr.bf16.mxu0 0
  %5639 = vmatpush1.bf16.msra.mxu0 %v5508
  %5640 = vmatprep.subr.bf16.mxu0 0
  %5641 = vmatpush1.bf16.msra.mxu0 %v5509
  %5642 = vmatprep.subr.bf16.mxu0 0
  %5643 = vmatpush1.bf16.msra.mxu0 %v5510
  %5644 = vmatprep.subr.bf16.mxu0 0
  %5645 = vmatpush1.bf16.msra.mxu0 %v5511
  %5646 = vmatprep.subr.bf16.mxu0 0
  %5647 = vmatpush1.bf16.msra.mxu0 %v5512
  %5648 = vmatprep.subr.bf16.mxu0 0
  %5649 = vmatpush1.bf16.msra.mxu0 %v5513
  %5650 = vmatprep.subr.bf16.mxu0 0
  %5651 = vmatpush1.bf16.msra.mxu0 0
  %5652 = vmatprep.subr.bf16.mxu0 0
  %5653 = vmatpush1.bf16.msra.mxu0 0
  %5654 = vmatprep.subr.bf16.mxu0 0
  %5655 = vmatpush1.bf16.msra.mxu0 0
  %5656 = vmatprep.subr.bf16.mxu0 0
  %5657 = vmatpush1.bf16.msra.mxu0 0
  %5658 = vmatprep.subr.bf16.mxu0 0
  %5659 = vmatpush1.bf16.msra.mxu0 0
  %5660 = vmatprep.subr.bf16.mxu0 0
  %5661 = vmatpush1.bf16.msra.mxu0 0
  %5662 = vmatprep.subr.bf16.mxu0 0
  %5663 = vmatpush1.bf16.msra.mxu0 0
  %5664 = vmatprep.subr.bf16.mxu0 0
  %5665 = vmatpush1.bf16.msra.mxu0 0
  %5666 = vmatprep.mubr.bf16.mxu0 0
  %5667 = vmatmul.mubr.bf16.gmra.mrb[0].mxu0 %v949
  %v5668 = vpop.f32.mrb[0].mxu0
  %v5669 = vadd.f32 0.0, %v5668
  %v5670 = vpop.f32.mrb[0].mxu0
  %v5671 = vpop.f32.mrb[0].mxu0
  %v5672 = vadd.f32 0.0, %v5671
  %v5673 = vpop.f32.mrb[0].mxu0
  %5674 = vmatprep.mubr.bf16.mxu0 0
  %5675 = vmatmul.mubr.bf16.gmra.mrb[0].mxu0 %v950
  %v5676 = vpop.f32.mrb[0].mxu0
  %v5677 = vadd.f32 0.0, %v5676
  %v5678 = vpop.f32.mrb[0].mxu0
  %v5679 = vpop.f32.mrb[0].mxu0
  %v5680 = vadd.f32 0.0, %v5679
  %v5681 = vpop.f32.mrb[0].mxu0
  %5682 = vmatprep.mubr.bf16.mxu0 0
  %5683 = vmatmul.mubr.bf16.gmra.mrb[0].mxu0 %v951
  %v5684 = vpop.f32.mrb[0].mxu0
  %v5685 = vadd.f32 0.0, %v5684
  %v5686 = vpop.f32.mrb[0].mxu0
  %v5687 = vpop.f32.mrb[0].mxu0
  %v5688 = vadd.f32 0.0, %v5687
  %v5689 = vpop.f32.mrb[0].mxu0
  %5690 = vmatprep.mubr.bf16.mxu0 0
  %5691 = vmatmul.mubr.bf16.gmra.mrb[0].mxu0 %v952
  %v5692 = vpop.f32.mrb[0].mxu0
  %v5693 = vadd.f32 0.0, %v5692
  %v5694 = vpop.f32.mrb[0].mxu0
  %v5695 = vpop.f32.mrb[0].mxu0
  %v5696 = vadd.f32 0.0, %v5695
  %v5697 = vpop.f32.mrb[0].mxu0
  %5698 = vmatprep.mubr.bf16.mxu0 0
  %5699 = vmatmul.mubr.bf16.gmra.mrb[0].mxu0 %v953
  %v5700 = vpop.f32.mrb[0].mxu0
  %v5701 = vadd.f32 0.0, %v5700
  %v5702 = vpop.f32.mrb[0].mxu0
  %v5703 = vpop.f32.mrb[0].mxu0
  %v5704 = vadd.f32 0.0, %v5703
  %v5705 = vpop.f32.mrb[0].mxu0
  %5706 = vmatprep.mubr.bf16.mxu0 0
  %5707 = vmatmul.mubr.bf16.gmra.mrb[0].mxu0 %v954
  %v5708 = vpop.f32.mrb[0].mxu0
  %v5709 = vadd.f32 0.0, %v5708
  %v5710 = vpop.f32.mrb[0].mxu0
  %v5711 = vpop.f32.mrb[0].mxu0
  %v5712 = vadd.f32 0.0, %v5711
  %v5713 = vpop.f32.mrb[0].mxu0
  %5714 = vmatprep.mubr.bf16.mxu0 0
  %5715 = vmatmul.mubr.bf16.gmra.mrb[0].mxu0 %v955
  %v5716 = vpop.f32.mrb[0].mxu0
  %v5717 = vadd.f32 0.0, %v5716
  %v5718 = vpop.f32.mrb[0].mxu0
  %v5719 = vpop.f32.mrb[0].mxu0
  %v5720 = vadd.f32 0.0, %v5719
  %v5721 = vpop.f32.mrb[0].mxu0
  %5722 = vmatprep.mubr.bf16.mxu0 0
  %5723 = vmatmul.mubr.bf16.gmra.mrb[0].mxu0 %v956
  %v5724 = vpop.f32.mrb[0].mxu0
  %v5725 = vadd.f32 0.0, %v5724
  %v5726 = vpop.f32.mrb[0].mxu0
  %v5727 = vpop.f32.mrb[0].mxu0
  %v5728 = vadd.f32 0.0, %v5727
  %v5729 = vpop.f32.mrb[0].mxu0
  %5730 = vdwg.mxu0
  %v5731 = vsub.f32 %v5489, %v5669
  %v5732 = vsub.f32 %v5490, %v5672
  %v5733 = vsub.f32 %v5491, %v5677
  %v5734 = vsub.f32 %v5492, %v5680
  %v5735 = vsub.f32 %v5493, %v5685
  %v5736 = vsub.f32 %v5494, %v5688
  %v5737 = vsub.f32 %v5495, %v5693
  %v5738 = vsub.f32 %v5496, %v5696
  %v5739 = vsub.f32 %v5497, %v5701
  %v5740 = vsub.f32 %v5498, %v5704
  %v5741 = vsub.f32 %v5499, %v5709
  %v5742 = vsub.f32 %v5500, %v5712
  %v5743 = vsub.f32 %v5501, %v5717
  %v5744 = vsub.f32 %v5502, %v5720
  %v5745 = vsub.f32 %v5503, %v5725
  %v5746 = vsub.f32 %v5504, %v5728
  %5747 = vrot.lane.b32.xlu0 %v5597, 96
  %v5748 = vpop.permute.xlu0 %5747
  %v5750 = vadd.f32 %v5731, %v5748
  %v5751 = vadd.f32 %v5732, %v5748
  %v5752 = vadd.f32 %v5733, %v5748
  %v5753 = vadd.f32 %v5734, %v5748
  %v5754 = vadd.f32 %v5735, %v5748
  %v5755 = vadd.f32 %v5736, %v5748
  %v5756 = vadd.f32 %v5737, %v5748
  %v5757 = vadd.f32 %v5738, %v5748
  %v5758 = vadd.f32 %v5739, %v5748
  %v5759 = vadd.f32 %v5740, %v5748
  %v5760 = vadd.f32 %v5741, %v5748
  %v5761 = vadd.f32 %v5742, %v5748
  %v5762 = vadd.f32 %v5743, %v5748
  %v5763 = vadd.f32 %v5744, %v5748
  %v5764 = vadd.f32 %v5745, %v5748
  %v5765 = vadd.f32 %v5746, %v5748
  %5782 = vrot.lane.b32.xlu0 %v5669, 96
  %v5783 = vpop.permute.xlu0 %5782
  %5784 = vrot.lane.b32.xlu0 %v5672, 96
  %v5785 = vpop.permute.xlu0 %5784
  %5786 = vrot.lane.b32.xlu0 %v5677, 96
  %v5787 = vpop.permute.xlu0 %5786
  %5788 = vrot.lane.b32.xlu0 %v5680, 96
  %v5789 = vpop.permute.xlu0 %5788
  %5790 = vrot.lane.b32.xlu0 %v5685, 96
  %v5791 = vpop.permute.xlu0 %5790
  %5792 = vrot.lane.b32.xlu0 %v5688, 96
  %v5793 = vpop.permute.xlu0 %5792
  %5794 = vrot.lane.b32.xlu0 %v5693, 96
  %v5795 = vpop.permute.xlu0 %5794
  %5796 = vrot.lane.b32.xlu0 %v5696, 96
  %v5797 = vpop.permute.xlu0 %5796
  %5798 = vrot.lane.b32.xlu0 %v5701, 96
  %v5799 = vpop.permute.xlu0 %5798
  %5800 = vrot.lane.b32.xlu0 %v5704, 96
  %v5801 = vpop.permute.xlu0 %5800
  %5802 = vrot.lane.b32.xlu0 %v5709, 96
  %v5803 = vpop.permute.xlu0 %5802
  %5804 = vrot.lane.b32.xlu0 %v5712, 96
  %v5805 = vpop.permute.xlu0 %5804
  %5806 = vrot.lane.b32.xlu0 %v5717, 96
  %v5807 = vpop.permute.xlu0 %5806
  %5808 = vrot.lane.b32.xlu0 %v5720, 96
  %v5809 = vpop.permute.xlu0 %5808
  %5810 = vrot.lane.b32.xlu0 %v5725, 96
  %v5811 = vpop.permute.xlu0 %5810
  %5812 = vrot.lane.b32.xlu0 %v5728, 96
  %v5813 = vpop.permute.xlu0 %5812
  %v5830 = vsub.f32 %v5489, %v5783
  %v5831 = vsub.f32 %v5490, %v5785
  %v5832 = vsub.f32 %v5491, %v5787
  %v5833 = vsub.f32 %v5492, %v5789
  %v5834 = vsub.f32 %v5493, %v5791
  %v5835 = vsub.f32 %v5494, %v5793
  %v5836 = vsub.f32 %v5495, %v5795
  %v5837 = vsub.f32 %v5496, %v5797
  %v5838 = vsub.f32 %v5497, %v5799
  %v5839 = vsub.f32 %v5498, %v5801
  %v5840 = vsub.f32 %v5499, %v5803
  %v5841 = vsub.f32 %v5500, %v5805
  %v5842 = vsub.f32 %v5501, %v5807
  %v5843 = vsub.f32 %v5502, %v5809
  %v5844 = vsub.f32 %v5503, %v5811
  %v5845 = vsub.f32 %v5504, %v5813
  %5862 = vrot.lane.b32.xlu0 %v5750, 32
  %v5863 = vpop.permute.xlu0 %5862
  %5864 = vrot.lane.b32.xlu0 %v5751, 32
  %v5865 = vpop.permute.xlu0 %5864
  %5866 = vrot.lane.b32.xlu0 %v5752, 32
  %v5867 = vpop.permute.xlu0 %5866
  %5868 = vrot.lane.b32.xlu0 %v5753, 32
  %v5869 = vpop.permute.xlu0 %5868
  %5870 = vrot.lane.b32.xlu0 %v5754, 32
  %v5871 = vpop.permute.xlu0 %5870
  %5872 = vrot.lane.b32.xlu0 %v5755, 32
  %v5873 = vpop.permute.xlu0 %5872
  %5874 = vrot.lane.b32.xlu0 %v5756, 32
  %v5875 = vpop.permute.xlu0 %5874
  %5876 = vrot.lane.b32.xlu0 %v5757, 32
  %v5877 = vpop.permute.xlu0 %5876
  %5878 = vrot.lane.b32.xlu0 %v5758, 32
  %v5879 = vpop.permute.xlu0 %5878
  %5880 = vrot.lane.b32.xlu0 %v5759, 32
  %v5881 = vpop.permute.xlu0 %5880
  %5882 = vrot.lane.b32.xlu0 %v5760, 32
  %v5883 = vpop.permute.xlu0 %5882
  %5884 = vrot.lane.b32.xlu0 %v5761, 32
  %v5885 = vpop.permute.xlu0 %5884
  %5886 = vrot.lane.b32.xlu0 %v5762, 32
  %v5887 = vpop.permute.xlu0 %5886
  %5888 = vrot.lane.b32.xlu0 %v5763, 32
  %v5889 = vpop.permute.xlu0 %5888
  %5890 = vrot.lane.b32.xlu0 %v5764, 32
  %v5891 = vpop.permute.xlu0 %5890
  %5892 = vrot.lane.b32.xlu0 %v5765, 32
  %v5893 = vpop.permute.xlu0 %5892
  %v5910 = vadd.f32 %v5830, %v5863
  %v5911 = vadd.f32 %v5831, %v5865
  %v5912 = vadd.f32 %v5832, %v5867
  %v5913 = vadd.f32 %v5833, %v5869
  %v5914 = vadd.f32 %v5834, %v5871
  %v5915 = vadd.f32 %v5835, %v5873
  %v5916 = vadd.f32 %v5836, %v5875
  %v5917 = vadd.f32 %v5837, %v5877
  %v5918 = vadd.f32 %v5838, %v5879
  %v5919 = vadd.f32 %v5839, %v5881
  %v5920 = vadd.f32 %v5840, %v5883
  %v5921 = vadd.f32 %v5841, %v5885
  %v5922 = vadd.f32 %v5842, %v5887
  %v5923 = vadd.f32 %v5843, %v5889
  %v5924 = vadd.f32 %v5844, %v5891
  %v5925 = vadd.f32 %v5845, %v5893
  %5926 = vrot.lane.b32.xlu0 %v5750, 96
  %v5927 = vpop.permute.xlu0 %5926
  %5928 = vrot.lane.b32.xlu0 %v5751, 96
  %v5929 = vpop.permute.xlu0 %5928
  %5930 = vrot.lane.b32.xlu0 %v5752, 96
  %v5931 = vpop.permute.xlu0 %5930
  %5932 = vrot.lane.b32.xlu0 %v5753, 96
  %v5933 = vpop.permute.xlu0 %5932
  %5934 = vrot.lane.b32.xlu0 %v5754, 96
  %v5935 = vpop.permute.xlu0 %5934
  %5936 = vrot.lane.b32.xlu0 %v5755, 96
  %v5937 = vpop.permute.xlu0 %5936
  %5938 = vrot.lane.b32.xlu0 %v5756, 96
  %v5939 = vpop.permute.xlu0 %5938
  %5940 = vrot.lane.b32.xlu0 %v5757, 96
  %v5941 = vpop.permute.xlu0 %5940
  %5942 = vrot.lane.b32.xlu0 %v5758, 96
  %v5943 = vpop.permute.xlu0 %5942
  %5944 = vrot.lane.b32.xlu0 %v5759, 96
  %v5945 = vpop.permute.xlu0 %5944
  %5946 = vrot.lane.b32.xlu0 %v5760, 96
  %v5947 = vpop.permute.xlu0 %5946
  %5948 = vrot.lane.b32.xlu0 %v5761, 96
  %v5949 = vpop.permute.xlu0 %5948
  %5950 = vrot.lane.b32.xlu0 %v5762, 96
  %v5951 = vpop.permute.xlu0 %5950
  %5952 = vrot.lane.b32.xlu0 %v5763, 96
  %v5953 = vpop.permute.xlu0 %5952
  %5954 = vrot.lane.b32.xlu0 %v5764, 96
  %v5955 = vpop.permute.xlu0 %5954
  %5956 = vrot.lane.b32.xlu0 %v5765, 96
  %v5957 = vpop.permute.xlu0 %5956
  %v5974 = vadd.f32 %v5669, %v5927
  %v5975 = vadd.f32 %v5672, %v5929
  %v5976 = vadd.f32 %v5677, %v5931
  %v5977 = vadd.f32 %v5680, %v5933
  %v5978 = vadd.f32 %v5685, %v5935
  %v5979 = vadd.f32 %v5688, %v5937
  %v5980 = vadd.f32 %v5693, %v5939
  %v5981 = vadd.f32 %v5696, %v5941
  %v5982 = vadd.f32 %v5701, %v5943
  %v5983 = vadd.f32 %v5704, %v5945
  %v5984 = vadd.f32 %v5709, %v5947
  %v5985 = vadd.f32 %v5712, %v5949
  %v5986 = vadd.f32 %v5717, %v5951
  %v5987 = vadd.f32 %v5720, %v5953
  %v5988 = vadd.f32 %v5725, %v5955
  %v5989 = vadd.f32 %v5728, %v5957
  %5990 = vmatprep.subr.bf16.mxu0 0
  %5991 = vmatpush1.bf16.msra.mxu0 %v5506
  %5992 = vmatprep.subr.bf16.mxu0 0
  %5993 = vmatpush1.bf16.msra.mxu0 %v5507
  %5994 = vmatprep.subr.bf16.mxu0 0
  %5995 = vmatpush1.bf16.msra.mxu0 %v5508
  %5996 = vmatprep.subr.bf16.mxu0 0
  %5997 = vmatpush1.bf16.msra.mxu0 %v5509
  %5998 = vmatprep.subr.bf16.mxu0 0
  %5999 = vmatpush1.bf16.msra.mxu0 %v5510
  %6000 = vmatprep.subr.bf16.mxu0 0
  %6001 = vmatpush1.bf16.msra.mxu0 %v5511
  %6002 = vmatprep.subr.bf16.mxu0 0
  %6003 = vmatpush1.bf16.msra.mxu0 %v5512
  %6004 = vmatprep.subr.bf16.mxu0 0
  %6005 = vmatpush1.bf16.msra.mxu0 %v5513
  %6006 = vmatprep.subr.bf16.mxu0 0
  %6007 = vmatpush1.bf16.msra.mxu0 0
  %6008 = vmatprep.subr.bf16.mxu0 0
  %6009 = vmatpush1.bf16.msra.mxu0 0
  %6010 = vmatprep.subr.bf16.mxu0 0
  %6011 = vmatpush1.bf16.msra.mxu0 0
  %6012 = vmatprep.subr.bf16.mxu0 0
  %6013 = vmatpush1.bf16.msra.mxu0 0
  %6014 = vmatprep.subr.bf16.mxu0 0
  %6015 = vmatpush1.bf16.msra.mxu0 0
  %6016 = vmatprep.subr.bf16.mxu0 0
  %6017 = vmatpush1.bf16.msra.mxu0 0
  %6018 = vmatprep.subr.bf16.mxu0 0
  %6019 = vmatpush1.bf16.msra.mxu0 0
  %6020 = vmatprep.subr.bf16.mxu0 0
  %6021 = vmatpush1.bf16.msra.mxu0 0
  %6022 = vmatprep.mubr.bf16.mxu0 0
  %6023 = vmatmul.mubr.bf16.gmra.mrb[0].mxu0 %v965
  %v6024 = vpop.f32.mrb[0].mxu0
  %v6025 = vadd.f32 0.0, %v6024
  %v6026 = vpop.f32.mrb[0].mxu0
  %v6027 = vpop.f32.mrb[0].mxu0
  %v6028 = vadd.f32 0.0, %v6027
  %v6029 = vpop.f32.mrb[0].mxu0
  %6030 = vmatprep.mubr.bf16.mxu0 0
  %6031 = vmatmul.mubr.bf16.gmra.mrb[0].mxu0 %v966
  %v6032 = vpop.f32.mrb[0].mxu0
  %v6033 = vadd.f32 0.0, %v6032
  %v6034 = vpop.f32.mrb[0].mxu0
  %v6035 = vpop.f32.mrb[0].mxu0
  %v6036 = vadd.f32 0.0, %v6035
  %v6037 = vpop.f32.mrb[0].mxu0
  %6038 = vmatprep.mubr.bf16.mxu0 0
  %6039 = vmatmul.mubr.bf16.gmra.mrb[0].mxu0 %v967
  %v6040 = vpop.f32.mrb[0].mxu0
  %v6041 = vadd.f32 0.0, %v6040
  %v6042 = vpop.f32.mrb[0].mxu0
  %v6043 = vpop.f32.mrb[0].mxu0
  %v6044 = vadd.f32 0.0, %v6043
  %v6045 = vpop.f32.mrb[0].mxu0
  %6046 = vmatprep.mubr.bf16.mxu0 0
  %6047 = vmatmul.mubr.bf16.gmra.mrb[0].mxu0 %v968
  %v6048 = vpop.f32.mrb[0].mxu0
  %v6049 = vadd.f32 0.0, %v6048
  %v6050 = vpop.f32.mrb[0].mxu0
  %v6051 = vpop.f32.mrb[0].mxu0
  %v6052 = vadd.f32 0.0, %v6051
  %v6053 = vpop.f32.mrb[0].mxu0
  %6054 = vmatprep.mubr.bf16.mxu0 0
  %6055 = vmatmul.mubr.bf16.gmra.mrb[0].mxu0 %v969
  %v6056 = vpop.f32.mrb[0].mxu0
  %v6057 = vadd.f32 0.0, %v6056
  %v6058 = vpop.f32.mrb[0].mxu0
  %v6059 = vpop.f32.mrb[0].mxu0
  %v6060 = vadd.f32 0.0, %v6059
  %v6061 = vpop.f32.mrb[0].mxu0
  %6062 = vmatprep.mubr.bf16.mxu0 0
  %6063 = vmatmul.mubr.bf16.gmra.mrb[0].mxu0 %v970
  %v6064 = vpop.f32.mrb[0].mxu0
  %v6065 = vadd.f32 0.0, %v6064
  %v6066 = vpop.f32.mrb[0].mxu0
  %v6067 = vpop.f32.mrb[0].mxu0
  %v6068 = vadd.f32 0.0, %v6067
  %v6069 = vpop.f32.mrb[0].mxu0
  %6070 = vmatprep.mubr.bf16.mxu0 0
  %6071 = vmatmul.mubr.bf16.gmra.mrb[0].mxu0 %v971
  %v6072 = vpop.f32.mrb[0].mxu0
  %v6073 = vadd.f32 0.0, %v6072
  %v6074 = vpop.f32.mrb[0].mxu0
  %v6075 = vpop.f32.mrb[0].mxu0
  %v6076 = vadd.f32 0.0, %v6075
  %v6077 = vpop.f32.mrb[0].mxu0
  %6078 = vmatprep.mubr.bf16.mxu0 0
  %6079 = vmatmul.mubr.bf16.gmra.mrb[0].mxu0 %v972
  %v6080 = vpop.f32.mrb[0].mxu0
  %v6081 = vadd.f32 0.0, %v6080
  %v6082 = vpop.f32.mrb[0].mxu0
  %v6083 = vpop.f32.mrb[0].mxu0
  %v6084 = vadd.f32 0.0, %v6083
  %v6085 = vpop.f32.mrb[0].mxu0
  %6086 = vdwg.mxu0
  %v6087 = vsub.f32 %v5489, %v6025
  %v6088 = vsub.f32 %v5490, %v6028
  %v6089 = vsub.f32 %v5491, %v6033
  %v6090 = vsub.f32 %v5492, %v6036
  %v6091 = vsub.f32 %v5493, %v6041
  %v6092 = vsub.f32 %v5494, %v6044
  %v6093 = vsub.f32 %v5495, %v6049
  %v6094 = vsub.f32 %v5496, %v6052
  %v6095 = vsub.f32 %v5497, %v6057
  %v6096 = vsub.f32 %v5498, %v6060
  %v6097 = vsub.f32 %v5499, %v6065
  %v6098 = vsub.f32 %v5500, %v6068
  %v6099 = vsub.f32 %v5501, %v6073
  %v6100 = vsub.f32 %v5502, %v6076
  %v6101 = vsub.f32 %v5503, %v6081
  %v6102 = vsub.f32 %v5504, %v6084
  %v6103 = vadd.f32 %v6087, %v5748
  %v6104 = vadd.f32 %v6088, %v5748
  %v6105 = vadd.f32 %v6089, %v5748
  %v6106 = vadd.f32 %v6090, %v5748
  %v6107 = vadd.f32 %v6091, %v5748
  %v6108 = vadd.f32 %v6092, %v5748
  %v6109 = vadd.f32 %v6093, %v5748
  %v6110 = vadd.f32 %v6094, %v5748
  %v6111 = vadd.f32 %v6095, %v5748
  %v6112 = vadd.f32 %v6096, %v5748
  %v6113 = vadd.f32 %v6097, %v5748
  %v6114 = vadd.f32 %v6098, %v5748
  %v6115 = vadd.f32 %v6099, %v5748
  %v6116 = vadd.f32 %v6100, %v5748
  %v6117 = vadd.f32 %v6101, %v5748
  %v6118 = vadd.f32 %v6102, %v5748
  %6135 = vrot.lane.b32.xlu0 %v6025, 96
  %v6136 = vpop.permute.xlu0 %6135
  %6137 = vrot.lane.b32.xlu0 %v6028, 96
  %v6138 = vpop.permute.xlu0 %6137
  %6139 = vrot.lane.b32.xlu0 %v6033, 96
  %v6140 = vpop.permute.xlu0 %6139
  %6141 = vrot.lane.b32.xlu0 %v6036, 96
  %v6142 = vpop.permute.xlu0 %6141
  %6143 = vrot.lane.b32.xlu0 %v6041, 96
  %v6144 = vpop.permute.xlu0 %6143
  %6145 = vrot.lane.b32.xlu0 %v6044, 96
  %v6146 = vpop.permute.xlu0 %6145
  %6147 = vrot.lane.b32.xlu0 %v6049, 96
  %v6148 = vpop.permute.xlu0 %6147
  %6149 = vrot.lane.b32.xlu0 %v6052, 96
  %v6150 = vpop.permute.xlu0 %6149
  %6151 = vrot.lane.b32.xlu0 %v6057, 96
  %v6152 = vpop.permute.xlu0 %6151
  %6153 = vrot.lane.b32.xlu0 %v6060, 96
  %v6154 = vpop.permute.xlu0 %6153
  %6155 = vrot.lane.b32.xlu0 %v6065, 96
  %v6156 = vpop.permute.xlu0 %6155
  %6157 = vrot.lane.b32.xlu0 %v6068, 96
  %v6158 = vpop.permute.xlu0 %6157
  %6159 = vrot.lane.b32.xlu0 %v6073, 96
  %v6160 = vpop.permute.xlu0 %6159
  %6161 = vrot.lane.b32.xlu0 %v6076, 96
  %v6162 = vpop.permute.xlu0 %6161
  %6163 = vrot.lane.b32.xlu0 %v6081, 96
  %v6164 = vpop.permute.xlu0 %6163
  %6165 = vrot.lane.b32.xlu0 %v6084, 96
  %v6166 = vpop.permute.xlu0 %6165
  %v6183 = vsub.f32 %v5489, %v6136
  %v6184 = vsub.f32 %v5490, %v6138
  %v6185 = vsub.f32 %v5491, %v6140
  %v6186 = vsub.f32 %v5492, %v6142
  %v6187 = vsub.f32 %v5493, %v6144
  %v6188 = vsub.f32 %v5494, %v6146
  %v6189 = vsub.f32 %v5495, %v6148
  %v6190 = vsub.f32 %v5496, %v6150
  %v6191 = vsub.f32 %v5497, %v6152
  %v6192 = vsub.f32 %v5498, %v6154
  %v6193 = vsub.f32 %v5499, %v6156
  %v6194 = vsub.f32 %v5500, %v6158
  %v6195 = vsub.f32 %v5501, %v6160
  %v6196 = vsub.f32 %v5502, %v6162
  %v6197 = vsub.f32 %v5503, %v6164
  %v6198 = vsub.f32 %v5504, %v6166
  %6215 = vrot.lane.b32.xlu0 %v6103, 32
  %v6216 = vpop.permute.xlu0 %6215
  %6217 = vrot.lane.b32.xlu0 %v6104, 32
  %v6218 = vpop.permute.xlu0 %6217
  %6219 = vrot.lane.b32.xlu0 %v6105, 32
  %v6220 = vpop.permute.xlu0 %6219
  %6221 = vrot.lane.b32.xlu0 %v6106, 32
  %v6222 = vpop.permute.xlu0 %6221
  %6223 = vrot.lane.b32.xlu0 %v6107, 32
  %v6224 = vpop.permute.xlu0 %6223
  %6225 = vrot.lane.b32.xlu0 %v6108, 32
  %v6226 = vpop.permute.xlu0 %6225
  %6227 = vrot.lane.b32.xlu0 %v6109, 32
  %v6228 = vpop.permute.xlu0 %6227
  %6229 = vrot.lane.b32.xlu0 %v6110, 32
  %v6230 = vpop.permute.xlu0 %6229
  %6231 = vrot.lane.b32.xlu0 %v6111, 32
  %v6232 = vpop.permute.xlu0 %6231
  %6233 = vrot.lane.b32.xlu0 %v6112, 32
  %v6234 = vpop.permute.xlu0 %6233
  %6235 = vrot.lane.b32.xlu0 %v6113, 32
  %v6236 = vpop.permute.xlu0 %6235
  %6237 = vrot.lane.b32.xlu0 %v6114, 32
  %v6238 = vpop.permute.xlu0 %6237
  %6239 = vrot.lane.b32.xlu0 %v6115, 32
  %v6240 = vpop.permute.xlu0 %6239
  %6241 = vrot.lane.b32.xlu0 %v6116, 32
  %v6242 = vpop.permute.xlu0 %6241
  %6243 = vrot.lane.b32.xlu0 %v6117, 32
  %v6244 = vpop.permute.xlu0 %6243
  %6245 = vrot.lane.b32.xlu0 %v6118, 32
  %v6246 = vpop.permute.xlu0 %6245
  %v6263 = vadd.f32 %v6183, %v6216
  %v6264 = vadd.f32 %v6184, %v6218
  %v6265 = vadd.f32 %v6185, %v6220
  %v6266 = vadd.f32 %v6186, %v6222
  %v6267 = vadd.f32 %v6187, %v6224
  %v6268 = vadd.f32 %v6188, %v6226
  %v6269 = vadd.f32 %v6189, %v6228
  %v6270 = vadd.f32 %v6190, %v6230
  %v6271 = vadd.f32 %v6191, %v6232
  %v6272 = vadd.f32 %v6192, %v6234
  %v6273 = vadd.f32 %v6193, %v6236
  %v6274 = vadd.f32 %v6194, %v6238
  %v6275 = vadd.f32 %v6195, %v6240
  %v6276 = vadd.f32 %v6196, %v6242
  %v6277 = vadd.f32 %v6197, %v6244
  %v6278 = vadd.f32 %v6198, %v6246
  %6279 = vrot.lane.b32.xlu0 %v6103, 96
  %v6280 = vpop.permute.xlu0 %6279
  %6281 = vrot.lane.b32.xlu0 %v6104, 96
  %v6282 = vpop.permute.xlu0 %6281
  %6283 = vrot.lane.b32.xlu0 %v6105, 96
  %v6284 = vpop.permute.xlu0 %6283
  %6285 = vrot.lane.b32.xlu0 %v6106, 96
  %v6286 = vpop.permute.xlu0 %6285
  %6287 = vrot.lane.b32.xlu0 %v6107, 96
  %v6288 = vpop.permute.xlu0 %6287
  %6289 = vrot.lane.b32.xlu0 %v6108, 96
  %v6290 = vpop.permute.xlu0 %6289
  %6291 = vrot.lane.b32.xlu0 %v6109, 96
  %v6292 = vpop.permute.xlu0 %6291
  %6293 = vrot.lane.b32.xlu0 %v6110, 96
  %v6294 = vpop.permute.xlu0 %6293
  %6295 = vrot.lane.b32.xlu0 %v6111, 96
  %v6296 = vpop.permute.xlu0 %6295
  %6297 = vrot.lane.b32.xlu0 %v6112, 96
  %v6298 = vpop.permute.xlu0 %6297
  %6299 = vrot.lane.b32.xlu0 %v6113, 96
  %v6300 = vpop.permute.xlu0 %6299
  %6301 = vrot.lane.b32.xlu0 %v6114, 96
  %v6302 = vpop.permute.xlu0 %6301
  %6303 = vrot.lane.b32.xlu0 %v6115, 96
  %v6304 = vpop.permute.xlu0 %6303
  %6305 = vrot.lane.b32.xlu0 %v6116, 96
  %v6306 = vpop.permute.xlu0 %6305
  %6307 = vrot.lane.b32.xlu0 %v6117, 96
  %v6308 = vpop.permute.xlu0 %6307
  %6309 = vrot.lane.b32.xlu0 %v6118, 96
  %v6310 = vpop.permute.xlu0 %6309
  %v6327 = vadd.f32 %v6025, %v6280
  %v6328 = vadd.f32 %v6028, %v6282
  %v6329 = vadd.f32 %v6033, %v6284
  %v6330 = vadd.f32 %v6036, %v6286
  %v6331 = vadd.f32 %v6041, %v6288
  %v6332 = vadd.f32 %v6044, %v6290
  %v6333 = vadd.f32 %v6049, %v6292
  %v6334 = vadd.f32 %v6052, %v6294
  %v6335 = vadd.f32 %v6057, %v6296
  %v6336 = vadd.f32 %v6060, %v6298
  %v6337 = vadd.f32 %v6065, %v6300
  %v6338 = vadd.f32 %v6068, %v6302
  %v6339 = vadd.f32 %v6073, %v6304
  %v6340 = vadd.f32 %v6076, %v6306
  %v6341 = vadd.f32 %v6081, %v6308
  %v6342 = vadd.f32 %v6084, %v6310
  %6343 = vmatprep.subr.bf16.mxu0 0
  %6344 = vmatpush1.bf16.msra.mxu0 %v5506
  %6345 = vmatprep.subr.bf16.mxu0 0
  %6346 = vmatpush1.bf16.msra.mxu0 %v5507
  %6347 = vmatprep.subr.bf16.mxu0 0
  %6348 = vmatpush1.bf16.msra.mxu0 %v5508
  %6349 = vmatprep.subr.bf16.mxu0 0
  %6350 = vmatpush1.bf16.msra.mxu0 %v5509
  %6351 = vmatprep.subr.bf16.mxu0 0
  %6352 = vmatpush1.bf16.msra.mxu0 %v5510
  %6353 = vmatprep.subr.bf16.mxu0 0
  %6354 = vmatpush1.bf16.msra.mxu0 %v5511
  %6355 = vmatprep.subr.bf16.mxu0 0
  %6356 = vmatpush1.bf16.msra.mxu0 %v5512
  %6357 = vmatprep.subr.bf16.mxu0 0
  %6358 = vmatpush1.bf16.msra.mxu0 %v5513
  %6359 = vmatprep.subr.bf16.mxu0 0
  %6360 = vmatpush1.bf16.msra.mxu0 0
  %6361 = vmatprep.subr.bf16.mxu0 0
  %6362 = vmatpush1.bf16.msra.mxu0 0
  %6363 = vmatprep.subr.bf16.mxu0 0
  %6364 = vmatpush1.bf16.msra.mxu0 0
  %6365 = vmatprep.subr.bf16.mxu0 0
  %6366 = vmatpush1.bf16.msra.mxu0 0
  %6367 = vmatprep.subr.bf16.mxu0 0
  %6368 = vmatpush1.bf16.msra.mxu0 0
  %6369 = vmatprep.subr.bf16.mxu0 0
  %6370 = vmatpush1.bf16.msra.mxu0 0
  %6371 = vmatprep.subr.bf16.mxu0 0
  %6372 = vmatpush1.bf16.msra.mxu0 0
  %6373 = vmatprep.subr.bf16.mxu0 0
  %6374 = vmatpush1.bf16.msra.mxu0 0
  %6375 = vmatprep.mubr.bf16.mxu0 0
  %6376 = vmatmul.mubr.bf16.gmra.mrb[0].mxu0 %v981
  %v6377 = vpop.f32.mrb[0].mxu0
  %v6378 = vadd.f32 0.0, %v6377
  %v6379 = vpop.f32.mrb[0].mxu0
  %v6380 = vpop.f32.mrb[0].mxu0
  %v6381 = vadd.f32 0.0, %v6380
  %v6382 = vpop.f32.mrb[0].mxu0
  %6383 = vmatprep.mubr.bf16.mxu0 0
  %6384 = vmatmul.mubr.bf16.gmra.mrb[0].mxu0 %v982
  %v6385 = vpop.f32.mrb[0].mxu0
  %v6386 = vadd.f32 0.0, %v6385
  %v6387 = vpop.f32.mrb[0].mxu0
  %v6388 = vpop.f32.mrb[0].mxu0
  %v6389 = vadd.f32 0.0, %v6388
  %v6390 = vpop.f32.mrb[0].mxu0
  %6391 = vmatprep.mubr.bf16.mxu0 0
  %6392 = vmatmul.mubr.bf16.gmra.mrb[0].mxu0 %v983
  %v6393 = vpop.f32.mrb[0].mxu0
  %v6394 = vadd.f32 0.0, %v6393
  %v6395 = vpop.f32.mrb[0].mxu0
  %v6396 = vpop.f32.mrb[0].mxu0
  %v6397 = vadd.f32 0.0, %v6396
  %v6398 = vpop.f32.mrb[0].mxu0
  %6399 = vmatprep.mubr.bf16.mxu0 0
  %6400 = vmatmul.mubr.bf16.gmra.mrb[0].mxu0 %v984
  %v6401 = vpop.f32.mrb[0].mxu0
  %v6402 = vadd.f32 0.0, %v6401
  %v6403 = vpop.f32.mrb[0].mxu0
  %v6404 = vpop.f32.mrb[0].mxu0
  %v6405 = vadd.f32 0.0, %v6404
  %v6406 = vpop.f32.mrb[0].mxu0
  %6407 = vmatprep.mubr.bf16.mxu0 0
  %6408 = vmatmul.mubr.bf16.gmra.mrb[0].mxu0 %v985
  %v6409 = vpop.f32.mrb[0].mxu0
  %v6410 = vadd.f32 0.0, %v6409
  %v6411 = vpop.f32.mrb[0].mxu0
  %v6412 = vpop.f32.mrb[0].mxu0
  %v6413 = vadd.f32 0.0, %v6412
  %v6414 = vpop.f32.mrb[0].mxu0
  %6415 = vmatprep.mubr.bf16.mxu0 0
  %6416 = vmatmul.mubr.bf16.gmra.mrb[0].mxu0 %v986
  %v6417 = vpop.f32.mrb[0].mxu0
  %v6418 = vadd.f32 0.0, %v6417
  %v6419 = vpop.f32.mrb[0].mxu0
  %v6420 = vpop.f32.mrb[0].mxu0
  %v6421 = vadd.f32 0.0, %v6420
  %v6422 = vpop.f32.mrb[0].mxu0
  %6423 = vmatprep.mubr.bf16.mxu0 0
  %6424 = vmatmul.mubr.bf16.gmra.mrb[0].mxu0 %v987
  %v6425 = vpop.f32.mrb[0].mxu0
  %v6426 = vadd.f32 0.0, %v6425
  %v6427 = vpop.f32.mrb[0].mxu0
  %v6428 = vpop.f32.mrb[0].mxu0
  %v6429 = vadd.f32 0.0, %v6428
  %v6430 = vpop.f32.mrb[0].mxu0
  %6431 = vmatprep.mubr.bf16.mxu0 0
  %6432 = vmatmul.mubr.bf16.gmra.mrb[0].mxu0 %v988
  %v6433 = vpop.f32.mrb[0].mxu0
  %v6434 = vadd.f32 0.0, %v6433
  %v6435 = vpop.f32.mrb[0].mxu0
  %v6436 = vpop.f32.mrb[0].mxu0
  %v6437 = vadd.f32 0.0, %v6436
  %v6438 = vpop.f32.mrb[0].mxu0
  %6439 = vdwg.mxu0
  %v6440 = vsub.f32 %v5489, %v6378
  %v6441 = vsub.f32 %v5490, %v6381
  %v6442 = vsub.f32 %v5491, %v6386
  %v6443 = vsub.f32 %v5492, %v6389
  %v6444 = vsub.f32 %v5493, %v6394
  %v6445 = vsub.f32 %v5494, %v6397
  %v6446 = vsub.f32 %v5495, %v6402
  %v6447 = vsub.f32 %v5496, %v6405
  %v6448 = vsub.f32 %v5497, %v6410
  %v6449 = vsub.f32 %v5498, %v6413
  %v6450 = vsub.f32 %v5499, %v6418
  %v6451 = vsub.f32 %v5500, %v6421
  %v6452 = vsub.f32 %v5501, %v6426
  %v6453 = vsub.f32 %v5502, %v6429
  %v6454 = vsub.f32 %v5503, %v6434
  %v6455 = vsub.f32 %v5504, %v6437
  %v6456 = vadd.f32 %v6440, %v5748
  %v6457 = vadd.f32 %v6441, %v5748
  %v6458 = vadd.f32 %v6442, %v5748
  %v6459 = vadd.f32 %v6443, %v5748
  %v6460 = vadd.f32 %v6444, %v5748
  %v6461 = vadd.f32 %v6445, %v5748
  %v6462 = vadd.f32 %v6446, %v5748
  %v6463 = vadd.f32 %v6447, %v5748
  %v6464 = vadd.f32 %v6448, %v5748
  %v6465 = vadd.f32 %v6449, %v5748
  %v6466 = vadd.f32 %v6450, %v5748
  %v6467 = vadd.f32 %v6451, %v5748
  %v6468 = vadd.f32 %v6452, %v5748
  %v6469 = vadd.f32 %v6453, %v5748
  %v6470 = vadd.f32 %v6454, %v5748
  %v6471 = vadd.f32 %v6455, %v5748
  %6488 = vrot.lane.b32.xlu0 %v6378, 96
  %v6489 = vpop.permute.xlu0 %6488
  %6490 = vrot.lane.b32.xlu0 %v6381, 96
  %v6491 = vpop.permute.xlu0 %6490
  %6492 = vrot.lane.b32.xlu0 %v6386, 96
  %v6493 = vpop.permute.xlu0 %6492
  %6494 = vrot.lane.b32.xlu0 %v6389, 96
  %v6495 = vpop.permute.xlu0 %6494
  %6496 = vrot.lane.b32.xlu0 %v6394, 96
  %v6497 = vpop.permute.xlu0 %6496
  %6498 = vrot.lane.b32.xlu0 %v6397, 96
  %v6499 = vpop.permute.xlu0 %6498
  %6500 = vrot.lane.b32.xlu0 %v6402, 96
  %v6501 = vpop.permute.xlu0 %6500
  %6502 = vrot.lane.b32.xlu0 %v6405, 96
  %v6503 = vpop.permute.xlu0 %6502
  %6504 = vrot.lane.b32.xlu0 %v6410, 96
  %v6505 = vpop.permute.xlu0 %6504
  %6506 = vrot.lane.b32.xlu0 %v6413, 96
  %v6507 = vpop.permute.xlu0 %6506
  %6508 = vrot.lane.b32.xlu0 %v6418, 96
  %v6509 = vpop.permute.xlu0 %6508
  %6510 = vrot.lane.b32.xlu0 %v6421, 96
  %v6511 = vpop.permute.xlu0 %6510
  %6512 = vrot.lane.b32.xlu0 %v6426, 96
  %v6513 = vpop.permute.xlu0 %6512
  %6514 = vrot.lane.b32.xlu0 %v6429, 96
  %v6515 = vpop.permute.xlu0 %6514
  %6516 = vrot.lane.b32.xlu0 %v6434, 96
  %v6517 = vpop.permute.xlu0 %6516
  %6518 = vrot.lane.b32.xlu0 %v6437, 96
  %v6519 = vpop.permute.xlu0 %6518
  %v6536 = vsub.f32 %v5489, %v6489
  %v6537 = vsub.f32 %v5490, %v6491
  %v6538 = vsub.f32 %v5491, %v6493
  %v6539 = vsub.f32 %v5492, %v6495
  %v6540 = vsub.f32 %v5493, %v6497
  %v6541 = vsub.f32 %v5494, %v6499
  %v6542 = vsub.f32 %v5495, %v6501
  %v6543 = vsub.f32 %v5496, %v6503
  %v6544 = vsub.f32 %v5497, %v6505
  %v6545 = vsub.f32 %v5498, %v6507
  %v6546 = vsub.f32 %v5499, %v6509
  %v6547 = vsub.f32 %v5500, %v6511
  %v6548 = vsub.f32 %v5501, %v6513
  %v6549 = vsub.f32 %v5502, %v6515
  %v6550 = vsub.f32 %v5503, %v6517
  %v6551 = vsub.f32 %v5504, %v6519
  %6568 = vrot.lane.b32.xlu0 %v6456, 32
  %v6569 = vpop.permute.xlu0 %6568
  %6570 = vrot.lane.b32.xlu0 %v6457, 32
  %v6571 = vpop.permute.xlu0 %6570
  %6572 = vrot.lane.b32.xlu0 %v6458, 32
  %v6573 = vpop.permute.xlu0 %6572
  %6574 = vrot.lane.b32.xlu0 %v6459, 32
  %v6575 = vpop.permute.xlu0 %6574
  %6576 = vrot.lane.b32.xlu0 %v6460, 32
  %v6577 = vpop.permute.xlu0 %6576
  %6578 = vrot.lane.b32.xlu0 %v6461, 32
  %v6579 = vpop.permute.xlu0 %6578
  %6580 = vrot.lane.b32.xlu0 %v6462, 32
  %v6581 = vpop.permute.xlu0 %6580
  %6582 = vrot.lane.b32.xlu0 %v6463, 32
  %v6583 = vpop.permute.xlu0 %6582
  %6584 = vrot.lane.b32.xlu0 %v6464, 32
  %v6585 = vpop.permute.xlu0 %6584
  %6586 = vrot.lane.b32.xlu0 %v6465, 32
  %v6587 = vpop.permute.xlu0 %6586
  %6588 = vrot.lane.b32.xlu0 %v6466, 32
  %v6589 = vpop.permute.xlu0 %6588
  %6590 = vrot.lane.b32.xlu0 %v6467, 32
  %v6591 = vpop.permute.xlu0 %6590
  %6592 = vrot.lane.b32.xlu0 %v6468, 32
  %v6593 = vpop.permute.xlu0 %6592
  %6594 = vrot.lane.b32.xlu0 %v6469, 32
  %v6595 = vpop.permute.xlu0 %6594
  %6596 = vrot.lane.b32.xlu0 %v6470, 32
  %v6597 = vpop.permute.xlu0 %6596
  %6598 = vrot.lane.b32.xlu0 %v6471, 32
  %v6599 = vpop.permute.xlu0 %6598
  %v6616 = vadd.f32 %v6536, %v6569
  %v6617 = vadd.f32 %v6537, %v6571
  %v6618 = vadd.f32 %v6538, %v6573
  %v6619 = vadd.f32 %v6539, %v6575
  %v6620 = vadd.f32 %v6540, %v6577
  %v6621 = vadd.f32 %v6541, %v6579
  %v6622 = vadd.f32 %v6542, %v6581
  %v6623 = vadd.f32 %v6543, %v6583
  %v6624 = vadd.f32 %v6544, %v6585
  %v6625 = vadd.f32 %v6545, %v6587
  %v6626 = vadd.f32 %v6546, %v6589
  %v6627 = vadd.f32 %v6547, %v6591
  %v6628 = vadd.f32 %v6548, %v6593
  %v6629 = vadd.f32 %v6549, %v6595
  %v6630 = vadd.f32 %v6550, %v6597
  %v6631 = vadd.f32 %v6551, %v6599
  %6632 = vrot.lane.b32.xlu0 %v6456, 96
  %v6633 = vpop.permute.xlu0 %6632
  %6634 = vrot.lane.b32.xlu0 %v6457, 96
  %v6635 = vpop.permute.xlu0 %6634
  %6636 = vrot.lane.b32.xlu0 %v6458, 96
  %v6637 = vpop.permute.xlu0 %6636
  %6638 = vrot.lane.b32.xlu0 %v6459, 96
  %v6639 = vpop.permute.xlu0 %6638
  %6640 = vrot.lane.b32.xlu0 %v6460, 96
  %v6641 = vpop.permute.xlu0 %6640
  %6642 = vrot.lane.b32.xlu0 %v6461, 96
  %v6643 = vpop.permute.xlu0 %6642
  %6644 = vrot.lane.b32.xlu0 %v6462, 96
  %v6645 = vpop.permute.xlu0 %6644
  %6646 = vrot.lane.b32.xlu0 %v6463, 96
  %v6647 = vpop.permute.xlu0 %6646
  %6648 = vrot.lane.b32.xlu0 %v6464, 96
  %v6649 = vpop.permute.xlu0 %6648
  %6650 = vrot.lane.b32.xlu0 %v6465, 96
  %v6651 = vpop.permute.xlu0 %6650
  %6652 = vrot.lane.b32.xlu0 %v6466, 96
  %v6653 = vpop.permute.xlu0 %6652
  %6654 = vrot.lane.b32.xlu0 %v6467, 96
  %v6655 = vpop.permute.xlu0 %6654
  %6656 = vrot.lane.b32.xlu0 %v6468, 96
  %v6657 = vpop.permute.xlu0 %6656
  %6658 = vrot.lane.b32.xlu0 %v6469, 96
  %v6659 = vpop.permute.xlu0 %6658
  %6660 = vrot.lane.b32.xlu0 %v6470, 96
  %v6661 = vpop.permute.xlu0 %6660
  %6662 = vrot.lane.b32.xlu0 %v6471, 96
  %v6663 = vpop.permute.xlu0 %6662
  %v6680 = vadd.f32 %v6378, %v6633
  %v6681 = vadd.f32 %v6381, %v6635
  %v6682 = vadd.f32 %v6386, %v6637
  %v6683 = vadd.f32 %v6389, %v6639
  %v6684 = vadd.f32 %v6394, %v6641
  %v6685 = vadd.f32 %v6397, %v6643
  %v6686 = vadd.f32 %v6402, %v6645
  %v6687 = vadd.f32 %v6405, %v6647
  %v6688 = vadd.f32 %v6410, %v6649
  %v6689 = vadd.f32 %v6413, %v6651
  %v6690 = vadd.f32 %v6418, %v6653
  %v6691 = vadd.f32 %v6421, %v6655
  %v6692 = vadd.f32 %v6426, %v6657
  %v6693 = vadd.f32 %v6429, %v6659
  %v6694 = vadd.f32 %v6434, %v6661
  %v6695 = vadd.f32 %v6437, %v6663
  %6696 = vmatprep.subr.bf16.mxu0 0
  %6697 = vmatpush1.bf16.msra.mxu0 %v5506
  %6698 = vmatprep.subr.bf16.mxu0 0
  %6699 = vmatpush1.bf16.msra.mxu0 %v5507
  %6700 = vmatprep.subr.bf16.mxu0 0
  %6701 = vmatpush1.bf16.msra.mxu0 %v5508
  %6702 = vmatprep.subr.bf16.mxu0 0
  %6703 = vmatpush1.bf16.msra.mxu0 %v5509
  %6704 = vmatprep.subr.bf16.mxu0 0
  %6705 = vmatpush1.bf16.msra.mxu0 %v5510
  %6706 = vmatprep.subr.bf16.mxu0 0
  %6707 = vmatpush1.bf16.msra.mxu0 %v5511
  %6708 = vmatprep.subr.bf16.mxu0 0
  %6709 = vmatpush1.bf16.msra.mxu0 %v5512
  %6710 = vmatprep.subr.bf16.mxu0 0
  %6711 = vmatpush1.bf16.msra.mxu0 %v5513
  %6712 = vmatprep.subr.bf16.mxu0 0
  %6713 = vmatpush1.bf16.msra.mxu0 0
  %6714 = vmatprep.subr.bf16.mxu0 0
  %6715 = vmatpush1.bf16.msra.mxu0 0
  %6716 = vmatprep.subr.bf16.mxu0 0
  %6717 = vmatpush1.bf16.msra.mxu0 0
  %6718 = vmatprep.subr.bf16.mxu0 0
  %6719 = vmatpush1.bf16.msra.mxu0 0
  %6720 = vmatprep.subr.bf16.mxu0 0
  %6721 = vmatpush1.bf16.msra.mxu0 0
  %6722 = vmatprep.subr.bf16.mxu0 0
  %6723 = vmatpush1.bf16.msra.mxu0 0
  %6724 = vmatprep.subr.bf16.mxu0 0
  %6725 = vmatpush1.bf16.msra.mxu0 0
  %6726 = vmatprep.subr.bf16.mxu0 0
  %6727 = vmatpush1.bf16.msra.mxu0 0
  %6728 = vmatprep.mubr.bf16.mxu0 0
  %6729 = vmatmul.mubr.bf16.gmra.mrb[0].mxu0 %v997
  %v6730 = vpop.f32.mrb[0].mxu0
  %v6731 = vadd.f32 0.0, %v6730
  %v6732 = vpop.f32.mrb[0].mxu0
  %v6733 = vpop.f32.mrb[0].mxu0
  %v6734 = vadd.f32 0.0, %v6733
  %v6735 = vpop.f32.mrb[0].mxu0
  %6736 = vmatprep.mubr.bf16.mxu0 0
  %6737 = vmatmul.mubr.bf16.gmra.mrb[0].mxu0 %v998
  %v6738 = vpop.f32.mrb[0].mxu0
  %v6739 = vadd.f32 0.0, %v6738
  %v6740 = vpop.f32.mrb[0].mxu0
  %v6741 = vpop.f32.mrb[0].mxu0
  %v6742 = vadd.f32 0.0, %v6741
  %v6743 = vpop.f32.mrb[0].mxu0
  %6744 = vmatprep.mubr.bf16.mxu0 0
  %6745 = vmatmul.mubr.bf16.gmra.mrb[0].mxu0 %v999
  %v6746 = vpop.f32.mrb[0].mxu0
  %v6747 = vadd.f32 0.0, %v6746
  %v6748 = vpop.f32.mrb[0].mxu0
  %v6749 = vpop.f32.mrb[0].mxu0
  %v6750 = vadd.f32 0.0, %v6749
  %v6751 = vpop.f32.mrb[0].mxu0
  %6752 = vmatprep.mubr.bf16.mxu0 0
  %6753 = vmatmul.mubr.bf16.gmra.mrb[0].mxu0 %v1000
  %v6754 = vpop.f32.mrb[0].mxu0
  %v6755 = vadd.f32 0.0, %v6754
  %v6756 = vpop.f32.mrb[0].mxu0
  %v6757 = vpop.f32.mrb[0].mxu0
  %v6758 = vadd.f32 0.0, %v6757
  %v6759 = vpop.f32.mrb[0].mxu0
  %6760 = vmatprep.mubr.bf16.mxu0 0
  %6761 = vmatmul.mubr.bf16.gmra.mrb[0].mxu0 %v1001
  %v6762 = vpop.f32.mrb[0].mxu0
  %v6763 = vadd.f32 0.0, %v6762
  %v6764 = vpop.f32.mrb[0].mxu0
  %v6765 = vpop.f32.mrb[0].mxu0
  %v6766 = vadd.f32 0.0, %v6765
  %v6767 = vpop.f32.mrb[0].mxu0
  %6768 = vmatprep.mubr.bf16.mxu0 0
  %6769 = vmatmul.mubr.bf16.gmra.mrb[0].mxu0 %v1002
  %v6770 = vpop.f32.mrb[0].mxu0
  %v6771 = vadd.f32 0.0, %v6770
  %v6772 = vpop.f32.mrb[0].mxu0
  %v6773 = vpop.f32.mrb[0].mxu0
  %v6774 = vadd.f32 0.0, %v6773
  %v6775 = vpop.f32.mrb[0].mxu0
  %6776 = vmatprep.mubr.bf16.mxu0 0
  %6777 = vmatmul.mubr.bf16.gmra.mrb[0].mxu0 %v1003
  %v6778 = vpop.f32.mrb[0].mxu0
  %v6779 = vadd.f32 0.0, %v6778
  %v6780 = vpop.f32.mrb[0].mxu0
  %v6781 = vpop.f32.mrb[0].mxu0
  %v6782 = vadd.f32 0.0, %v6781
  %v6783 = vpop.f32.mrb[0].mxu0
  %6784 = vmatprep.mubr.bf16.mxu0 0
  %6785 = vmatmul.mubr.bf16.gmra.mrb[0].mxu0 %v1004
  %v6786 = vpop.f32.mrb[0].mxu0
  %v6787 = vadd.f32 0.0, %v6786
  %v6788 = vpop.f32.mrb[0].mxu0
  %v6789 = vpop.f32.mrb[0].mxu0
  %v6790 = vadd.f32 0.0, %v6789
  %v6791 = vpop.f32.mrb[0].mxu0
  %6792 = vdwg.mxu0
  %v6793 = vsub.f32 %v5489, %v6731
  %v6794 = vsub.f32 %v5490, %v6734
  %v6795 = vsub.f32 %v5491, %v6739
  %v6796 = vsub.f32 %v5492, %v6742
  %v6797 = vsub.f32 %v5493, %v6747
  %v6798 = vsub.f32 %v5494, %v6750
  %v6799 = vsub.f32 %v5495, %v6755
  %v6800 = vsub.f32 %v5496, %v6758
  %v6801 = vsub.f32 %v5497, %v6763
  %v6802 = vsub.f32 %v5498, %v6766
  %v6803 = vsub.f32 %v5499, %v6771
  %v6804 = vsub.f32 %v5500, %v6774
  %v6805 = vsub.f32 %v5501, %v6779
  %v6806 = vsub.f32 %v5502, %v6782
  %v6807 = vsub.f32 %v5503, %v6787
  %v6808 = vsub.f32 %v5504, %v6790
  %v6809 = vadd.f32 %v6793, %v5748
  %v6810 = vadd.f32 %v6794, %v5748
  %v6811 = vadd.f32 %v6795, %v5748
  %v6812 = vadd.f32 %v6796, %v5748
  %v6813 = vadd.f32 %v6797, %v5748
  %v6814 = vadd.f32 %v6798, %v5748
  %v6815 = vadd.f32 %v6799, %v5748
  %v6816 = vadd.f32 %v6800, %v5748
  %v6817 = vadd.f32 %v6801, %v5748
  %v6818 = vadd.f32 %v6802, %v5748
  %v6819 = vadd.f32 %v6803, %v5748
  %v6820 = vadd.f32 %v6804, %v5748
  %v6821 = vadd.f32 %v6805, %v5748
  %v6822 = vadd.f32 %v6806, %v5748
  %v6823 = vadd.f32 %v6807, %v5748
  %v6824 = vadd.f32 %v6808, %v5748
  %6841 = vrot.lane.b32.xlu0 %v6731, 96
  %v6842 = vpop.permute.xlu0 %6841
  %6843 = vrot.lane.b32.xlu0 %v6734, 96
  %v6844 = vpop.permute.xlu0 %6843
  %6845 = vrot.lane.b32.xlu0 %v6739, 96
  %v6846 = vpop.permute.xlu0 %6845
  %6847 = vrot.lane.b32.xlu0 %v6742, 96
  %v6848 = vpop.permute.xlu0 %6847
  %6849 = vrot.lane.b32.xlu0 %v6747, 96
  %v6850 = vpop.permute.xlu0 %6849
  %6851 = vrot.lane.b32.xlu0 %v6750, 96
  %v6852 = vpop.permute.xlu0 %6851
  %6853 = vrot.lane.b32.xlu0 %v6755, 96
  %v6854 = vpop.permute.xlu0 %6853
  %6855 = vrot.lane.b32.xlu0 %v6758, 96
  %v6856 = vpop.permute.xlu0 %6855
  %6857 = vrot.lane.b32.xlu0 %v6763, 96
  %v6858 = vpop.permute.xlu0 %6857
  %6859 = vrot.lane.b32.xlu0 %v6766, 96
  %v6860 = vpop.permute.xlu0 %6859
  %6861 = vrot.lane.b32.xlu0 %v6771, 96
  %v6862 = vpop.permute.xlu0 %6861
  %6863 = vrot.lane.b32.xlu0 %v6774, 96
  %v6864 = vpop.permute.xlu0 %6863
  %6865 = vrot.lane.b32.xlu0 %v6779, 96
  %v6866 = vpop.permute.xlu0 %6865
  %6867 = vrot.lane.b32.xlu0 %v6782, 96
  %v6868 = vpop.permute.xlu0 %6867
  %6869 = vrot.lane.b32.xlu0 %v6787, 96
  %v6870 = vpop.permute.xlu0 %6869
  %6871 = vrot.lane.b32.xlu0 %v6790, 96
  %v6872 = vpop.permute.xlu0 %6871
  %v6889 = vsub.f32 %v5489, %v6842
  %v6890 = vsub.f32 %v5490, %v6844
  %v6891 = vsub.f32 %v5491, %v6846
  %v6892 = vsub.f32 %v5492, %v6848
  %v6893 = vsub.f32 %v5493, %v6850
  %v6894 = vsub.f32 %v5494, %v6852
  %v6895 = vsub.f32 %v5495, %v6854
  %v6896 = vsub.f32 %v5496, %v6856
  %v6897 = vsub.f32 %v5497, %v6858
  %v6898 = vsub.f32 %v5498, %v6860
  %v6899 = vsub.f32 %v5499, %v6862
  %v6900 = vsub.f32 %v5500, %v6864
  %v6901 = vsub.f32 %v5501, %v6866
  %v6902 = vsub.f32 %v5502, %v6868
  %v6903 = vsub.f32 %v5503, %v6870
  %v6904 = vsub.f32 %v5504, %v6872
  %6921 = vrot.lane.b32.xlu0 %v6809, 32
  %v6922 = vpop.permute.xlu0 %6921
  %6923 = vrot.lane.b32.xlu0 %v6810, 32
  %v6924 = vpop.permute.xlu0 %6923
  %6925 = vrot.lane.b32.xlu0 %v6811, 32
  %v6926 = vpop.permute.xlu0 %6925
  %6927 = vrot.lane.b32.xlu0 %v6812, 32
  %v6928 = vpop.permute.xlu0 %6927
  %6929 = vrot.lane.b32.xlu0 %v6813, 32
  %v6930 = vpop.permute.xlu0 %6929
  %6931 = vrot.lane.b32.xlu0 %v6814, 32
  %v6932 = vpop.permute.xlu0 %6931
  %6933 = vrot.lane.b32.xlu0 %v6815, 32
  %v6934 = vpop.permute.xlu0 %6933
  %6935 = vrot.lane.b32.xlu0 %v6816, 32
  %v6936 = vpop.permute.xlu0 %6935
  %6937 = vrot.lane.b32.xlu0 %v6817, 32
  %v6938 = vpop.permute.xlu0 %6937
  %6939 = vrot.lane.b32.xlu0 %v6818, 32
  %v6940 = vpop.permute.xlu0 %6939
  %6941 = vrot.lane.b32.xlu0 %v6819, 32
  %v6942 = vpop.permute.xlu0 %6941
  %6943 = vrot.lane.b32.xlu0 %v6820, 32
  %v6944 = vpop.permute.xlu0 %6943
  %6945 = vrot.lane.b32.xlu0 %v6821, 32
  %v6946 = vpop.permute.xlu0 %6945
  %6947 = vrot.lane.b32.xlu0 %v6822, 32
  %v6948 = vpop.permute.xlu0 %6947
  %6949 = vrot.lane.b32.xlu0 %v6823, 32
  %v6950 = vpop.permute.xlu0 %6949
  %6951 = vrot.lane.b32.xlu0 %v6824, 32
  %v6952 = vpop.permute.xlu0 %6951
  %v6969 = vadd.f32 %v6889, %v6922
  %v6970 = vadd.f32 %v6890, %v6924
  %v6971 = vadd.f32 %v6891, %v6926
  %v6972 = vadd.f32 %v6892, %v6928
  %v6973 = vadd.f32 %v6893, %v6930
  %v6974 = vadd.f32 %v6894, %v6932
  %v6975 = vadd.f32 %v6895, %v6934
  %v6976 = vadd.f32 %v6896, %v6936
  %v6977 = vadd.f32 %v6897, %v6938
  %v6978 = vadd.f32 %v6898, %v6940
  %v6979 = vadd.f32 %v6899, %v6942
  %v6980 = vadd.f32 %v6900, %v6944
  %v6981 = vadd.f32 %v6901, %v6946
  %v6982 = vadd.f32 %v6902, %v6948
  %v6983 = vadd.f32 %v6903, %v6950
  %v6984 = vadd.f32 %v6904, %v6952
  %6985 = vrot.lane.b32.xlu0 %v6809, 96
  %v6986 = vpop.permute.xlu0 %6985
  %6987 = vrot.lane.b32.xlu0 %v6810, 96
  %v6988 = vpop.permute.xlu0 %6987
  %6989 = vrot.lane.b32.xlu0 %v6811, 96
  %v6990 = vpop.permute.xlu0 %6989
  %6991 = vrot.lane.b32.xlu0 %v6812, 96
  %v6992 = vpop.permute.xlu0 %6991
  %6993 = vrot.lane.b32.xlu0 %v6813, 96
  %v6994 = vpop.permute.xlu0 %6993
  %6995 = vrot.lane.b32.xlu0 %v6814, 96
  %v6996 = vpop.permute.xlu0 %6995
  %6997 = vrot.lane.b32.xlu0 %v6815, 96
  %v6998 = vpop.permute.xlu0 %6997
  %6999 = vrot.lane.b32.xlu0 %v6816, 96
  %v7000 = vpop.permute.xlu0 %6999
  %7001 = vrot.lane.b32.xlu0 %v6817, 96
  %v7002 = vpop.permute.xlu0 %7001
  %7003 = vrot.lane.b32.xlu0 %v6818, 96
  %v7004 = vpop.permute.xlu0 %7003
  %7005 = vrot.lane.b32.xlu0 %v6819, 96
  %v7006 = vpop.permute.xlu0 %7005
  %7007 = vrot.lane.b32.xlu0 %v6820, 96
  %v7008 = vpop.permute.xlu0 %7007
  %7009 = vrot.lane.b32.xlu0 %v6821, 96
  %v7010 = vpop.permute.xlu0 %7009
  %7011 = vrot.lane.b32.xlu0 %v6822, 96
  %v7012 = vpop.permute.xlu0 %7011
  %7013 = vrot.lane.b32.xlu0 %v6823, 96
  %v7014 = vpop.permute.xlu0 %7013
  %7015 = vrot.lane.b32.xlu0 %v6824, 96
  %v7016 = vpop.permute.xlu0 %7015
  %v7033 = vadd.f32 %v6731, %v6986
  %v7034 = vadd.f32 %v6734, %v6988
  %v7035 = vadd.f32 %v6739, %v6990
  %v7036 = vadd.f32 %v6742, %v6992
  %v7037 = vadd.f32 %v6747, %v6994
  %v7038 = vadd.f32 %v6750, %v6996
  %v7039 = vadd.f32 %v6755, %v6998
  %v7040 = vadd.f32 %v6758, %v7000
  %v7041 = vadd.f32 %v6763, %v7002
  %v7042 = vadd.f32 %v6766, %v7004
  %v7043 = vadd.f32 %v6771, %v7006
  %v7044 = vadd.f32 %v6774, %v7008
  %v7045 = vadd.f32 %v6779, %v7010
  %v7046 = vadd.f32 %v6782, %v7012
  %v7047 = vadd.f32 %v6787, %v7014
  %v7048 = vadd.f32 %v6790, %v7016
  %v7049 = vmax.f32 %v5598, %v5910
  %v7050 = vmax.f32 %v5599, %v5911
  %v7051 = vmax.f32 %v5600, %v5912
  %v7052 = vmax.f32 %v5601, %v5913
  %v7053 = vmax.f32 %v5602, %v5914
  %v7054 = vmax.f32 %v5603, %v5915
  %v7055 = vmax.f32 %v5604, %v5916
  %v7056 = vmax.f32 %v5605, %v5917
  %v7057 = vmax.f32 %v5606, %v5918
  %v7058 = vmax.f32 %v5607, %v5919
  %v7059 = vmax.f32 %v5608, %v5920
  %v7060 = vmax.f32 %v5609, %v5921
  %v7061 = vmax.f32 %v5610, %v5922
  %v7062 = vmax.f32 %v5611, %v5923
  %v7063 = vmax.f32 %v5612, %v5924
  %v7064 = vmax.f32 %v5613, %v5925
  %v7065 = vmax.f32 %v7049, %v6263
  %v7066 = vmax.f32 %v7050, %v6264
  %v7067 = vmax.f32 %v7051, %v6265
  %v7068 = vmax.f32 %v7052, %v6266
  %v7069 = vmax.f32 %v7053, %v6267
  %v7070 = vmax.f32 %v7054, %v6268
  %v7071 = vmax.f32 %v7055, %v6269
  %v7072 = vmax.f32 %v7056, %v6270
  %v7073 = vmax.f32 %v7057, %v6271
  %v7074 = vmax.f32 %v7058, %v6272
  %v7075 = vmax.f32 %v7059, %v6273
  %v7076 = vmax.f32 %v7060, %v6274
  %v7077 = vmax.f32 %v7061, %v6275
  %v7078 = vmax.f32 %v7062, %v6276
  %v7079 = vmax.f32 %v7063, %v6277
  %v7080 = vmax.f32 %v7064, %v6278
  %v7081 = vmax.f32 %v7065, %v6616
  %v7082 = vmax.f32 %v7066, %v6617
  %v7083 = vmax.f32 %v7067, %v6618
  %v7084 = vmax.f32 %v7068, %v6619
  %v7085 = vmax.f32 %v7069, %v6620
  %v7086 = vmax.f32 %v7070, %v6621
  %v7087 = vmax.f32 %v7071, %v6622
  %v7088 = vmax.f32 %v7072, %v6623
  %v7089 = vmax.f32 %v7073, %v6624
  %v7090 = vmax.f32 %v7074, %v6625
  %v7091 = vmax.f32 %v7075, %v6626
  %v7092 = vmax.f32 %v7076, %v6627
  %v7093 = vmax.f32 %v7077, %v6628
  %v7094 = vmax.f32 %v7078, %v6629
  %v7095 = vmax.f32 %v7079, %v6630
  %v7096 = vmax.f32 %v7080, %v6631
  %v7097 = vmax.f32 %v7081, %v6969
  %v7098 = vmax.f32 %v7082, %v6970
  %v7099 = vmax.f32 %v7083, %v6971
  %v7100 = vmax.f32 %v7084, %v6972
  %v7101 = vmax.f32 %v7085, %v6973
  %v7102 = vmax.f32 %v7086, %v6974
  %v7103 = vmax.f32 %v7087, %v6975
  %v7104 = vmax.f32 %v7088, %v6976
  %v7105 = vmax.f32 %v7089, %v6977
  %v7106 = vmax.f32 %v7090, %v6978
  %v7107 = vmax.f32 %v7091, %v6979
  %v7108 = vmax.f32 %v7092, %v6980
  %v7109 = vmax.f32 %v7093, %v6981
  %v7110 = vmax.f32 %v7094, %v6982
  %v7111 = vmax.f32 %v7095, %v6983
  %v7112 = vmax.f32 %v7096, %v6984
  %v7113 = vsub.f32 %v5598, %v7097
  %v7114 = vsub.f32 %v5599, %v7098
  %v7115 = vsub.f32 %v5600, %v7099
  %v7116 = vsub.f32 %v5601, %v7100
  %v7117 = vsub.f32 %v5602, %v7101
  %v7118 = vsub.f32 %v5603, %v7102
  %v7119 = vsub.f32 %v5604, %v7103
  %v7120 = vsub.f32 %v5605, %v7104
  %v7121 = vsub.f32 %v5606, %v7105
  %v7122 = vsub.f32 %v5607, %v7106
  %v7123 = vsub.f32 %v5608, %v7107
  %v7124 = vsub.f32 %v5609, %v7108
  %v7125 = vsub.f32 %v5610, %v7109
  %v7126 = vsub.f32 %v5611, %v7110
  %v7127 = vsub.f32 %v5612, %v7111
  %v7128 = vsub.f32 %v5613, %v7112
  %v7129 = vmul.f32 %v7113, 1.442695
  %v7130 = vpow.pop %v7129
  %v7131 = vmul.f32 %v7114, 1.442695
  %v7132 = vpow.pop %v7131
  %v7133 = vmul.f32 %v7115, 1.442695
  %v7134 = vpow.pop %v7133
  %v7135 = vmul.f32 %v7116, 1.442695
  %v7136 = vpow.pop %v7135
  %v7137 = vmul.f32 %v7117, 1.442695
  %v7138 = vpow.pop %v7137
  %v7139 = vmul.f32 %v7118, 1.442695
  %v7140 = vpow.pop %v7139
  %v7141 = vmul.f32 %v7119, 1.442695
  %v7142 = vpow.pop %v7141
  %v7143 = vmul.f32 %v7120, 1.442695
  %v7144 = vpow.pop %v7143
  %v7145 = vmul.f32 %v7121, 1.442695
  %v7146 = vpow.pop %v7145
  %v7147 = vmul.f32 %v7122, 1.442695
  %v7148 = vpow.pop %v7147
  %v7149 = vmul.f32 %v7123, 1.442695
  %v7150 = vpow.pop %v7149
  %v7151 = vmul.f32 %v7124, 1.442695
  %v7152 = vpow.pop %v7151
  %v7153 = vmul.f32 %v7125, 1.442695
  %v7154 = vpow.pop %v7153
  %v7155 = vmul.f32 %v7126, 1.442695
  %v7156 = vpow.pop %v7155
  %v7157 = vmul.f32 %v7127, 1.442695
  %v7158 = vpow.pop %v7157
  %v7159 = vmul.f32 %v7128, 1.442695
  %v7160 = vpow.pop %v7159
  %v7161 = vadd.f32 %v7130, 0.0
  %v7162 = vadd.f32 %v7132, 0.0
  %v7163 = vadd.f32 %v7134, 0.0
  %v7164 = vadd.f32 %v7136, 0.0
  %v7165 = vadd.f32 %v7138, 0.0
  %v7166 = vadd.f32 %v7140, 0.0
  %v7167 = vadd.f32 %v7142, 0.0
  %v7168 = vadd.f32 %v7144, 0.0
  %v7169 = vadd.f32 %v7146, 0.0
  %v7170 = vadd.f32 %v7148, 0.0
  %v7171 = vadd.f32 %v7150, 0.0
  %v7172 = vadd.f32 %v7152, 0.0
  %v7173 = vadd.f32 %v7154, 0.0
  %v7174 = vadd.f32 %v7156, 0.0
  %v7175 = vadd.f32 %v7158, 0.0
  %v7176 = vadd.f32 %v7160, 0.0
  %7193 = vrot.lane.b32.xlu0 %v5618, 64
  %v7194 = vpop.permute.xlu0 %7193
  %7195 = vrot.lane.b32.xlu0 %v5619, 64
  %v7196 = vpop.permute.xlu0 %7195
  %7197 = vrot.lane.b32.xlu0 %v5620, 64
  %v7198 = vpop.permute.xlu0 %7197
  %7199 = vrot.lane.b32.xlu0 %v5621, 64
  %v7200 = vpop.permute.xlu0 %7199
  %7201 = vrot.lane.b32.xlu0 %v5622, 64
  %v7202 = vpop.permute.xlu0 %7201
  %7203 = vrot.lane.b32.xlu0 %v5623, 64
  %v7204 = vpop.permute.xlu0 %7203
  %7205 = vrot.lane.b32.xlu0 %v5624, 64
  %v7206 = vpop.permute.xlu0 %7205
  %7207 = vrot.lane.b32.xlu0 %v5625, 64
  %v7208 = vpop.permute.xlu0 %7207
  %7209 = vrot.lane.b32.xlu0 %v5626, 64
  %v7210 = vpop.permute.xlu0 %7209
  %7211 = vrot.lane.b32.xlu0 %v5627, 64
  %v7212 = vpop.permute.xlu0 %7211
  %7213 = vrot.lane.b32.xlu0 %v5628, 64
  %v7214 = vpop.permute.xlu0 %7213
  %7215 = vrot.lane.b32.xlu0 %v5629, 64
  %v7216 = vpop.permute.xlu0 %7215
  %7217 = vrot.lane.b32.xlu0 %v5630, 64
  %v7218 = vpop.permute.xlu0 %7217
  %7219 = vrot.lane.b32.xlu0 %v5631, 64
  %v7220 = vpop.permute.xlu0 %7219
  %7221 = vrot.lane.b32.xlu0 %v5632, 64
  %v7222 = vpop.permute.xlu0 %7221
  %7223 = vrot.lane.b32.xlu0 %v5633, 64
  %v7224 = vpop.permute.xlu0 %7223
  %v7241 = vmul.f32 %v7130, %v7194
  %v7242 = vmul.f32 %v7132, %v7196
  %v7243 = vmul.f32 %v7134, %v7198
  %v7244 = vmul.f32 %v7136, %v7200
  %v7245 = vmul.f32 %v7138, %v7202
  %v7246 = vmul.f32 %v7140, %v7204
  %v7247 = vmul.f32 %v7142, %v7206
  %v7248 = vmul.f32 %v7144, %v7208
  %v7249 = vmul.f32 %v7146, %v7210
  %v7250 = vmul.f32 %v7148, %v7212
  %v7251 = vmul.f32 %v7150, %v7214
  %v7252 = vmul.f32 %v7152, %v7216
  %v7253 = vmul.f32 %v7154, %v7218
  %v7254 = vmul.f32 %v7156, %v7220
  %v7255 = vmul.f32 %v7158, %v7222
  %v7256 = vmul.f32 %v7160, %v7224
  %v7257 = vadd.f32 %v7241, 0.0
  %v7258 = vadd.f32 %v7242, 0.0
  %v7259 = vadd.f32 %v7243, 0.0
  %v7260 = vadd.f32 %v7244, 0.0
  %v7261 = vadd.f32 %v7245, 0.0
  %v7262 = vadd.f32 %v7246, 0.0
  %v7263 = vadd.f32 %v7247, 0.0
  %v7264 = vadd.f32 %v7248, 0.0
  %v7265 = vadd.f32 %v7249, 0.0
  %v7266 = vadd.f32 %v7250, 0.0
  %v7267 = vadd.f32 %v7251, 0.0
  %v7268 = vadd.f32 %v7252, 0.0
  %v7269 = vadd.f32 %v7253, 0.0
  %v7270 = vadd.f32 %v7254, 0.0
  %v7271 = vadd.f32 %v7255, 0.0
  %v7272 = vadd.f32 %v7256, 0.0
  %v7273 = vsub.f32 %v5910, %v7097
  %v7274 = vsub.f32 %v5911, %v7098
  %v7275 = vsub.f32 %v5912, %v7099
  %v7276 = vsub.f32 %v5913, %v7100
  %v7277 = vsub.f32 %v5914, %v7101
  %v7278 = vsub.f32 %v5915, %v7102
  %v7279 = vsub.f32 %v5916, %v7103
  %v7280 = vsub.f32 %v5917, %v7104
  %v7281 = vsub.f32 %v5918, %v7105
  %v7282 = vsub.f32 %v5919, %v7106
  %v7283 = vsub.f32 %v5920, %v7107
  %v7284 = vsub.f32 %v5921, %v7108
  %v7285 = vsub.f32 %v5922, %v7109
  %v7286 = vsub.f32 %v5923, %v7110
  %v7287 = vsub.f32 %v5924, %v7111
  %v7288 = vsub.f32 %v5925, %v7112
  %v7289 = vmul.f32 %v7273, 1.442695
  %v7290 = vpow.pop %v7289
  %v7291 = vmul.f32 %v7274, 1.442695
  %v7292 = vpow.pop %v7291
  %v7293 = vmul.f32 %v7275, 1.442695
  %v7294 = vpow.pop %v7293
  %v7295 = vmul.f32 %v7276, 1.442695
  %v7296 = vpow.pop %v7295
  %v7297 = vmul.f32 %v7277, 1.442695
  %v7298 = vpow.pop %v7297
  %v7299 = vmul.f32 %v7278, 1.442695
  %v7300 = vpow.pop %v7299
  %v7301 = vmul.f32 %v7279, 1.442695
  %v7302 = vpow.pop %v7301
  %v7303 = vmul.f32 %v7280, 1.442695
  %v7304 = vpow.pop %v7303
  %v7305 = vmul.f32 %v7281, 1.442695
  %v7306 = vpow.pop %v7305
  %v7307 = vmul.f32 %v7282, 1.442695
  %v7308 = vpow.pop %v7307
  %v7309 = vmul.f32 %v7283, 1.442695
  %v7310 = vpow.pop %v7309
  %v7311 = vmul.f32 %v7284, 1.442695
  %v7312 = vpow.pop %v7311
  %v7313 = vmul.f32 %v7285, 1.442695
  %v7314 = vpow.pop %v7313
  %v7315 = vmul.f32 %v7286, 1.442695
  %v7316 = vpow.pop %v7315
  %v7317 = vmul.f32 %v7287, 1.442695
  %v7318 = vpow.pop %v7317
  %v7319 = vmul.f32 %v7288, 1.442695
  %v7320 = vpow.pop %v7319
  %v7321 = vadd.f32 %v7161, %v7290
  %v7322 = vadd.f32 %v7162, %v7292
  %v7323 = vadd.f32 %v7163, %v7294
  %v7324 = vadd.f32 %v7164, %v7296
  %v7325 = vadd.f32 %v7165, %v7298
  %v7326 = vadd.f32 %v7166, %v7300
  %v7327 = vadd.f32 %v7167, %v7302
  %v7328 = vadd.f32 %v7168, %v7304
  %v7329 = vadd.f32 %v7169, %v7306
  %v7330 = vadd.f32 %v7170, %v7308
  %v7331 = vadd.f32 %v7171, %v7310
  %v7332 = vadd.f32 %v7172, %v7312
  %v7333 = vadd.f32 %v7173, %v7314
  %v7334 = vadd.f32 %v7174, %v7316
  %v7335 = vadd.f32 %v7175, %v7318
  %v7336 = vadd.f32 %v7176, %v7320
  %7353 = vrot.lane.b32.xlu0 %v5974, 64
  %v7354 = vpop.permute.xlu0 %7353
  %7355 = vrot.lane.b32.xlu0 %v5975, 64
  %v7356 = vpop.permute.xlu0 %7355
  %7357 = vrot.lane.b32.xlu0 %v5976, 64
  %v7358 = vpop.permute.xlu0 %7357
  %7359 = vrot.lane.b32.xlu0 %v5977, 64
  %v7360 = vpop.permute.xlu0 %7359
  %7361 = vrot.lane.b32.xlu0 %v5978, 64
  %v7362 = vpop.permute.xlu0 %7361
  %7363 = vrot.lane.b32.xlu0 %v5979, 64
  %v7364 = vpop.permute.xlu0 %7363
  %7365 = vrot.lane.b32.xlu0 %v5980, 64
  %v7366 = vpop.permute.xlu0 %7365
  %7367 = vrot.lane.b32.xlu0 %v5981, 64
  %v7368 = vpop.permute.xlu0 %7367
  %7369 = vrot.lane.b32.xlu0 %v5982, 64
  %v7370 = vpop.permute.xlu0 %7369
  %7371 = vrot.lane.b32.xlu0 %v5983, 64
  %v7372 = vpop.permute.xlu0 %7371
  %7373 = vrot.lane.b32.xlu0 %v5984, 64
  %v7374 = vpop.permute.xlu0 %7373
  %7375 = vrot.lane.b32.xlu0 %v5985, 64
  %v7376 = vpop.permute.xlu0 %7375
  %7377 = vrot.lane.b32.xlu0 %v5986, 64
  %v7378 = vpop.permute.xlu0 %7377
  %7379 = vrot.lane.b32.xlu0 %v5987, 64
  %v7380 = vpop.permute.xlu0 %7379
  %7381 = vrot.lane.b32.xlu0 %v5988, 64
  %v7382 = vpop.permute.xlu0 %7381
  %7383 = vrot.lane.b32.xlu0 %v5989, 64
  %v7384 = vpop.permute.xlu0 %7383
  %v7401 = vmul.f32 %v7290, %v7354
  %v7402 = vmul.f32 %v7292, %v7356
  %v7403 = vmul.f32 %v7294, %v7358
  %v7404 = vmul.f32 %v7296, %v7360
  %v7405 = vmul.f32 %v7298, %v7362
  %v7406 = vmul.f32 %v7300, %v7364
  %v7407 = vmul.f32 %v7302, %v7366
  %v7408 = vmul.f32 %v7304, %v7368
  %v7409 = vmul.f32 %v7306, %v7370
  %v7410 = vmul.f32 %v7308, %v7372
  %v7411 = vmul.f32 %v7310, %v7374
  %v7412 = vmul.f32 %v7312, %v7376
  %v7413 = vmul.f32 %v7314, %v7378
  %v7414 = vmul.f32 %v7316, %v7380
  %v7415 = vmul.f32 %v7318, %v7382
  %v7416 = vmul.f32 %v7320, %v7384
  %v7417 = vadd.f32 %v7257, %v7401
  %v7418 = vadd.f32 %v7258, %v7402
  %v7419 = vadd.f32 %v7259, %v7403
  %v7420 = vadd.f32 %v7260, %v7404
  %v7421 = vadd.f32 %v7261, %v7405
  %v7422 = vadd.f32 %v7262, %v7406
  %v7423 = vadd.f32 %v7263, %v7407
  %v7424 = vadd.f32 %v7264, %v7408
  %v7425 = vadd.f32 %v7265, %v7409
  %v7426 = vadd.f32 %v7266, %v7410
  %v7427 = vadd.f32 %v7267, %v7411
  %v7428 = vadd.f32 %v7268, %v7412
  %v7429 = vadd.f32 %v7269, %v7413
  %v7430 = vadd.f32 %v7270, %v7414
  %v7431 = vadd.f32 %v7271, %v7415
  %v7432 = vadd.f32 %v7272, %v7416
  %v7433 = vsub.f32 %v6263, %v7097
  %v7434 = vsub.f32 %v6264, %v7098
  %v7435 = vsub.f32 %v6265, %v7099
  %v7436 = vsub.f32 %v6266, %v7100
  %v7437 = vsub.f32 %v6267, %v7101
  %v7438 = vsub.f32 %v6268, %v7102
  %v7439 = vsub.f32 %v6269, %v7103
  %v7440 = vsub.f32 %v6270, %v7104
  %v7441 = vsub.f32 %v6271, %v7105
  %v7442 = vsub.f32 %v6272, %v7106
  %v7443 = vsub.f32 %v6273, %v7107
  %v7444 = vsub.f32 %v6274, %v7108
  %v7445 = vsub.f32 %v6275, %v7109
  %v7446 = vsub.f32 %v6276, %v7110
  %v7447 = vsub.f32 %v6277, %v7111
  %v7448 = vsub.f32 %v6278, %v7112
  %v7449 = vmul.f32 %v7433, 1.442695
  %v7450 = vpow.pop %v7449
  %v7451 = vmul.f32 %v7434, 1.442695
  %v7452 = vpow.pop %v7451
  %v7453 = vmul.f32 %v7435, 1.442695
  %v7454 = vpow.pop %v7453
  %v7455 = vmul.f32 %v7436, 1.442695
  %v7456 = vpow.pop %v7455
  %v7457 = vmul.f32 %v7437, 1.442695
  %v7458 = vpow.pop %v7457
  %v7459 = vmul.f32 %v7438, 1.442695
  %v7460 = vpow.pop %v7459
  %v7461 = vmul.f32 %v7439, 1.442695
  %v7462 = vpow.pop %v7461
  %v7463 = vmul.f32 %v7440, 1.442695
  %v7464 = vpow.pop %v7463
  %v7465 = vmul.f32 %v7441, 1.442695
  %v7466 = vpow.pop %v7465
  %v7467 = vmul.f32 %v7442, 1.442695
  %v7468 = vpow.pop %v7467
  %v7469 = vmul.f32 %v7443, 1.442695
  %v7470 = vpow.pop %v7469
  %v7471 = vmul.f32 %v7444, 1.442695
  %v7472 = vpow.pop %v7471
  %v7473 = vmul.f32 %v7445, 1.442695
  %v7474 = vpow.pop %v7473
  %v7475 = vmul.f32 %v7446, 1.442695
  %v7476 = vpow.pop %v7475
  %v7477 = vmul.f32 %v7447, 1.442695
  %v7478 = vpow.pop %v7477
  %v7479 = vmul.f32 %v7448, 1.442695
  %v7480 = vpow.pop %v7479
  %v7481 = vadd.f32 %v7321, %v7450
  %v7482 = vadd.f32 %v7322, %v7452
  %v7483 = vadd.f32 %v7323, %v7454
  %v7484 = vadd.f32 %v7324, %v7456
  %v7485 = vadd.f32 %v7325, %v7458
  %v7486 = vadd.f32 %v7326, %v7460
  %v7487 = vadd.f32 %v7327, %v7462
  %v7488 = vadd.f32 %v7328, %v7464
  %v7489 = vadd.f32 %v7329, %v7466
  %v7490 = vadd.f32 %v7330, %v7468
  %v7491 = vadd.f32 %v7331, %v7470
  %v7492 = vadd.f32 %v7332, %v7472
  %v7493 = vadd.f32 %v7333, %v7474
  %v7494 = vadd.f32 %v7334, %v7476
  %v7495 = vadd.f32 %v7335, %v7478
  %v7496 = vadd.f32 %v7336, %v7480
  %7513 = vrot.lane.b32.xlu0 %v6327, 64
  %v7514 = vpop.permute.xlu0 %7513
  %7515 = vrot.lane.b32.xlu0 %v6328, 64
  %v7516 = vpop.permute.xlu0 %7515
  %7517 = vrot.lane.b32.xlu0 %v6329, 64
  %v7518 = vpop.permute.xlu0 %7517
  %7519 = vrot.lane.b32.xlu0 %v6330, 64
  %v7520 = vpop.permute.xlu0 %7519
  %7521 = vrot.lane.b32.xlu0 %v6331, 64
  %v7522 = vpop.permute.xlu0 %7521
  %7523 = vrot.lane.b32.xlu0 %v6332, 64
  %v7524 = vpop.permute.xlu0 %7523
  %7525 = vrot.lane.b32.xlu0 %v6333, 64
  %v7526 = vpop.permute.xlu0 %7525
  %7527 = vrot.lane.b32.xlu0 %v6334, 64
  %v7528 = vpop.permute.xlu0 %7527
  %7529 = vrot.lane.b32.xlu0 %v6335, 64
  %v7530 = vpop.permute.xlu0 %7529
  %7531 = vrot.lane.b32.xlu0 %v6336, 64
  %v7532 = vpop.permute.xlu0 %7531
  %7533 = vrot.lane.b32.xlu0 %v6337, 64
  %v7534 = vpop.permute.xlu0 %7533
  %7535 = vrot.lane.b32.xlu0 %v6338, 64
  %v7536 = vpop.permute.xlu0 %7535
  %7537 = vrot.lane.b32.xlu0 %v6339, 64
  %v7538 = vpop.permute.xlu0 %7537
  %7539 = vrot.lane.b32.xlu0 %v6340, 64
  %v7540 = vpop.permute.xlu0 %7539
  %7541 = vrot.lane.b32.xlu0 %v6341, 64
  %v7542 = vpop.permute.xlu0 %7541
  %7543 = vrot.lane.b32.xlu0 %v6342, 64
  %v7544 = vpop.permute.xlu0 %7543
  %v7561 = vmul.f32 %v7450, %v7514
  %v7562 = vmul.f32 %v7452, %v7516
  %v7563 = vmul.f32 %v7454, %v7518
  %v7564 = vmul.f32 %v7456, %v7520
  %v7565 = vmul.f32 %v7458, %v7522
  %v7566 = vmul.f32 %v7460, %v7524
  %v7567 = vmul.f32 %v7462, %v7526
  %v7568 = vmul.f32 %v7464, %v7528
  %v7569 = vmul.f32 %v7466, %v7530
  %v7570 = vmul.f32 %v7468, %v7532
  %v7571 = vmul.f32 %v7470, %v7534
  %v7572 = vmul.f32 %v7472, %v7536
  %v7573 = vmul.f32 %v7474, %v7538
  %v7574 = vmul.f32 %v7476, %v7540
  %v7575 = vmul.f32 %v7478, %v7542
  %v7576 = vmul.f32 %v7480, %v7544
  %v7577 = vadd.f32 %v7417, %v7561
  %v7578 = vadd.f32 %v7418, %v7562
  %v7579 = vadd.f32 %v7419, %v7563
  %v7580 = vadd.f32 %v7420, %v7564
  %v7581 = vadd.f32 %v7421, %v7565
  %v7582 = vadd.f32 %v7422, %v7566
  %v7583 = vadd.f32 %v7423, %v7567
  %v7584 = vadd.f32 %v7424, %v7568
  %v7585 = vadd.f32 %v7425, %v7569
  %v7586 = vadd.f32 %v7426, %v7570
  %v7587 = vadd.f32 %v7427, %v7571
  %v7588 = vadd.f32 %v7428, %v7572
  %v7589 = vadd.f32 %v7429, %v7573
  %v7590 = vadd.f32 %v7430, %v7574
  %v7591 = vadd.f32 %v7431, %v7575
  %v7592 = vadd.f32 %v7432, %v7576
  %v7593 = vsub.f32 %v6616, %v7097
  %v7594 = vsub.f32 %v6617, %v7098
  %v7595 = vsub.f32 %v6618, %v7099
  %v7596 = vsub.f32 %v6619, %v7100
  %v7597 = vsub.f32 %v6620, %v7101
  %v7598 = vsub.f32 %v6621, %v7102
  %v7599 = vsub.f32 %v6622, %v7103
  %v7600 = vsub.f32 %v6623, %v7104
  %v7601 = vsub.f32 %v6624, %v7105
  %v7602 = vsub.f32 %v6625, %v7106
  %v7603 = vsub.f32 %v6626, %v7107
  %v7604 = vsub.f32 %v6627, %v7108
  %v7605 = vsub.f32 %v6628, %v7109
  %v7606 = vsub.f32 %v6629, %v7110
  %v7607 = vsub.f32 %v6630, %v7111
  %v7608 = vsub.f32 %v6631, %v7112
  %v7609 = vmul.f32 %v7593, 1.442695
  %v7610 = vpow.pop %v7609
  %v7611 = vmul.f32 %v7594, 1.442695
  %v7612 = vpow.pop %v7611
  %v7613 = vmul.f32 %v7595, 1.442695
  %v7614 = vpow.pop %v7613
  %v7615 = vmul.f32 %v7596, 1.442695
  %v7616 = vpow.pop %v7615
  %v7617 = vmul.f32 %v7597, 1.442695
  %v7618 = vpow.pop %v7617
  %v7619 = vmul.f32 %v7598, 1.442695
  %v7620 = vpow.pop %v7619
  %v7621 = vmul.f32 %v7599, 1.442695
  %v7622 = vpow.pop %v7621
  %v7623 = vmul.f32 %v7600, 1.442695
  %v7624 = vpow.pop %v7623
  %v7625 = vmul.f32 %v7601, 1.442695
  %v7626 = vpow.pop %v7625
  %v7627 = vmul.f32 %v7602, 1.442695
  %v7628 = vpow.pop %v7627
  %v7629 = vmul.f32 %v7603, 1.442695
  %v7630 = vpow.pop %v7629
  %v7631 = vmul.f32 %v7604, 1.442695
  %v7632 = vpow.pop %v7631
  %v7633 = vmul.f32 %v7605, 1.442695
  %v7634 = vpow.pop %v7633
  %v7635 = vmul.f32 %v7606, 1.442695
  %v7636 = vpow.pop %v7635
  %v7637 = vmul.f32 %v7607, 1.442695
  %v7638 = vpow.pop %v7637
  %v7639 = vmul.f32 %v7608, 1.442695
  %v7640 = vpow.pop %v7639
  %v7641 = vadd.f32 %v7481, %v7610
  %v7642 = vadd.f32 %v7482, %v7612
  %v7643 = vadd.f32 %v7483, %v7614
  %v7644 = vadd.f32 %v7484, %v7616
  %v7645 = vadd.f32 %v7485, %v7618
  %v7646 = vadd.f32 %v7486, %v7620
  %v7647 = vadd.f32 %v7487, %v7622
  %v7648 = vadd.f32 %v7488, %v7624
  %v7649 = vadd.f32 %v7489, %v7626
  %v7650 = vadd.f32 %v7490, %v7628
  %v7651 = vadd.f32 %v7491, %v7630
  %v7652 = vadd.f32 %v7492, %v7632
  %v7653 = vadd.f32 %v7493, %v7634
  %v7654 = vadd.f32 %v7494, %v7636
  %v7655 = vadd.f32 %v7495, %v7638
  %v7656 = vadd.f32 %v7496, %v7640
  %7673 = vrot.lane.b32.xlu0 %v6680, 64
  %v7674 = vpop.permute.xlu0 %7673
  %7675 = vrot.lane.b32.xlu0 %v6681, 64
  %v7676 = vpop.permute.xlu0 %7675
  %7677 = vrot.lane.b32.xlu0 %v6682, 64
  %v7678 = vpop.permute.xlu0 %7677
  %7679 = vrot.lane.b32.xlu0 %v6683, 64
  %v7680 = vpop.permute.xlu0 %7679
  %7681 = vrot.lane.b32.xlu0 %v6684, 64
  %v7682 = vpop.permute.xlu0 %7681
  %7683 = vrot.lane.b32.xlu0 %v6685, 64
  %v7684 = vpop.permute.xlu0 %7683
  %7685 = vrot.lane.b32.xlu0 %v6686, 64
  %v7686 = vpop.permute.xlu0 %7685
  %7687 = vrot.lane.b32.xlu0 %v6687, 64
  %v7688 = vpop.permute.xlu0 %7687
  %7689 = vrot.lane.b32.xlu0 %v6688, 64
  %v7690 = vpop.permute.xlu0 %7689
  %7691 = vrot.lane.b32.xlu0 %v6689, 64
  %v7692 = vpop.permute.xlu0 %7691
  %7693 = vrot.lane.b32.xlu0 %v6690, 64
  %v7694 = vpop.permute.xlu0 %7693
  %7695 = vrot.lane.b32.xlu0 %v6691, 64
  %v7696 = vpop.permute.xlu0 %7695
  %7697 = vrot.lane.b32.xlu0 %v6692, 64
  %v7698 = vpop.permute.xlu0 %7697
  %7699 = vrot.lane.b32.xlu0 %v6693, 64
  %v7700 = vpop.permute.xlu0 %7699
  %7701 = vrot.lane.b32.xlu0 %v6694, 64
  %v7702 = vpop.permute.xlu0 %7701
  %7703 = vrot.lane.b32.xlu0 %v6695, 64
  %v7704 = vpop.permute.xlu0 %7703
  %v7721 = vmul.f32 %v7610, %v7674
  %v7722 = vmul.f32 %v7612, %v7676
  %v7723 = vmul.f32 %v7614, %v7678
  %v7724 = vmul.f32 %v7616, %v7680
  %v7725 = vmul.f32 %v7618, %v7682
  %v7726 = vmul.f32 %v7620, %v7684
  %v7727 = vmul.f32 %v7622, %v7686
  %v7728 = vmul.f32 %v7624, %v7688
  %v7729 = vmul.f32 %v7626, %v7690
  %v7730 = vmul.f32 %v7628, %v7692
  %v7731 = vmul.f32 %v7630, %v7694
  %v7732 = vmul.f32 %v7632, %v7696
  %v7733 = vmul.f32 %v7634, %v7698
  %v7734 = vmul.f32 %v7636, %v7700
  %v7735 = vmul.f32 %v7638, %v7702
  %v7736 = vmul.f32 %v7640, %v7704
  %v7737 = vadd.f32 %v7577, %v7721
  %v7738 = vadd.f32 %v7578, %v7722
  %v7739 = vadd.f32 %v7579, %v7723
  %v7740 = vadd.f32 %v7580, %v7724
  %v7741 = vadd.f32 %v7581, %v7725
  %v7742 = vadd.f32 %v7582, %v7726
  %v7743 = vadd.f32 %v7583, %v7727
  %v7744 = vadd.f32 %v7584, %v7728
  %v7745 = vadd.f32 %v7585, %v7729
  %v7746 = vadd.f32 %v7586, %v7730
  %v7747 = vadd.f32 %v7587, %v7731
  %v7748 = vadd.f32 %v7588, %v7732
  %v7749 = vadd.f32 %v7589, %v7733
  %v7750 = vadd.f32 %v7590, %v7734
  %v7751 = vadd.f32 %v7591, %v7735
  %v7752 = vadd.f32 %v7592, %v7736
  %v7753 = vsub.f32 %v6969, %v7097
  %v7754 = vsub.f32 %v6970, %v7098
  %v7755 = vsub.f32 %v6971, %v7099
  %v7756 = vsub.f32 %v6972, %v7100
  %v7757 = vsub.f32 %v6973, %v7101
  %v7758 = vsub.f32 %v6974, %v7102
  %v7759 = vsub.f32 %v6975, %v7103
  %v7760 = vsub.f32 %v6976, %v7104
  %v7761 = vsub.f32 %v6977, %v7105
  %v7762 = vsub.f32 %v6978, %v7106
  %v7763 = vsub.f32 %v6979, %v7107
  %v7764 = vsub.f32 %v6980, %v7108
  %v7765 = vsub.f32 %v6981, %v7109
  %v7766 = vsub.f32 %v6982, %v7110
  %v7767 = vsub.f32 %v6983, %v7111
  %v7768 = vsub.f32 %v6984, %v7112
  %v7769 = vmul.f32 %v7753, 1.442695
  %v7770 = vpow.pop %v7769
  %v7771 = vmul.f32 %v7754, 1.442695
  %v7772 = vpow.pop %v7771
  %v7773 = vmul.f32 %v7755, 1.442695
  %v7774 = vpow.pop %v7773
  %v7775 = vmul.f32 %v7756, 1.442695
  %v7776 = vpow.pop %v7775
  %v7777 = vmul.f32 %v7757, 1.442695
  %v7778 = vpow.pop %v7777
  %v7779 = vmul.f32 %v7758, 1.442695
  %v7780 = vpow.pop %v7779
  %v7781 = vmul.f32 %v7759, 1.442695
  %v7782 = vpow.pop %v7781
  %v7783 = vmul.f32 %v7760, 1.442695
  %v7784 = vpow.pop %v7783
  %v7785 = vmul.f32 %v7761, 1.442695
  %v7786 = vpow.pop %v7785
  %v7787 = vmul.f32 %v7762, 1.442695
  %v7788 = vpow.pop %v7787
  %v7789 = vmul.f32 %v7763, 1.442695
  %v7790 = vpow.pop %v7789
  %v7791 = vmul.f32 %v7764, 1.442695
  %v7792 = vpow.pop %v7791
  %v7793 = vmul.f32 %v7765, 1.442695
  %v7794 = vpow.pop %v7793
  %v7795 = vmul.f32 %v7766, 1.442695
  %v7796 = vpow.pop %v7795
  %v7797 = vmul.f32 %v7767, 1.442695
  %v7798 = vpow.pop %v7797
  %v7799 = vmul.f32 %v7768, 1.442695
  %v7800 = vpow.pop %v7799
  %v7801 = vadd.f32 %v7641, %v7770
  %v7802 = vadd.f32 %v7642, %v7772
  %v7803 = vadd.f32 %v7643, %v7774
  %v7804 = vadd.f32 %v7644, %v7776
  %v7805 = vadd.f32 %v7645, %v7778
  %v7806 = vadd.f32 %v7646, %v7780
  %v7807 = vadd.f32 %v7647, %v7782
  %v7808 = vadd.f32 %v7648, %v7784
  %v7809 = vadd.f32 %v7649, %v7786
  %v7810 = vadd.f32 %v7650, %v7788
  %v7811 = vadd.f32 %v7651, %v7790
  %v7812 = vadd.f32 %v7652, %v7792
  %v7813 = vadd.f32 %v7653, %v7794
  %v7814 = vadd.f32 %v7654, %v7796
  %v7815 = vadd.f32 %v7655, %v7798
  %v7816 = vadd.f32 %v7656, %v7800
  %7833 = vrot.lane.b32.xlu0 %v7033, 64
  %v7834 = vpop.permute.xlu0 %7833
  %7835 = vrot.lane.b32.xlu0 %v7034, 64
  %v7836 = vpop.permute.xlu0 %7835
  %7837 = vrot.lane.b32.xlu0 %v7035, 64
  %v7838 = vpop.permute.xlu0 %7837
  %7839 = vrot.lane.b32.xlu0 %v7036, 64
  %v7840 = vpop.permute.xlu0 %7839
  %7841 = vrot.lane.b32.xlu0 %v7037, 64
  %v7842 = vpop.permute.xlu0 %7841
  %7843 = vrot.lane.b32.xlu0 %v7038, 64
  %v7844 = vpop.permute.xlu0 %7843
  %7845 = vrot.lane.b32.xlu0 %v7039, 64
  %v7846 = vpop.permute.xlu0 %7845
  %7847 = vrot.lane.b32.xlu0 %v7040, 64
  %v7848 = vpop.permute.xlu0 %7847
  %7849 = vrot.lane.b32.xlu0 %v7041, 64
  %v7850 = vpop.permute.xlu0 %7849
  %7851 = vrot.lane.b32.xlu0 %v7042, 64
  %v7852 = vpop.permute.xlu0 %7851
  %7853 = vrot.lane.b32.xlu0 %v7043, 64
  %v7854 = vpop.permute.xlu0 %7853
  %7855 = vrot.lane.b32.xlu0 %v7044, 64
  %v7856 = vpop.permute.xlu0 %7855
  %7857 = vrot.lane.b32.xlu0 %v7045, 64
  %v7858 = vpop.permute.xlu0 %7857
  %7859 = vrot.lane.b32.xlu0 %v7046, 64
  %v7860 = vpop.permute.xlu0 %7859
  %7861 = vrot.lane.b32.xlu0 %v7047, 64
  %v7862 = vpop.permute.xlu0 %7861
  %7863 = vrot.lane.b32.xlu0 %v7048, 64
  %v7864 = vpop.permute.xlu0 %7863
  %v7881 = vmul.f32 %v7770, %v7834
  %v7882 = vmul.f32 %v7772, %v7836
  %v7883 = vmul.f32 %v7774, %v7838
  %v7884 = vmul.f32 %v7776, %v7840
  %v7885 = vmul.f32 %v7778, %v7842
  %v7886 = vmul.f32 %v7780, %v7844
  %v7887 = vmul.f32 %v7782, %v7846
  %v7888 = vmul.f32 %v7784, %v7848
  %v7889 = vmul.f32 %v7786, %v7850
  %v7890 = vmul.f32 %v7788, %v7852
  %v7891 = vmul.f32 %v7790, %v7854
  %v7892 = vmul.f32 %v7792, %v7856
  %v7893 = vmul.f32 %v7794, %v7858
  %v7894 = vmul.f32 %v7796, %v7860
  %v7895 = vmul.f32 %v7798, %v7862
  %v7896 = vmul.f32 %v7800, %v7864
  %v7897 = vadd.f32 %v7737, %v7881
  %v7898 = vadd.f32 %v7738, %v7882
  %v7899 = vadd.f32 %v7739, %v7883
  %v7900 = vadd.f32 %v7740, %v7884
  %v7901 = vadd.f32 %v7741, %v7885
  %v7902 = vadd.f32 %v7742, %v7886
  %v7903 = vadd.f32 %v7743, %v7887
  %v7904 = vadd.f32 %v7744, %v7888
  %v7905 = vadd.f32 %v7745, %v7889
  %v7906 = vadd.f32 %v7746, %v7890
  %v7907 = vadd.f32 %v7747, %v7891
  %v7908 = vadd.f32 %v7748, %v7892
  %v7909 = vadd.f32 %v7749, %v7893
  %v7910 = vadd.f32 %v7750, %v7894
  %v7911 = vadd.f32 %v7751, %v7895
  %v7912 = vadd.f32 %v7752, %v7896
  %v7913 = vrcp.pop %v7801
  %v7914 = vrcp.pop %v7802
  %v7915 = vrcp.pop %v7803
  %v7916 = vrcp.pop %v7804
  %v7917 = vrcp.pop %v7805
  %v7918 = vrcp.pop %v7806
  %v7919 = vrcp.pop %v7807
  %v7920 = vrcp.pop %v7808
  %v7921 = vrcp.pop %v7809
  %v7922 = vrcp.pop %v7810
  %v7923 = vrcp.pop %v7811
  %v7924 = vrcp.pop %v7812
  %v7925 = vrcp.pop %v7813
  %v7926 = vrcp.pop %v7814
  %v7927 = vrcp.pop %v7815
  %v7928 = vrcp.pop %v7816
  %v7929 = vmul.f32 %v7897, %v7913
  %v7930 = vmul.f32 %v7898, %v7914
  %v7931 = vmul.f32 %v7899, %v7915
  %v7932 = vmul.f32 %v7900, %v7916
  %v7933 = vmul.f32 %v7901, %v7917
  %v7934 = vmul.f32 %v7902, %v7918
  %v7935 = vmul.f32 %v7903, %v7919
  %v7936 = vmul.f32 %v7904, %v7920
  %v7937 = vmul.f32 %v7905, %v7921
  %v7938 = vmul.f32 %v7906, %v7922
  %v7939 = vmul.f32 %v7907, %v7923
  %v7940 = vmul.f32 %v7908, %v7924
  %v7941 = vmul.f32 %v7909, %v7925
  %v7942 = vmul.f32 %v7910, %v7926
  %v7943 = vmul.f32 %v7911, %v7927
  %v7944 = vmul.f32 %v7912, %v7928
  %v7945 = vmax.f32 %v5473, %v7929
  %v7946 = vmax.f32 %v5474, %v7930
  %v7947 = vmax.f32 %v5475, %v7931
  %v7948 = vmax.f32 %v5476, %v7932
  %v7949 = vmax.f32 %v5477, %v7933
  %v7950 = vmax.f32 %v5478, %v7934
  %v7951 = vmax.f32 %v5479, %v7935
  %v7952 = vmax.f32 %v5480, %v7936
  %v7953 = vmax.f32 %v5481, %v7937
  %v7954 = vmax.f32 %v5482, %v7938
  %v7955 = vmax.f32 %v5483, %v7939
  %v7956 = vmax.f32 %v5484, %v7940
  %v7957 = vmax.f32 %v5485, %v7941
  %v7958 = vmax.f32 %v5486, %v7942
  %v7959 = vmax.f32 %v5487, %v7943
  %v7960 = vmax.f32 %v5488, %v7944
  %v7961 = vadd.f32 %v7945, 0.0
  %v7962 = vadd.f32 %v7946, 0.0
  %v7963 = vadd.f32 %v7947, 0.0
  %v7964 = vadd.f32 %v7948, 0.0
  %v7965 = vadd.f32 %v7949, 0.0
  %v7966 = vadd.f32 %v7950, 0.0
  %v7967 = vadd.f32 %v7951, 0.0
  %v7968 = vadd.f32 %v7952, 0.0
  %v7969 = vadd.f32 %v7953, 0.0
  %v7970 = vadd.f32 %v7954, 0.0
  %v7971 = vadd.f32 %v7955, 0.0
  %v7972 = vadd.f32 %v7956, 0.0
  %v7973 = vadd.f32 %v7957, 0.0
  %v7974 = vadd.f32 %v7958, 0.0
  %v7975 = vadd.f32 %v7959, 0.0
  %v7976 = vadd.f32 %v7960, 0.0
  %v7977 = vpack.c.bf16 %v7946, %v7945
  %v7978 = vpack.c.bf16 %v7948, %v7947
  %v7979 = vpack.c.bf16 %v7950, %v7949
  %v7980 = vpack.c.bf16 %v7952, %v7951
  %v7981 = vpack.c.bf16 %v7954, %v7953
  %v7982 = vpack.c.bf16 %v7956, %v7955
  %v7983 = vpack.c.bf16 %v7958, %v7957
  %v7984 = vpack.c.bf16 %v7960, %v7959
  %s7985 = scalar_lea.vmem %s4, 32
  %v7986 = vld [vmem:[%s7985] sm:$0xff]
  %v7987 = vld [vmem:[%s7985 + $0x8] sm:$0xff]
  %v7988 = vld [vmem:[%s7985 + $0x10] sm:$0xff]
  %v7989 = vld [vmem:[%s7985 + $0x18] sm:$0xff]
  %v7994 = vunpack.c.l.b16 %v7986
  %v7995 = vunpack.c.h.b16 %v7986
  %v7996 = vunpack.c.l.b16 %v7987
  %v7997 = vunpack.c.h.b16 %v7987
  %v7998 = vunpack.c.l.b16 %v7988
  %v7999 = vunpack.c.h.b16 %v7988
  %v8000 = vunpack.c.l.b16 %v7989
  %v8001 = vunpack.c.h.b16 %v7989
  %v8002 = vpack.c.b16 %v7996, %v7994
  %v8003 = vpack.c.b16 %v7997, %v7995
  %v8004 = vpack.c.b16 %v8000, %v7998
  %v8005 = vpack.c.b16 %v8001, %v7999
  %v8011 = vsel %vm2895, %v7977, 0
  %v8014 = vsel %vm2895, %v7978, 0
  %v8017 = vsel %vm2895, %v7979, 0
  %v8020 = vsel %vm2895, %v7980, 0
  %v8023 = vsel %vm2895, %v7981, 0
  %v8026 = vsel %vm2895, %v7982, 0
  %v8029 = vsel %vm2895, %v7983, 0
  %v8032 = vsel %vm2895, %v7984, 0
  %8034 = vmatprep.subr.bf16.mxu0 %v8003
  %8035 = vmatpush1.bf16.msra.mxu0 %v8002
  %8036 = vmatprep.subr.bf16.mxu0 %v8005
  %8037 = vmatpush1.bf16.msra.mxu0 %v8004
  %8038 = vmatprep.subr.bf16.mxu0 0
  %8039 = vmatpush1.bf16.msra.mxu0 0
  %8040 = vmatprep.subr.bf16.mxu0 0
  %8041 = vmatpush1.bf16.msra.mxu0 0
  %8042 = vmatprep.subr.bf16.mxu0 0
  %8043 = vmatpush1.bf16.msra.mxu0 0
  %8044 = vmatprep.subr.bf16.mxu0 0
  %8045 = vmatpush1.bf16.msra.mxu0 0
  %8046 = vmatprep.subr.bf16.mxu0 0
  %8047 = vmatpush1.bf16.msra.mxu0 0
  %8048 = vmatprep.subr.bf16.mxu0 0
  %8049 = vmatpush1.bf16.msra.mxu0 0
  %8050 = vmatprep.subr.bf16.mxu0 0
  %8051 = vmatpush1.bf16.msra.mxu0 0
  %8052 = vmatprep.subr.bf16.mxu0 0
  %8053 = vmatpush1.bf16.msra.mxu0 0
  %8054 = vmatprep.subr.bf16.mxu0 0
  %8055 = vmatpush1.bf16.msra.mxu0 0
  %8056 = vmatprep.subr.bf16.mxu0 0
  %8057 = vmatpush1.bf16.msra.mxu0 0
  %8058 = vmatprep.subr.bf16.mxu0 0
  %8059 = vmatpush1.bf16.msra.mxu0 0
  %8060 = vmatprep.subr.bf16.mxu0 0
  %8061 = vmatpush1.bf16.msra.mxu0 0
  %8062 = vmatprep.subr.bf16.mxu0 0
  %8063 = vmatpush1.bf16.msra.mxu0 0
  %8064 = vmatprep.subr.bf16.mxu0 0
  %8065 = vmatpush1.bf16.msra.mxu0 0
  %8066 = vmatprep.mubr.bf16.mxu0 0
  %8067 = vmatmul.mubr.bf16.gmra.mrb[0].mxu0 %v8011
  %v8068 = vpop.f32.mrb[0].mxu0
  %v8069 = vadd.f32 0.0, %v8068
  %v8070 = vpop.f32.mrb[0].mxu0
  %v8071 = vadd.f32 0.0, %v8070
  %v8072 = vpop.f32.mrb[0].mxu0
  %v8073 = vadd.f32 0.0, %v8072
  %v8074 = vpop.f32.mrb[0].mxu0
  %v8075 = vadd.f32 0.0, %v8074
  %8076 = vmatprep.mubr.bf16.mxu0 0
  %8077 = vmatmul.mubr.bf16.gmra.mrb[0].mxu0 %v8014
  %v8078 = vpop.f32.mrb[0].mxu0
  %v8079 = vadd.f32 0.0, %v8078
  %v8080 = vpop.f32.mrb[0].mxu0
  %v8081 = vadd.f32 0.0, %v8080
  %v8082 = vpop.f32.mrb[0].mxu0
  %v8083 = vadd.f32 0.0, %v8082
  %v8084 = vpop.f32.mrb[0].mxu0
  %v8085 = vadd.f32 0.0, %v8084
  %8086 = vmatprep.mubr.bf16.mxu0 0
  %8087 = vmatmul.mubr.bf16.gmra.mrb[0].mxu0 %v8017
  %v8088 = vpop.f32.mrb[0].mxu0
  %v8089 = vadd.f32 0.0, %v8088
  %v8090 = vpop.f32.mrb[0].mxu0
  %v8091 = vadd.f32 0.0, %v8090
  %v8092 = vpop.f32.mrb[0].mxu0
  %v8093 = vadd.f32 0.0, %v8092
  %v8094 = vpop.f32.mrb[0].mxu0
  %v8095 = vadd.f32 0.0, %v8094
  %8096 = vmatprep.mubr.bf16.mxu0 0
  %8097 = vmatmul.mubr.bf16.gmra.mrb[0].mxu0 %v8020
  %v8098 = vpop.f32.mrb[0].mxu0
  %v8099 = vadd.f32 0.0, %v8098
  %v8100 = vpop.f32.mrb[0].mxu0
  %v8101 = vadd.f32 0.0, %v8100
  %v8102 = vpop.f32.mrb[0].mxu0
  %v8103 = vadd.f32 0.0, %v8102
  %v8104 = vpop.f32.mrb[0].mxu0
  %v8105 = vadd.f32 0.0, %v8104
  %8106 = vmatprep.mubr.bf16.mxu0 0
  %8107 = vmatmul.mubr.bf16.gmra.mrb[0].mxu0 %v8023
  %v8108 = vpop.f32.mrb[0].mxu0
  %v8109 = vadd.f32 0.0, %v8108
  %v8110 = vpop.f32.mrb[0].mxu0
  %v8111 = vadd.f32 0.0, %v8110
  %v8112 = vpop.f32.mrb[0].mxu0
  %v8113 = vadd.f32 0.0, %v8112
  %v8114 = vpop.f32.mrb[0].mxu0
  %v8115 = vadd.f32 0.0, %v8114
  %8116 = vmatprep.mubr.bf16.mxu0 0
  %8117 = vmatmul.mubr.bf16.gmra.mrb[0].mxu0 %v8026
  %v8118 = vpop.f32.mrb[0].mxu0
  %v8119 = vadd.f32 0.0, %v8118
  %v8120 = vpop.f32.mrb[0].mxu0
  %v8121 = vadd.f32 0.0, %v8120
  %v8122 = vpop.f32.mrb[0].mxu0
  %v8123 = vadd.f32 0.0, %v8122
  %v8124 = vpop.f32.mrb[0].mxu0
  %v8125 = vadd.f32 0.0, %v8124
  %8126 = vmatprep.mubr.bf16.mxu0 0
  %8127 = vmatmul.mubr.bf16.gmra.mrb[0].mxu0 %v8029
  %v8128 = vpop.f32.mrb[0].mxu0
  %v8129 = vadd.f32 0.0, %v8128
  %v8130 = vpop.f32.mrb[0].mxu0
  %v8131 = vadd.f32 0.0, %v8130
  %v8132 = vpop.f32.mrb[0].mxu0
  %v8133 = vadd.f32 0.0, %v8132
  %v8134 = vpop.f32.mrb[0].mxu0
  %v8135 = vadd.f32 0.0, %v8134
  %8136 = vmatprep.mubr.bf16.mxu0 0
  %8137 = vmatmul.mubr.bf16.gmra.mrb[0].mxu0 %v8032
  %v8138 = vpop.f32.mrb[0].mxu0
  %v8139 = vadd.f32 0.0, %v8138
  %v8140 = vpop.f32.mrb[0].mxu0
  %v8141 = vadd.f32 0.0, %v8140
  %v8142 = vpop.f32.mrb[0].mxu0
  %v8143 = vadd.f32 0.0, %v8142
  %v8144 = vpop.f32.mrb[0].mxu0
  %v8145 = vadd.f32 0.0, %v8144
  %8146 = vdwg.mxu0
  %v8147 = vadd.f32 %v8069, %v2785
  %v8148 = vadd.f32 %v8073, %v2789
  %v8149 = vadd.f32 %v8079, %v2795
  %v8150 = vadd.f32 %v8083, %v2799
  %v8151 = vadd.f32 %v8089, %v2805
  %v8152 = vadd.f32 %v8093, %v2809
  %v8153 = vadd.f32 %v8099, %v2815
  %v8154 = vadd.f32 %v8103, %v2819
  %v8155 = vadd.f32 %v8109, %v2825
  %v8156 = vadd.f32 %v8113, %v2829
  %v8157 = vadd.f32 %v8119, %v2835
  %v8158 = vadd.f32 %v8123, %v2839
  %v8159 = vadd.f32 %v8129, %v2845
  %v8160 = vadd.f32 %v8133, %v2849
  %v8161 = vadd.f32 %v8139, %v2855
  %v8162 = vadd.f32 %v8143, %v2859
  %v8163 = vld [vmem:[%s6 + $0x2] sm:$0x1]
  %v8164 = vpack.c.bf16 %v8148, %v8147
  %v8165 = vpack.c.bf16 %v8150, %v8149
  %v8166 = vpack.c.bf16 %v8152, %v8151
  %v8167 = vpack.c.bf16 %v8154, %v8153
  %v8168 = vpack.c.bf16 %v8156, %v8155
  %v8169 = vpack.c.bf16 %v8158, %v8157
  %v8170 = vpack.c.bf16 %v8160, %v8159
  %v8171 = vpack.c.bf16 %v8162, %v8161
  %8188 = vrot.lane.b32.xlu0 %v8147, 96
  %v8189 = vpop.permute.xlu0 %8188
  %8190 = vrot.lane.b32.xlu0 %v8148, 96
  %v8191 = vpop.permute.xlu0 %8190
  %8192 = vrot.lane.b32.xlu0 %v8149, 96
  %v8193 = vpop.permute.xlu0 %8192
  %8194 = vrot.lane.b32.xlu0 %v8150, 96
  %v8195 = vpop.permute.xlu0 %8194
  %8196 = vrot.lane.b32.xlu0 %v8151, 96
  %v8197 = vpop.permute.xlu0 %8196
  %8198 = vrot.lane.b32.xlu0 %v8152, 96
  %v8199 = vpop.permute.xlu0 %8198
  %8200 = vrot.lane.b32.xlu0 %v8153, 96
  %v8201 = vpop.permute.xlu0 %8200
  %8202 = vrot.lane.b32.xlu0 %v8154, 96
  %v8203 = vpop.permute.xlu0 %8202
  %8204 = vrot.lane.b32.xlu0 %v8155, 96
  %v8205 = vpop.permute.xlu0 %8204
  %8206 = vrot.lane.b32.xlu0 %v8156, 96
  %v8207 = vpop.permute.xlu0 %8206
  %8208 = vrot.lane.b32.xlu0 %v8157, 96
  %v8209 = vpop.permute.xlu0 %8208
  %8210 = vrot.lane.b32.xlu0 %v8158, 96
  %v8211 = vpop.permute.xlu0 %8210
  %8212 = vrot.lane.b32.xlu0 %v8159, 96
  %v8213 = vpop.permute.xlu0 %8212
  %8214 = vrot.lane.b32.xlu0 %v8160, 96
  %v8215 = vpop.permute.xlu0 %8214
  %8216 = vrot.lane.b32.xlu0 %v8161, 96
  %v8217 = vpop.permute.xlu0 %8216
  %8218 = vrot.lane.b32.xlu0 %v8162, 96
  %v8219 = vpop.permute.xlu0 %8218
  %v8236 = vsub.f32 %v8147, %v8189
  %v8237 = vsub.f32 %v8148, %v8191
  %v8238 = vsub.f32 %v8149, %v8193
  %v8239 = vsub.f32 %v8150, %v8195
  %v8240 = vsub.f32 %v8151, %v8197
  %v8241 = vsub.f32 %v8152, %v8199
  %v8242 = vsub.f32 %v8153, %v8201
  %v8243 = vsub.f32 %v8154, %v8203
  %v8244 = vsub.f32 %v8155, %v8205
  %v8245 = vsub.f32 %v8156, %v8207
  %v8246 = vsub.f32 %v8157, %v8209
  %v8247 = vsub.f32 %v8158, %v8211
  %v8248 = vsub.f32 %v8159, %v8213
  %v8249 = vsub.f32 %v8160, %v8215
  %v8250 = vsub.f32 %v8161, %v8217
  %v8251 = vsub.f32 %v8162, %v8219
  %v8252 = vlaneseq
  %v8253 = vshrl.u32 %v8252, 7
  %v8254 = vsub.s32 0, %v8253
  %v8255 = vrot.slane %v8163, %v8254
  %v8256 = vadd.f32 %v8236, %v8255
  %v8257 = vadd.f32 %v8237, %v8255
  %v8258 = vadd.f32 %v8238, %v8255
  %v8259 = vadd.f32 %v8239, %v8255
  %v8260 = vadd.f32 %v8240, %v8255
  %v8261 = vadd.f32 %v8241, %v8255
  %v8262 = vadd.f32 %v8242, %v8255
  %v8263 = vadd.f32 %v8243, %v8255
  %v8264 = vadd.f32 %v8244, %v8255
  %v8265 = vadd.f32 %v8245, %v8255
  %v8266 = vadd.f32 %v8246, %v8255
  %v8267 = vadd.f32 %v8247, %v8255
  %v8268 = vadd.f32 %v8248, %v8255
  %v8269 = vadd.f32 %v8249, %v8255
  %v8270 = vadd.f32 %v8250, %v8255
  %v8271 = vadd.f32 %v8251, %v8255
  %8273 = vrot.lane.b32.xlu0 %v8255, 64
  %v8274 = vpop.permute.xlu0 %8273
  %v8276 = vadd.f32 %v8147, %v8274
  %v8277 = vadd.f32 %v8148, %v8274
  %v8278 = vadd.f32 %v8149, %v8274
  %v8279 = vadd.f32 %v8150, %v8274
  %v8280 = vadd.f32 %v8151, %v8274
  %v8281 = vadd.f32 %v8152, %v8274
  %v8282 = vadd.f32 %v8153, %v8274
  %v8283 = vadd.f32 %v8154, %v8274
  %v8284 = vadd.f32 %v8155, %v8274
  %v8285 = vadd.f32 %v8156, %v8274
  %v8286 = vadd.f32 %v8157, %v8274
  %v8287 = vadd.f32 %v8158, %v8274
  %v8288 = vadd.f32 %v8159, %v8274
  %v8289 = vadd.f32 %v8160, %v8274
  %v8290 = vadd.f32 %v8161, %v8274
  %v8291 = vadd.f32 %v8162, %v8274
  %8292 = vmatprep.subr.bf16.mxu0 0
  %8293 = vmatpush1.bf16.msra.mxu0 %v8164
  %8294 = vmatprep.subr.bf16.mxu0 0
  %8295 = vmatpush1.bf16.msra.mxu0 %v8165
  %8296 = vmatprep.subr.bf16.mxu0 0
  %8297 = vmatpush1.bf16.msra.mxu0 %v8166
  %8298 = vmatprep.subr.bf16.mxu0 0
  %8299 = vmatpush1.bf16.msra.mxu0 %v8167
  %8300 = vmatprep.subr.bf16.mxu0 0
  %8301 = vmatpush1.bf16.msra.mxu0 %v8168
  %8302 = vmatprep.subr.bf16.mxu0 0
  %8303 = vmatpush1.bf16.msra.mxu0 %v8169
  %8304 = vmatprep.subr.bf16.mxu0 0
  %8305 = vmatpush1.bf16.msra.mxu0 %v8170
  %8306 = vmatprep.subr.bf16.mxu0 0
  %8307 = vmatpush1.bf16.msra.mxu0 %v8171
  %8308 = vmatprep.subr.bf16.mxu0 0
  %8309 = vmatpush1.bf16.msra.mxu0 0
  %8310 = vmatprep.subr.bf16.mxu0 0
  %8311 = vmatpush1.bf16.msra.mxu0 0
  %8312 = vmatprep.subr.bf16.mxu0 0
  %8313 = vmatpush1.bf16.msra.mxu0 0
  %8314 = vmatprep.subr.bf16.mxu0 0
  %8315 = vmatpush1.bf16.msra.mxu0 0
  %8316 = vmatprep.subr.bf16.mxu0 0
  %8317 = vmatpush1.bf16.msra.mxu0 0
  %8318 = vmatprep.subr.bf16.mxu0 0
  %8319 = vmatpush1.bf16.msra.mxu0 0
  %8320 = vmatprep.subr.bf16.mxu0 0
  %8321 = vmatpush1.bf16.msra.mxu0 0
  %8322 = vmatprep.subr.bf16.mxu0 0
  %8323 = vmatpush1.bf16.msra.mxu0 0
  %8324 = vmatprep.mubr.bf16.mxu0 0
  %8325 = vmatmul.mubr.bf16.gmra.mrb[0].mxu0 %v949
  %v8326 = vpop.f32.mrb[0].mxu0
  %v8327 = vadd.f32 0.0, %v8326
  %v8328 = vpop.f32.mrb[0].mxu0
  %v8329 = vpop.f32.mrb[0].mxu0
  %v8330 = vadd.f32 0.0, %v8329
  %v8331 = vpop.f32.mrb[0].mxu0
  %8332 = vmatprep.mubr.bf16.mxu0 0
  %8333 = vmatmul.mubr.bf16.gmra.mrb[0].mxu0 %v950
  %v8334 = vpop.f32.mrb[0].mxu0
  %v8335 = vadd.f32 0.0, %v8334
  %v8336 = vpop.f32.mrb[0].mxu0
  %v8337 = vpop.f32.mrb[0].mxu0
  %v8338 = vadd.f32 0.0, %v8337
  %v8339 = vpop.f32.mrb[0].mxu0
  %8340 = vmatprep.mubr.bf16.mxu0 0
  %8341 = vmatmul.mubr.bf16.gmra.mrb[0].mxu0 %v951
  %v8342 = vpop.f32.mrb[0].mxu0
  %v8343 = vadd.f32 0.0, %v8342
  %v8344 = vpop.f32.mrb[0].mxu0
  %v8345 = vpop.f32.mrb[0].mxu0
  %v8346 = vadd.f32 0.0, %v8345
  %v8347 = vpop.f32.mrb[0].mxu0
  %8348 = vmatprep.mubr.bf16.mxu0 0
  %8349 = vmatmul.mubr.bf16.gmra.mrb[0].mxu0 %v952
  %v8350 = vpop.f32.mrb[0].mxu0
  %v8351 = vadd.f32 0.0, %v8350
  %v8352 = vpop.f32.mrb[0].mxu0
  %v8353 = vpop.f32.mrb[0].mxu0
  %v8354 = vadd.f32 0.0, %v8353
  %v8355 = vpop.f32.mrb[0].mxu0
  %8356 = vmatprep.mubr.bf16.mxu0 0
  %8357 = vmatmul.mubr.bf16.gmra.mrb[0].mxu0 %v953
  %v8358 = vpop.f32.mrb[0].mxu0
  %v8359 = vadd.f32 0.0, %v8358
  %v8360 = vpop.f32.mrb[0].mxu0
  %v8361 = vpop.f32.mrb[0].mxu0
  %v8362 = vadd.f32 0.0, %v8361
  %v8363 = vpop.f32.mrb[0].mxu0
  %8364 = vmatprep.mubr.bf16.mxu0 0
  %8365 = vmatmul.mubr.bf16.gmra.mrb[0].mxu0 %v954
  %v8366 = vpop.f32.mrb[0].mxu0
  %v8367 = vadd.f32 0.0, %v8366
  %v8368 = vpop.f32.mrb[0].mxu0
  %v8369 = vpop.f32.mrb[0].mxu0
  %v8370 = vadd.f32 0.0, %v8369
  %v8371 = vpop.f32.mrb[0].mxu0
  %8372 = vmatprep.mubr.bf16.mxu0 0
  %8373 = vmatmul.mubr.bf16.gmra.mrb[0].mxu0 %v955
  %v8374 = vpop.f32.mrb[0].mxu0
  %v8375 = vadd.f32 0.0, %v8374
  %v8376 = vpop.f32.mrb[0].mxu0
  %v8377 = vpop.f32.mrb[0].mxu0
  %v8378 = vadd.f32 0.0, %v8377
  %v8379 = vpop.f32.mrb[0].mxu0
  %8380 = vmatprep.mubr.bf16.mxu0 0
  %8381 = vmatmul.mubr.bf16.gmra.mrb[0].mxu0 %v956
  %v8382 = vpop.f32.mrb[0].mxu0
  %v8383 = vadd.f32 0.0, %v8382
  %v8384 = vpop.f32.mrb[0].mxu0
  %v8385 = vpop.f32.mrb[0].mxu0
  %v8386 = vadd.f32 0.0, %v8385
  %v8387 = vpop.f32.mrb[0].mxu0
  %8388 = vdwg.mxu0
  %v8389 = vsub.f32 %v8147, %v8327
  %v8390 = vsub.f32 %v8148, %v8330
  %v8391 = vsub.f32 %v8149, %v8335
  %v8392 = vsub.f32 %v8150, %v8338
  %v8393 = vsub.f32 %v8151, %v8343
  %v8394 = vsub.f32 %v8152, %v8346
  %v8395 = vsub.f32 %v8153, %v8351
  %v8396 = vsub.f32 %v8154, %v8354
  %v8397 = vsub.f32 %v8155, %v8359
  %v8398 = vsub.f32 %v8156, %v8362
  %v8399 = vsub.f32 %v8157, %v8367
  %v8400 = vsub.f32 %v8158, %v8370
  %v8401 = vsub.f32 %v8159, %v8375
  %v8402 = vsub.f32 %v8160, %v8378
  %v8403 = vsub.f32 %v8161, %v8383
  %v8404 = vsub.f32 %v8162, %v8386
  %8405 = vrot.lane.b32.xlu0 %v8255, 96
  %v8406 = vpop.permute.xlu0 %8405
  %v8408 = vadd.f32 %v8389, %v8406
  %v8409 = vadd.f32 %v8390, %v8406
  %v8410 = vadd.f32 %v8391, %v8406
  %v8411 = vadd.f32 %v8392, %v8406
  %v8412 = vadd.f32 %v8393, %v8406
  %v8413 = vadd.f32 %v8394, %v8406
  %v8414 = vadd.f32 %v8395, %v8406
  %v8415 = vadd.f32 %v8396, %v8406
  %v8416 = vadd.f32 %v8397, %v8406
  %v8417 = vadd.f32 %v8398, %v8406
  %v8418 = vadd.f32 %v8399, %v8406
  %v8419 = vadd.f32 %v8400, %v8406
  %v8420 = vadd.f32 %v8401, %v8406
  %v8421 = vadd.f32 %v8402, %v8406
  %v8422 = vadd.f32 %v8403, %v8406
  %v8423 = vadd.f32 %v8404, %v8406
  %8440 = vrot.lane.b32.xlu0 %v8327, 96
  %v8441 = vpop.permute.xlu0 %8440
  %8442 = vrot.lane.b32.xlu0 %v8330, 96
  %v8443 = vpop.permute.xlu0 %8442
  %8444 = vrot.lane.b32.xlu0 %v8335, 96
  %v8445 = vpop.permute.xlu0 %8444
  %8446 = vrot.lane.b32.xlu0 %v8338, 96
  %v8447 = vpop.permute.xlu0 %8446
  %8448 = vrot.lane.b32.xlu0 %v8343, 96
  %v8449 = vpop.permute.xlu0 %8448
  %8450 = vrot.lane.b32.xlu0 %v8346, 96
  %v8451 = vpop.permute.xlu0 %8450
  %8452 = vrot.lane.b32.xlu0 %v8351, 96
  %v8453 = vpop.permute.xlu0 %8452
  %8454 = vrot.lane.b32.xlu0 %v8354, 96
  %v8455 = vpop.permute.xlu0 %8454
  %8456 = vrot.lane.b32.xlu0 %v8359, 96
  %v8457 = vpop.permute.xlu0 %8456
  %8458 = vrot.lane.b32.xlu0 %v8362, 96
  %v8459 = vpop.permute.xlu0 %8458
  %8460 = vrot.lane.b32.xlu0 %v8367, 96
  %v8461 = vpop.permute.xlu0 %8460
  %8462 = vrot.lane.b32.xlu0 %v8370, 96
  %v8463 = vpop.permute.xlu0 %8462
  %8464 = vrot.lane.b32.xlu0 %v8375, 96
  %v8465 = vpop.permute.xlu0 %8464
  %8466 = vrot.lane.b32.xlu0 %v8378, 96
  %v8467 = vpop.permute.xlu0 %8466
  %8468 = vrot.lane.b32.xlu0 %v8383, 96
  %v8469 = vpop.permute.xlu0 %8468
  %8470 = vrot.lane.b32.xlu0 %v8386, 96
  %v8471 = vpop.permute.xlu0 %8470
  %v8488 = vsub.f32 %v8147, %v8441
  %v8489 = vsub.f32 %v8148, %v8443
  %v8490 = vsub.f32 %v8149, %v8445
  %v8491 = vsub.f32 %v8150, %v8447
  %v8492 = vsub.f32 %v8151, %v8449
  %v8493 = vsub.f32 %v8152, %v8451
  %v8494 = vsub.f32 %v8153, %v8453
  %v8495 = vsub.f32 %v8154, %v8455
  %v8496 = vsub.f32 %v8155, %v8457
  %v8497 = vsub.f32 %v8156, %v8459
  %v8498 = vsub.f32 %v8157, %v8461
  %v8499 = vsub.f32 %v8158, %v8463
  %v8500 = vsub.f32 %v8159, %v8465
  %v8501 = vsub.f32 %v8160, %v8467
  %v8502 = vsub.f32 %v8161, %v8469
  %v8503 = vsub.f32 %v8162, %v8471
  %8520 = vrot.lane.b32.xlu0 %v8408, 32
  %v8521 = vpop.permute.xlu0 %8520
  %8522 = vrot.lane.b32.xlu0 %v8409, 32
  %v8523 = vpop.permute.xlu0 %8522
  %8524 = vrot.lane.b32.xlu0 %v8410, 32
  %v8525 = vpop.permute.xlu0 %8524
  %8526 = vrot.lane.b32.xlu0 %v8411, 32
  %v8527 = vpop.permute.xlu0 %8526
  %8528 = vrot.lane.b32.xlu0 %v8412, 32
  %v8529 = vpop.permute.xlu0 %8528
  %8530 = vrot.lane.b32.xlu0 %v8413, 32
  %v8531 = vpop.permute.xlu0 %8530
  %8532 = vrot.lane.b32.xlu0 %v8414, 32
  %v8533 = vpop.permute.xlu0 %8532
  %8534 = vrot.lane.b32.xlu0 %v8415, 32
  %v8535 = vpop.permute.xlu0 %8534
  %8536 = vrot.lane.b32.xlu0 %v8416, 32
  %v8537 = vpop.permute.xlu0 %8536
  %8538 = vrot.lane.b32.xlu0 %v8417, 32
  %v8539 = vpop.permute.xlu0 %8538
  %8540 = vrot.lane.b32.xlu0 %v8418, 32
  %v8541 = vpop.permute.xlu0 %8540
  %8542 = vrot.lane.b32.xlu0 %v8419, 32
  %v8543 = vpop.permute.xlu0 %8542
  %8544 = vrot.lane.b32.xlu0 %v8420, 32
  %v8545 = vpop.permute.xlu0 %8544
  %8546 = vrot.lane.b32.xlu0 %v8421, 32
  %v8547 = vpop.permute.xlu0 %8546
  %8548 = vrot.lane.b32.xlu0 %v8422, 32
  %v8549 = vpop.permute.xlu0 %8548
  %8550 = vrot.lane.b32.xlu0 %v8423, 32
  %v8551 = vpop.permute.xlu0 %8550
  %v8568 = vadd.f32 %v8488, %v8521
  %v8569 = vadd.f32 %v8489, %v8523
  %v8570 = vadd.f32 %v8490, %v8525
  %v8571 = vadd.f32 %v8491, %v8527
  %v8572 = vadd.f32 %v8492, %v8529
  %v8573 = vadd.f32 %v8493, %v8531
  %v8574 = vadd.f32 %v8494, %v8533
  %v8575 = vadd.f32 %v8495, %v8535
  %v8576 = vadd.f32 %v8496, %v8537
  %v8577 = vadd.f32 %v8497, %v8539
  %v8578 = vadd.f32 %v8498, %v8541
  %v8579 = vadd.f32 %v8499, %v8543
  %v8580 = vadd.f32 %v8500, %v8545
  %v8581 = vadd.f32 %v8501, %v8547
  %v8582 = vadd.f32 %v8502, %v8549
  %v8583 = vadd.f32 %v8503, %v8551
  %8584 = vrot.lane.b32.xlu0 %v8408, 96
  %v8585 = vpop.permute.xlu0 %8584
  %8586 = vrot.lane.b32.xlu0 %v8409, 96
  %v8587 = vpop.permute.xlu0 %8586
  %8588 = vrot.lane.b32.xlu0 %v8410, 96
  %v8589 = vpop.permute.xlu0 %8588
  %8590 = vrot.lane.b32.xlu0 %v8411, 96
  %v8591 = vpop.permute.xlu0 %8590
  %8592 = vrot.lane.b32.xlu0 %v8412, 96
  %v8593 = vpop.permute.xlu0 %8592
  %8594 = vrot.lane.b32.xlu0 %v8413, 96
  %v8595 = vpop.permute.xlu0 %8594
  %8596 = vrot.lane.b32.xlu0 %v8414, 96
  %v8597 = vpop.permute.xlu0 %8596
  %8598 = vrot.lane.b32.xlu0 %v8415, 96
  %v8599 = vpop.permute.xlu0 %8598
  %8600 = vrot.lane.b32.xlu0 %v8416, 96
  %v8601 = vpop.permute.xlu0 %8600
  %8602 = vrot.lane.b32.xlu0 %v8417, 96
  %v8603 = vpop.permute.xlu0 %8602
  %8604 = vrot.lane.b32.xlu0 %v8418, 96
  %v8605 = vpop.permute.xlu0 %8604
  %8606 = vrot.lane.b32.xlu0 %v8419, 96
  %v8607 = vpop.permute.xlu0 %8606
  %8608 = vrot.lane.b32.xlu0 %v8420, 96
  %v8609 = vpop.permute.xlu0 %8608
  %8610 = vrot.lane.b32.xlu0 %v8421, 96
  %v8611 = vpop.permute.xlu0 %8610
  %8612 = vrot.lane.b32.xlu0 %v8422, 96
  %v8613 = vpop.permute.xlu0 %8612
  %8614 = vrot.lane.b32.xlu0 %v8423, 96
  %v8615 = vpop.permute.xlu0 %8614
  %v8632 = vadd.f32 %v8327, %v8585
  %v8633 = vadd.f32 %v8330, %v8587
  %v8634 = vadd.f32 %v8335, %v8589
  %v8635 = vadd.f32 %v8338, %v8591
  %v8636 = vadd.f32 %v8343, %v8593
  %v8637 = vadd.f32 %v8346, %v8595
  %v8638 = vadd.f32 %v8351, %v8597
  %v8639 = vadd.f32 %v8354, %v8599
  %v8640 = vadd.f32 %v8359, %v8601
  %v8641 = vadd.f32 %v8362, %v8603
  %v8642 = vadd.f32 %v8367, %v8605
  %v8643 = vadd.f32 %v8370, %v8607
  %v8644 = vadd.f32 %v8375, %v8609
  %v8645 = vadd.f32 %v8378, %v8611
  %v8646 = vadd.f32 %v8383, %v8613
  %v8647 = vadd.f32 %v8386, %v8615
  %8648 = vmatprep.subr.bf16.mxu0 0
  %8649 = vmatpush1.bf16.msra.mxu0 %v8164
  %8650 = vmatprep.subr.bf16.mxu0 0
  %8651 = vmatpush1.bf16.msra.mxu0 %v8165
  %8652 = vmatprep.subr.bf16.mxu0 0
  %8653 = vmatpush1.bf16.msra.mxu0 %v8166
  %8654 = vmatprep.subr.bf16.mxu0 0
  %8655 = vmatpush1.bf16.msra.mxu0 %v8167
  %8656 = vmatprep.subr.bf16.mxu0 0
  %8657 = vmatpush1.bf16.msra.mxu0 %v8168
  %8658 = vmatprep.subr.bf16.mxu0 0
  %8659 = vmatpush1.bf16.msra.mxu0 %v8169
  %8660 = vmatprep.subr.bf16.mxu0 0
  %8661 = vmatpush1.bf16.msra.mxu0 %v8170
  %8662 = vmatprep.subr.bf16.mxu0 0
  %8663 = vmatpush1.bf16.msra.mxu0 %v8171
  %8664 = vmatprep.subr.bf16.mxu0 0
  %8665 = vmatpush1.bf16.msra.mxu0 0
  %8666 = vmatprep.subr.bf16.mxu0 0
  %8667 = vmatpush1.bf16.msra.mxu0 0
  %8668 = vmatprep.subr.bf16.mxu0 0
  %8669 = vmatpush1.bf16.msra.mxu0 0
  %8670 = vmatprep.subr.bf16.mxu0 0
  %8671 = vmatpush1.bf16.msra.mxu0 0
  %8672 = vmatprep.subr.bf16.mxu0 0
  %8673 = vmatpush1.bf16.msra.mxu0 0
  %8674 = vmatprep.subr.bf16.mxu0 0
  %8675 = vmatpush1.bf16.msra.mxu0 0
  %8676 = vmatprep.subr.bf16.mxu0 0
  %8677 = vmatpush1.bf16.msra.mxu0 0
  %8678 = vmatprep.subr.bf16.mxu0 0
  %8679 = vmatpush1.bf16.msra.mxu0 0
  %8680 = vmatprep.mubr.bf16.mxu0 0
  %8681 = vmatmul.mubr.bf16.gmra.mrb[0].mxu0 %v957
  %v8682 = vpop.f32.mrb[0].mxu0
  %v8683 = vadd.f32 0.0, %v8682
  %v8684 = vpop.f32.mrb[0].mxu0
  %v8685 = vpop.f32.mrb[0].mxu0
  %v8686 = vadd.f32 0.0, %v8685
  %v8687 = vpop.f32.mrb[0].mxu0
  %8688 = vmatprep.mubr.bf16.mxu0 0
  %8689 = vmatmul.mubr.bf16.gmra.mrb[0].mxu0 %v958
  %v8690 = vpop.f32.mrb[0].mxu0
  %v8691 = vadd.f32 0.0, %v8690
  %v8692 = vpop.f32.mrb[0].mxu0
  %v8693 = vpop.f32.mrb[0].mxu0
  %v8694 = vadd.f32 0.0, %v8693
  %v8695 = vpop.f32.mrb[0].mxu0
  %8696 = vmatprep.mubr.bf16.mxu0 0
  %8697 = vmatmul.mubr.bf16.gmra.mrb[0].mxu0 %v959
  %v8698 = vpop.f32.mrb[0].mxu0
  %v8699 = vadd.f32 0.0, %v8698
  %v8700 = vpop.f32.mrb[0].mxu0
  %v8701 = vpop.f32.mrb[0].mxu0
  %v8702 = vadd.f32 0.0, %v8701
  %v8703 = vpop.f32.mrb[0].mxu0
  %8704 = vmatprep.mubr.bf16.mxu0 0
  %8705 = vmatmul.mubr.bf16.gmra.mrb[0].mxu0 %v960
  %v8706 = vpop.f32.mrb[0].mxu0
  %v8707 = vadd.f32 0.0, %v8706
  %v8708 = vpop.f32.mrb[0].mxu0
  %v8709 = vpop.f32.mrb[0].mxu0
  %v8710 = vadd.f32 0.0, %v8709
  %v8711 = vpop.f32.mrb[0].mxu0
  %8712 = vmatprep.mubr.bf16.mxu0 0
  %8713 = vmatmul.mubr.bf16.gmra.mrb[0].mxu0 %v961
  %v8714 = vpop.f32.mrb[0].mxu0
  %v8715 = vadd.f32 0.0, %v8714
  %v8716 = vpop.f32.mrb[0].mxu0
  %v8717 = vpop.f32.mrb[0].mxu0
  %v8718 = vadd.f32 0.0, %v8717
  %v8719 = vpop.f32.mrb[0].mxu0
  %8720 = vmatprep.mubr.bf16.mxu0 0
  %8721 = vmatmul.mubr.bf16.gmra.mrb[0].mxu0 %v962
  %v8722 = vpop.f32.mrb[0].mxu0
  %v8723 = vadd.f32 0.0, %v8722
  %v8724 = vpop.f32.mrb[0].mxu0
  %v8725 = vpop.f32.mrb[0].mxu0
  %v8726 = vadd.f32 0.0, %v8725
  %v8727 = vpop.f32.mrb[0].mxu0
  %8728 = vmatprep.mubr.bf16.mxu0 0
  %8729 = vmatmul.mubr.bf16.gmra.mrb[0].mxu0 %v963
  %v8730 = vpop.f32.mrb[0].mxu0
  %v8731 = vadd.f32 0.0, %v8730
  %v8732 = vpop.f32.mrb[0].mxu0
  %v8733 = vpop.f32.mrb[0].mxu0
  %v8734 = vadd.f32 0.0, %v8733
  %v8735 = vpop.f32.mrb[0].mxu0
  %8736 = vmatprep.mubr.bf16.mxu0 0
  %8737 = vmatmul.mubr.bf16.gmra.mrb[0].mxu0 %v964
  %v8738 = vpop.f32.mrb[0].mxu0
  %v8739 = vadd.f32 0.0, %v8738
  %v8740 = vpop.f32.mrb[0].mxu0
  %v8741 = vpop.f32.mrb[0].mxu0
  %v8742 = vadd.f32 0.0, %v8741
  %v8743 = vpop.f32.mrb[0].mxu0
  %8744 = vdwg.mxu0
  %v8745 = vsub.f32 %v8147, %v8683
  %v8746 = vsub.f32 %v8148, %v8686
  %v8747 = vsub.f32 %v8149, %v8691
  %v8748 = vsub.f32 %v8150, %v8694
  %v8749 = vsub.f32 %v8151, %v8699
  %v8750 = vsub.f32 %v8152, %v8702
  %v8751 = vsub.f32 %v8153, %v8707
  %v8752 = vsub.f32 %v8154, %v8710
  %v8753 = vsub.f32 %v8155, %v8715
  %v8754 = vsub.f32 %v8156, %v8718
  %v8755 = vsub.f32 %v8157, %v8723
  %v8756 = vsub.f32 %v8158, %v8726
  %v8757 = vsub.f32 %v8159, %v8731
  %v8758 = vsub.f32 %v8160, %v8734
  %v8759 = vsub.f32 %v8161, %v8739
  %v8760 = vsub.f32 %v8162, %v8742
  %v8761 = vadd.f32 %v8745, %v8406
  %v8762 = vadd.f32 %v8746, %v8406
  %v8763 = vadd.f32 %v8747, %v8406
  %v8764 = vadd.f32 %v8748, %v8406
  %v8765 = vadd.f32 %v8749, %v8406
  %v8766 = vadd.f32 %v8750, %v8406
  %v8767 = vadd.f32 %v8751, %v8406
  %v8768 = vadd.f32 %v8752, %v8406
  %v8769 = vadd.f32 %v8753, %v8406
  %v8770 = vadd.f32 %v8754, %v8406
  %v8771 = vadd.f32 %v8755, %v8406
  %v8772 = vadd.f32 %v8756, %v8406
  %v8773 = vadd.f32 %v8757, %v8406
  %v8774 = vadd.f32 %v8758, %v8406
  %v8775 = vadd.f32 %v8759, %v8406
  %v8776 = vadd.f32 %v8760, %v8406
  %8793 = vrot.lane.b32.xlu0 %v8683, 96
  %v8794 = vpop.permute.xlu0 %8793
  %8795 = vrot.lane.b32.xlu0 %v8686, 96
  %v8796 = vpop.permute.xlu0 %8795
  %8797 = vrot.lane.b32.xlu0 %v8691, 96
  %v8798 = vpop.permute.xlu0 %8797
  %8799 = vrot.lane.b32.xlu0 %v8694, 96
  %v8800 = vpop.permute.xlu0 %8799
  %8801 = vrot.lane.b32.xlu0 %v8699, 96
  %v8802 = vpop.permute.xlu0 %8801
  %8803 = vrot.lane.b32.xlu0 %v8702, 96
  %v8804 = vpop.permute.xlu0 %8803
  %8805 = vrot.lane.b32.xlu0 %v8707, 96
  %v8806 = vpop.permute.xlu0 %8805
  %8807 = vrot.lane.b32.xlu0 %v8710, 96
  %v8808 = vpop.permute.xlu0 %8807
  %8809 = vrot.lane.b32.xlu0 %v8715, 96
  %v8810 = vpop.permute.xlu0 %8809
  %8811 = vrot.lane.b32.xlu0 %v8718, 96
  %v8812 = vpop.permute.xlu0 %8811
  %8813 = vrot.lane.b32.xlu0 %v8723, 96
  %v8814 = vpop.permute.xlu0 %8813
  %8815 = vrot.lane.b32.xlu0 %v8726, 96
  %v8816 = vpop.permute.xlu0 %8815
  %8817 = vrot.lane.b32.xlu0 %v8731, 96
  %v8818 = vpop.permute.xlu0 %8817
  %8819 = vrot.lane.b32.xlu0 %v8734, 96
  %v8820 = vpop.permute.xlu0 %8819
  %8821 = vrot.lane.b32.xlu0 %v8739, 96
  %v8822 = vpop.permute.xlu0 %8821
  %8823 = vrot.lane.b32.xlu0 %v8742, 96
  %v8824 = vpop.permute.xlu0 %8823
  %v8841 = vsub.f32 %v8147, %v8794
  %v8842 = vsub.f32 %v8148, %v8796
  %v8843 = vsub.f32 %v8149, %v8798
  %v8844 = vsub.f32 %v8150, %v8800
  %v8845 = vsub.f32 %v8151, %v8802
  %v8846 = vsub.f32 %v8152, %v8804
  %v8847 = vsub.f32 %v8153, %v8806
  %v8848 = vsub.f32 %v8154, %v8808
  %v8849 = vsub.f32 %v8155, %v8810
  %v8850 = vsub.f32 %v8156, %v8812
  %v8851 = vsub.f32 %v8157, %v8814
  %v8852 = vsub.f32 %v8158, %v8816
  %v8853 = vsub.f32 %v8159, %v8818
  %v8854 = vsub.f32 %v8160, %v8820
  %v8855 = vsub.f32 %v8161, %v8822
  %v8856 = vsub.f32 %v8162, %v8824
  %8873 = vrot.lane.b32.xlu0 %v8761, 32
  %v8874 = vpop.permute.xlu0 %8873
  %8875 = vrot.lane.b32.xlu0 %v8762, 32
  %v8876 = vpop.permute.xlu0 %8875
  %8877 = vrot.lane.b32.xlu0 %v8763, 32
  %v8878 = vpop.permute.xlu0 %8877
  %8879 = vrot.lane.b32.xlu0 %v8764, 32
  %v8880 = vpop.permute.xlu0 %8879
  %8881 = vrot.lane.b32.xlu0 %v8765, 32
  %v8882 = vpop.permute.xlu0 %8881
  %8883 = vrot.lane.b32.xlu0 %v8766, 32
  %v8884 = vpop.permute.xlu0 %8883
  %8885 = vrot.lane.b32.xlu0 %v8767, 32
  %v8886 = vpop.permute.xlu0 %8885
  %8887 = vrot.lane.b32.xlu0 %v8768, 32
  %v8888 = vpop.permute.xlu0 %8887
  %8889 = vrot.lane.b32.xlu0 %v8769, 32
  %v8890 = vpop.permute.xlu0 %8889
  %8891 = vrot.lane.b32.xlu0 %v8770, 32
  %v8892 = vpop.permute.xlu0 %8891
  %8893 = vrot.lane.b32.xlu0 %v8771, 32
  %v8894 = vpop.permute.xlu0 %8893
  %8895 = vrot.lane.b32.xlu0 %v8772, 32
  %v8896 = vpop.permute.xlu0 %8895
  %8897 = vrot.lane.b32.xlu0 %v8773, 32
  %v8898 = vpop.permute.xlu0 %8897
  %8899 = vrot.lane.b32.xlu0 %v8774, 32
  %v8900 = vpop.permute.xlu0 %8899
  %8901 = vrot.lane.b32.xlu0 %v8775, 32
  %v8902 = vpop.permute.xlu0 %8901
  %8903 = vrot.lane.b32.xlu0 %v8776, 32
  %v8904 = vpop.permute.xlu0 %8903
  %v8921 = vadd.f32 %v8841, %v8874
  %v8922 = vadd.f32 %v8842, %v8876
  %v8923 = vadd.f32 %v8843, %v8878
  %v8924 = vadd.f32 %v8844, %v8880
  %v8925 = vadd.f32 %v8845, %v8882
  %v8926 = vadd.f32 %v8846, %v8884
  %v8927 = vadd.f32 %v8847, %v8886
  %v8928 = vadd.f32 %v8848, %v8888
  %v8929 = vadd.f32 %v8849, %v8890
  %v8930 = vadd.f32 %v8850, %v8892
  %v8931 = vadd.f32 %v8851, %v8894
  %v8932 = vadd.f32 %v8852, %v8896
  %v8933 = vadd.f32 %v8853, %v8898
  %v8934 = vadd.f32 %v8854, %v8900
  %v8935 = vadd.f32 %v8855, %v8902
  %v8936 = vadd.f32 %v8856, %v8904
  %8937 = vrot.lane.b32.xlu0 %v8761, 96
  %v8938 = vpop.permute.xlu0 %8937
  %8939 = vrot.lane.b32.xlu0 %v8762, 96
  %v8940 = vpop.permute.xlu0 %8939
  %8941 = vrot.lane.b32.xlu0 %v8763, 96
  %v8942 = vpop.permute.xlu0 %8941
  %8943 = vrot.lane.b32.xlu0 %v8764, 96
  %v8944 = vpop.permute.xlu0 %8943
  %8945 = vrot.lane.b32.xlu0 %v8765, 96
  %v8946 = vpop.permute.xlu0 %8945
  %8947 = vrot.lane.b32.xlu0 %v8766, 96
  %v8948 = vpop.permute.xlu0 %8947
  %8949 = vrot.lane.b32.xlu0 %v8767, 96
  %v8950 = vpop.permute.xlu0 %8949
  %8951 = vrot.lane.b32.xlu0 %v8768, 96
  %v8952 = vpop.permute.xlu0 %8951
  %8953 = vrot.lane.b32.xlu0 %v8769, 96
  %v8954 = vpop.permute.xlu0 %8953
  %8955 = vrot.lane.b32.xlu0 %v8770, 96
  %v8956 = vpop.permute.xlu0 %8955
  %8957 = vrot.lane.b32.xlu0 %v8771, 96
  %v8958 = vpop.permute.xlu0 %8957
  %8959 = vrot.lane.b32.xlu0 %v8772, 96
  %v8960 = vpop.permute.xlu0 %8959
  %8961 = vrot.lane.b32.xlu0 %v8773, 96
  %v8962 = vpop.permute.xlu0 %8961
  %8963 = vrot.lane.b32.xlu0 %v8774, 96
  %v8964 = vpop.permute.xlu0 %8963
  %8965 = vrot.lane.b32.xlu0 %v8775, 96
  %v8966 = vpop.permute.xlu0 %8965
  %8967 = vrot.lane.b32.xlu0 %v8776, 96
  %v8968 = vpop.permute.xlu0 %8967
  %v8985 = vadd.f32 %v8683, %v8938
  %v8986 = vadd.f32 %v8686, %v8940
  %v8987 = vadd.f32 %v8691, %v8942
  %v8988 = vadd.f32 %v8694, %v8944
  %v8989 = vadd.f32 %v8699, %v8946
  %v8990 = vadd.f32 %v8702, %v8948
  %v8991 = vadd.f32 %v8707, %v8950
  %v8992 = vadd.f32 %v8710, %v8952
  %v8993 = vadd.f32 %v8715, %v8954
  %v8994 = vadd.f32 %v8718, %v8956
  %v8995 = vadd.f32 %v8723, %v8958
  %v8996 = vadd.f32 %v8726, %v8960
  %v8997 = vadd.f32 %v8731, %v8962
  %v8998 = vadd.f32 %v8734, %v8964
  %v8999 = vadd.f32 %v8739, %v8966
  %v9000 = vadd.f32 %v8742, %v8968
  %9001 = vmatprep.subr.bf16.mxu0 0
  %9002 = vmatpush1.bf16.msra.mxu0 %v8164
  %9003 = vmatprep.subr.bf16.mxu0 0
  %9004 = vmatpush1.bf16.msra.mxu0 %v8165
  %9005 = vmatprep.subr.bf16.mxu0 0
  %9006 = vmatpush1.bf16.msra.mxu0 %v8166
  %9007 = vmatprep.subr.bf16.mxu0 0
  %9008 = vmatpush1.bf16.msra.mxu0 %v8167
  %9009 = vmatprep.subr.bf16.mxu0 0
  %9010 = vmatpush1.bf16.msra.mxu0 %v8168
  %9011 = vmatprep.subr.bf16.mxu0 0
  %9012 = vmatpush1.bf16.msra.mxu0 %v8169
  %9013 = vmatprep.subr.bf16.mxu0 0
  %9014 = vmatpush1.bf16.msra.mxu0 %v8170
  %9015 = vmatprep.subr.bf16.mxu0 0
  %9016 = vmatpush1.bf16.msra.mxu0 %v8171
  %9017 = vmatprep.subr.bf16.mxu0 0
  %9018 = vmatpush1.bf16.msra.mxu0 0
  %9019 = vmatprep.subr.bf16.mxu0 0
  %9020 = vmatpush1.bf16.msra.mxu0 0
  %9021 = vmatprep.subr.bf16.mxu0 0
  %9022 = vmatpush1.bf16.msra.mxu0 0
  %9023 = vmatprep.subr.bf16.mxu0 0
  %9024 = vmatpush1.bf16.msra.mxu0 0
  %9025 = vmatprep.subr.bf16.mxu0 0
  %9026 = vmatpush1.bf16.msra.mxu0 0
  %9027 = vmatprep.subr.bf16.mxu0 0
  %9028 = vmatpush1.bf16.msra.mxu0 0
  %9029 = vmatprep.subr.bf16.mxu0 0
  %9030 = vmatpush1.bf16.msra.mxu0 0
  %9031 = vmatprep.subr.bf16.mxu0 0
  %9032 = vmatpush1.bf16.msra.mxu0 0
  %9033 = vmatprep.mubr.bf16.mxu0 0
  %9034 = vmatmul.mubr.bf16.gmra.mrb[0].mxu0 %v965
  %v9035 = vpop.f32.mrb[0].mxu0
  %v9036 = vadd.f32 0.0, %v9035
  %v9037 = vpop.f32.mrb[0].mxu0
  %v9038 = vpop.f32.mrb[0].mxu0
  %v9039 = vadd.f32 0.0, %v9038
  %v9040 = vpop.f32.mrb[0].mxu0
  %9041 = vmatprep.mubr.bf16.mxu0 0
  %9042 = vmatmul.mubr.bf16.gmra.mrb[0].mxu0 %v966
  %v9043 = vpop.f32.mrb[0].mxu0
  %v9044 = vadd.f32 0.0, %v9043
  %v9045 = vpop.f32.mrb[0].mxu0
  %v9046 = vpop.f32.mrb[0].mxu0
  %v9047 = vadd.f32 0.0, %v9046
  %v9048 = vpop.f32.mrb[0].mxu0
  %9049 = vmatprep.mubr.bf16.mxu0 0
  %9050 = vmatmul.mubr.bf16.gmra.mrb[0].mxu0 %v967
  %v9051 = vpop.f32.mrb[0].mxu0
  %v9052 = vadd.f32 0.0, %v9051
  %v9053 = vpop.f32.mrb[0].mxu0
  %v9054 = vpop.f32.mrb[0].mxu0
  %v9055 = vadd.f32 0.0, %v9054
  %v9056 = vpop.f32.mrb[0].mxu0
  %9057 = vmatprep.mubr.bf16.mxu0 0
  %9058 = vmatmul.mubr.bf16.gmra.mrb[0].mxu0 %v968
  %v9059 = vpop.f32.mrb[0].mxu0
  %v9060 = vadd.f32 0.0, %v9059
  %v9061 = vpop.f32.mrb[0].mxu0
  %v9062 = vpop.f32.mrb[0].mxu0
  %v9063 = vadd.f32 0.0, %v9062
  %v9064 = vpop.f32.mrb[0].mxu0
  %9065 = vmatprep.mubr.bf16.mxu0 0
  %9066 = vmatmul.mubr.bf16.gmra.mrb[0].mxu0 %v969
  %v9067 = vpop.f32.mrb[0].mxu0
  %v9068 = vadd.f32 0.0, %v9067
  %v9069 = vpop.f32.mrb[0].mxu0
  %v9070 = vpop.f32.mrb[0].mxu0
  %v9071 = vadd.f32 0.0, %v9070
  %v9072 = vpop.f32.mrb[0].mxu0
  %9073 = vmatprep.mubr.bf16.mxu0 0
  %9074 = vmatmul.mubr.bf16.gmra.mrb[0].mxu0 %v970
  %v9075 = vpop.f32.mrb[0].mxu0
  %v9076 = vadd.f32 0.0, %v9075
  %v9077 = vpop.f32.mrb[0].mxu0
  %v9078 = vpop.f32.mrb[0].mxu0
  %v9079 = vadd.f32 0.0, %v9078
  %v9080 = vpop.f32.mrb[0].mxu0
  %9081 = vmatprep.mubr.bf16.mxu0 0
  %9082 = vmatmul.mubr.bf16.gmra.mrb[0].mxu0 %v971
  %v9083 = vpop.f32.mrb[0].mxu0
  %v9084 = vadd.f32 0.0, %v9083
  %v9085 = vpop.f32.mrb[0].mxu0
  %v9086 = vpop.f32.mrb[0].mxu0
  %v9087 = vadd.f32 0.0, %v9086
  %v9088 = vpop.f32.mrb[0].mxu0
  %9089 = vmatprep.mubr.bf16.mxu0 0
  %9090 = vmatmul.mubr.bf16.gmra.mrb[0].mxu0 %v972
  %v9091 = vpop.f32.mrb[0].mxu0
  %v9092 = vadd.f32 0.0, %v9091
  %v9093 = vpop.f32.mrb[0].mxu0
  %v9094 = vpop.f32.mrb[0].mxu0
  %v9095 = vadd.f32 0.0, %v9094
  %v9096 = vpop.f32.mrb[0].mxu0
  %9097 = vdwg.mxu0
  %v9098 = vsub.f32 %v8147, %v9036
  %v9099 = vsub.f32 %v8148, %v9039
  %v9100 = vsub.f32 %v8149, %v9044
  %v9101 = vsub.f32 %v8150, %v9047
  %v9102 = vsub.f32 %v8151, %v9052
  %v9103 = vsub.f32 %v8152, %v9055
  %v9104 = vsub.f32 %v8153, %v9060
  %v9105 = vsub.f32 %v8154, %v9063
  %v9106 = vsub.f32 %v8155, %v9068
  %v9107 = vsub.f32 %v8156, %v9071
  %v9108 = vsub.f32 %v8157, %v9076
  %v9109 = vsub.f32 %v8158, %v9079
  %v9110 = vsub.f32 %v8159, %v9084
  %v9111 = vsub.f32 %v8160, %v9087
  %v9112 = vsub.f32 %v8161, %v9092
  %v9113 = vsub.f32 %v8162, %v9095
  %v9114 = vadd.f32 %v9098, %v8406
  %v9115 = vadd.f32 %v9099, %v8406
  %v9116 = vadd.f32 %v9100, %v8406
  %v9117 = vadd.f32 %v9101, %v8406
  %v9118 = vadd.f32 %v9102, %v8406
  %v9119 = vadd.f32 %v9103, %v8406
  %v9120 = vadd.f32 %v9104, %v8406
  %v9121 = vadd.f32 %v9105, %v8406
  %v9122 = vadd.f32 %v9106, %v8406
  %v9123 = vadd.f32 %v9107, %v8406
  %v9124 = vadd.f32 %v9108, %v8406
  %v9125 = vadd.f32 %v9109, %v8406
  %v9126 = vadd.f32 %v9110, %v8406
  %v9127 = vadd.f32 %v9111, %v8406
  %v9128 = vadd.f32 %v9112, %v8406
  %v9129 = vadd.f32 %v9113, %v8406
  %9146 = vrot.lane.b32.xlu0 %v9036, 96
  %v9147 = vpop.permute.xlu0 %9146
  %9148 = vrot.lane.b32.xlu0 %v9039, 96
  %v9149 = vpop.permute.xlu0 %9148
  %9150 = vrot.lane.b32.xlu0 %v9044, 96
  %v9151 = vpop.permute.xlu0 %9150
  %9152 = vrot.lane.b32.xlu0 %v9047, 96
  %v9153 = vpop.permute.xlu0 %9152
  %9154 = vrot.lane.b32.xlu0 %v9052, 96
  %v9155 = vpop.permute.xlu0 %9154
  %9156 = vrot.lane.b32.xlu0 %v9055, 96
  %v9157 = vpop.permute.xlu0 %9156
  %9158 = vrot.lane.b32.xlu0 %v9060, 96
  %v9159 = vpop.permute.xlu0 %9158
  %9160 = vrot.lane.b32.xlu0 %v9063, 96
  %v9161 = vpop.permute.xlu0 %9160
  %9162 = vrot.lane.b32.xlu0 %v9068, 96
  %v9163 = vpop.permute.xlu0 %9162
  %9164 = vrot.lane.b32.xlu0 %v9071, 96
  %v9165 = vpop.permute.xlu0 %9164
  %9166 = vrot.lane.b32.xlu0 %v9076, 96
  %v9167 = vpop.permute.xlu0 %9166
  %9168 = vrot.lane.b32.xlu0 %v9079, 96
  %v9169 = vpop.permute.xlu0 %9168
  %9170 = vrot.lane.b32.xlu0 %v9084, 96
  %v9171 = vpop.permute.xlu0 %9170
  %9172 = vrot.lane.b32.xlu0 %v9087, 96
  %v9173 = vpop.permute.xlu0 %9172
  %9174 = vrot.lane.b32.xlu0 %v9092, 96
  %v9175 = vpop.permute.xlu0 %9174
  %9176 = vrot.lane.b32.xlu0 %v9095, 96
  %v9177 = vpop.permute.xlu0 %9176
  %v9194 = vsub.f32 %v8147, %v9147
  %v9195 = vsub.f32 %v8148, %v9149
  %v9196 = vsub.f32 %v8149, %v9151
  %v9197 = vsub.f32 %v8150, %v9153
  %v9198 = vsub.f32 %v8151, %v9155
  %v9199 = vsub.f32 %v8152, %v9157
  %v9200 = vsub.f32 %v8153, %v9159
  %v9201 = vsub.f32 %v8154, %v9161
  %v9202 = vsub.f32 %v8155, %v9163
  %v9203 = vsub.f32 %v8156, %v9165
  %v9204 = vsub.f32 %v8157, %v9167
  %v9205 = vsub.f32 %v8158, %v9169
  %v9206 = vsub.f32 %v8159, %v9171
  %v9207 = vsub.f32 %v8160, %v9173
  %v9208 = vsub.f32 %v8161, %v9175
  %v9209 = vsub.f32 %v8162, %v9177
  %9226 = vrot.lane.b32.xlu0 %v9114, 32
  %v9227 = vpop.permute.xlu0 %9226
  %9228 = vrot.lane.b32.xlu0 %v9115, 32
  %v9229 = vpop.permute.xlu0 %9228
  %9230 = vrot.lane.b32.xlu0 %v9116, 32
  %v9231 = vpop.permute.xlu0 %9230
  %9232 = vrot.lane.b32.xlu0 %v9117, 32
  %v9233 = vpop.permute.xlu0 %9232
  %9234 = vrot.lane.b32.xlu0 %v9118, 32
  %v9235 = vpop.permute.xlu0 %9234
  %9236 = vrot.lane.b32.xlu0 %v9119, 32
  %v9237 = vpop.permute.xlu0 %9236
  %9238 = vrot.lane.b32.xlu0 %v9120, 32
  %v9239 = vpop.permute.xlu0 %9238
  %9240 = vrot.lane.b32.xlu0 %v9121, 32
  %v9241 = vpop.permute.xlu0 %9240
  %9242 = vrot.lane.b32.xlu0 %v9122, 32
  %v9243 = vpop.permute.xlu0 %9242
  %9244 = vrot.lane.b32.xlu0 %v9123, 32
  %v9245 = vpop.permute.xlu0 %9244
  %9246 = vrot.lane.b32.xlu0 %v9124, 32
  %v9247 = vpop.permute.xlu0 %9246
  %9248 = vrot.lane.b32.xlu0 %v9125, 32
  %v9249 = vpop.permute.xlu0 %9248
  %9250 = vrot.lane.b32.xlu0 %v9126, 32
  %v9251 = vpop.permute.xlu0 %9250
  %9252 = vrot.lane.b32.xlu0 %v9127, 32
  %v9253 = vpop.permute.xlu0 %9252
  %9254 = vrot.lane.b32.xlu0 %v9128, 32
  %v9255 = vpop.permute.xlu0 %9254
  %9256 = vrot.lane.b32.xlu0 %v9129, 32
  %v9257 = vpop.permute.xlu0 %9256
  %v9274 = vadd.f32 %v9194, %v9227
  %v9275 = vadd.f32 %v9195, %v9229
  %v9276 = vadd.f32 %v9196, %v9231
  %v9277 = vadd.f32 %v9197, %v9233
  %v9278 = vadd.f32 %v9198, %v9235
  %v9279 = vadd.f32 %v9199, %v9237
  %v9280 = vadd.f32 %v9200, %v9239
  %v9281 = vadd.f32 %v9201, %v9241
  %v9282 = vadd.f32 %v9202, %v9243
  %v9283 = vadd.f32 %v9203, %v9245
  %v9284 = vadd.f32 %v9204, %v9247
  %v9285 = vadd.f32 %v9205, %v9249
  %v9286 = vadd.f32 %v9206, %v9251
  %v9287 = vadd.f32 %v9207, %v9253
  %v9288 = vadd.f32 %v9208, %v9255
  %v9289 = vadd.f32 %v9209, %v9257
  %9290 = vrot.lane.b32.xlu0 %v9114, 96
  %v9291 = vpop.permute.xlu0 %9290
  %9292 = vrot.lane.b32.xlu0 %v9115, 96
  %v9293 = vpop.permute.xlu0 %9292
  %9294 = vrot.lane.b32.xlu0 %v9116, 96
  %v9295 = vpop.permute.xlu0 %9294
  %9296 = vrot.lane.b32.xlu0 %v9117, 96
  %v9297 = vpop.permute.xlu0 %9296
  %9298 = vrot.lane.b32.xlu0 %v9118, 96
  %v9299 = vpop.permute.xlu0 %9298
  %9300 = vrot.lane.b32.xlu0 %v9119, 96
  %v9301 = vpop.permute.xlu0 %9300
  %9302 = vrot.lane.b32.xlu0 %v9120, 96
  %v9303 = vpop.permute.xlu0 %9302
  %9304 = vrot.lane.b32.xlu0 %v9121, 96
  %v9305 = vpop.permute.xlu0 %9304
  %9306 = vrot.lane.b32.xlu0 %v9122, 96
  %v9307 = vpop.permute.xlu0 %9306
  %9308 = vrot.lane.b32.xlu0 %v9123, 96
  %v9309 = vpop.permute.xlu0 %9308
  %9310 = vrot.lane.b32.xlu0 %v9124, 96
  %v9311 = vpop.permute.xlu0 %9310
  %9312 = vrot.lane.b32.xlu0 %v9125, 96
  %v9313 = vpop.permute.xlu0 %9312
  %9314 = vrot.lane.b32.xlu0 %v9126, 96
  %v9315 = vpop.permute.xlu0 %9314
  %9316 = vrot.lane.b32.xlu0 %v9127, 96
  %v9317 = vpop.permute.xlu0 %9316
  %9318 = vrot.lane.b32.xlu0 %v9128, 96
  %v9319 = vpop.permute.xlu0 %9318
  %9320 = vrot.lane.b32.xlu0 %v9129, 96
  %v9321 = vpop.permute.xlu0 %9320
  %v9338 = vadd.f32 %v9036, %v9291
  %v9339 = vadd.f32 %v9039, %v9293
  %v9340 = vadd.f32 %v9044, %v9295
  %v9341 = vadd.f32 %v9047, %v9297
  %v9342 = vadd.f32 %v9052, %v9299
  %v9343 = vadd.f32 %v9055, %v9301
  %v9344 = vadd.f32 %v9060, %v9303
  %v9345 = vadd.f32 %v9063, %v9305
  %v9346 = vadd.f32 %v9068, %v9307
  %v9347 = vadd.f32 %v9071, %v9309
  %v9348 = vadd.f32 %v9076, %v9311
  %v9349 = vadd.f32 %v9079, %v9313
  %v9350 = vadd.f32 %v9084, %v9315
  %v9351 = vadd.f32 %v9087, %v9317
  %v9352 = vadd.f32 %v9092, %v9319
  %v9353 = vadd.f32 %v9095, %v9321
  %9354 = vmatprep.subr.bf16.mxu0 0
  %9355 = vmatpush1.bf16.msra.mxu0 %v8164
  %9356 = vmatprep.subr.bf16.mxu0 0
  %9357 = vmatpush1.bf16.msra.mxu0 %v8165
  %9358 = vmatprep.subr.bf16.mxu0 0
  %9359 = vmatpush1.bf16.msra.mxu0 %v8166
  %9360 = vmatprep.subr.bf16.mxu0 0
  %9361 = vmatpush1.bf16.msra.mxu0 %v8167
  %9362 = vmatprep.subr.bf16.mxu0 0
  %9363 = vmatpush1.bf16.msra.mxu0 %v8168
  %9364 = vmatprep.subr.bf16.mxu0 0
  %9365 = vmatpush1.bf16.msra.mxu0 %v8169
  %9366 = vmatprep.subr.bf16.mxu0 0
  %9367 = vmatpush1.bf16.msra.mxu0 %v8170
  %9368 = vmatprep.subr.bf16.mxu0 0
  %9369 = vmatpush1.bf16.msra.mxu0 %v8171
  %9370 = vmatprep.subr.bf16.mxu0 0
  %9371 = vmatpush1.bf16.msra.mxu0 0
  %9372 = vmatprep.subr.bf16.mxu0 0
  %9373 = vmatpush1.bf16.msra.mxu0 0
  %9374 = vmatprep.subr.bf16.mxu0 0
  %9375 = vmatpush1.bf16.msra.mxu0 0
  %9376 = vmatprep.subr.bf16.mxu0 0
  %9377 = vmatpush1.bf16.msra.mxu0 0
  %9378 = vmatprep.subr.bf16.mxu0 0
  %9379 = vmatpush1.bf16.msra.mxu0 0
  %9380 = vmatprep.subr.bf16.mxu0 0
  %9381 = vmatpush1.bf16.msra.mxu0 0
  %9382 = vmatprep.subr.bf16.mxu0 0
  %9383 = vmatpush1.bf16.msra.mxu0 0
  %9384 = vmatprep.subr.bf16.mxu0 0
  %9385 = vmatpush1.bf16.msra.mxu0 0
  %9386 = vmatprep.mubr.bf16.mxu0 0
  %9387 = vmatmul.mubr.bf16.gmra.mrb[0].mxu0 %v973
  %v9388 = vpop.f32.mrb[0].mxu0
  %v9389 = vadd.f32 0.0, %v9388
  %v9390 = vpop.f32.mrb[0].mxu0
  %v9391 = vpop.f32.mrb[0].mxu0
  %v9392 = vadd.f32 0.0, %v9391
  %v9393 = vpop.f32.mrb[0].mxu0
  %9394 = vmatprep.mubr.bf16.mxu0 0
  %9395 = vmatmul.mubr.bf16.gmra.mrb[0].mxu0 %v974
  %v9396 = vpop.f32.mrb[0].mxu0
  %v9397 = vadd.f32 0.0, %v9396
  %v9398 = vpop.f32.mrb[0].mxu0
  %v9399 = vpop.f32.mrb[0].mxu0
  %v9400 = vadd.f32 0.0, %v9399
  %v9401 = vpop.f32.mrb[0].mxu0
  %9402 = vmatprep.mubr.bf16.mxu0 0
  %9403 = vmatmul.mubr.bf16.gmra.mrb[0].mxu0 %v975
  %v9404 = vpop.f32.mrb[0].mxu0
  %v9405 = vadd.f32 0.0, %v9404
  %v9406 = vpop.f32.mrb[0].mxu0
  %v9407 = vpop.f32.mrb[0].mxu0
  %v9408 = vadd.f32 0.0, %v9407
  %v9409 = vpop.f32.mrb[0].mxu0
  %9410 = vmatprep.mubr.bf16.mxu0 0
  %9411 = vmatmul.mubr.bf16.gmra.mrb[0].mxu0 %v976
  %v9412 = vpop.f32.mrb[0].mxu0
  %v9413 = vadd.f32 0.0, %v9412
  %v9414 = vpop.f32.mrb[0].mxu0
  %v9415 = vpop.f32.mrb[0].mxu0
  %v9416 = vadd.f32 0.0, %v9415
  %v9417 = vpop.f32.mrb[0].mxu0
  %9418 = vmatprep.mubr.bf16.mxu0 0
  %9419 = vmatmul.mubr.bf16.gmra.mrb[0].mxu0 %v977
  %v9420 = vpop.f32.mrb[0].mxu0
  %v9421 = vadd.f32 0.0, %v9420
  %v9422 = vpop.f32.mrb[0].mxu0
  %v9423 = vpop.f32.mrb[0].mxu0
  %v9424 = vadd.f32 0.0, %v9423
  %v9425 = vpop.f32.mrb[0].mxu0
  %9426 = vmatprep.mubr.bf16.mxu0 0
  %9427 = vmatmul.mubr.bf16.gmra.mrb[0].mxu0 %v978
  %v9428 = vpop.f32.mrb[0].mxu0
  %v9429 = vadd.f32 0.0, %v9428
  %v9430 = vpop.f32.mrb[0].mxu0
  %v9431 = vpop.f32.mrb[0].mxu0
  %v9432 = vadd.f32 0.0, %v9431
  %v9433 = vpop.f32.mrb[0].mxu0
  %9434 = vmatprep.mubr.bf16.mxu0 0
  %9435 = vmatmul.mubr.bf16.gmra.mrb[0].mxu0 %v979
  %v9436 = vpop.f32.mrb[0].mxu0
  %v9437 = vadd.f32 0.0, %v9436
  %v9438 = vpop.f32.mrb[0].mxu0
  %v9439 = vpop.f32.mrb[0].mxu0
  %v9440 = vadd.f32 0.0, %v9439
  %v9441 = vpop.f32.mrb[0].mxu0
  %9442 = vmatprep.mubr.bf16.mxu0 0
  %9443 = vmatmul.mubr.bf16.gmra.mrb[0].mxu0 %v980
  %v9444 = vpop.f32.mrb[0].mxu0
  %v9445 = vadd.f32 0.0, %v9444
  %v9446 = vpop.f32.mrb[0].mxu0
  %v9447 = vpop.f32.mrb[0].mxu0
  %v9448 = vadd.f32 0.0, %v9447
  %v9449 = vpop.f32.mrb[0].mxu0
  %9450 = vdwg.mxu0
  %v9451 = vsub.f32 %v8147, %v9389
  %v9452 = vsub.f32 %v8148, %v9392
  %v9453 = vsub.f32 %v8149, %v9397
  %v9454 = vsub.f32 %v8150, %v9400
  %v9455 = vsub.f32 %v8151, %v9405
  %v9456 = vsub.f32 %v8152, %v9408
  %v9457 = vsub.f32 %v8153, %v9413
  %v9458 = vsub.f32 %v8154, %v9416
  %v9459 = vsub.f32 %v8155, %v9421
  %v9460 = vsub.f32 %v8156, %v9424
  %v9461 = vsub.f32 %v8157, %v9429
  %v9462 = vsub.f32 %v8158, %v9432
  %v9463 = vsub.f32 %v8159, %v9437
  %v9464 = vsub.f32 %v8160, %v9440
  %v9465 = vsub.f32 %v8161, %v9445
  %v9466 = vsub.f32 %v8162, %v9448
  %v9467 = vadd.f32 %v9451, %v8406
  %v9468 = vadd.f32 %v9452, %v8406
  %v9469 = vadd.f32 %v9453, %v8406
  %v9470 = vadd.f32 %v9454, %v8406
  %v9471 = vadd.f32 %v9455, %v8406
  %v9472 = vadd.f32 %v9456, %v8406
  %v9473 = vadd.f32 %v9457, %v8406
  %v9474 = vadd.f32 %v9458, %v8406
  %v9475 = vadd.f32 %v9459, %v8406
  %v9476 = vadd.f32 %v9460, %v8406
  %v9477 = vadd.f32 %v9461, %v8406
  %v9478 = vadd.f32 %v9462, %v8406
  %v9479 = vadd.f32 %v9463, %v8406
  %v9480 = vadd.f32 %v9464, %v8406
  %v9481 = vadd.f32 %v9465, %v8406
  %v9482 = vadd.f32 %v9466, %v8406
  %9499 = vrot.lane.b32.xlu0 %v9389, 96
  %v9500 = vpop.permute.xlu0 %9499
  %9501 = vrot.lane.b32.xlu0 %v9392, 96
  %v9502 = vpop.permute.xlu0 %9501
  %9503 = vrot.lane.b32.xlu0 %v9397, 96
  %v9504 = vpop.permute.xlu0 %9503
  %9505 = vrot.lane.b32.xlu0 %v9400, 96
  %v9506 = vpop.permute.xlu0 %9505
  %9507 = vrot.lane.b32.xlu0 %v9405, 96
  %v9508 = vpop.permute.xlu0 %9507
  %9509 = vrot.lane.b32.xlu0 %v9408, 96
  %v9510 = vpop.permute.xlu0 %9509
  %9511 = vrot.lane.b32.xlu0 %v9413, 96
  %v9512 = vpop.permute.xlu0 %9511
  %9513 = vrot.lane.b32.xlu0 %v9416, 96
  %v9514 = vpop.permute.xlu0 %9513
  %9515 = vrot.lane.b32.xlu0 %v9421, 96
  %v9516 = vpop.permute.xlu0 %9515
  %9517 = vrot.lane.b32.xlu0 %v9424, 96
  %v9518 = vpop.permute.xlu0 %9517
  %9519 = vrot.lane.b32.xlu0 %v9429, 96
  %v9520 = vpop.permute.xlu0 %9519
  %9521 = vrot.lane.b32.xlu0 %v9432, 96
  %v9522 = vpop.permute.xlu0 %9521
  %9523 = vrot.lane.b32.xlu0 %v9437, 96
  %v9524 = vpop.permute.xlu0 %9523
  %9525 = vrot.lane.b32.xlu0 %v9440, 96
  %v9526 = vpop.permute.xlu0 %9525
  %9527 = vrot.lane.b32.xlu0 %v9445, 96
  %v9528 = vpop.permute.xlu0 %9527
  %9529 = vrot.lane.b32.xlu0 %v9448, 96
  %v9530 = vpop.permute.xlu0 %9529
  %v9547 = vsub.f32 %v8147, %v9500
  %v9548 = vsub.f32 %v8148, %v9502
  %v9549 = vsub.f32 %v8149, %v9504
  %v9550 = vsub.f32 %v8150, %v9506
  %v9551 = vsub.f32 %v8151, %v9508
  %v9552 = vsub.f32 %v8152, %v9510
  %v9553 = vsub.f32 %v8153, %v9512
  %v9554 = vsub.f32 %v8154, %v9514
  %v9555 = vsub.f32 %v8155, %v9516
  %v9556 = vsub.f32 %v8156, %v9518
  %v9557 = vsub.f32 %v8157, %v9520
  %v9558 = vsub.f32 %v8158, %v9522
  %v9559 = vsub.f32 %v8159, %v9524
  %v9560 = vsub.f32 %v8160, %v9526
  %v9561 = vsub.f32 %v8161, %v9528
  %v9562 = vsub.f32 %v8162, %v9530
  %9579 = vrot.lane.b32.xlu0 %v9467, 32
  %v9580 = vpop.permute.xlu0 %9579
  %9581 = vrot.lane.b32.xlu0 %v9468, 32
  %v9582 = vpop.permute.xlu0 %9581
  %9583 = vrot.lane.b32.xlu0 %v9469, 32
  %v9584 = vpop.permute.xlu0 %9583
  %9585 = vrot.lane.b32.xlu0 %v9470, 32
  %v9586 = vpop.permute.xlu0 %9585
  %9587 = vrot.lane.b32.xlu0 %v9471, 32
  %v9588 = vpop.permute.xlu0 %9587
  %9589 = vrot.lane.b32.xlu0 %v9472, 32
  %v9590 = vpop.permute.xlu0 %9589
  %9591 = vrot.lane.b32.xlu0 %v9473, 32
  %v9592 = vpop.permute.xlu0 %9591
  %9593 = vrot.lane.b32.xlu0 %v9474, 32
  %v9594 = vpop.permute.xlu0 %9593
  %9595 = vrot.lane.b32.xlu0 %v9475, 32
  %v9596 = vpop.permute.xlu0 %9595
  %9597 = vrot.lane.b32.xlu0 %v9476, 32
  %v9598 = vpop.permute.xlu0 %9597
  %9599 = vrot.lane.b32.xlu0 %v9477, 32
  %v9600 = vpop.permute.xlu0 %9599
  %9601 = vrot.lane.b32.xlu0 %v9478, 32
  %v9602 = vpop.permute.xlu0 %9601
  %9603 = vrot.lane.b32.xlu0 %v9479, 32
  %v9604 = vpop.permute.xlu0 %9603
  %9605 = vrot.lane.b32.xlu0 %v9480, 32
  %v9606 = vpop.permute.xlu0 %9605
  %9607 = vrot.lane.b32.xlu0 %v9481, 32
  %v9608 = vpop.permute.xlu0 %9607
  %9609 = vrot.lane.b32.xlu0 %v9482, 32
  %v9610 = vpop.permute.xlu0 %9609
  %v9627 = vadd.f32 %v9547, %v9580
  %v9628 = vadd.f32 %v9548, %v9582
  %v9629 = vadd.f32 %v9549, %v9584
  %v9630 = vadd.f32 %v9550, %v9586
  %v9631 = vadd.f32 %v9551, %v9588
  %v9632 = vadd.f32 %v9552, %v9590
  %v9633 = vadd.f32 %v9553, %v9592
  %v9634 = vadd.f32 %v9554, %v9594
  %v9635 = vadd.f32 %v9555, %v9596
  %v9636 = vadd.f32 %v9556, %v9598
  %v9637 = vadd.f32 %v9557, %v9600
  %v9638 = vadd.f32 %v9558, %v9602
  %v9639 = vadd.f32 %v9559, %v9604
  %v9640 = vadd.f32 %v9560, %v9606
  %v9641 = vadd.f32 %v9561, %v9608
  %v9642 = vadd.f32 %v9562, %v9610
  %9643 = vrot.lane.b32.xlu0 %v9467, 96
  %v9644 = vpop.permute.xlu0 %9643
  %9645 = vrot.lane.b32.xlu0 %v9468, 96
  %v9646 = vpop.permute.xlu0 %9645
  %9647 = vrot.lane.b32.xlu0 %v9469, 96
  %v9648 = vpop.permute.xlu0 %9647
  %9649 = vrot.lane.b32.xlu0 %v9470, 96
  %v9650 = vpop.permute.xlu0 %9649
  %9651 = vrot.lane.b32.xlu0 %v9471, 96
  %v9652 = vpop.permute.xlu0 %9651
  %9653 = vrot.lane.b32.xlu0 %v9472, 96
  %v9654 = vpop.permute.xlu0 %9653
  %9655 = vrot.lane.b32.xlu0 %v9473, 96
  %v9656 = vpop.permute.xlu0 %9655
  %9657 = vrot.lane.b32.xlu0 %v9474, 96
  %v9658 = vpop.permute.xlu0 %9657
  %9659 = vrot.lane.b32.xlu0 %v9475, 96
  %v9660 = vpop.permute.xlu0 %9659
  %9661 = vrot.lane.b32.xlu0 %v9476, 96
  %v9662 = vpop.permute.xlu0 %9661
  %9663 = vrot.lane.b32.xlu0 %v9477, 96
  %v9664 = vpop.permute.xlu0 %9663
  %9665 = vrot.lane.b32.xlu0 %v9478, 96
  %v9666 = vpop.permute.xlu0 %9665
  %9667 = vrot.lane.b32.xlu0 %v9479, 96
  %v9668 = vpop.permute.xlu0 %9667
  %9669 = vrot.lane.b32.xlu0 %v9480, 96
  %v9670 = vpop.permute.xlu0 %9669
  %9671 = vrot.lane.b32.xlu0 %v9481, 96
  %v9672 = vpop.permute.xlu0 %9671
  %9673 = vrot.lane.b32.xlu0 %v9482, 96
  %v9674 = vpop.permute.xlu0 %9673
  %v9691 = vadd.f32 %v9389, %v9644
  %v9692 = vadd.f32 %v9392, %v9646
  %v9693 = vadd.f32 %v9397, %v9648
  %v9694 = vadd.f32 %v9400, %v9650
  %v9695 = vadd.f32 %v9405, %v9652
  %v9696 = vadd.f32 %v9408, %v9654
  %v9697 = vadd.f32 %v9413, %v9656
  %v9698 = vadd.f32 %v9416, %v9658
  %v9699 = vadd.f32 %v9421, %v9660
  %v9700 = vadd.f32 %v9424, %v9662
  %v9701 = vadd.f32 %v9429, %v9664
  %v9702 = vadd.f32 %v9432, %v9666
  %v9703 = vadd.f32 %v9437, %v9668
  %v9704 = vadd.f32 %v9440, %v9670
  %v9705 = vadd.f32 %v9445, %v9672
  %v9706 = vadd.f32 %v9448, %v9674
  %v9707 = vmax.f32 %v8256, %v8568
  %v9708 = vmax.f32 %v8257, %v8569
  %v9709 = vmax.f32 %v8258, %v8570
  %v9710 = vmax.f32 %v8259, %v8571
  %v9711 = vmax.f32 %v8260, %v8572
  %v9712 = vmax.f32 %v8261, %v8573
  %v9713 = vmax.f32 %v8262, %v8574
  %v9714 = vmax.f32 %v8263, %v8575
  %v9715 = vmax.f32 %v8264, %v8576
  %v9716 = vmax.f32 %v8265, %v8577
  %v9717 = vmax.f32 %v8266, %v8578
  %v9718 = vmax.f32 %v8267, %v8579
  %v9719 = vmax.f32 %v8268, %v8580
  %v9720 = vmax.f32 %v8269, %v8581
  %v9721 = vmax.f32 %v8270, %v8582
  %v9722 = vmax.f32 %v8271, %v8583
  %v9723 = vmax.f32 %v9707, %v8921
  %v9724 = vmax.f32 %v9708, %v8922
  %v9725 = vmax.f32 %v9709, %v8923
  %v9726 = vmax.f32 %v9710, %v8924
  %v9727 = vmax.f32 %v9711, %v8925
  %v9728 = vmax.f32 %v9712, %v8926
  %v9729 = vmax.f32 %v9713, %v8927
  %v9730 = vmax.f32 %v9714, %v8928
  %v9731 = vmax.f32 %v9715, %v8929
  %v9732 = vmax.f32 %v9716, %v8930
  %v9733 = vmax.f32 %v9717, %v8931
  %v9734 = vmax.f32 %v9718, %v8932
  %v9735 = vmax.f32 %v9719, %v8933
  %v9736 = vmax.f32 %v9720, %v8934
  %v9737 = vmax.f32 %v9721, %v8935
  %v9738 = vmax.f32 %v9722, %v8936
  %v9739 = vmax.f32 %v9723, %v9274
  %v9740 = vmax.f32 %v9724, %v9275
  %v9741 = vmax.f32 %v9725, %v9276
  %v9742 = vmax.f32 %v9726, %v9277
  %v9743 = vmax.f32 %v9727, %v9278
  %v9744 = vmax.f32 %v9728, %v9279
  %v9745 = vmax.f32 %v9729, %v9280
  %v9746 = vmax.f32 %v9730, %v9281
  %v9747 = vmax.f32 %v9731, %v9282
  %v9748 = vmax.f32 %v9732, %v9283
  %v9749 = vmax.f32 %v9733, %v9284
  %v9750 = vmax.f32 %v9734, %v9285
  %v9751 = vmax.f32 %v9735, %v9286
  %v9752 = vmax.f32 %v9736, %v9287
  %v9753 = vmax.f32 %v9737, %v9288
  %v9754 = vmax.f32 %v9738, %v9289
  %v9755 = vmax.f32 %v9739, %v9627
  %v9756 = vmax.f32 %v9740, %v9628
  %v9757 = vmax.f32 %v9741, %v9629
  %v9758 = vmax.f32 %v9742, %v9630
  %v9759 = vmax.f32 %v9743, %v9631
  %v9760 = vmax.f32 %v9744, %v9632
  %v9761 = vmax.f32 %v9745, %v9633
  %v9762 = vmax.f32 %v9746, %v9634
  %v9763 = vmax.f32 %v9747, %v9635
  %v9764 = vmax.f32 %v9748, %v9636
  %v9765 = vmax.f32 %v9749, %v9637
  %v9766 = vmax.f32 %v9750, %v9638
  %v9767 = vmax.f32 %v9751, %v9639
  %v9768 = vmax.f32 %v9752, %v9640
  %v9769 = vmax.f32 %v9753, %v9641
  %v9770 = vmax.f32 %v9754, %v9642
  %v9771 = vsub.f32 %v8256, %v9755
  %v9772 = vsub.f32 %v8257, %v9756
  %v9773 = vsub.f32 %v8258, %v9757
  %v9774 = vsub.f32 %v8259, %v9758
  %v9775 = vsub.f32 %v8260, %v9759
  %v9776 = vsub.f32 %v8261, %v9760
  %v9777 = vsub.f32 %v8262, %v9761
  %v9778 = vsub.f32 %v8263, %v9762
  %v9779 = vsub.f32 %v8264, %v9763
  %v9780 = vsub.f32 %v8265, %v9764
  %v9781 = vsub.f32 %v8266, %v9765
  %v9782 = vsub.f32 %v8267, %v9766
  %v9783 = vsub.f32 %v8268, %v9767
  %v9784 = vsub.f32 %v8269, %v9768
  %v9785 = vsub.f32 %v8270, %v9769
  %v9786 = vsub.f32 %v8271, %v9770
  %v9787 = vmul.f32 %v9771, 1.442695
  %v9788 = vpow.pop %v9787
  %v9789 = vmul.f32 %v9772, 1.442695
  %v9790 = vpow.pop %v9789
  %v9791 = vmul.f32 %v9773, 1.442695
  %v9792 = vpow.pop %v9791
  %v9793 = vmul.f32 %v9774, 1.442695
  %v9794 = vpow.pop %v9793
  %v9795 = vmul.f32 %v9775, 1.442695
  %v9796 = vpow.pop %v9795
  %v9797 = vmul.f32 %v9776, 1.442695
  %v9798 = vpow.pop %v9797
  %v9799 = vmul.f32 %v9777, 1.442695
  %v9800 = vpow.pop %v9799
  %v9801 = vmul.f32 %v9778, 1.442695
  %v9802 = vpow.pop %v9801
  %v9803 = vmul.f32 %v9779, 1.442695
  %v9804 = vpow.pop %v9803
  %v9805 = vmul.f32 %v9780, 1.442695
  %v9806 = vpow.pop %v9805
  %v9807 = vmul.f32 %v9781, 1.442695
  %v9808 = vpow.pop %v9807
  %v9809 = vmul.f32 %v9782, 1.442695
  %v9810 = vpow.pop %v9809
  %v9811 = vmul.f32 %v9783, 1.442695
  %v9812 = vpow.pop %v9811
  %v9813 = vmul.f32 %v9784, 1.442695
  %v9814 = vpow.pop %v9813
  %v9815 = vmul.f32 %v9785, 1.442695
  %v9816 = vpow.pop %v9815
  %v9817 = vmul.f32 %v9786, 1.442695
  %v9818 = vpow.pop %v9817
  %v9819 = vadd.f32 %v9788, 0.0
  %v9820 = vadd.f32 %v9790, 0.0
  %v9821 = vadd.f32 %v9792, 0.0
  %v9822 = vadd.f32 %v9794, 0.0
  %v9823 = vadd.f32 %v9796, 0.0
  %v9824 = vadd.f32 %v9798, 0.0
  %v9825 = vadd.f32 %v9800, 0.0
  %v9826 = vadd.f32 %v9802, 0.0
  %v9827 = vadd.f32 %v9804, 0.0
  %v9828 = vadd.f32 %v9806, 0.0
  %v9829 = vadd.f32 %v9808, 0.0
  %v9830 = vadd.f32 %v9810, 0.0
  %v9831 = vadd.f32 %v9812, 0.0
  %v9832 = vadd.f32 %v9814, 0.0
  %v9833 = vadd.f32 %v9816, 0.0
  %v9834 = vadd.f32 %v9818, 0.0
  %9851 = vrot.lane.b32.xlu0 %v8276, 64
  %v9852 = vpop.permute.xlu0 %9851
  %9853 = vrot.lane.b32.xlu0 %v8277, 64
  %v9854 = vpop.permute.xlu0 %9853
  %9855 = vrot.lane.b32.xlu0 %v8278, 64
  %v9856 = vpop.permute.xlu0 %9855
  %9857 = vrot.lane.b32.xlu0 %v8279, 64
  %v9858 = vpop.permute.xlu0 %9857
  %9859 = vrot.lane.b32.xlu0 %v8280, 64
  %v9860 = vpop.permute.xlu0 %9859
  %9861 = vrot.lane.b32.xlu0 %v8281, 64
  %v9862 = vpop.permute.xlu0 %9861
  %9863 = vrot.lane.b32.xlu0 %v8282, 64
  %v9864 = vpop.permute.xlu0 %9863
  %9865 = vrot.lane.b32.xlu0 %v8283, 64
  %v9866 = vpop.permute.xlu0 %9865
  %9867 = vrot.lane.b32.xlu0 %v8284, 64
  %v9868 = vpop.permute.xlu0 %9867
  %9869 = vrot.lane.b32.xlu0 %v8285, 64
  %v9870 = vpop.permute.xlu0 %9869
  %9871 = vrot.lane.b32.xlu0 %v8286, 64
  %v9872 = vpop.permute.xlu0 %9871
  %9873 = vrot.lane.b32.xlu0 %v8287, 64
  %v9874 = vpop.permute.xlu0 %9873
  %9875 = vrot.lane.b32.xlu0 %v8288, 64
  %v9876 = vpop.permute.xlu0 %9875
  %9877 = vrot.lane.b32.xlu0 %v8289, 64
  %v9878 = vpop.permute.xlu0 %9877
  %9879 = vrot.lane.b32.xlu0 %v8290, 64
  %v9880 = vpop.permute.xlu0 %9879
  %9881 = vrot.lane.b32.xlu0 %v8291, 64
  %v9882 = vpop.permute.xlu0 %9881
  %v9899 = vmul.f32 %v9788, %v9852
  %v9900 = vmul.f32 %v9790, %v9854
  %v9901 = vmul.f32 %v9792, %v9856
  %v9902 = vmul.f32 %v9794, %v9858
  %v9903 = vmul.f32 %v9796, %v9860
  %v9904 = vmul.f32 %v9798, %v9862
  %v9905 = vmul.f32 %v9800, %v9864
  %v9906 = vmul.f32 %v9802, %v9866
  %v9907 = vmul.f32 %v9804, %v9868
  %v9908 = vmul.f32 %v9806, %v9870
  %v9909 = vmul.f32 %v9808, %v9872
  %v9910 = vmul.f32 %v9810, %v9874
  %v9911 = vmul.f32 %v9812, %v9876
  %v9912 = vmul.f32 %v9814, %v9878
  %v9913 = vmul.f32 %v9816, %v9880
  %v9914 = vmul.f32 %v9818, %v9882
  %v9915 = vadd.f32 %v9899, 0.0
  %v9916 = vadd.f32 %v9900, 0.0
  %v9917 = vadd.f32 %v9901, 0.0
  %v9918 = vadd.f32 %v9902, 0.0
  %v9919 = vadd.f32 %v9903, 0.0
  %v9920 = vadd.f32 %v9904, 0.0
  %v9921 = vadd.f32 %v9905, 0.0
  %v9922 = vadd.f32 %v9906, 0.0
  %v9923 = vadd.f32 %v9907, 0.0
  %v9924 = vadd.f32 %v9908, 0.0
  %v9925 = vadd.f32 %v9909, 0.0
  %v9926 = vadd.f32 %v9910, 0.0
  %v9927 = vadd.f32 %v9911, 0.0
  %v9928 = vadd.f32 %v9912, 0.0
  %v9929 = vadd.f32 %v9913, 0.0
  %v9930 = vadd.f32 %v9914, 0.0
  %v9931 = vsub.f32 %v8568, %v9755
  %v9932 = vsub.f32 %v8569, %v9756
  %v9933 = vsub.f32 %v8570, %v9757
  %v9934 = vsub.f32 %v8571, %v9758
  %v9935 = vsub.f32 %v8572, %v9759
  %v9936 = vsub.f32 %v8573, %v9760
  %v9937 = vsub.f32 %v8574, %v9761
  %v9938 = vsub.f32 %v8575, %v9762
  %v9939 = vsub.f32 %v8576, %v9763
  %v9940 = vsub.f32 %v8577, %v9764
  %v9941 = vsub.f32 %v8578, %v9765
  %v9942 = vsub.f32 %v8579, %v9766
  %v9943 = vsub.f32 %v8580, %v9767
  %v9944 = vsub.f32 %v8581, %v9768
  %v9945 = vsub.f32 %v8582, %v9769
  %v9946 = vsub.f32 %v8583, %v9770
  %v9947 = vmul.f32 %v9931, 1.442695
  %v9948 = vpow.pop %v9947
  %v9949 = vmul.f32 %v9932, 1.442695
  %v9950 = vpow.pop %v9949
  %v9951 = vmul.f32 %v9933, 1.442695
  %v9952 = vpow.pop %v9951
  %v9953 = vmul.f32 %v9934, 1.442695
  %v9954 = vpow.pop %v9953
  %v9955 = vmul.f32 %v9935, 1.442695
  %v9956 = vpow.pop %v9955
  %v9957 = vmul.f32 %v9936, 1.442695
  %v9958 = vpow.pop %v9957
  %v9959 = vmul.f32 %v9937, 1.442695
  %v9960 = vpow.pop %v9959
  %v9961 = vmul.f32 %v9938, 1.442695
  %v9962 = vpow.pop %v9961
  %v9963 = vmul.f32 %v9939, 1.442695
  %v9964 = vpow.pop %v9963
  %v9965 = vmul.f32 %v9940, 1.442695
  %v9966 = vpow.pop %v9965
  %v9967 = vmul.f32 %v9941, 1.442695
  %v9968 = vpow.pop %v9967
  %v9969 = vmul.f32 %v9942, 1.442695
  %v9970 = vpow.pop %v9969
  %v9971 = vmul.f32 %v9943, 1.442695
  %v9972 = vpow.pop %v9971
  %v9973 = vmul.f32 %v9944, 1.442695
  %v9974 = vpow.pop %v9973
  %v9975 = vmul.f32 %v9945, 1.442695
  %v9976 = vpow.pop %v9975
  %v9977 = vmul.f32 %v9946, 1.442695
  %v9978 = vpow.pop %v9977
  %v9979 = vadd.f32 %v9819, %v9948
  %v9980 = vadd.f32 %v9820, %v9950
  %v9981 = vadd.f32 %v9821, %v9952
  %v9982 = vadd.f32 %v9822, %v9954
  %v9983 = vadd.f32 %v9823, %v9956
  %v9984 = vadd.f32 %v9824, %v9958
  %v9985 = vadd.f32 %v9825, %v9960
  %v9986 = vadd.f32 %v9826, %v9962
  %v9987 = vadd.f32 %v9827, %v9964
  %v9988 = vadd.f32 %v9828, %v9966
  %v9989 = vadd.f32 %v9829, %v9968
  %v9990 = vadd.f32 %v9830, %v9970
  %v9991 = vadd.f32 %v9831, %v9972
  %v9992 = vadd.f32 %v9832, %v9974
  %v9993 = vadd.f32 %v9833, %v9976
  %v9994 = vadd.f32 %v9834, %v9978
  %10011 = vrot.lane.b32.xlu0 %v8632, 64
  %v10012 = vpop.permute.xlu0 %10011
  %10013 = vrot.lane.b32.xlu0 %v8633, 64
  %v10014 = vpop.permute.xlu0 %10013
  %10015 = vrot.lane.b32.xlu0 %v8634, 64
  %v10016 = vpop.permute.xlu0 %10015
  %10017 = vrot.lane.b32.xlu0 %v8635, 64
  %v10018 = vpop.permute.xlu0 %10017
  %10019 = vrot.lane.b32.xlu0 %v8636, 64
  %v10020 = vpop.permute.xlu0 %10019
  %10021 = vrot.lane.b32.xlu0 %v8637, 64
  %v10022 = vpop.permute.xlu0 %10021
  %10023 = vrot.lane.b32.xlu0 %v8638, 64
  %v10024 = vpop.permute.xlu0 %10023
  %10025 = vrot.lane.b32.xlu0 %v8639, 64
  %v10026 = vpop.permute.xlu0 %10025
  %10027 = vrot.lane.b32.xlu0 %v8640, 64
  %v10028 = vpop.permute.xlu0 %10027
  %10029 = vrot.lane.b32.xlu0 %v8641, 64
  %v10030 = vpop.permute.xlu0 %10029
  %10031 = vrot.lane.b32.xlu0 %v8642, 64
  %v10032 = vpop.permute.xlu0 %10031
  %10033 = vrot.lane.b32.xlu0 %v8643, 64
  %v10034 = vpop.permute.xlu0 %10033
  %10035 = vrot.lane.b32.xlu0 %v8644, 64
  %v10036 = vpop.permute.xlu0 %10035
  %10037 = vrot.lane.b32.xlu0 %v8645, 64
  %v10038 = vpop.permute.xlu0 %10037
  %10039 = vrot.lane.b32.xlu0 %v8646, 64
  %v10040 = vpop.permute.xlu0 %10039
  %10041 = vrot.lane.b32.xlu0 %v8647, 64
  %v10042 = vpop.permute.xlu0 %10041
  %v10059 = vmul.f32 %v9948, %v10012
  %v10060 = vmul.f32 %v9950, %v10014
  %v10061 = vmul.f32 %v9952, %v10016
  %v10062 = vmul.f32 %v9954, %v10018
  %v10063 = vmul.f32 %v9956, %v10020
  %v10064 = vmul.f32 %v9958, %v10022
  %v10065 = vmul.f32 %v9960, %v10024
  %v10066 = vmul.f32 %v9962, %v10026
  %v10067 = vmul.f32 %v9964, %v10028
  %v10068 = vmul.f32 %v9966, %v10030
  %v10069 = vmul.f32 %v9968, %v10032
  %v10070 = vmul.f32 %v9970, %v10034
  %v10071 = vmul.f32 %v9972, %v10036
  %v10072 = vmul.f32 %v9974, %v10038
  %v10073 = vmul.f32 %v9976, %v10040
  %v10074 = vmul.f32 %v9978, %v10042
  %v10075 = vadd.f32 %v9915, %v10059
  %v10076 = vadd.f32 %v9916, %v10060
  %v10077 = vadd.f32 %v9917, %v10061
  %v10078 = vadd.f32 %v9918, %v10062
  %v10079 = vadd.f32 %v9919, %v10063
  %v10080 = vadd.f32 %v9920, %v10064
  %v10081 = vadd.f32 %v9921, %v10065
  %v10082 = vadd.f32 %v9922, %v10066
  %v10083 = vadd.f32 %v9923, %v10067
  %v10084 = vadd.f32 %v9924, %v10068
  %v10085 = vadd.f32 %v9925, %v10069
  %v10086 = vadd.f32 %v9926, %v10070
  %v10087 = vadd.f32 %v9927, %v10071
  %v10088 = vadd.f32 %v9928, %v10072
  %v10089 = vadd.f32 %v9929, %v10073
  %v10090 = vadd.f32 %v9930, %v10074
  %v10091 = vsub.f32 %v8921, %v9755
  %v10092 = vsub.f32 %v8922, %v9756
  %v10093 = vsub.f32 %v8923, %v9757
  %v10094 = vsub.f32 %v8924, %v9758
  %v10095 = vsub.f32 %v8925, %v9759
  %v10096 = vsub.f32 %v8926, %v9760
  %v10097 = vsub.f32 %v8927, %v9761
  %v10098 = vsub.f32 %v8928, %v9762
  %v10099 = vsub.f32 %v8929, %v9763
  %v10100 = vsub.f32 %v8930, %v9764
  %v10101 = vsub.f32 %v8931, %v9765
  %v10102 = vsub.f32 %v8932, %v9766
  %v10103 = vsub.f32 %v8933, %v9767
  %v10104 = vsub.f32 %v8934, %v9768
  %v10105 = vsub.f32 %v8935, %v9769
  %v10106 = vsub.f32 %v8936, %v9770
  %v10107 = vmul.f32 %v10091, 1.442695
  %v10108 = vpow.pop %v10107
  %v10109 = vmul.f32 %v10092, 1.442695
  %v10110 = vpow.pop %v10109
  %v10111 = vmul.f32 %v10093, 1.442695
  %v10112 = vpow.pop %v10111
  %v10113 = vmul.f32 %v10094, 1.442695
  %v10114 = vpow.pop %v10113
  %v10115 = vmul.f32 %v10095, 1.442695
  %v10116 = vpow.pop %v10115
  %v10117 = vmul.f32 %v10096, 1.442695
  %v10118 = vpow.pop %v10117
  %v10119 = vmul.f32 %v10097, 1.442695
  %v10120 = vpow.pop %v10119
  %v10121 = vmul.f32 %v10098, 1.442695
  %v10122 = vpow.pop %v10121
  %v10123 = vmul.f32 %v10099, 1.442695
  %v10124 = vpow.pop %v10123
  %v10125 = vmul.f32 %v10100, 1.442695
  %v10126 = vpow.pop %v10125
  %v10127 = vmul.f32 %v10101, 1.442695
  %v10128 = vpow.pop %v10127
  %v10129 = vmul.f32 %v10102, 1.442695
  %v10130 = vpow.pop %v10129
  %v10131 = vmul.f32 %v10103, 1.442695
  %v10132 = vpow.pop %v10131
  %v10133 = vmul.f32 %v10104, 1.442695
  %v10134 = vpow.pop %v10133
  %v10135 = vmul.f32 %v10105, 1.442695
  %v10136 = vpow.pop %v10135
  %v10137 = vmul.f32 %v10106, 1.442695
  %v10138 = vpow.pop %v10137
  %v10139 = vadd.f32 %v9979, %v10108
  %v10140 = vadd.f32 %v9980, %v10110
  %v10141 = vadd.f32 %v9981, %v10112
  %v10142 = vadd.f32 %v9982, %v10114
  %v10143 = vadd.f32 %v9983, %v10116
  %v10144 = vadd.f32 %v9984, %v10118
  %v10145 = vadd.f32 %v9985, %v10120
  %v10146 = vadd.f32 %v9986, %v10122
  %v10147 = vadd.f32 %v9987, %v10124
  %v10148 = vadd.f32 %v9988, %v10126
  %v10149 = vadd.f32 %v9989, %v10128
  %v10150 = vadd.f32 %v9990, %v10130
  %v10151 = vadd.f32 %v9991, %v10132
  %v10152 = vadd.f32 %v9992, %v10134
  %v10153 = vadd.f32 %v9993, %v10136
  %v10154 = vadd.f32 %v9994, %v10138
  %10171 = vrot.lane.b32.xlu0 %v8985, 64
  %v10172 = vpop.permute.xlu0 %10171
  %10173 = vrot.lane.b32.xlu0 %v8986, 64
  %v10174 = vpop.permute.xlu0 %10173
  %10175 = vrot.lane.b32.xlu0 %v8987, 64
  %v10176 = vpop.permute.xlu0 %10175
  %10177 = vrot.lane.b32.xlu0 %v8988, 64
  %v10178 = vpop.permute.xlu0 %10177
  %10179 = vrot.lane.b32.xlu0 %v8989, 64
  %v10180 = vpop.permute.xlu0 %10179
  %10181 = vrot.lane.b32.xlu0 %v8990, 64
  %v10182 = vpop.permute.xlu0 %10181
  %10183 = vrot.lane.b32.xlu0 %v8991, 64
  %v10184 = vpop.permute.xlu0 %10183
  %10185 = vrot.lane.b32.xlu0 %v8992, 64
  %v10186 = vpop.permute.xlu0 %10185
  %10187 = vrot.lane.b32.xlu0 %v8993, 64
  %v10188 = vpop.permute.xlu0 %10187
  %10189 = vrot.lane.b32.xlu0 %v8994, 64
  %v10190 = vpop.permute.xlu0 %10189
  %10191 = vrot.lane.b32.xlu0 %v8995, 64
  %v10192 = vpop.permute.xlu0 %10191
  %10193 = vrot.lane.b32.xlu0 %v8996, 64
  %v10194 = vpop.permute.xlu0 %10193
  %10195 = vrot.lane.b32.xlu0 %v8997, 64
  %v10196 = vpop.permute.xlu0 %10195
  %10197 = vrot.lane.b32.xlu0 %v8998, 64
  %v10198 = vpop.permute.xlu0 %10197
  %10199 = vrot.lane.b32.xlu0 %v8999, 64
  %v10200 = vpop.permute.xlu0 %10199
  %10201 = vrot.lane.b32.xlu0 %v9000, 64
  %v10202 = vpop.permute.xlu0 %10201
  %v10219 = vmul.f32 %v10108, %v10172
  %v10220 = vmul.f32 %v10110, %v10174
  %v10221 = vmul.f32 %v10112, %v10176
  %v10222 = vmul.f32 %v10114, %v10178
  %v10223 = vmul.f32 %v10116, %v10180
  %v10224 = vmul.f32 %v10118, %v10182
  %v10225 = vmul.f32 %v10120, %v10184
  %v10226 = vmul.f32 %v10122, %v10186
  %v10227 = vmul.f32 %v10124, %v10188
  %v10228 = vmul.f32 %v10126, %v10190
  %v10229 = vmul.f32 %v10128, %v10192
  %v10230 = vmul.f32 %v10130, %v10194
  %v10231 = vmul.f32 %v10132, %v10196
  %v10232 = vmul.f32 %v10134, %v10198
  %v10233 = vmul.f32 %v10136, %v10200
  %v10234 = vmul.f32 %v10138, %v10202
  %v10235 = vadd.f32 %v10075, %v10219
  %v10236 = vadd.f32 %v10076, %v10220
  %v10237 = vadd.f32 %v10077, %v10221
  %v10238 = vadd.f32 %v10078, %v10222
  %v10239 = vadd.f32 %v10079, %v10223
  %v10240 = vadd.f32 %v10080, %v10224
  %v10241 = vadd.f32 %v10081, %v10225
  %v10242 = vadd.f32 %v10082, %v10226
  %v10243 = vadd.f32 %v10083, %v10227
  %v10244 = vadd.f32 %v10084, %v10228
  %v10245 = vadd.f32 %v10085, %v10229
  %v10246 = vadd.f32 %v10086, %v10230
  %v10247 = vadd.f32 %v10087, %v10231
  %v10248 = vadd.f32 %v10088, %v10232
  %v10249 = vadd.f32 %v10089, %v10233
  %v10250 = vadd.f32 %v10090, %v10234
  %v10251 = vsub.f32 %v9274, %v9755
  %v10252 = vsub.f32 %v9275, %v9756
  %v10253 = vsub.f32 %v9276, %v9757
  %v10254 = vsub.f32 %v9277, %v9758
  %v10255 = vsub.f32 %v9278, %v9759
  %v10256 = vsub.f32 %v9279, %v9760
  %v10257 = vsub.f32 %v9280, %v9761
  %v10258 = vsub.f32 %v9281, %v9762
  %v10259 = vsub.f32 %v9282, %v9763
  %v10260 = vsub.f32 %v9283, %v9764
  %v10261 = vsub.f32 %v9284, %v9765
  %v10262 = vsub.f32 %v9285, %v9766
  %v10263 = vsub.f32 %v9286, %v9767
  %v10264 = vsub.f32 %v9287, %v9768
  %v10265 = vsub.f32 %v9288, %v9769
  %v10266 = vsub.f32 %v9289, %v9770
  %v10267 = vmul.f32 %v10251, 1.442695
  %v10268 = vpow.pop %v10267
  %v10269 = vmul.f32 %v10252, 1.442695
  %v10270 = vpow.pop %v10269
  %v10271 = vmul.f32 %v10253, 1.442695
  %v10272 = vpow.pop %v10271
  %v10273 = vmul.f32 %v10254, 1.442695
  %v10274 = vpow.pop %v10273
  %v10275 = vmul.f32 %v10255, 1.442695
  %v10276 = vpow.pop %v10275
  %v10277 = vmul.f32 %v10256, 1.442695
  %v10278 = vpow.pop %v10277
  %v10279 = vmul.f32 %v10257, 1.442695
  %v10280 = vpow.pop %v10279
  %v10281 = vmul.f32 %v10258, 1.442695
  %v10282 = vpow.pop %v10281
  %v10283 = vmul.f32 %v10259, 1.442695
  %v10284 = vpow.pop %v10283
  %v10285 = vmul.f32 %v10260, 1.442695
  %v10286 = vpow.pop %v10285
  %v10287 = vmul.f32 %v10261, 1.442695
  %v10288 = vpow.pop %v10287
  %v10289 = vmul.f32 %v10262, 1.442695
  %v10290 = vpow.pop %v10289
  %v10291 = vmul.f32 %v10263, 1.442695
  %v10292 = vpow.pop %v10291
  %v10293 = vmul.f32 %v10264, 1.442695
  %v10294 = vpow.pop %v10293
  %v10295 = vmul.f32 %v10265, 1.442695
  %v10296 = vpow.pop %v10295
  %v10297 = vmul.f32 %v10266, 1.442695
  %v10298 = vpow.pop %v10297
  %v10299 = vadd.f32 %v10139, %v10268
  %v10300 = vadd.f32 %v10140, %v10270
  %v10301 = vadd.f32 %v10141, %v10272
  %v10302 = vadd.f32 %v10142, %v10274
  %v10303 = vadd.f32 %v10143, %v10276
  %v10304 = vadd.f32 %v10144, %v10278
  %v10305 = vadd.f32 %v10145, %v10280
  %v10306 = vadd.f32 %v10146, %v10282
  %v10307 = vadd.f32 %v10147, %v10284
  %v10308 = vadd.f32 %v10148, %v10286
  %v10309 = vadd.f32 %v10149, %v10288
  %v10310 = vadd.f32 %v10150, %v10290
  %v10311 = vadd.f32 %v10151, %v10292
  %v10312 = vadd.f32 %v10152, %v10294
  %v10313 = vadd.f32 %v10153, %v10296
  %v10314 = vadd.f32 %v10154, %v10298
  %10331 = vrot.lane.b32.xlu0 %v9338, 64
  %v10332 = vpop.permute.xlu0 %10331
  %10333 = vrot.lane.b32.xlu0 %v9339, 64
  %v10334 = vpop.permute.xlu0 %10333
  %10335 = vrot.lane.b32.xlu0 %v9340, 64
  %v10336 = vpop.permute.xlu0 %10335
  %10337 = vrot.lane.b32.xlu0 %v9341, 64
  %v10338 = vpop.permute.xlu0 %10337
  %10339 = vrot.lane.b32.xlu0 %v9342, 64
  %v10340 = vpop.permute.xlu0 %10339
  %10341 = vrot.lane.b32.xlu0 %v9343, 64
  %v10342 = vpop.permute.xlu0 %10341
  %10343 = vrot.lane.b32.xlu0 %v9344, 64
  %v10344 = vpop.permute.xlu0 %10343
  %10345 = vrot.lane.b32.xlu0 %v9345, 64
  %v10346 = vpop.permute.xlu0 %10345
  %10347 = vrot.lane.b32.xlu0 %v9346, 64
  %v10348 = vpop.permute.xlu0 %10347
  %10349 = vrot.lane.b32.xlu0 %v9347, 64
  %v10350 = vpop.permute.xlu0 %10349
  %10351 = vrot.lane.b32.xlu0 %v9348, 64
  %v10352 = vpop.permute.xlu0 %10351
  %10353 = vrot.lane.b32.xlu0 %v9349, 64
  %v10354 = vpop.permute.xlu0 %10353
  %10355 = vrot.lane.b32.xlu0 %v9350, 64
  %v10356 = vpop.permute.xlu0 %10355
  %10357 = vrot.lane.b32.xlu0 %v9351, 64
  %v10358 = vpop.permute.xlu0 %10357
  %10359 = vrot.lane.b32.xlu0 %v9352, 64
  %v10360 = vpop.permute.xlu0 %10359
  %10361 = vrot.lane.b32.xlu0 %v9353, 64
  %v10362 = vpop.permute.xlu0 %10361
  %v10379 = vmul.f32 %v10268, %v10332
  %v10380 = vmul.f32 %v10270, %v10334
  %v10381 = vmul.f32 %v10272, %v10336
  %v10382 = vmul.f32 %v10274, %v10338
  %v10383 = vmul.f32 %v10276, %v10340
  %v10384 = vmul.f32 %v10278, %v10342
  %v10385 = vmul.f32 %v10280, %v10344
  %v10386 = vmul.f32 %v10282, %v10346
  %v10387 = vmul.f32 %v10284, %v10348
  %v10388 = vmul.f32 %v10286, %v10350
  %v10389 = vmul.f32 %v10288, %v10352
  %v10390 = vmul.f32 %v10290, %v10354
  %v10391 = vmul.f32 %v10292, %v10356
  %v10392 = vmul.f32 %v10294, %v10358
  %v10393 = vmul.f32 %v10296, %v10360
  %v10394 = vmul.f32 %v10298, %v10362
  %v10395 = vadd.f32 %v10235, %v10379
  %v10396 = vadd.f32 %v10236, %v10380
  %v10397 = vadd.f32 %v10237, %v10381
  %v10398 = vadd.f32 %v10238, %v10382
  %v10399 = vadd.f32 %v10239, %v10383
  %v10400 = vadd.f32 %v10240, %v10384
  %v10401 = vadd.f32 %v10241, %v10385
  %v10402 = vadd.f32 %v10242, %v10386
  %v10403 = vadd.f32 %v10243, %v10387
  %v10404 = vadd.f32 %v10244, %v10388
  %v10405 = vadd.f32 %v10245, %v10389
  %v10406 = vadd.f32 %v10246, %v10390
  %v10407 = vadd.f32 %v10247, %v10391
  %v10408 = vadd.f32 %v10248, %v10392
  %v10409 = vadd.f32 %v10249, %v10393
  %v10410 = vadd.f32 %v10250, %v10394
  %v10411 = vsub.f32 %v9627, %v9755
  %v10412 = vsub.f32 %v9628, %v9756
  %v10413 = vsub.f32 %v9629, %v9757
  %v10414 = vsub.f32 %v9630, %v9758
  %v10415 = vsub.f32 %v9631, %v9759
  %v10416 = vsub.f32 %v9632, %v9760
  %v10417 = vsub.f32 %v9633, %v9761
  %v10418 = vsub.f32 %v9634, %v9762
  %v10419 = vsub.f32 %v9635, %v9763
  %v10420 = vsub.f32 %v9636, %v9764
  %v10421 = vsub.f32 %v9637, %v9765
  %v10422 = vsub.f32 %v9638, %v9766
  %v10423 = vsub.f32 %v9639, %v9767
  %v10424 = vsub.f32 %v9640, %v9768
  %v10425 = vsub.f32 %v9641, %v9769
  %v10426 = vsub.f32 %v9642, %v9770
  %v10427 = vmul.f32 %v10411, 1.442695
  %v10428 = vpow.pop %v10427
  %v10429 = vmul.f32 %v10412, 1.442695
  %v10430 = vpow.pop %v10429
  %v10431 = vmul.f32 %v10413, 1.442695
  %v10432 = vpow.pop %v10431
  %v10433 = vmul.f32 %v10414, 1.442695
  %v10434 = vpow.pop %v10433
  %v10435 = vmul.f32 %v10415, 1.442695
  %v10436 = vpow.pop %v10435
  %v10437 = vmul.f32 %v10416, 1.442695
  %v10438 = vpow.pop %v10437
  %v10439 = vmul.f32 %v10417, 1.442695
  %v10440 = vpow.pop %v10439
  %v10441 = vmul.f32 %v10418, 1.442695
  %v10442 = vpow.pop %v10441
  %v10443 = vmul.f32 %v10419, 1.442695
  %v10444 = vpow.pop %v10443
  %v10445 = vmul.f32 %v10420, 1.442695
  %v10446 = vpow.pop %v10445
  %v10447 = vmul.f32 %v10421, 1.442695
  %v10448 = vpow.pop %v10447
  %v10449 = vmul.f32 %v10422, 1.442695
  %v10450 = vpow.pop %v10449
  %v10451 = vmul.f32 %v10423, 1.442695
  %v10452 = vpow.pop %v10451
  %v10453 = vmul.f32 %v10424, 1.442695
  %v10454 = vpow.pop %v10453
  %v10455 = vmul.f32 %v10425, 1.442695
  %v10456 = vpow.pop %v10455
  %v10457 = vmul.f32 %v10426, 1.442695
  %v10458 = vpow.pop %v10457
  %v10459 = vadd.f32 %v10299, %v10428
  %v10460 = vadd.f32 %v10300, %v10430
  %v10461 = vadd.f32 %v10301, %v10432
  %v10462 = vadd.f32 %v10302, %v10434
  %v10463 = vadd.f32 %v10303, %v10436
  %v10464 = vadd.f32 %v10304, %v10438
  %v10465 = vadd.f32 %v10305, %v10440
  %v10466 = vadd.f32 %v10306, %v10442
  %v10467 = vadd.f32 %v10307, %v10444
  %v10468 = vadd.f32 %v10308, %v10446
  %v10469 = vadd.f32 %v10309, %v10448
  %v10470 = vadd.f32 %v10310, %v10450
  %v10471 = vadd.f32 %v10311, %v10452
  %v10472 = vadd.f32 %v10312, %v10454
  %v10473 = vadd.f32 %v10313, %v10456
  %v10474 = vadd.f32 %v10314, %v10458
  %10491 = vrot.lane.b32.xlu0 %v9691, 64
  %v10492 = vpop.permute.xlu0 %10491
  %10493 = vrot.lane.b32.xlu0 %v9692, 64
  %v10494 = vpop.permute.xlu0 %10493
  %10495 = vrot.lane.b32.xlu0 %v9693, 64
  %v10496 = vpop.permute.xlu0 %10495
  %10497 = vrot.lane.b32.xlu0 %v9694, 64
  %v10498 = vpop.permute.xlu0 %10497
  %10499 = vrot.lane.b32.xlu0 %v9695, 64
  %v10500 = vpop.permute.xlu0 %10499
  %10501 = vrot.lane.b32.xlu0 %v9696, 64
  %v10502 = vpop.permute.xlu0 %10501
  %10503 = vrot.lane.b32.xlu0 %v9697, 64
  %v10504 = vpop.permute.xlu0 %10503
  %10505 = vrot.lane.b32.xlu0 %v9698, 64
  %v10506 = vpop.permute.xlu0 %10505
  %10507 = vrot.lane.b32.xlu0 %v9699, 64
  %v10508 = vpop.permute.xlu0 %10507
  %10509 = vrot.lane.b32.xlu0 %v9700, 64
  %v10510 = vpop.permute.xlu0 %10509
  %10511 = vrot.lane.b32.xlu0 %v9701, 64
  %v10512 = vpop.permute.xlu0 %10511
  %10513 = vrot.lane.b32.xlu0 %v9702, 64
  %v10514 = vpop.permute.xlu0 %10513
  %10515 = vrot.lane.b32.xlu0 %v9703, 64
  %v10516 = vpop.permute.xlu0 %10515
  %10517 = vrot.lane.b32.xlu0 %v9704, 64
  %v10518 = vpop.permute.xlu0 %10517
  %10519 = vrot.lane.b32.xlu0 %v9705, 64
  %v10520 = vpop.permute.xlu0 %10519
  %10521 = vrot.lane.b32.xlu0 %v9706, 64
  %v10522 = vpop.permute.xlu0 %10521
  %v10539 = vmul.f32 %v10428, %v10492
  %v10540 = vmul.f32 %v10430, %v10494
  %v10541 = vmul.f32 %v10432, %v10496
  %v10542 = vmul.f32 %v10434, %v10498
  %v10543 = vmul.f32 %v10436, %v10500
  %v10544 = vmul.f32 %v10438, %v10502
  %v10545 = vmul.f32 %v10440, %v10504
  %v10546 = vmul.f32 %v10442, %v10506
  %v10547 = vmul.f32 %v10444, %v10508
  %v10548 = vmul.f32 %v10446, %v10510
  %v10549 = vmul.f32 %v10448, %v10512
  %v10550 = vmul.f32 %v10450, %v10514
  %v10551 = vmul.f32 %v10452, %v10516
  %v10552 = vmul.f32 %v10454, %v10518
  %v10553 = vmul.f32 %v10456, %v10520
  %v10554 = vmul.f32 %v10458, %v10522
  %v10555 = vadd.f32 %v10395, %v10539
  %v10556 = vadd.f32 %v10396, %v10540
  %v10557 = vadd.f32 %v10397, %v10541
  %v10558 = vadd.f32 %v10398, %v10542
  %v10559 = vadd.f32 %v10399, %v10543
  %v10560 = vadd.f32 %v10400, %v10544
  %v10561 = vadd.f32 %v10401, %v10545
  %v10562 = vadd.f32 %v10402, %v10546
  %v10563 = vadd.f32 %v10403, %v10547
  %v10564 = vadd.f32 %v10404, %v10548
  %v10565 = vadd.f32 %v10405, %v10549
  %v10566 = vadd.f32 %v10406, %v10550
  %v10567 = vadd.f32 %v10407, %v10551
  %v10568 = vadd.f32 %v10408, %v10552
  %v10569 = vadd.f32 %v10409, %v10553
  %v10570 = vadd.f32 %v10410, %v10554
  %v10571 = vrcp.pop %v10459
  %v10572 = vrcp.pop %v10460
  %v10573 = vrcp.pop %v10461
  %v10574 = vrcp.pop %v10462
  %v10575 = vrcp.pop %v10463
  %v10576 = vrcp.pop %v10464
  %v10577 = vrcp.pop %v10465
  %v10578 = vrcp.pop %v10466
  %v10579 = vrcp.pop %v10467
  %v10580 = vrcp.pop %v10468
  %v10581 = vrcp.pop %v10469
  %v10582 = vrcp.pop %v10470
  %v10583 = vrcp.pop %v10471
  %v10584 = vrcp.pop %v10472
  %v10585 = vrcp.pop %v10473
  %v10586 = vrcp.pop %v10474
  %v10587 = vmul.f32 %v10555, %v10571
  %v10588 = vmul.f32 %v10556, %v10572
  %v10589 = vmul.f32 %v10557, %v10573
  %v10590 = vmul.f32 %v10558, %v10574
  %v10591 = vmul.f32 %v10559, %v10575
  %v10592 = vmul.f32 %v10560, %v10576
  %v10593 = vmul.f32 %v10561, %v10577
  %v10594 = vmul.f32 %v10562, %v10578
  %v10595 = vmul.f32 %v10563, %v10579
  %v10596 = vmul.f32 %v10564, %v10580
  %v10597 = vmul.f32 %v10565, %v10581
  %v10598 = vmul.f32 %v10566, %v10582
  %v10599 = vmul.f32 %v10567, %v10583
  %v10600 = vmul.f32 %v10568, %v10584
  %v10601 = vmul.f32 %v10569, %v10585
  %v10602 = vmul.f32 %v10570, %v10586
  %v10603 = vadd.f32 %v8071, %v2787
  %v10604 = vadd.f32 %v8075, %v2791
  %v10605 = vadd.f32 %v8081, %v2797
  %v10606 = vadd.f32 %v8085, %v2801
  %v10607 = vadd.f32 %v8091, %v2807
  %v10608 = vadd.f32 %v8095, %v2811
  %v10609 = vadd.f32 %v8101, %v2817
  %v10610 = vadd.f32 %v8105, %v2821
  %v10611 = vadd.f32 %v8111, %v2827
  %v10612 = vadd.f32 %v8115, %v2831
  %v10613 = vadd.f32 %v8121, %v2837
  %v10614 = vadd.f32 %v8125, %v2841
  %v10615 = vadd.f32 %v8131, %v2847
  %v10616 = vadd.f32 %v8135, %v2851
  %v10617 = vadd.f32 %v8141, %v2857
  %v10618 = vadd.f32 %v8145, %v2861
  %v10619 = vld [vmem:[%s6 + $0x3] sm:$0x1]
  %v10620 = vpack.c.bf16 %v10604, %v10603
  %v10621 = vpack.c.bf16 %v10606, %v10605
  %v10622 = vpack.c.bf16 %v10608, %v10607
  %v10623 = vpack.c.bf16 %v10610, %v10609
  %v10624 = vpack.c.bf16 %v10612, %v10611
  %v10625 = vpack.c.bf16 %v10614, %v10613
  %v10626 = vpack.c.bf16 %v10616, %v10615
  %v10627 = vpack.c.bf16 %v10618, %v10617
  %10644 = vrot.lane.b32.xlu0 %v10603, 96
  %v10645 = vpop.permute.xlu0 %10644
  %10646 = vrot.lane.b32.xlu0 %v10604, 96
  %v10647 = vpop.permute.xlu0 %10646
  %10648 = vrot.lane.b32.xlu0 %v10605, 96
  %v10649 = vpop.permute.xlu0 %10648
  %10650 = vrot.lane.b32.xlu0 %v10606, 96
  %v10651 = vpop.permute.xlu0 %10650
  %10652 = vrot.lane.b32.xlu0 %v10607, 96
  %v10653 = vpop.permute.xlu0 %10652
  %10654 = vrot.lane.b32.xlu0 %v10608, 96
  %v10655 = vpop.permute.xlu0 %10654
  %10656 = vrot.lane.b32.xlu0 %v10609, 96
  %v10657 = vpop.permute.xlu0 %10656
  %10658 = vrot.lane.b32.xlu0 %v10610, 96
  %v10659 = vpop.permute.xlu0 %10658
  %10660 = vrot.lane.b32.xlu0 %v10611, 96
  %v10661 = vpop.permute.xlu0 %10660
  %10662 = vrot.lane.b32.xlu0 %v10612, 96
  %v10663 = vpop.permute.xlu0 %10662
  %10664 = vrot.lane.b32.xlu0 %v10613, 96
  %v10665 = vpop.permute.xlu0 %10664
  %10666 = vrot.lane.b32.xlu0 %v10614, 96
  %v10667 = vpop.permute.xlu0 %10666
  %10668 = vrot.lane.b32.xlu0 %v10615, 96
  %v10669 = vpop.permute.xlu0 %10668
  %10670 = vrot.lane.b32.xlu0 %v10616, 96
  %v10671 = vpop.permute.xlu0 %10670
  %10672 = vrot.lane.b32.xlu0 %v10617, 96
  %v10673 = vpop.permute.xlu0 %10672
  %10674 = vrot.lane.b32.xlu0 %v10618, 96
  %v10675 = vpop.permute.xlu0 %10674
  %v10692 = vsub.f32 %v10603, %v10645
  %v10693 = vsub.f32 %v10604, %v10647
  %v10694 = vsub.f32 %v10605, %v10649
  %v10695 = vsub.f32 %v10606, %v10651
  %v10696 = vsub.f32 %v10607, %v10653
  %v10697 = vsub.f32 %v10608, %v10655
  %v10698 = vsub.f32 %v10609, %v10657
  %v10699 = vsub.f32 %v10610, %v10659
  %v10700 = vsub.f32 %v10611, %v10661
  %v10701 = vsub.f32 %v10612, %v10663
  %v10702 = vsub.f32 %v10613, %v10665
  %v10703 = vsub.f32 %v10614, %v10667
  %v10704 = vsub.f32 %v10615, %v10669
  %v10705 = vsub.f32 %v10616, %v10671
  %v10706 = vsub.f32 %v10617, %v10673
  %v10707 = vsub.f32 %v10618, %v10675
  %v10708 = vlaneseq
  %v10709 = vshrl.u32 %v10708, 7
  %v10710 = vsub.s32 0, %v10709
  %v10711 = vrot.slane %v10619, %v10710
  %v10712 = vadd.f32 %v10692, %v10711
  %v10713 = vadd.f32 %v10693, %v10711
  %v10714 = vadd.f32 %v10694, %v10711
  %v10715 = vadd.f32 %v10695, %v10711
  %v10716 = vadd.f32 %v10696, %v10711
  %v10717 = vadd.f32 %v10697, %v10711
  %v10718 = vadd.f32 %v10698, %v10711
  %v10719 = vadd.f32 %v10699, %v10711
  %v10720 = vadd.f32 %v10700, %v10711
  %v10721 = vadd.f32 %v10701, %v10711
  %v10722 = vadd.f32 %v10702, %v10711
  %v10723 = vadd.f32 %v10703, %v10711
  %v10724 = vadd.f32 %v10704, %v10711
  %v10725 = vadd.f32 %v10705, %v10711
  %v10726 = vadd.f32 %v10706, %v10711
  %v10727 = vadd.f32 %v10707, %v10711
  %10729 = vrot.lane.b32.xlu0 %v10711, 64
  %v10730 = vpop.permute.xlu0 %10729
  %v10732 = vadd.f32 %v10603, %v10730
  %v10733 = vadd.f32 %v10604, %v10730
  %v10734 = vadd.f32 %v10605, %v10730
  %v10735 = vadd.f32 %v10606, %v10730
  %v10736 = vadd.f32 %v10607, %v10730
  %v10737 = vadd.f32 %v10608, %v10730
  %v10738 = vadd.f32 %v10609, %v10730
  %v10739 = vadd.f32 %v10610, %v10730
  %v10740 = vadd.f32 %v10611, %v10730
  %v10741 = vadd.f32 %v10612, %v10730
  %v10742 = vadd.f32 %v10613, %v10730
  %v10743 = vadd.f32 %v10614, %v10730
  %v10744 = vadd.f32 %v10615, %v10730
  %v10745 = vadd.f32 %v10616, %v10730
  %v10746 = vadd.f32 %v10617, %v10730
  %v10747 = vadd.f32 %v10618, %v10730
  %10748 = vmatprep.subr.bf16.mxu0 0
  %10749 = vmatpush1.bf16.msra.mxu0 %v10620
  %10750 = vmatprep.subr.bf16.mxu0 0
  %10751 = vmatpush1.bf16.msra.mxu0 %v10621
  %10752 = vmatprep.subr.bf16.mxu0 0
  %10753 = vmatpush1.bf16.msra.mxu0 %v10622
  %10754 = vmatprep.subr.bf16.mxu0 0
  %10755 = vmatpush1.bf16.msra.mxu0 %v10623
  %10756 = vmatprep.subr.bf16.mxu0 0
  %10757 = vmatpush1.bf16.msra.mxu0 %v10624
  %10758 = vmatprep.subr.bf16.mxu0 0
  %10759 = vmatpush1.bf16.msra.mxu0 %v10625
  %10760 = vmatprep.subr.bf16.mxu0 0
  %10761 = vmatpush1.bf16.msra.mxu0 %v10626
  %10762 = vmatprep.subr.bf16.mxu0 0
  %10763 = vmatpush1.bf16.msra.mxu0 %v10627
  %10764 = vmatprep.subr.bf16.mxu0 0
  %10765 = vmatpush1.bf16.msra.mxu0 0
  %10766 = vmatprep.subr.bf16.mxu0 0
  %10767 = vmatpush1.bf16.msra.mxu0 0
  %10768 = vmatprep.subr.bf16.mxu0 0
  %10769 = vmatpush1.bf16.msra.mxu0 0
  %10770 = vmatprep.subr.bf16.mxu0 0
  %10771 = vmatpush1.bf16.msra.mxu0 0
  %10772 = vmatprep.subr.bf16.mxu0 0
  %10773 = vmatpush1.bf16.msra.mxu0 0
  %10774 = vmatprep.subr.bf16.mxu0 0
  %10775 = vmatpush1.bf16.msra.mxu0 0
  %10776 = vmatprep.subr.bf16.mxu0 0
  %10777 = vmatpush1.bf16.msra.mxu0 0
  %10778 = vmatprep.subr.bf16.mxu0 0
  %10779 = vmatpush1.bf16.msra.mxu0 0
  %10780 = vmatprep.mubr.bf16.mxu0 0
  %10781 = vmatmul.mubr.bf16.gmra.mrb[0].mxu0 %v949
  %v10782 = vpop.f32.mrb[0].mxu0
  %v10783 = vadd.f32 0.0, %v10782
  %v10784 = vpop.f32.mrb[0].mxu0
  %v10785 = vpop.f32.mrb[0].mxu0
  %v10786 = vadd.f32 0.0, %v10785
  %v10787 = vpop.f32.mrb[0].mxu0
  %10788 = vmatprep.mubr.bf16.mxu0 0
  %10789 = vmatmul.mubr.bf16.gmra.mrb[0].mxu0 %v950
  %v10790 = vpop.f32.mrb[0].mxu0
  %v10791 = vadd.f32 0.0, %v10790
  %v10792 = vpop.f32.mrb[0].mxu0
  %v10793 = vpop.f32.mrb[0].mxu0
  %v10794 = vadd.f32 0.0, %v10793
  %v10795 = vpop.f32.mrb[0].mxu0
  %10796 = vmatprep.mubr.bf16.mxu0 0
  %10797 = vmatmul.mubr.bf16.gmra.mrb[0].mxu0 %v951
  %v10798 = vpop.f32.mrb[0].mxu0
  %v10799 = vadd.f32 0.0, %v10798
  %v10800 = vpop.f32.mrb[0].mxu0
  %v10801 = vpop.f32.mrb[0].mxu0
  %v10802 = vadd.f32 0.0, %v10801
  %v10803 = vpop.f32.mrb[0].mxu0
  %10804 = vmatprep.mubr.bf16.mxu0 0
  %10805 = vmatmul.mubr.bf16.gmra.mrb[0].mxu0 %v952
  %v10806 = vpop.f32.mrb[0].mxu0
  %v10807 = vadd.f32 0.0, %v10806
  %v10808 = vpop.f32.mrb[0].mxu0
  %v10809 = vpop.f32.mrb[0].mxu0
  %v10810 = vadd.f32 0.0, %v10809
  %v10811 = vpop.f32.mrb[0].mxu0
  %10812 = vmatprep.mubr.bf16.mxu0 0
  %10813 = vmatmul.mubr.bf16.gmra.mrb[0].mxu0 %v953
  %v10814 = vpop.f32.mrb[0].mxu0
  %v10815 = vadd.f32 0.0, %v10814
  %v10816 = vpop.f32.mrb[0].mxu0
  %v10817 = vpop.f32.mrb[0].mxu0
  %v10818 = vadd.f32 0.0, %v10817
  %v10819 = vpop.f32.mrb[0].mxu0
  %10820 = vmatprep.mubr.bf16.mxu0 0
  %10821 = vmatmul.mubr.bf16.gmra.mrb[0].mxu0 %v954
  %v10822 = vpop.f32.mrb[0].mxu0
  %v10823 = vadd.f32 0.0, %v10822
  %v10824 = vpop.f32.mrb[0].mxu0
  %v10825 = vpop.f32.mrb[0].mxu0
  %v10826 = vadd.f32 0.0, %v10825
  %v10827 = vpop.f32.mrb[0].mxu0
  %10828 = vmatprep.mubr.bf16.mxu0 0
  %10829 = vmatmul.mubr.bf16.gmra.mrb[0].mxu0 %v955
  %v10830 = vpop.f32.mrb[0].mxu0
  %v10831 = vadd.f32 0.0, %v10830
  %v10832 = vpop.f32.mrb[0].mxu0
  %v10833 = vpop.f32.mrb[0].mxu0
  %v10834 = vadd.f32 0.0, %v10833
  %v10835 = vpop.f32.mrb[0].mxu0
  %10836 = vmatprep.mubr.bf16.mxu0 0
  %10837 = vmatmul.mubr.bf16.gmra.mrb[0].mxu0 %v956
  %v10838 = vpop.f32.mrb[0].mxu0
  %v10839 = vadd.f32 0.0, %v10838
  %v10840 = vpop.f32.mrb[0].mxu0
  %v10841 = vpop.f32.mrb[0].mxu0
  %v10842 = vadd.f32 0.0, %v10841
  %v10843 = vpop.f32.mrb[0].mxu0
  %10844 = vdwg.mxu0
  %v10845 = vsub.f32 %v10603, %v10783
  %v10846 = vsub.f32 %v10604, %v10786
  %v10847 = vsub.f32 %v10605, %v10791
  %v10848 = vsub.f32 %v10606, %v10794
  %v10849 = vsub.f32 %v10607, %v10799
  %v10850 = vsub.f32 %v10608, %v10802
  %v10851 = vsub.f32 %v10609, %v10807
  %v10852 = vsub.f32 %v10610, %v10810
  %v10853 = vsub.f32 %v10611, %v10815
  %v10854 = vsub.f32 %v10612, %v10818
  %v10855 = vsub.f32 %v10613, %v10823
  %v10856 = vsub.f32 %v10614, %v10826
  %v10857 = vsub.f32 %v10615, %v10831
  %v10858 = vsub.f32 %v10616, %v10834
  %v10859 = vsub.f32 %v10617, %v10839
  %v10860 = vsub.f32 %v10618, %v10842
  %10861 = vrot.lane.b32.xlu0 %v10711, 96
  %v10862 = vpop.permute.xlu0 %10861
  %v10864 = vadd.f32 %v10845, %v10862
  %v10865 = vadd.f32 %v10846, %v10862
  %v10866 = vadd.f32 %v10847, %v10862
  %v10867 = vadd.f32 %v10848, %v10862
  %v10868 = vadd.f32 %v10849, %v10862
  %v10869 = vadd.f32 %v10850, %v10862
  %v10870 = vadd.f32 %v10851, %v10862
  %v10871 = vadd.f32 %v10852, %v10862
  %v10872 = vadd.f32 %v10853, %v10862
  %v10873 = vadd.f32 %v10854, %v10862
  %v10874 = vadd.f32 %v10855, %v10862
  %v10875 = vadd.f32 %v10856, %v10862
  %v10876 = vadd.f32 %v10857, %v10862
  %v10877 = vadd.f32 %v10858, %v10862
  %v10878 = vadd.f32 %v10859, %v10862
  %v10879 = vadd.f32 %v10860, %v10862
  %10896 = vrot.lane.b32.xlu0 %v10783, 96
  %v10897 = vpop.permute.xlu0 %10896
  %10898 = vrot.lane.b32.xlu0 %v10786, 96
  %v10899 = vpop.permute.xlu0 %10898
  %10900 = vrot.lane.b32.xlu0 %v10791, 96
  %v10901 = vpop.permute.xlu0 %10900
  %10902 = vrot.lane.b32.xlu0 %v10794, 96
  %v10903 = vpop.permute.xlu0 %10902
  %10904 = vrot.lane.b32.xlu0 %v10799, 96
  %v10905 = vpop.permute.xlu0 %10904
  %10906 = vrot.lane.b32.xlu0 %v10802, 96
  %v10907 = vpop.permute.xlu0 %10906
  %10908 = vrot.lane.b32.xlu0 %v10807, 96
  %v10909 = vpop.permute.xlu0 %10908
  %10910 = vrot.lane.b32.xlu0 %v10810, 96
  %v10911 = vpop.permute.xlu0 %10910
  %10912 = vrot.lane.b32.xlu0 %v10815, 96
  %v10913 = vpop.permute.xlu0 %10912
  %10914 = vrot.lane.b32.xlu0 %v10818, 96
  %v10915 = vpop.permute.xlu0 %10914
  %10916 = vrot.lane.b32.xlu0 %v10823, 96
  %v10917 = vpop.permute.xlu0 %10916
  %10918 = vrot.lane.b32.xlu0 %v10826, 96
  %v10919 = vpop.permute.xlu0 %10918
  %10920 = vrot.lane.b32.xlu0 %v10831, 96
  %v10921 = vpop.permute.xlu0 %10920
  %10922 = vrot.lane.b32.xlu0 %v10834, 96
  %v10923 = vpop.permute.xlu0 %10922
  %10924 = vrot.lane.b32.xlu0 %v10839, 96
  %v10925 = vpop.permute.xlu0 %10924
  %10926 = vrot.lane.b32.xlu0 %v10842, 96
  %v10927 = vpop.permute.xlu0 %10926
  %v10944 = vsub.f32 %v10603, %v10897
  %v10945 = vsub.f32 %v10604, %v10899
  %v10946 = vsub.f32 %v10605, %v10901
  %v10947 = vsub.f32 %v10606, %v10903
  %v10948 = vsub.f32 %v10607, %v10905
  %v10949 = vsub.f32 %v10608, %v10907
  %v10950 = vsub.f32 %v10609, %v10909
  %v10951 = vsub.f32 %v10610, %v10911
  %v10952 = vsub.f32 %v10611, %v10913
  %v10953 = vsub.f32 %v10612, %v10915
  %v10954 = vsub.f32 %v10613, %v10917
  %v10955 = vsub.f32 %v10614, %v10919
  %v10956 = vsub.f32 %v10615, %v10921
  %v10957 = vsub.f32 %v10616, %v10923
  %v10958 = vsub.f32 %v10617, %v10925
  %v10959 = vsub.f32 %v10618, %v10927
  %10976 = vrot.lane.b32.xlu0 %v10864, 32
  %v10977 = vpop.permute.xlu0 %10976
  %10978 = vrot.lane.b32.xlu0 %v10865, 32
  %v10979 = vpop.permute.xlu0 %10978
  %10980 = vrot.lane.b32.xlu0 %v10866, 32
  %v10981 = vpop.permute.xlu0 %10980
  %10982 = vrot.lane.b32.xlu0 %v10867, 32
  %v10983 = vpop.permute.xlu0 %10982
  %10984 = vrot.lane.b32.xlu0 %v10868, 32
  %v10985 = vpop.permute.xlu0 %10984
  %10986 = vrot.lane.b32.xlu0 %v10869, 32
  %v10987 = vpop.permute.xlu0 %10986
  %10988 = vrot.lane.b32.xlu0 %v10870, 32
  %v10989 = vpop.permute.xlu0 %10988
  %10990 = vrot.lane.b32.xlu0 %v10871, 32
  %v10991 = vpop.permute.xlu0 %10990
  %10992 = vrot.lane.b32.xlu0 %v10872, 32
  %v10993 = vpop.permute.xlu0 %10992
  %10994 = vrot.lane.b32.xlu0 %v10873, 32
  %v10995 = vpop.permute.xlu0 %10994
  %10996 = vrot.lane.b32.xlu0 %v10874, 32
  %v10997 = vpop.permute.xlu0 %10996
  %10998 = vrot.lane.b32.xlu0 %v10875, 32
  %v10999 = vpop.permute.xlu0 %10998
  %11000 = vrot.lane.b32.xlu0 %v10876, 32
  %v11001 = vpop.permute.xlu0 %11000
  %11002 = vrot.lane.b32.xlu0 %v10877, 32
  %v11003 = vpop.permute.xlu0 %11002
  %11004 = vrot.lane.b32.xlu0 %v10878, 32
  %v11005 = vpop.permute.xlu0 %11004
  %11006 = vrot.lane.b32.xlu0 %v10879, 32
  %v11007 = vpop.permute.xlu0 %11006
  %v11024 = vadd.f32 %v10944, %v10977
  %v11025 = vadd.f32 %v10945, %v10979
  %v11026 = vadd.f32 %v10946, %v10981
  %v11027 = vadd.f32 %v10947, %v10983
  %v11028 = vadd.f32 %v10948, %v10985
  %v11029 = vadd.f32 %v10949, %v10987
  %v11030 = vadd.f32 %v10950, %v10989
  %v11031 = vadd.f32 %v10951, %v10991
  %v11032 = vadd.f32 %v10952, %v10993
  %v11033 = vadd.f32 %v10953, %v10995
  %v11034 = vadd.f32 %v10954, %v10997
  %v11035 = vadd.f32 %v10955, %v10999
  %v11036 = vadd.f32 %v10956, %v11001
  %v11037 = vadd.f32 %v10957, %v11003
  %v11038 = vadd.f32 %v10958, %v11005
  %v11039 = vadd.f32 %v10959, %v11007
  %11040 = vrot.lane.b32.xlu0 %v10864, 96
  %v11041 = vpop.permute.xlu0 %11040
  %11042 = vrot.lane.b32.xlu0 %v10865, 96
  %v11043 = vpop.permute.xlu0 %11042
  %11044 = vrot.lane.b32.xlu0 %v10866, 96
  %v11045 = vpop.permute.xlu0 %11044
  %11046 = vrot.lane.b32.xlu0 %v10867, 96
  %v11047 = vpop.permute.xlu0 %11046
  %11048 = vrot.lane.b32.xlu0 %v10868, 96
  %v11049 = vpop.permute.xlu0 %11048
  %11050 = vrot.lane.b32.xlu0 %v10869, 96
  %v11051 = vpop.permute.xlu0 %11050
  %11052 = vrot.lane.b32.xlu0 %v10870, 96
  %v11053 = vpop.permute.xlu0 %11052
  %11054 = vrot.lane.b32.xlu0 %v10871, 96
  %v11055 = vpop.permute.xlu0 %11054
  %11056 = vrot.lane.b32.xlu0 %v10872, 96
  %v11057 = vpop.permute.xlu0 %11056
  %11058 = vrot.lane.b32.xlu0 %v10873, 96
  %v11059 = vpop.permute.xlu0 %11058
  %11060 = vrot.lane.b32.xlu0 %v10874, 96
  %v11061 = vpop.permute.xlu0 %11060
  %11062 = vrot.lane.b32.xlu0 %v10875, 96
  %v11063 = vpop.permute.xlu0 %11062
  %11064 = vrot.lane.b32.xlu0 %v10876, 96
  %v11065 = vpop.permute.xlu0 %11064
  %11066 = vrot.lane.b32.xlu0 %v10877, 96
  %v11067 = vpop.permute.xlu0 %11066
  %11068 = vrot.lane.b32.xlu0 %v10878, 96
  %v11069 = vpop.permute.xlu0 %11068
  %11070 = vrot.lane.b32.xlu0 %v10879, 96
  %v11071 = vpop.permute.xlu0 %11070
  %v11088 = vadd.f32 %v10783, %v11041
  %v11089 = vadd.f32 %v10786, %v11043
  %v11090 = vadd.f32 %v10791, %v11045
  %v11091 = vadd.f32 %v10794, %v11047
  %v11092 = vadd.f32 %v10799, %v11049
  %v11093 = vadd.f32 %v10802, %v11051
  %v11094 = vadd.f32 %v10807, %v11053
  %v11095 = vadd.f32 %v10810, %v11055
  %v11096 = vadd.f32 %v10815, %v11057
  %v11097 = vadd.f32 %v10818, %v11059
  %v11098 = vadd.f32 %v10823, %v11061
  %v11099 = vadd.f32 %v10826, %v11063
  %v11100 = vadd.f32 %v10831, %v11065
  %v11101 = vadd.f32 %v10834, %v11067
  %v11102 = vadd.f32 %v10839, %v11069
  %v11103 = vadd.f32 %v10842, %v11071
  %11104 = vmatprep.subr.bf16.mxu0 0
  %11105 = vmatpush1.bf16.msra.mxu0 %v10620
  %11106 = vmatprep.subr.bf16.mxu0 0
  %11107 = vmatpush1.bf16.msra.mxu0 %v10621
  %11108 = vmatprep.subr.bf16.mxu0 0
  %11109 = vmatpush1.bf16.msra.mxu0 %v10622
  %11110 = vmatprep.subr.bf16.mxu0 0
  %11111 = vmatpush1.bf16.msra.mxu0 %v10623
  %11112 = vmatprep.subr.bf16.mxu0 0
  %11113 = vmatpush1.bf16.msra.mxu0 %v10624
  %11114 = vmatprep.subr.bf16.mxu0 0
  %11115 = vmatpush1.bf16.msra.mxu0 %v10625
  %11116 = vmatprep.subr.bf16.mxu0 0
  %11117 = vmatpush1.bf16.msra.mxu0 %v10626
  %11118 = vmatprep.subr.bf16.mxu0 0
  %11119 = vmatpush1.bf16.msra.mxu0 %v10627
  %11120 = vmatprep.subr.bf16.mxu0 0
  %11121 = vmatpush1.bf16.msra.mxu0 0
  %11122 = vmatprep.subr.bf16.mxu0 0
  %11123 = vmatpush1.bf16.msra.mxu0 0
  %11124 = vmatprep.subr.bf16.mxu0 0
  %11125 = vmatpush1.bf16.msra.mxu0 0
  %11126 = vmatprep.subr.bf16.mxu0 0
  %11127 = vmatpush1.bf16.msra.mxu0 0
  %11128 = vmatprep.subr.bf16.mxu0 0
  %11129 = vmatpush1.bf16.msra.mxu0 0
  %11130 = vmatprep.subr.bf16.mxu0 0
  %11131 = vmatpush1.bf16.msra.mxu0 0
  %11132 = vmatprep.subr.bf16.mxu0 0
  %11133 = vmatpush1.bf16.msra.mxu0 0
  %11134 = vmatprep.subr.bf16.mxu0 0
  %11135 = vmatpush1.bf16.msra.mxu0 0
  %11136 = vmatprep.mubr.bf16.mxu0 0
  %11137 = vmatmul.mubr.bf16.gmra.mrb[0].mxu0 %v965
  %v11138 = vpop.f32.mrb[0].mxu0
  %v11139 = vadd.f32 0.0, %v11138
  %v11140 = vpop.f32.mrb[0].mxu0
  %v11141 = vpop.f32.mrb[0].mxu0
  %v11142 = vadd.f32 0.0, %v11141
  %v11143 = vpop.f32.mrb[0].mxu0
  %11144 = vmatprep.mubr.bf16.mxu0 0
  %11145 = vmatmul.mubr.bf16.gmra.mrb[0].mxu0 %v966
  %v11146 = vpop.f32.mrb[0].mxu0
  %v11147 = vadd.f32 0.0, %v11146
  %v11148 = vpop.f32.mrb[0].mxu0
  %v11149 = vpop.f32.mrb[0].mxu0
  %v11150 = vadd.f32 0.0, %v11149
  %v11151 = vpop.f32.mrb[0].mxu0
  %11152 = vmatprep.mubr.bf16.mxu0 0
  %11153 = vmatmul.mubr.bf16.gmra.mrb[0].mxu0 %v967
  %v11154 = vpop.f32.mrb[0].mxu0
  %v11155 = vadd.f32 0.0, %v11154
  %v11156 = vpop.f32.mrb[0].mxu0
  %v11157 = vpop.f32.mrb[0].mxu0
  %v11158 = vadd.f32 0.0, %v11157
  %v11159 = vpop.f32.mrb[0].mxu0
  %11160 = vmatprep.mubr.bf16.mxu0 0
  %11161 = vmatmul.mubr.bf16.gmra.mrb[0].mxu0 %v968
  %v11162 = vpop.f32.mrb[0].mxu0
  %v11163 = vadd.f32 0.0, %v11162
  %v11164 = vpop.f32.mrb[0].mxu0
  %v11165 = vpop.f32.mrb[0].mxu0
  %v11166 = vadd.f32 0.0, %v11165
  %v11167 = vpop.f32.mrb[0].mxu0
  %11168 = vmatprep.mubr.bf16.mxu0 0
  %11169 = vmatmul.mubr.bf16.gmra.mrb[0].mxu0 %v969
  %v11170 = vpop.f32.mrb[0].mxu0
  %v11171 = vadd.f32 0.0, %v11170
  %v11172 = vpop.f32.mrb[0].mxu0
  %v11173 = vpop.f32.mrb[0].mxu0
  %v11174 = vadd.f32 0.0, %v11173
  %v11175 = vpop.f32.mrb[0].mxu0
  %11176 = vmatprep.mubr.bf16.mxu0 0
  %11177 = vmatmul.mubr.bf16.gmra.mrb[0].mxu0 %v970
  %v11178 = vpop.f32.mrb[0].mxu0
  %v11179 = vadd.f32 0.0, %v11178
  %v11180 = vpop.f32.mrb[0].mxu0
  %v11181 = vpop.f32.mrb[0].mxu0
  %v11182 = vadd.f32 0.0, %v11181
  %v11183 = vpop.f32.mrb[0].mxu0
  %11184 = vmatprep.mubr.bf16.mxu0 0
  %11185 = vmatmul.mubr.bf16.gmra.mrb[0].mxu0 %v971
  %v11186 = vpop.f32.mrb[0].mxu0
  %v11187 = vadd.f32 0.0, %v11186
  %v11188 = vpop.f32.mrb[0].mxu0
  %v11189 = vpop.f32.mrb[0].mxu0
  %v11190 = vadd.f32 0.0, %v11189
  %v11191 = vpop.f32.mrb[0].mxu0
  %11192 = vmatprep.mubr.bf16.mxu0 0
  %11193 = vmatmul.mubr.bf16.gmra.mrb[0].mxu0 %v972
  %v11194 = vpop.f32.mrb[0].mxu0
  %v11195 = vadd.f32 0.0, %v11194
  %v11196 = vpop.f32.mrb[0].mxu0
  %v11197 = vpop.f32.mrb[0].mxu0
  %v11198 = vadd.f32 0.0, %v11197
  %v11199 = vpop.f32.mrb[0].mxu0
  %11200 = vdwg.mxu0
  %v11201 = vsub.f32 %v10603, %v11139
  %v11202 = vsub.f32 %v10604, %v11142
  %v11203 = vsub.f32 %v10605, %v11147
  %v11204 = vsub.f32 %v10606, %v11150
  %v11205 = vsub.f32 %v10607, %v11155
  %v11206 = vsub.f32 %v10608, %v11158
  %v11207 = vsub.f32 %v10609, %v11163
  %v11208 = vsub.f32 %v10610, %v11166
  %v11209 = vsub.f32 %v10611, %v11171
  %v11210 = vsub.f32 %v10612, %v11174
  %v11211 = vsub.f32 %v10613, %v11179
  %v11212 = vsub.f32 %v10614, %v11182
  %v11213 = vsub.f32 %v10615, %v11187
  %v11214 = vsub.f32 %v10616, %v11190
  %v11215 = vsub.f32 %v10617, %v11195
  %v11216 = vsub.f32 %v10618, %v11198
  %v11217 = vadd.f32 %v11201, %v10862
  %v11218 = vadd.f32 %v11202, %v10862
  %v11219 = vadd.f32 %v11203, %v10862
  %v11220 = vadd.f32 %v11204, %v10862
  %v11221 = vadd.f32 %v11205, %v10862
  %v11222 = vadd.f32 %v11206, %v10862
  %v11223 = vadd.f32 %v11207, %v10862
  %v11224 = vadd.f32 %v11208, %v10862
  %v11225 = vadd.f32 %v11209, %v10862
  %v11226 = vadd.f32 %v11210, %v10862
  %v11227 = vadd.f32 %v11211, %v10862
  %v11228 = vadd.f32 %v11212, %v10862
  %v11229 = vadd.f32 %v11213, %v10862
  %v11230 = vadd.f32 %v11214, %v10862
  %v11231 = vadd.f32 %v11215, %v10862
  %v11232 = vadd.f32 %v11216, %v10862
  %11249 = vrot.lane.b32.xlu0 %v11139, 96
  %v11250 = vpop.permute.xlu0 %11249
  %11251 = vrot.lane.b32.xlu0 %v11142, 96
  %v11252 = vpop.permute.xlu0 %11251
  %11253 = vrot.lane.b32.xlu0 %v11147, 96
  %v11254 = vpop.permute.xlu0 %11253
  %11255 = vrot.lane.b32.xlu0 %v11150, 96
  %v11256 = vpop.permute.xlu0 %11255
  %11257 = vrot.lane.b32.xlu0 %v11155, 96
  %v11258 = vpop.permute.xlu0 %11257
  %11259 = vrot.lane.b32.xlu0 %v11158, 96
  %v11260 = vpop.permute.xlu0 %11259
  %11261 = vrot.lane.b32.xlu0 %v11163, 96
  %v11262 = vpop.permute.xlu0 %11261
  %11263 = vrot.lane.b32.xlu0 %v11166, 96
  %v11264 = vpop.permute.xlu0 %11263
  %11265 = vrot.lane.b32.xlu0 %v11171, 96
  %v11266 = vpop.permute.xlu0 %11265
  %11267 = vrot.lane.b32.xlu0 %v11174, 96
  %v11268 = vpop.permute.xlu0 %11267
  %11269 = vrot.lane.b32.xlu0 %v11179, 96
  %v11270 = vpop.permute.xlu0 %11269
  %11271 = vrot.lane.b32.xlu0 %v11182, 96
  %v11272 = vpop.permute.xlu0 %11271
  %11273 = vrot.lane.b32.xlu0 %v11187, 96
  %v11274 = vpop.permute.xlu0 %11273
  %11275 = vrot.lane.b32.xlu0 %v11190, 96
  %v11276 = vpop.permute.xlu0 %11275
  %11277 = vrot.lane.b32.xlu0 %v11195, 96
  %v11278 = vpop.permute.xlu0 %11277
  %11279 = vrot.lane.b32.xlu0 %v11198, 96
  %v11280 = vpop.permute.xlu0 %11279
  %v11297 = vsub.f32 %v10603, %v11250
  %v11298 = vsub.f32 %v10604, %v11252
  %v11299 = vsub.f32 %v10605, %v11254
  %v11300 = vsub.f32 %v10606, %v11256
  %v11301 = vsub.f32 %v10607, %v11258
  %v11302 = vsub.f32 %v10608, %v11260
  %v11303 = vsub.f32 %v10609, %v11262
  %v11304 = vsub.f32 %v10610, %v11264
  %v11305 = vsub.f32 %v10611, %v11266
  %v11306 = vsub.f32 %v10612, %v11268
  %v11307 = vsub.f32 %v10613, %v11270
  %v11308 = vsub.f32 %v10614, %v11272
  %v11309 = vsub.f32 %v10615, %v11274
  %v11310 = vsub.f32 %v10616, %v11276
  %v11311 = vsub.f32 %v10617, %v11278
  %v11312 = vsub.f32 %v10618, %v11280
  %11329 = vrot.lane.b32.xlu0 %v11217, 32
  %v11330 = vpop.permute.xlu0 %11329
  %11331 = vrot.lane.b32.xlu0 %v11218, 32
  %v11332 = vpop.permute.xlu0 %11331
  %11333 = vrot.lane.b32.xlu0 %v11219, 32
  %v11334 = vpop.permute.xlu0 %11333
  %11335 = vrot.lane.b32.xlu0 %v11220, 32
  %v11336 = vpop.permute.xlu0 %11335
  %11337 = vrot.lane.b32.xlu0 %v11221, 32
  %v11338 = vpop.permute.xlu0 %11337
  %11339 = vrot.lane.b32.xlu0 %v11222, 32
  %v11340 = vpop.permute.xlu0 %11339
  %11341 = vrot.lane.b32.xlu0 %v11223, 32
  %v11342 = vpop.permute.xlu0 %11341
  %11343 = vrot.lane.b32.xlu0 %v11224, 32
  %v11344 = vpop.permute.xlu0 %11343
  %11345 = vrot.lane.b32.xlu0 %v11225, 32
  %v11346 = vpop.permute.xlu0 %11345
  %11347 = vrot.lane.b32.xlu0 %v11226, 32
  %v11348 = vpop.permute.xlu0 %11347
  %11349 = vrot.lane.b32.xlu0 %v11227, 32
  %v11350 = vpop.permute.xlu0 %11349
  %11351 = vrot.lane.b32.xlu0 %v11228, 32
  %v11352 = vpop.permute.xlu0 %11351
  %11353 = vrot.lane.b32.xlu0 %v11229, 32
  %v11354 = vpop.permute.xlu0 %11353
  %11355 = vrot.lane.b32.xlu0 %v11230, 32
  %v11356 = vpop.permute.xlu0 %11355
  %11357 = vrot.lane.b32.xlu0 %v11231, 32
  %v11358 = vpop.permute.xlu0 %11357
  %11359 = vrot.lane.b32.xlu0 %v11232, 32
  %v11360 = vpop.permute.xlu0 %11359
  %v11377 = vadd.f32 %v11297, %v11330
  %v11378 = vadd.f32 %v11298, %v11332
  %v11379 = vadd.f32 %v11299, %v11334
  %v11380 = vadd.f32 %v11300, %v11336
  %v11381 = vadd.f32 %v11301, %v11338
  %v11382 = vadd.f32 %v11302, %v11340
  %v11383 = vadd.f32 %v11303, %v11342
  %v11384 = vadd.f32 %v11304, %v11344
  %v11385 = vadd.f32 %v11305, %v11346
  %v11386 = vadd.f32 %v11306, %v11348
  %v11387 = vadd.f32 %v11307, %v11350
  %v11388 = vadd.f32 %v11308, %v11352
  %v11389 = vadd.f32 %v11309, %v11354
  %v11390 = vadd.f32 %v11310, %v11356
  %v11391 = vadd.f32 %v11311, %v11358
  %v11392 = vadd.f32 %v11312, %v11360
  %11393 = vrot.lane.b32.xlu0 %v11217, 96
  %v11394 = vpop.permute.xlu0 %11393
  %11395 = vrot.lane.b32.xlu0 %v11218, 96
  %v11396 = vpop.permute.xlu0 %11395
  %11397 = vrot.lane.b32.xlu0 %v11219, 96
  %v11398 = vpop.permute.xlu0 %11397
  %11399 = vrot.lane.b32.xlu0 %v11220, 96
  %v11400 = vpop.permute.xlu0 %11399
  %11401 = vrot.lane.b32.xlu0 %v11221, 96
  %v11402 = vpop.permute.xlu0 %11401
  %11403 = vrot.lane.b32.xlu0 %v11222, 96
  %v11404 = vpop.permute.xlu0 %11403
  %11405 = vrot.lane.b32.xlu0 %v11223, 96
  %v11406 = vpop.permute.xlu0 %11405
  %11407 = vrot.lane.b32.xlu0 %v11224, 96
  %v11408 = vpop.permute.xlu0 %11407
  %11409 = vrot.lane.b32.xlu0 %v11225, 96
  %v11410 = vpop.permute.xlu0 %11409
  %11411 = vrot.lane.b32.xlu0 %v11226, 96
  %v11412 = vpop.permute.xlu0 %11411
  %11413 = vrot.lane.b32.xlu0 %v11227, 96
  %v11414 = vpop.permute.xlu0 %11413
  %11415 = vrot.lane.b32.xlu0 %v11228, 96
  %v11416 = vpop.permute.xlu0 %11415
  %11417 = vrot.lane.b32.xlu0 %v11229, 96
  %v11418 = vpop.permute.xlu0 %11417
  %11419 = vrot.lane.b32.xlu0 %v11230, 96
  %v11420 = vpop.permute.xlu0 %11419
  %11421 = vrot.lane.b32.xlu0 %v11231, 96
  %v11422 = vpop.permute.xlu0 %11421
  %11423 = vrot.lane.b32.xlu0 %v11232, 96
  %v11424 = vpop.permute.xlu0 %11423
  %v11441 = vadd.f32 %v11139, %v11394
  %v11442 = vadd.f32 %v11142, %v11396
  %v11443 = vadd.f32 %v11147, %v11398
  %v11444 = vadd.f32 %v11150, %v11400
  %v11445 = vadd.f32 %v11155, %v11402
  %v11446 = vadd.f32 %v11158, %v11404
  %v11447 = vadd.f32 %v11163, %v11406
  %v11448 = vadd.f32 %v11166, %v11408
  %v11449 = vadd.f32 %v11171, %v11410
  %v11450 = vadd.f32 %v11174, %v11412
  %v11451 = vadd.f32 %v11179, %v11414
  %v11452 = vadd.f32 %v11182, %v11416
  %v11453 = vadd.f32 %v11187, %v11418
  %v11454 = vadd.f32 %v11190, %v11420
  %v11455 = vadd.f32 %v11195, %v11422
  %v11456 = vadd.f32 %v11198, %v11424
  %11457 = vmatprep.subr.bf16.mxu0 0
  %11458 = vmatpush1.bf16.msra.mxu0 %v10620
  %11459 = vmatprep.subr.bf16.mxu0 0
  %11460 = vmatpush1.bf16.msra.mxu0 %v10621
  %11461 = vmatprep.subr.bf16.mxu0 0
  %11462 = vmatpush1.bf16.msra.mxu0 %v10622
  %11463 = vmatprep.subr.bf16.mxu0 0
  %11464 = vmatpush1.bf16.msra.mxu0 %v10623
  %11465 = vmatprep.subr.bf16.mxu0 0
  %11466 = vmatpush1.bf16.msra.mxu0 %v10624
  %11467 = vmatprep.subr.bf16.mxu0 0
  %11468 = vmatpush1.bf16.msra.mxu0 %v10625
  %11469 = vmatprep.subr.bf16.mxu0 0
  %11470 = vmatpush1.bf16.msra.mxu0 %v10626
  %11471 = vmatprep.subr.bf16.mxu0 0
  %11472 = vmatpush1.bf16.msra.mxu0 %v10627
  %11473 = vmatprep.subr.bf16.mxu0 0
  %11474 = vmatpush1.bf16.msra.mxu0 0
  %11475 = vmatprep.subr.bf16.mxu0 0
  %11476 = vmatpush1.bf16.msra.mxu0 0
  %11477 = vmatprep.subr.bf16.mxu0 0
  %11478 = vmatpush1.bf16.msra.mxu0 0
  %11479 = vmatprep.subr.bf16.mxu0 0
  %11480 = vmatpush1.bf16.msra.mxu0 0
  %11481 = vmatprep.subr.bf16.mxu0 0
  %11482 = vmatpush1.bf16.msra.mxu0 0
  %11483 = vmatprep.subr.bf16.mxu0 0
  %11484 = vmatpush1.bf16.msra.mxu0 0
  %11485 = vmatprep.subr.bf16.mxu0 0
  %11486 = vmatpush1.bf16.msra.mxu0 0
  %11487 = vmatprep.subr.bf16.mxu0 0
  %11488 = vmatpush1.bf16.msra.mxu0 0
  %11489 = vmatprep.mubr.bf16.mxu0 0
  %11490 = vmatmul.mubr.bf16.gmra.mrb[0].mxu0 %v981
  %v11491 = vpop.f32.mrb[0].mxu0
  %v11492 = vadd.f32 0.0, %v11491
  %v11493 = vpop.f32.mrb[0].mxu0
  %v11494 = vpop.f32.mrb[0].mxu0
  %v11495 = vadd.f32 0.0, %v11494
  %v11496 = vpop.f32.mrb[0].mxu0
  %11497 = vmatprep.mubr.bf16.mxu0 0
  %11498 = vmatmul.mubr.bf16.gmra.mrb[0].mxu0 %v982
  %v11499 = vpop.f32.mrb[0].mxu0
  %v11500 = vadd.f32 0.0, %v11499
  %v11501 = vpop.f32.mrb[0].mxu0
  %v11502 = vpop.f32.mrb[0].mxu0
  %v11503 = vadd.f32 0.0, %v11502
  %v11504 = vpop.f32.mrb[0].mxu0
  %11505 = vmatprep.mubr.bf16.mxu0 0
  %11506 = vmatmul.mubr.bf16.gmra.mrb[0].mxu0 %v983
  %v11507 = vpop.f32.mrb[0].mxu0
  %v11508 = vadd.f32 0.0, %v11507
  %v11509 = vpop.f32.mrb[0].mxu0
  %v11510 = vpop.f32.mrb[0].mxu0
  %v11511 = vadd.f32 0.0, %v11510
  %v11512 = vpop.f32.mrb[0].mxu0
  %11513 = vmatprep.mubr.bf16.mxu0 0
  %11514 = vmatmul.mubr.bf16.gmra.mrb[0].mxu0 %v984
  %v11515 = vpop.f32.mrb[0].mxu0
  %v11516 = vadd.f32 0.0, %v11515
  %v11517 = vpop.f32.mrb[0].mxu0
  %v11518 = vpop.f32.mrb[0].mxu0
  %v11519 = vadd.f32 0.0, %v11518
  %v11520 = vpop.f32.mrb[0].mxu0
  %11521 = vmatprep.mubr.bf16.mxu0 0
  %11522 = vmatmul.mubr.bf16.gmra.mrb[0].mxu0 %v985
  %v11523 = vpop.f32.mrb[0].mxu0
  %v11524 = vadd.f32 0.0, %v11523
  %v11525 = vpop.f32.mrb[0].mxu0
  %v11526 = vpop.f32.mrb[0].mxu0
  %v11527 = vadd.f32 0.0, %v11526
  %v11528 = vpop.f32.mrb[0].mxu0
  %11529 = vmatprep.mubr.bf16.mxu0 0
  %11530 = vmatmul.mubr.bf16.gmra.mrb[0].mxu0 %v986
  %v11531 = vpop.f32.mrb[0].mxu0
  %v11532 = vadd.f32 0.0, %v11531
  %v11533 = vpop.f32.mrb[0].mxu0
  %v11534 = vpop.f32.mrb[0].mxu0
  %v11535 = vadd.f32 0.0, %v11534
  %v11536 = vpop.f32.mrb[0].mxu0
  %11537 = vmatprep.mubr.bf16.mxu0 0
  %11538 = vmatmul.mubr.bf16.gmra.mrb[0].mxu0 %v987
  %v11539 = vpop.f32.mrb[0].mxu0
  %v11540 = vadd.f32 0.0, %v11539
  %v11541 = vpop.f32.mrb[0].mxu0
  %v11542 = vpop.f32.mrb[0].mxu0
  %v11543 = vadd.f32 0.0, %v11542
  %v11544 = vpop.f32.mrb[0].mxu0
  %11545 = vmatprep.mubr.bf16.mxu0 0
  %11546 = vmatmul.mubr.bf16.gmra.mrb[0].mxu0 %v988
  %v11547 = vpop.f32.mrb[0].mxu0
  %v11548 = vadd.f32 0.0, %v11547
  %v11549 = vpop.f32.mrb[0].mxu0
  %v11550 = vpop.f32.mrb[0].mxu0
  %v11551 = vadd.f32 0.0, %v11550
  %v11552 = vpop.f32.mrb[0].mxu0
  %11553 = vdwg.mxu0
  %v11554 = vsub.f32 %v10603, %v11492
  %v11555 = vsub.f32 %v10604, %v11495
  %v11556 = vsub.f32 %v10605, %v11500
  %v11557 = vsub.f32 %v10606, %v11503
  %v11558 = vsub.f32 %v10607, %v11508
  %v11559 = vsub.f32 %v10608, %v11511
  %v11560 = vsub.f32 %v10609, %v11516
  %v11561 = vsub.f32 %v10610, %v11519
  %v11562 = vsub.f32 %v10611, %v11524
  %v11563 = vsub.f32 %v10612, %v11527
  %v11564 = vsub.f32 %v10613, %v11532
  %v11565 = vsub.f32 %v10614, %v11535
  %v11566 = vsub.f32 %v10615, %v11540
  %v11567 = vsub.f32 %v10616, %v11543
  %v11568 = vsub.f32 %v10617, %v11548
  %v11569 = vsub.f32 %v10618, %v11551
  %v11570 = vadd.f32 %v11554, %v10862
  %v11571 = vadd.f32 %v11555, %v10862
  %v11572 = vadd.f32 %v11556, %v10862
  %v11573 = vadd.f32 %v11557, %v10862
  %v11574 = vadd.f32 %v11558, %v10862
  %v11575 = vadd.f32 %v11559, %v10862
  %v11576 = vadd.f32 %v11560, %v10862
  %v11577 = vadd.f32 %v11561, %v10862
  %v11578 = vadd.f32 %v11562, %v10862
  %v11579 = vadd.f32 %v11563, %v10862
  %v11580 = vadd.f32 %v11564, %v10862
  %v11581 = vadd.f32 %v11565, %v10862
  %v11582 = vadd.f32 %v11566, %v10862
  %v11583 = vadd.f32 %v11567, %v10862
  %v11584 = vadd.f32 %v11568, %v10862
  %v11585 = vadd.f32 %v11569, %v10862
  %11602 = vrot.lane.b32.xlu0 %v11492, 96
  %v11603 = vpop.permute.xlu0 %11602
  %11604 = vrot.lane.b32.xlu0 %v11495, 96
  %v11605 = vpop.permute.xlu0 %11604
  %11606 = vrot.lane.b32.xlu0 %v11500, 96
  %v11607 = vpop.permute.xlu0 %11606
  %11608 = vrot.lane.b32.xlu0 %v11503, 96
  %v11609 = vpop.permute.xlu0 %11608
  %11610 = vrot.lane.b32.xlu0 %v11508, 96
  %v11611 = vpop.permute.xlu0 %11610
  %11612 = vrot.lane.b32.xlu0 %v11511, 96
  %v11613 = vpop.permute.xlu0 %11612
  %11614 = vrot.lane.b32.xlu0 %v11516, 96
  %v11615 = vpop.permute.xlu0 %11614
  %11616 = vrot.lane.b32.xlu0 %v11519, 96
  %v11617 = vpop.permute.xlu0 %11616
  %11618 = vrot.lane.b32.xlu0 %v11524, 96
  %v11619 = vpop.permute.xlu0 %11618
  %11620 = vrot.lane.b32.xlu0 %v11527, 96
  %v11621 = vpop.permute.xlu0 %11620
  %11622 = vrot.lane.b32.xlu0 %v11532, 96
  %v11623 = vpop.permute.xlu0 %11622
  %11624 = vrot.lane.b32.xlu0 %v11535, 96
  %v11625 = vpop.permute.xlu0 %11624
  %11626 = vrot.lane.b32.xlu0 %v11540, 96
  %v11627 = vpop.permute.xlu0 %11626
  %11628 = vrot.lane.b32.xlu0 %v11543, 96
  %v11629 = vpop.permute.xlu0 %11628
  %11630 = vrot.lane.b32.xlu0 %v11548, 96
  %v11631 = vpop.permute.xlu0 %11630
  %11632 = vrot.lane.b32.xlu0 %v11551, 96
  %v11633 = vpop.permute.xlu0 %11632
  %v11650 = vsub.f32 %v10603, %v11603
  %v11651 = vsub.f32 %v10604, %v11605
  %v11652 = vsub.f32 %v10605, %v11607
  %v11653 = vsub.f32 %v10606, %v11609
  %v11654 = vsub.f32 %v10607, %v11611
  %v11655 = vsub.f32 %v10608, %v11613
  %v11656 = vsub.f32 %v10609, %v11615
  %v11657 = vsub.f32 %v10610, %v11617
  %v11658 = vsub.f32 %v10611, %v11619
  %v11659 = vsub.f32 %v10612, %v11621
  %v11660 = vsub.f32 %v10613, %v11623
  %v11661 = vsub.f32 %v10614, %v11625
  %v11662 = vsub.f32 %v10615, %v11627
  %v11663 = vsub.f32 %v10616, %v11629
  %v11664 = vsub.f32 %v10617, %v11631
  %v11665 = vsub.f32 %v10618, %v11633
  %11682 = vrot.lane.b32.xlu0 %v11570, 32
  %v11683 = vpop.permute.xlu0 %11682
  %11684 = vrot.lane.b32.xlu0 %v11571, 32
  %v11685 = vpop.permute.xlu0 %11684
  %11686 = vrot.lane.b32.xlu0 %v11572, 32
  %v11687 = vpop.permute.xlu0 %11686
  %11688 = vrot.lane.b32.xlu0 %v11573, 32
  %v11689 = vpop.permute.xlu0 %11688
  %11690 = vrot.lane.b32.xlu0 %v11574, 32
  %v11691 = vpop.permute.xlu0 %11690
  %11692 = vrot.lane.b32.xlu0 %v11575, 32
  %v11693 = vpop.permute.xlu0 %11692
  %11694 = vrot.lane.b32.xlu0 %v11576, 32
  %v11695 = vpop.permute.xlu0 %11694
  %11696 = vrot.lane.b32.xlu0 %v11577, 32
  %v11697 = vpop.permute.xlu0 %11696
  %11698 = vrot.lane.b32.xlu0 %v11578, 32
  %v11699 = vpop.permute.xlu0 %11698
  %11700 = vrot.lane.b32.xlu0 %v11579, 32
  %v11701 = vpop.permute.xlu0 %11700
  %11702 = vrot.lane.b32.xlu0 %v11580, 32
  %v11703 = vpop.permute.xlu0 %11702
  %11704 = vrot.lane.b32.xlu0 %v11581, 32
  %v11705 = vpop.permute.xlu0 %11704
  %11706 = vrot.lane.b32.xlu0 %v11582, 32
  %v11707 = vpop.permute.xlu0 %11706
  %11708 = vrot.lane.b32.xlu0 %v11583, 32
  %v11709 = vpop.permute.xlu0 %11708
  %11710 = vrot.lane.b32.xlu0 %v11584, 32
  %v11711 = vpop.permute.xlu0 %11710
  %11712 = vrot.lane.b32.xlu0 %v11585, 32
  %v11713 = vpop.permute.xlu0 %11712
  %v11730 = vadd.f32 %v11650, %v11683
  %v11731 = vadd.f32 %v11651, %v11685
  %v11732 = vadd.f32 %v11652, %v11687
  %v11733 = vadd.f32 %v11653, %v11689
  %v11734 = vadd.f32 %v11654, %v11691
  %v11735 = vadd.f32 %v11655, %v11693
  %v11736 = vadd.f32 %v11656, %v11695
  %v11737 = vadd.f32 %v11657, %v11697
  %v11738 = vadd.f32 %v11658, %v11699
  %v11739 = vadd.f32 %v11659, %v11701
  %v11740 = vadd.f32 %v11660, %v11703
  %v11741 = vadd.f32 %v11661, %v11705
  %v11742 = vadd.f32 %v11662, %v11707
  %v11743 = vadd.f32 %v11663, %v11709
  %v11744 = vadd.f32 %v11664, %v11711
  %v11745 = vadd.f32 %v11665, %v11713
  %11746 = vrot.lane.b32.xlu0 %v11570, 96
  %v11747 = vpop.permute.xlu0 %11746
  %11748 = vrot.lane.b32.xlu0 %v11571, 96
  %v11749 = vpop.permute.xlu0 %11748
  %11750 = vrot.lane.b32.xlu0 %v11572, 96
  %v11751 = vpop.permute.xlu0 %11750
  %11752 = vrot.lane.b32.xlu0 %v11573, 96
  %v11753 = vpop.permute.xlu0 %11752
  %11754 = vrot.lane.b32.xlu0 %v11574, 96
  %v11755 = vpop.permute.xlu0 %11754
  %11756 = vrot.lane.b32.xlu0 %v11575, 96
  %v11757 = vpop.permute.xlu0 %11756
  %11758 = vrot.lane.b32.xlu0 %v11576, 96
  %v11759 = vpop.permute.xlu0 %11758
  %11760 = vrot.lane.b32.xlu0 %v11577, 96
  %v11761 = vpop.permute.xlu0 %11760
  %11762 = vrot.lane.b32.xlu0 %v11578, 96
  %v11763 = vpop.permute.xlu0 %11762
  %11764 = vrot.lane.b32.xlu0 %v11579, 96
  %v11765 = vpop.permute.xlu0 %11764
  %11766 = vrot.lane.b32.xlu0 %v11580, 96
  %v11767 = vpop.permute.xlu0 %11766
  %11768 = vrot.lane.b32.xlu0 %v11581, 96
  %v11769 = vpop.permute.xlu0 %11768
  %11770 = vrot.lane.b32.xlu0 %v11582, 96
  %v11771 = vpop.permute.xlu0 %11770
  %11772 = vrot.lane.b32.xlu0 %v11583, 96
  %v11773 = vpop.permute.xlu0 %11772
  %11774 = vrot.lane.b32.xlu0 %v11584, 96
  %v11775 = vpop.permute.xlu0 %11774
  %11776 = vrot.lane.b32.xlu0 %v11585, 96
  %v11777 = vpop.permute.xlu0 %11776
  %v11794 = vadd.f32 %v11492, %v11747
  %v11795 = vadd.f32 %v11495, %v11749
  %v11796 = vadd.f32 %v11500, %v11751
  %v11797 = vadd.f32 %v11503, %v11753
  %v11798 = vadd.f32 %v11508, %v11755
  %v11799 = vadd.f32 %v11511, %v11757
  %v11800 = vadd.f32 %v11516, %v11759
  %v11801 = vadd.f32 %v11519, %v11761
  %v11802 = vadd.f32 %v11524, %v11763
  %v11803 = vadd.f32 %v11527, %v11765
  %v11804 = vadd.f32 %v11532, %v11767
  %v11805 = vadd.f32 %v11535, %v11769
  %v11806 = vadd.f32 %v11540, %v11771
  %v11807 = vadd.f32 %v11543, %v11773
  %v11808 = vadd.f32 %v11548, %v11775
  %v11809 = vadd.f32 %v11551, %v11777
  %11810 = vmatprep.subr.bf16.mxu0 0
  %11811 = vmatpush1.bf16.msra.mxu0 %v10620
  %11812 = vmatprep.subr.bf16.mxu0 0
  %11813 = vmatpush1.bf16.msra.mxu0 %v10621
  %11814 = vmatprep.subr.bf16.mxu0 0
  %11815 = vmatpush1.bf16.msra.mxu0 %v10622
  %11816 = vmatprep.subr.bf16.mxu0 0
  %11817 = vmatpush1.bf16.msra.mxu0 %v10623
  %11818 = vmatprep.subr.bf16.mxu0 0
  %11819 = vmatpush1.bf16.msra.mxu0 %v10624
  %11820 = vmatprep.subr.bf16.mxu0 0
  %11821 = vmatpush1.bf16.msra.mxu0 %v10625
  %11822 = vmatprep.subr.bf16.mxu0 0
  %11823 = vmatpush1.bf16.msra.mxu0 %v10626
  %11824 = vmatprep.subr.bf16.mxu0 0
  %11825 = vmatpush1.bf16.msra.mxu0 %v10627
  %11826 = vmatprep.subr.bf16.mxu0 0
  %11827 = vmatpush1.bf16.msra.mxu0 0
  %11828 = vmatprep.subr.bf16.mxu0 0
  %11829 = vmatpush1.bf16.msra.mxu0 0
  %11830 = vmatprep.subr.bf16.mxu0 0
  %11831 = vmatpush1.bf16.msra.mxu0 0
  %11832 = vmatprep.subr.bf16.mxu0 0
  %11833 = vmatpush1.bf16.msra.mxu0 0
  %11834 = vmatprep.subr.bf16.mxu0 0
  %11835 = vmatpush1.bf16.msra.mxu0 0
  %11836 = vmatprep.subr.bf16.mxu0 0
  %11837 = vmatpush1.bf16.msra.mxu0 0
  %11838 = vmatprep.subr.bf16.mxu0 0
  %11839 = vmatpush1.bf16.msra.mxu0 0
  %11840 = vmatprep.subr.bf16.mxu0 0
  %11841 = vmatpush1.bf16.msra.mxu0 0
  %11842 = vmatprep.mubr.bf16.mxu0 0
  %11843 = vmatmul.mubr.bf16.gmra.mrb[0].mxu0 %v997
  %v11844 = vpop.f32.mrb[0].mxu0
  %v11845 = vadd.f32 0.0, %v11844
  %v11846 = vpop.f32.mrb[0].mxu0
  %v11847 = vpop.f32.mrb[0].mxu0
  %v11848 = vadd.f32 0.0, %v11847
  %v11849 = vpop.f32.mrb[0].mxu0
  %11850 = vmatprep.mubr.bf16.mxu0 0
  %11851 = vmatmul.mubr.bf16.gmra.mrb[0].mxu0 %v998
  %v11852 = vpop.f32.mrb[0].mxu0
  %v11853 = vadd.f32 0.0, %v11852
  %v11854 = vpop.f32.mrb[0].mxu0
  %v11855 = vpop.f32.mrb[0].mxu0
  %v11856 = vadd.f32 0.0, %v11855
  %v11857 = vpop.f32.mrb[0].mxu0
  %11858 = vmatprep.mubr.bf16.mxu0 0
  %11859 = vmatmul.mubr.bf16.gmra.mrb[0].mxu0 %v999
  %v11860 = vpop.f32.mrb[0].mxu0
  %v11861 = vadd.f32 0.0, %v11860
  %v11862 = vpop.f32.mrb[0].mxu0
  %v11863 = vpop.f32.mrb[0].mxu0
  %v11864 = vadd.f32 0.0, %v11863
  %v11865 = vpop.f32.mrb[0].mxu0
  %11866 = vmatprep.mubr.bf16.mxu0 0
  %11867 = vmatmul.mubr.bf16.gmra.mrb[0].mxu0 %v1000
  %v11868 = vpop.f32.mrb[0].mxu0
  %v11869 = vadd.f32 0.0, %v11868
  %v11870 = vpop.f32.mrb[0].mxu0
  %v11871 = vpop.f32.mrb[0].mxu0
  %v11872 = vadd.f32 0.0, %v11871
  %v11873 = vpop.f32.mrb[0].mxu0
  %11874 = vmatprep.mubr.bf16.mxu0 0
  %11875 = vmatmul.mubr.bf16.gmra.mrb[0].mxu0 %v1001
  %v11876 = vpop.f32.mrb[0].mxu0
  %v11877 = vadd.f32 0.0, %v11876
  %v11878 = vpop.f32.mrb[0].mxu0
  %v11879 = vpop.f32.mrb[0].mxu0
  %v11880 = vadd.f32 0.0, %v11879
  %v11881 = vpop.f32.mrb[0].mxu0
  %11882 = vmatprep.mubr.bf16.mxu0 0
  %11883 = vmatmul.mubr.bf16.gmra.mrb[0].mxu0 %v1002
  %v11884 = vpop.f32.mrb[0].mxu0
  %v11885 = vadd.f32 0.0, %v11884
  %v11886 = vpop.f32.mrb[0].mxu0
  %v11887 = vpop.f32.mrb[0].mxu0
  %v11888 = vadd.f32 0.0, %v11887
  %v11889 = vpop.f32.mrb[0].mxu0
  %11890 = vmatprep.mubr.bf16.mxu0 0
  %11891 = vmatmul.mubr.bf16.gmra.mrb[0].mxu0 %v1003
  %v11892 = vpop.f32.mrb[0].mxu0
  %v11893 = vadd.f32 0.0, %v11892
  %v11894 = vpop.f32.mrb[0].mxu0
  %v11895 = vpop.f32.mrb[0].mxu0
  %v11896 = vadd.f32 0.0, %v11895
  %v11897 = vpop.f32.mrb[0].mxu0
  %11898 = vmatprep.mubr.bf16.mxu0 0
  %11899 = vmatmul.mubr.bf16.gmra.mrb[0].mxu0 %v1004
  %v11900 = vpop.f32.mrb[0].mxu0
  %v11901 = vadd.f32 0.0, %v11900
  %v11902 = vpop.f32.mrb[0].mxu0
  %v11903 = vpop.f32.mrb[0].mxu0
  %v11904 = vadd.f32 0.0, %v11903
  %v11905 = vpop.f32.mrb[0].mxu0
  %11906 = vdwg.mxu0
  %v11907 = vsub.f32 %v10603, %v11845
  %v11908 = vsub.f32 %v10604, %v11848
  %v11909 = vsub.f32 %v10605, %v11853
  %v11910 = vsub.f32 %v10606, %v11856
  %v11911 = vsub.f32 %v10607, %v11861
  %v11912 = vsub.f32 %v10608, %v11864
  %v11913 = vsub.f32 %v10609, %v11869
  %v11914 = vsub.f32 %v10610, %v11872
  %v11915 = vsub.f32 %v10611, %v11877
  %v11916 = vsub.f32 %v10612, %v11880
  %v11917 = vsub.f32 %v10613, %v11885
  %v11918 = vsub.f32 %v10614, %v11888
  %v11919 = vsub.f32 %v10615, %v11893
  %v11920 = vsub.f32 %v10616, %v11896
  %v11921 = vsub.f32 %v10617, %v11901
  %v11922 = vsub.f32 %v10618, %v11904
  %v11923 = vadd.f32 %v11907, %v10862
  %v11924 = vadd.f32 %v11908, %v10862
  %v11925 = vadd.f32 %v11909, %v10862
  %v11926 = vadd.f32 %v11910, %v10862
  %v11927 = vadd.f32 %v11911, %v10862
  %v11928 = vadd.f32 %v11912, %v10862
  %v11929 = vadd.f32 %v11913, %v10862
  %v11930 = vadd.f32 %v11914, %v10862
  %v11931 = vadd.f32 %v11915, %v10862
  %v11932 = vadd.f32 %v11916, %v10862
  %v11933 = vadd.f32 %v11917, %v10862
  %v11934 = vadd.f32 %v11918, %v10862
  %v11935 = vadd.f32 %v11919, %v10862
  %v11936 = vadd.f32 %v11920, %v10862
  %v11937 = vadd.f32 %v11921, %v10862
  %v11938 = vadd.f32 %v11922, %v10862
  %11955 = vrot.lane.b32.xlu0 %v11845, 96
  %v11956 = vpop.permute.xlu0 %11955
  %11957 = vrot.lane.b32.xlu0 %v11848, 96
  %v11958 = vpop.permute.xlu0 %11957
  %11959 = vrot.lane.b32.xlu0 %v11853, 96
  %v11960 = vpop.permute.xlu0 %11959
  %11961 = vrot.lane.b32.xlu0 %v11856, 96
  %v11962 = vpop.permute.xlu0 %11961
  %11963 = vrot.lane.b32.xlu0 %v11861, 96
  %v11964 = vpop.permute.xlu0 %11963
  %11965 = vrot.lane.b32.xlu0 %v11864, 96
  %v11966 = vpop.permute.xlu0 %11965
  %11967 = vrot.lane.b32.xlu0 %v11869, 96
  %v11968 = vpop.permute.xlu0 %11967
  %11969 = vrot.lane.b32.xlu0 %v11872, 96
  %v11970 = vpop.permute.xlu0 %11969
  %11971 = vrot.lane.b32.xlu0 %v11877, 96
  %v11972 = vpop.permute.xlu0 %11971
  %11973 = vrot.lane.b32.xlu0 %v11880, 96
  %v11974 = vpop.permute.xlu0 %11973
  %11975 = vrot.lane.b32.xlu0 %v11885, 96
  %v11976 = vpop.permute.xlu0 %11975
  %11977 = vrot.lane.b32.xlu0 %v11888, 96
  %v11978 = vpop.permute.xlu0 %11977
  %11979 = vrot.lane.b32.xlu0 %v11893, 96
  %v11980 = vpop.permute.xlu0 %11979
  %11981 = vrot.lane.b32.xlu0 %v11896, 96
  %v11982 = vpop.permute.xlu0 %11981
  %11983 = vrot.lane.b32.xlu0 %v11901, 96
  %v11984 = vpop.permute.xlu0 %11983
  %11985 = vrot.lane.b32.xlu0 %v11904, 96
  %v11986 = vpop.permute.xlu0 %11985
  %v12003 = vsub.f32 %v10603, %v11956
  %v12004 = vsub.f32 %v10604, %v11958
  %v12005 = vsub.f32 %v10605, %v11960
  %v12006 = vsub.f32 %v10606, %v11962
  %v12007 = vsub.f32 %v10607, %v11964
  %v12008 = vsub.f32 %v10608, %v11966
  %v12009 = vsub.f32 %v10609, %v11968
  %v12010 = vsub.f32 %v10610, %v11970
  %v12011 = vsub.f32 %v10611, %v11972
  %v12012 = vsub.f32 %v10612, %v11974
  %v12013 = vsub.f32 %v10613, %v11976
  %v12014 = vsub.f32 %v10614, %v11978
  %v12015 = vsub.f32 %v10615, %v11980
  %v12016 = vsub.f32 %v10616, %v11982
  %v12017 = vsub.f32 %v10617, %v11984
  %v12018 = vsub.f32 %v10618, %v11986
  %12035 = vrot.lane.b32.xlu0 %v11923, 32
  %v12036 = vpop.permute.xlu0 %12035
  %12037 = vrot.lane.b32.xlu0 %v11924, 32
  %v12038 = vpop.permute.xlu0 %12037
  %12039 = vrot.lane.b32.xlu0 %v11925, 32
  %v12040 = vpop.permute.xlu0 %12039
  %12041 = vrot.lane.b32.xlu0 %v11926, 32
  %v12042 = vpop.permute.xlu0 %12041
  %12043 = vrot.lane.b32.xlu0 %v11927, 32
  %v12044 = vpop.permute.xlu0 %12043
  %12045 = vrot.lane.b32.xlu0 %v11928, 32
  %v12046 = vpop.permute.xlu0 %12045
  %12047 = vrot.lane.b32.xlu0 %v11929, 32
  %v12048 = vpop.permute.xlu0 %12047
  %12049 = vrot.lane.b32.xlu0 %v11930, 32
  %v12050 = vpop.permute.xlu0 %12049
  %12051 = vrot.lane.b32.xlu0 %v11931, 32
  %v12052 = vpop.permute.xlu0 %12051
  %12053 = vrot.lane.b32.xlu0 %v11932, 32
  %v12054 = vpop.permute.xlu0 %12053
  %12055 = vrot.lane.b32.xlu0 %v11933, 32
  %v12056 = vpop.permute.xlu0 %12055
  %12057 = vrot.lane.b32.xlu0 %v11934, 32
  %v12058 = vpop.permute.xlu0 %12057
  %12059 = vrot.lane.b32.xlu0 %v11935, 32
  %v12060 = vpop.permute.xlu0 %12059
  %12061 = vrot.lane.b32.xlu0 %v11936, 32
  %v12062 = vpop.permute.xlu0 %12061
  %12063 = vrot.lane.b32.xlu0 %v11937, 32
  %v12064 = vpop.permute.xlu0 %12063
  %12065 = vrot.lane.b32.xlu0 %v11938, 32
  %v12066 = vpop.permute.xlu0 %12065
  %v12083 = vadd.f32 %v12003, %v12036
  %v12084 = vadd.f32 %v12004, %v12038
  %v12085 = vadd.f32 %v12005, %v12040
  %v12086 = vadd.f32 %v12006, %v12042
  %v12087 = vadd.f32 %v12007, %v12044
  %v12088 = vadd.f32 %v12008, %v12046
  %v12089 = vadd.f32 %v12009, %v12048
  %v12090 = vadd.f32 %v12010, %v12050
  %v12091 = vadd.f32 %v12011, %v12052
  %v12092 = vadd.f32 %v12012, %v12054
  %v12093 = vadd.f32 %v12013, %v12056
  %v12094 = vadd.f32 %v12014, %v12058
  %v12095 = vadd.f32 %v12015, %v12060
  %v12096 = vadd.f32 %v12016, %v12062
  %v12097 = vadd.f32 %v12017, %v12064
  %v12098 = vadd.f32 %v12018, %v12066
  %12099 = vrot.lane.b32.xlu0 %v11923, 96
  %v12100 = vpop.permute.xlu0 %12099
  %12101 = vrot.lane.b32.xlu0 %v11924, 96
  %v12102 = vpop.permute.xlu0 %12101
  %12103 = vrot.lane.b32.xlu0 %v11925, 96
  %v12104 = vpop.permute.xlu0 %12103
  %12105 = vrot.lane.b32.xlu0 %v11926, 96
  %v12106 = vpop.permute.xlu0 %12105
  %12107 = vrot.lane.b32.xlu0 %v11927, 96
  %v12108 = vpop.permute.xlu0 %12107
  %12109 = vrot.lane.b32.xlu0 %v11928, 96
  %v12110 = vpop.permute.xlu0 %12109
  %12111 = vrot.lane.b32.xlu0 %v11929, 96
  %v12112 = vpop.permute.xlu0 %12111
  %12113 = vrot.lane.b32.xlu0 %v11930, 96
  %v12114 = vpop.permute.xlu0 %12113
  %12115 = vrot.lane.b32.xlu0 %v11931, 96
  %v12116 = vpop.permute.xlu0 %12115
  %12117 = vrot.lane.b32.xlu0 %v11932, 96
  %v12118 = vpop.permute.xlu0 %12117
  %12119 = vrot.lane.b32.xlu0 %v11933, 96
  %v12120 = vpop.permute.xlu0 %12119
  %12121 = vrot.lane.b32.xlu0 %v11934, 96
  %v12122 = vpop.permute.xlu0 %12121
  %12123 = vrot.lane.b32.xlu0 %v11935, 96
  %v12124 = vpop.permute.xlu0 %12123
  %12125 = vrot.lane.b32.xlu0 %v11936, 96
  %v12126 = vpop.permute.xlu0 %12125
  %12127 = vrot.lane.b32.xlu0 %v11937, 96
  %v12128 = vpop.permute.xlu0 %12127
  %12129 = vrot.lane.b32.xlu0 %v11938, 96
  %v12130 = vpop.permute.xlu0 %12129
  %v12147 = vadd.f32 %v11845, %v12100
  %v12148 = vadd.f32 %v11848, %v12102
  %v12149 = vadd.f32 %v11853, %v12104
  %v12150 = vadd.f32 %v11856, %v12106
  %v12151 = vadd.f32 %v11861, %v12108
  %v12152 = vadd.f32 %v11864, %v12110
  %v12153 = vadd.f32 %v11869, %v12112
  %v12154 = vadd.f32 %v11872, %v12114
  %v12155 = vadd.f32 %v11877, %v12116
  %v12156 = vadd.f32 %v11880, %v12118
  %v12157 = vadd.f32 %v11885, %v12120
  %v12158 = vadd.f32 %v11888, %v12122
  %v12159 = vadd.f32 %v11893, %v12124
  %v12160 = vadd.f32 %v11896, %v12126
  %v12161 = vadd.f32 %v11901, %v12128
  %v12162 = vadd.f32 %v11904, %v12130
  %v12163 = vmax.f32 %v10712, %v11024
  %v12164 = vmax.f32 %v10713, %v11025
  %v12165 = vmax.f32 %v10714, %v11026
  %v12166 = vmax.f32 %v10715, %v11027
  %v12167 = vmax.f32 %v10716, %v11028
  %v12168 = vmax.f32 %v10717, %v11029
  %v12169 = vmax.f32 %v10718, %v11030
  %v12170 = vmax.f32 %v10719, %v11031
  %v12171 = vmax.f32 %v10720, %v11032
  %v12172 = vmax.f32 %v10721, %v11033
  %v12173 = vmax.f32 %v10722, %v11034
  %v12174 = vmax.f32 %v10723, %v11035
  %v12175 = vmax.f32 %v10724, %v11036
  %v12176 = vmax.f32 %v10725, %v11037
  %v12177 = vmax.f32 %v10726, %v11038
  %v12178 = vmax.f32 %v10727, %v11039
  %v12179 = vmax.f32 %v12163, %v11377
  %v12180 = vmax.f32 %v12164, %v11378
  %v12181 = vmax.f32 %v12165, %v11379
  %v12182 = vmax.f32 %v12166, %v11380
  %v12183 = vmax.f32 %v12167, %v11381
  %v12184 = vmax.f32 %v12168, %v11382
  %v12185 = vmax.f32 %v12169, %v11383
  %v12186 = vmax.f32 %v12170, %v11384
  %v12187 = vmax.f32 %v12171, %v11385
  %v12188 = vmax.f32 %v12172, %v11386
  %v12189 = vmax.f32 %v12173, %v11387
  %v12190 = vmax.f32 %v12174, %v11388
  %v12191 = vmax.f32 %v12175, %v11389
  %v12192 = vmax.f32 %v12176, %v11390
  %v12193 = vmax.f32 %v12177, %v11391
  %v12194 = vmax.f32 %v12178, %v11392
  %v12195 = vmax.f32 %v12179, %v11730
  %v12196 = vmax.f32 %v12180, %v11731
  %v12197 = vmax.f32 %v12181, %v11732
  %v12198 = vmax.f32 %v12182, %v11733
  %v12199 = vmax.f32 %v12183, %v11734
  %v12200 = vmax.f32 %v12184, %v11735
  %v12201 = vmax.f32 %v12185, %v11736
  %v12202 = vmax.f32 %v12186, %v11737
  %v12203 = vmax.f32 %v12187, %v11738
  %v12204 = vmax.f32 %v12188, %v11739
  %v12205 = vmax.f32 %v12189, %v11740
  %v12206 = vmax.f32 %v12190, %v11741
  %v12207 = vmax.f32 %v12191, %v11742
  %v12208 = vmax.f32 %v12192, %v11743
  %v12209 = vmax.f32 %v12193, %v11744
  %v12210 = vmax.f32 %v12194, %v11745
  %v12211 = vmax.f32 %v12195, %v12083
  %v12212 = vmax.f32 %v12196, %v12084
  %v12213 = vmax.f32 %v12197, %v12085
  %v12214 = vmax.f32 %v12198, %v12086
  %v12215 = vmax.f32 %v12199, %v12087
  %v12216 = vmax.f32 %v12200, %v12088
  %v12217 = vmax.f32 %v12201, %v12089
  %v12218 = vmax.f32 %v12202, %v12090
  %v12219 = vmax.f32 %v12203, %v12091
  %v12220 = vmax.f32 %v12204, %v12092
  %v12221 = vmax.f32 %v12205, %v12093
  %v12222 = vmax.f32 %v12206, %v12094
  %v12223 = vmax.f32 %v12207, %v12095
  %v12224 = vmax.f32 %v12208, %v12096
  %v12225 = vmax.f32 %v12209, %v12097
  %v12226 = vmax.f32 %v12210, %v12098
  %v12227 = vsub.f32 %v10712, %v12211
  %v12228 = vsub.f32 %v10713, %v12212
  %v12229 = vsub.f32 %v10714, %v12213
  %v12230 = vsub.f32 %v10715, %v12214
  %v12231 = vsub.f32 %v10716, %v12215
  %v12232 = vsub.f32 %v10717, %v12216
  %v12233 = vsub.f32 %v10718, %v12217
  %v12234 = vsub.f32 %v10719, %v12218
  %v12235 = vsub.f32 %v10720, %v12219
  %v12236 = vsub.f32 %v10721, %v12220
  %v12237 = vsub.f32 %v10722, %v12221
  %v12238 = vsub.f32 %v10723, %v12222
  %v12239 = vsub.f32 %v10724, %v12223
  %v12240 = vsub.f32 %v10725, %v12224
  %v12241 = vsub.f32 %v10726, %v12225
  %v12242 = vsub.f32 %v10727, %v12226
  %v12243 = vmul.f32 %v12227, 1.442695
  %v12244 = vpow.pop %v12243
  %v12245 = vmul.f32 %v12228, 1.442695
  %v12246 = vpow.pop %v12245
  %v12247 = vmul.f32 %v12229, 1.442695
  %v12248 = vpow.pop %v12247
  %v12249 = vmul.f32 %v12230, 1.442695
  %v12250 = vpow.pop %v12249
  %v12251 = vmul.f32 %v12231, 1.442695
  %v12252 = vpow.pop %v12251
  %v12253 = vmul.f32 %v12232, 1.442695
  %v12254 = vpow.pop %v12253
  %v12255 = vmul.f32 %v12233, 1.442695
  %v12256 = vpow.pop %v12255
  %v12257 = vmul.f32 %v12234, 1.442695
  %v12258 = vpow.pop %v12257
  %v12259 = vmul.f32 %v12235, 1.442695
  %v12260 = vpow.pop %v12259
  %v12261 = vmul.f32 %v12236, 1.442695
  %v12262 = vpow.pop %v12261
  %v12263 = vmul.f32 %v12237, 1.442695
  %v12264 = vpow.pop %v12263
  %v12265 = vmul.f32 %v12238, 1.442695
  %v12266 = vpow.pop %v12265
  %v12267 = vmul.f32 %v12239, 1.442695
  %v12268 = vpow.pop %v12267
  %v12269 = vmul.f32 %v12240, 1.442695
  %v12270 = vpow.pop %v12269
  %v12271 = vmul.f32 %v12241, 1.442695
  %v12272 = vpow.pop %v12271
  %v12273 = vmul.f32 %v12242, 1.442695
  %v12274 = vpow.pop %v12273
  %v12275 = vadd.f32 %v12244, 0.0
  %v12276 = vadd.f32 %v12246, 0.0
  %v12277 = vadd.f32 %v12248, 0.0
  %v12278 = vadd.f32 %v12250, 0.0
  %v12279 = vadd.f32 %v12252, 0.0
  %v12280 = vadd.f32 %v12254, 0.0
  %v12281 = vadd.f32 %v12256, 0.0
  %v12282 = vadd.f32 %v12258, 0.0
  %v12283 = vadd.f32 %v12260, 0.0
  %v12284 = vadd.f32 %v12262, 0.0
  %v12285 = vadd.f32 %v12264, 0.0
  %v12286 = vadd.f32 %v12266, 0.0
  %v12287 = vadd.f32 %v12268, 0.0
  %v12288 = vadd.f32 %v12270, 0.0
  %v12289 = vadd.f32 %v12272, 0.0
  %v12290 = vadd.f32 %v12274, 0.0
  %12307 = vrot.lane.b32.xlu0 %v10732, 64
  %v12308 = vpop.permute.xlu0 %12307
  %12309 = vrot.lane.b32.xlu0 %v10733, 64
  %v12310 = vpop.permute.xlu0 %12309
  %12311 = vrot.lane.b32.xlu0 %v10734, 64
  %v12312 = vpop.permute.xlu0 %12311
  %12313 = vrot.lane.b32.xlu0 %v10735, 64
  %v12314 = vpop.permute.xlu0 %12313
  %12315 = vrot.lane.b32.xlu0 %v10736, 64
  %v12316 = vpop.permute.xlu0 %12315
  %12317 = vrot.lane.b32.xlu0 %v10737, 64
  %v12318 = vpop.permute.xlu0 %12317
  %12319 = vrot.lane.b32.xlu0 %v10738, 64
  %v12320 = vpop.permute.xlu0 %12319
  %12321 = vrot.lane.b32.xlu0 %v10739, 64
  %v12322 = vpop.permute.xlu0 %12321
  %12323 = vrot.lane.b32.xlu0 %v10740, 64
  %v12324 = vpop.permute.xlu0 %12323
  %12325 = vrot.lane.b32.xlu0 %v10741, 64
  %v12326 = vpop.permute.xlu0 %12325
  %12327 = vrot.lane.b32.xlu0 %v10742, 64
  %v12328 = vpop.permute.xlu0 %12327
  %12329 = vrot.lane.b32.xlu0 %v10743, 64
  %v12330 = vpop.permute.xlu0 %12329
  %12331 = vrot.lane.b32.xlu0 %v10744, 64
  %v12332 = vpop.permute.xlu0 %12331
  %12333 = vrot.lane.b32.xlu0 %v10745, 64
  %v12334 = vpop.permute.xlu0 %12333
  %12335 = vrot.lane.b32.xlu0 %v10746, 64
  %v12336 = vpop.permute.xlu0 %12335
  %12337 = vrot.lane.b32.xlu0 %v10747, 64
  %v12338 = vpop.permute.xlu0 %12337
  %v12355 = vmul.f32 %v12244, %v12308
  %v12356 = vmul.f32 %v12246, %v12310
  %v12357 = vmul.f32 %v12248, %v12312
  %v12358 = vmul.f32 %v12250, %v12314
  %v12359 = vmul.f32 %v12252, %v12316
  %v12360 = vmul.f32 %v12254, %v12318
  %v12361 = vmul.f32 %v12256, %v12320
  %v12362 = vmul.f32 %v12258, %v12322
  %v12363 = vmul.f32 %v12260, %v12324
  %v12364 = vmul.f32 %v12262, %v12326
  %v12365 = vmul.f32 %v12264, %v12328
  %v12366 = vmul.f32 %v12266, %v12330
  %v12367 = vmul.f32 %v12268, %v12332
  %v12368 = vmul.f32 %v12270, %v12334
  %v12369 = vmul.f32 %v12272, %v12336
  %v12370 = vmul.f32 %v12274, %v12338
  %v12371 = vadd.f32 %v12355, 0.0
  %v12372 = vadd.f32 %v12356, 0.0
  %v12373 = vadd.f32 %v12357, 0.0
  %v12374 = vadd.f32 %v12358, 0.0
  %v12375 = vadd.f32 %v12359, 0.0
  %v12376 = vadd.f32 %v12360, 0.0
  %v12377 = vadd.f32 %v12361, 0.0
  %v12378 = vadd.f32 %v12362, 0.0
  %v12379 = vadd.f32 %v12363, 0.0
  %v12380 = vadd.f32 %v12364, 0.0
  %v12381 = vadd.f32 %v12365, 0.0
  %v12382 = vadd.f32 %v12366, 0.0
  %v12383 = vadd.f32 %v12367, 0.0
  %v12384 = vadd.f32 %v12368, 0.0
  %v12385 = vadd.f32 %v12369, 0.0
  %v12386 = vadd.f32 %v12370, 0.0
  %v12387 = vsub.f32 %v11024, %v12211
  %v12388 = vsub.f32 %v11025, %v12212
  %v12389 = vsub.f32 %v11026, %v12213
  %v12390 = vsub.f32 %v11027, %v12214
  %v12391 = vsub.f32 %v11028, %v12215
  %v12392 = vsub.f32 %v11029, %v12216
  %v12393 = vsub.f32 %v11030, %v12217
  %v12394 = vsub.f32 %v11031, %v12218
  %v12395 = vsub.f32 %v11032, %v12219
  %v12396 = vsub.f32 %v11033, %v12220
  %v12397 = vsub.f32 %v11034, %v12221
  %v12398 = vsub.f32 %v11035, %v12222
  %v12399 = vsub.f32 %v11036, %v12223
  %v12400 = vsub.f32 %v11037, %v12224
  %v12401 = vsub.f32 %v11038, %v12225
  %v12402 = vsub.f32 %v11039, %v12226
  %v12403 = vmul.f32 %v12387, 1.442695
  %v12404 = vpow.pop %v12403
  %v12405 = vmul.f32 %v12388, 1.442695
  %v12406 = vpow.pop %v12405
  %v12407 = vmul.f32 %v12389, 1.442695
  %v12408 = vpow.pop %v12407
  %v12409 = vmul.f32 %v12390, 1.442695
  %v12410 = vpow.pop %v12409
  %v12411 = vmul.f32 %v12391, 1.442695
  %v12412 = vpow.pop %v12411
  %v12413 = vmul.f32 %v12392, 1.442695
  %v12414 = vpow.pop %v12413
  %v12415 = vmul.f32 %v12393, 1.442695
  %v12416 = vpow.pop %v12415
  %v12417 = vmul.f32 %v12394, 1.442695
  %v12418 = vpow.pop %v12417
  %v12419 = vmul.f32 %v12395, 1.442695
  %v12420 = vpow.pop %v12419
  %v12421 = vmul.f32 %v12396, 1.442695
  %v12422 = vpow.pop %v12421
  %v12423 = vmul.f32 %v12397, 1.442695
  %v12424 = vpow.pop %v12423
  %v12425 = vmul.f32 %v12398, 1.442695
  %v12426 = vpow.pop %v12425
  %v12427 = vmul.f32 %v12399, 1.442695
  %v12428 = vpow.pop %v12427
  %v12429 = vmul.f32 %v12400, 1.442695
  %v12430 = vpow.pop %v12429
  %v12431 = vmul.f32 %v12401, 1.442695
  %v12432 = vpow.pop %v12431
  %v12433 = vmul.f32 %v12402, 1.442695
  %v12434 = vpow.pop %v12433
  %v12435 = vadd.f32 %v12275, %v12404
  %v12436 = vadd.f32 %v12276, %v12406
  %v12437 = vadd.f32 %v12277, %v12408
  %v12438 = vadd.f32 %v12278, %v12410
  %v12439 = vadd.f32 %v12279, %v12412
  %v12440 = vadd.f32 %v12280, %v12414
  %v12441 = vadd.f32 %v12281, %v12416
  %v12442 = vadd.f32 %v12282, %v12418
  %v12443 = vadd.f32 %v12283, %v12420
  %v12444 = vadd.f32 %v12284, %v12422
  %v12445 = vadd.f32 %v12285, %v12424
  %v12446 = vadd.f32 %v12286, %v12426
  %v12447 = vadd.f32 %v12287, %v12428
  %v12448 = vadd.f32 %v12288, %v12430
  %v12449 = vadd.f32 %v12289, %v12432
  %v12450 = vadd.f32 %v12290, %v12434
  %12467 = vrot.lane.b32.xlu0 %v11088, 64
  %v12468 = vpop.permute.xlu0 %12467
  %12469 = vrot.lane.b32.xlu0 %v11089, 64
  %v12470 = vpop.permute.xlu0 %12469
  %12471 = vrot.lane.b32.xlu0 %v11090, 64
  %v12472 = vpop.permute.xlu0 %12471
  %12473 = vrot.lane.b32.xlu0 %v11091, 64
  %v12474 = vpop.permute.xlu0 %12473
  %12475 = vrot.lane.b32.xlu0 %v11092, 64
  %v12476 = vpop.permute.xlu0 %12475
  %12477 = vrot.lane.b32.xlu0 %v11093, 64
  %v12478 = vpop.permute.xlu0 %12477
  %12479 = vrot.lane.b32.xlu0 %v11094, 64
  %v12480 = vpop.permute.xlu0 %12479
  %12481 = vrot.lane.b32.xlu0 %v11095, 64
  %v12482 = vpop.permute.xlu0 %12481
  %12483 = vrot.lane.b32.xlu0 %v11096, 64
  %v12484 = vpop.permute.xlu0 %12483
  %12485 = vrot.lane.b32.xlu0 %v11097, 64
  %v12486 = vpop.permute.xlu0 %12485
  %12487 = vrot.lane.b32.xlu0 %v11098, 64
  %v12488 = vpop.permute.xlu0 %12487
  %12489 = vrot.lane.b32.xlu0 %v11099, 64
  %v12490 = vpop.permute.xlu0 %12489
  %12491 = vrot.lane.b32.xlu0 %v11100, 64
  %v12492 = vpop.permute.xlu0 %12491
  %12493 = vrot.lane.b32.xlu0 %v11101, 64
  %v12494 = vpop.permute.xlu0 %12493
  %12495 = vrot.lane.b32.xlu0 %v11102, 64
  %v12496 = vpop.permute.xlu0 %12495
  %12497 = vrot.lane.b32.xlu0 %v11103, 64
  %v12498 = vpop.permute.xlu0 %12497
  %v12515 = vmul.f32 %v12404, %v12468
  %v12516 = vmul.f32 %v12406, %v12470
  %v12517 = vmul.f32 %v12408, %v12472
  %v12518 = vmul.f32 %v12410, %v12474
  %v12519 = vmul.f32 %v12412, %v12476
  %v12520 = vmul.f32 %v12414, %v12478
  %v12521 = vmul.f32 %v12416, %v12480
  %v12522 = vmul.f32 %v12418, %v12482
  %v12523 = vmul.f32 %v12420, %v12484
  %v12524 = vmul.f32 %v12422, %v12486
  %v12525 = vmul.f32 %v12424, %v12488
  %v12526 = vmul.f32 %v12426, %v12490
  %v12527 = vmul.f32 %v12428, %v12492
  %v12528 = vmul.f32 %v12430, %v12494
  %v12529 = vmul.f32 %v12432, %v12496
  %v12530 = vmul.f32 %v12434, %v12498
  %v12531 = vadd.f32 %v12371, %v12515
  %v12532 = vadd.f32 %v12372, %v12516
  %v12533 = vadd.f32 %v12373, %v12517
  %v12534 = vadd.f32 %v12374, %v12518
  %v12535 = vadd.f32 %v12375, %v12519
  %v12536 = vadd.f32 %v12376, %v12520
  %v12537 = vadd.f32 %v12377, %v12521
  %v12538 = vadd.f32 %v12378, %v12522
  %v12539 = vadd.f32 %v12379, %v12523
  %v12540 = vadd.f32 %v12380, %v12524
  %v12541 = vadd.f32 %v12381, %v12525
  %v12542 = vadd.f32 %v12382, %v12526
  %v12543 = vadd.f32 %v12383, %v12527
  %v12544 = vadd.f32 %v12384, %v12528
  %v12545 = vadd.f32 %v12385, %v12529
  %v12546 = vadd.f32 %v12386, %v12530
  %v12547 = vsub.f32 %v11377, %v12211
  %v12548 = vsub.f32 %v11378, %v12212
  %v12549 = vsub.f32 %v11379, %v12213
  %v12550 = vsub.f32 %v11380, %v12214
  %v12551 = vsub.f32 %v11381, %v12215
  %v12552 = vsub.f32 %v11382, %v12216
  %v12553 = vsub.f32 %v11383, %v12217
  %v12554 = vsub.f32 %v11384, %v12218
  %v12555 = vsub.f32 %v11385, %v12219
  %v12556 = vsub.f32 %v11386, %v12220
  %v12557 = vsub.f32 %v11387, %v12221
  %v12558 = vsub.f32 %v11388, %v12222
  %v12559 = vsub.f32 %v11389, %v12223
  %v12560 = vsub.f32 %v11390, %v12224
  %v12561 = vsub.f32 %v11391, %v12225
  %v12562 = vsub.f32 %v11392, %v12226
  %v12563 = vmul.f32 %v12547, 1.442695
  %v12564 = vpow.pop %v12563
  %v12565 = vmul.f32 %v12548, 1.442695
  %v12566 = vpow.pop %v12565
  %v12567 = vmul.f32 %v12549, 1.442695
  %v12568 = vpow.pop %v12567
  %v12569 = vmul.f32 %v12550, 1.442695
  %v12570 = vpow.pop %v12569
  %v12571 = vmul.f32 %v12551, 1.442695
  %v12572 = vpow.pop %v12571
  %v12573 = vmul.f32 %v12552, 1.442695
  %v12574 = vpow.pop %v12573
  %v12575 = vmul.f32 %v12553, 1.442695
  %v12576 = vpow.pop %v12575
  %v12577 = vmul.f32 %v12554, 1.442695
  %v12578 = vpow.pop %v12577
  %v12579 = vmul.f32 %v12555, 1.442695
  %v12580 = vpow.pop %v12579
  %v12581 = vmul.f32 %v12556, 1.442695
  %v12582 = vpow.pop %v12581
  %v12583 = vmul.f32 %v12557, 1.442695
  %v12584 = vpow.pop %v12583
  %v12585 = vmul.f32 %v12558, 1.442695
  %v12586 = vpow.pop %v12585
  %v12587 = vmul.f32 %v12559, 1.442695
  %v12588 = vpow.pop %v12587
  %v12589 = vmul.f32 %v12560, 1.442695
  %v12590 = vpow.pop %v12589
  %v12591 = vmul.f32 %v12561, 1.442695
  %v12592 = vpow.pop %v12591
  %v12593 = vmul.f32 %v12562, 1.442695
  %v12594 = vpow.pop %v12593
  %v12595 = vadd.f32 %v12435, %v12564
  %v12596 = vadd.f32 %v12436, %v12566
  %v12597 = vadd.f32 %v12437, %v12568
  %v12598 = vadd.f32 %v12438, %v12570
  %v12599 = vadd.f32 %v12439, %v12572
  %v12600 = vadd.f32 %v12440, %v12574
  %v12601 = vadd.f32 %v12441, %v12576
  %v12602 = vadd.f32 %v12442, %v12578
  %v12603 = vadd.f32 %v12443, %v12580
  %v12604 = vadd.f32 %v12444, %v12582
  %v12605 = vadd.f32 %v12445, %v12584
  %v12606 = vadd.f32 %v12446, %v12586
  %v12607 = vadd.f32 %v12447, %v12588
  %v12608 = vadd.f32 %v12448, %v12590
  %v12609 = vadd.f32 %v12449, %v12592
  %v12610 = vadd.f32 %v12450, %v12594
  %12627 = vrot.lane.b32.xlu0 %v11441, 64
  %v12628 = vpop.permute.xlu0 %12627
  %12629 = vrot.lane.b32.xlu0 %v11442, 64
  %v12630 = vpop.permute.xlu0 %12629
  %12631 = vrot.lane.b32.xlu0 %v11443, 64
  %v12632 = vpop.permute.xlu0 %12631
  %12633 = vrot.lane.b32.xlu0 %v11444, 64
  %v12634 = vpop.permute.xlu0 %12633
  %12635 = vrot.lane.b32.xlu0 %v11445, 64
  %v12636 = vpop.permute.xlu0 %12635
  %12637 = vrot.lane.b32.xlu0 %v11446, 64
  %v12638 = vpop.permute.xlu0 %12637
  %12639 = vrot.lane.b32.xlu0 %v11447, 64
  %v12640 = vpop.permute.xlu0 %12639
  %12641 = vrot.lane.b32.xlu0 %v11448, 64
  %v12642 = vpop.permute.xlu0 %12641
  %12643 = vrot.lane.b32.xlu0 %v11449, 64
  %v12644 = vpop.permute.xlu0 %12643
  %12645 = vrot.lane.b32.xlu0 %v11450, 64
  %v12646 = vpop.permute.xlu0 %12645
  %12647 = vrot.lane.b32.xlu0 %v11451, 64
  %v12648 = vpop.permute.xlu0 %12647
  %12649 = vrot.lane.b32.xlu0 %v11452, 64
  %v12650 = vpop.permute.xlu0 %12649
  %12651 = vrot.lane.b32.xlu0 %v11453, 64
  %v12652 = vpop.permute.xlu0 %12651
  %12653 = vrot.lane.b32.xlu0 %v11454, 64
  %v12654 = vpop.permute.xlu0 %12653
  %12655 = vrot.lane.b32.xlu0 %v11455, 64
  %v12656 = vpop.permute.xlu0 %12655
  %12657 = vrot.lane.b32.xlu0 %v11456, 64
  %v12658 = vpop.permute.xlu0 %12657
  %v12675 = vmul.f32 %v12564, %v12628
  %v12676 = vmul.f32 %v12566, %v12630
  %v12677 = vmul.f32 %v12568, %v12632
  %v12678 = vmul.f32 %v12570, %v12634
  %v12679 = vmul.f32 %v12572, %v12636
  %v12680 = vmul.f32 %v12574, %v12638
  %v12681 = vmul.f32 %v12576, %v12640
  %v12682 = vmul.f32 %v12578, %v12642
  %v12683 = vmul.f32 %v12580, %v12644
  %v12684 = vmul.f32 %v12582, %v12646
  %v12685 = vmul.f32 %v12584, %v12648
  %v12686 = vmul.f32 %v12586, %v12650
  %v12687 = vmul.f32 %v12588, %v12652
  %v12688 = vmul.f32 %v12590, %v12654
  %v12689 = vmul.f32 %v12592, %v12656
  %v12690 = vmul.f32 %v12594, %v12658
  %v12691 = vadd.f32 %v12531, %v12675
  %v12692 = vadd.f32 %v12532, %v12676
  %v12693 = vadd.f32 %v12533, %v12677
  %v12694 = vadd.f32 %v12534, %v12678
  %v12695 = vadd.f32 %v12535, %v12679
  %v12696 = vadd.f32 %v12536, %v12680
  %v12697 = vadd.f32 %v12537, %v12681
  %v12698 = vadd.f32 %v12538, %v12682
  %v12699 = vadd.f32 %v12539, %v12683
  %v12700 = vadd.f32 %v12540, %v12684
  %v12701 = vadd.f32 %v12541, %v12685
  %v12702 = vadd.f32 %v12542, %v12686
  %v12703 = vadd.f32 %v12543, %v12687
  %v12704 = vadd.f32 %v12544, %v12688
  %v12705 = vadd.f32 %v12545, %v12689
  %v12706 = vadd.f32 %v12546, %v12690
  %v12707 = vsub.f32 %v11730, %v12211
  %v12708 = vsub.f32 %v11731, %v12212
  %v12709 = vsub.f32 %v11732, %v12213
  %v12710 = vsub.f32 %v11733, %v12214
  %v12711 = vsub.f32 %v11734, %v12215
  %v12712 = vsub.f32 %v11735, %v12216
  %v12713 = vsub.f32 %v11736, %v12217
  %v12714 = vsub.f32 %v11737, %v12218
  %v12715 = vsub.f32 %v11738, %v12219
  %v12716 = vsub.f32 %v11739, %v12220
  %v12717 = vsub.f32 %v11740, %v12221
  %v12718 = vsub.f32 %v11741, %v12222
  %v12719 = vsub.f32 %v11742, %v12223
  %v12720 = vsub.f32 %v11743, %v12224
  %v12721 = vsub.f32 %v11744, %v12225
  %v12722 = vsub.f32 %v11745, %v12226
  %v12723 = vmul.f32 %v12707, 1.442695
  %v12724 = vpow.pop %v12723
  %v12725 = vmul.f32 %v12708, 1.442695
  %v12726 = vpow.pop %v12725
  %v12727 = vmul.f32 %v12709, 1.442695
  %v12728 = vpow.pop %v12727
  %v12729 = vmul.f32 %v12710, 1.442695
  %v12730 = vpow.pop %v12729
  %v12731 = vmul.f32 %v12711, 1.442695
  %v12732 = vpow.pop %v12731
  %v12733 = vmul.f32 %v12712, 1.442695
  %v12734 = vpow.pop %v12733
  %v12735 = vmul.f32 %v12713, 1.442695
  %v12736 = vpow.pop %v12735
  %v12737 = vmul.f32 %v12714, 1.442695
  %v12738 = vpow.pop %v12737
  %v12739 = vmul.f32 %v12715, 1.442695
  %v12740 = vpow.pop %v12739
  %v12741 = vmul.f32 %v12716, 1.442695
  %v12742 = vpow.pop %v12741
  %v12743 = vmul.f32 %v12717, 1.442695
  %v12744 = vpow.pop %v12743
  %v12745 = vmul.f32 %v12718, 1.442695
  %v12746 = vpow.pop %v12745
  %v12747 = vmul.f32 %v12719, 1.442695
  %v12748 = vpow.pop %v12747
  %v12749 = vmul.f32 %v12720, 1.442695
  %v12750 = vpow.pop %v12749
  %v12751 = vmul.f32 %v12721, 1.442695
  %v12752 = vpow.pop %v12751
  %v12753 = vmul.f32 %v12722, 1.442695
  %v12754 = vpow.pop %v12753
  %v12755 = vadd.f32 %v12595, %v12724
  %v12756 = vadd.f32 %v12596, %v12726
  %v12757 = vadd.f32 %v12597, %v12728
  %v12758 = vadd.f32 %v12598, %v12730
  %v12759 = vadd.f32 %v12599, %v12732
  %v12760 = vadd.f32 %v12600, %v12734
  %v12761 = vadd.f32 %v12601, %v12736
  %v12762 = vadd.f32 %v12602, %v12738
  %v12763 = vadd.f32 %v12603, %v12740
  %v12764 = vadd.f32 %v12604, %v12742
  %v12765 = vadd.f32 %v12605, %v12744
  %v12766 = vadd.f32 %v12606, %v12746
  %v12767 = vadd.f32 %v12607, %v12748
  %v12768 = vadd.f32 %v12608, %v12750
  %v12769 = vadd.f32 %v12609, %v12752
  %v12770 = vadd.f32 %v12610, %v12754
  %12787 = vrot.lane.b32.xlu0 %v11794, 64
  %v12788 = vpop.permute.xlu0 %12787
  %12789 = vrot.lane.b32.xlu0 %v11795, 64
  %v12790 = vpop.permute.xlu0 %12789
  %12791 = vrot.lane.b32.xlu0 %v11796, 64
  %v12792 = vpop.permute.xlu0 %12791
  %12793 = vrot.lane.b32.xlu0 %v11797, 64
  %v12794 = vpop.permute.xlu0 %12793
  %12795 = vrot.lane.b32.xlu0 %v11798, 64
  %v12796 = vpop.permute.xlu0 %12795
  %12797 = vrot.lane.b32.xlu0 %v11799, 64
  %v12798 = vpop.permute.xlu0 %12797
  %12799 = vrot.lane.b32.xlu0 %v11800, 64
  %v12800 = vpop.permute.xlu0 %12799
  %12801 = vrot.lane.b32.xlu0 %v11801, 64
  %v12802 = vpop.permute.xlu0 %12801
  %12803 = vrot.lane.b32.xlu0 %v11802, 64
  %v12804 = vpop.permute.xlu0 %12803
  %12805 = vrot.lane.b32.xlu0 %v11803, 64
  %v12806 = vpop.permute.xlu0 %12805
  %12807 = vrot.lane.b32.xlu0 %v11804, 64
  %v12808 = vpop.permute.xlu0 %12807
  %12809 = vrot.lane.b32.xlu0 %v11805, 64
  %v12810 = vpop.permute.xlu0 %12809
  %12811 = vrot.lane.b32.xlu0 %v11806, 64
  %v12812 = vpop.permute.xlu0 %12811
  %12813 = vrot.lane.b32.xlu0 %v11807, 64
  %v12814 = vpop.permute.xlu0 %12813
  %12815 = vrot.lane.b32.xlu0 %v11808, 64
  %v12816 = vpop.permute.xlu0 %12815
  %12817 = vrot.lane.b32.xlu0 %v11809, 64
  %v12818 = vpop.permute.xlu0 %12817
  %v12835 = vmul.f32 %v12724, %v12788
  %v12836 = vmul.f32 %v12726, %v12790
  %v12837 = vmul.f32 %v12728, %v12792
  %v12838 = vmul.f32 %v12730, %v12794
  %v12839 = vmul.f32 %v12732, %v12796
  %v12840 = vmul.f32 %v12734, %v12798
  %v12841 = vmul.f32 %v12736, %v12800
  %v12842 = vmul.f32 %v12738, %v12802
  %v12843 = vmul.f32 %v12740, %v12804
  %v12844 = vmul.f32 %v12742, %v12806
  %v12845 = vmul.f32 %v12744, %v12808
  %v12846 = vmul.f32 %v12746, %v12810
  %v12847 = vmul.f32 %v12748, %v12812
  %v12848 = vmul.f32 %v12750, %v12814
  %v12849 = vmul.f32 %v12752, %v12816
  %v12850 = vmul.f32 %v12754, %v12818
  %v12851 = vadd.f32 %v12691, %v12835
  %v12852 = vadd.f32 %v12692, %v12836
  %v12853 = vadd.f32 %v12693, %v12837
  %v12854 = vadd.f32 %v12694, %v12838
  %v12855 = vadd.f32 %v12695, %v12839
  %v12856 = vadd.f32 %v12696, %v12840
  %v12857 = vadd.f32 %v12697, %v12841
  %v12858 = vadd.f32 %v12698, %v12842
  %v12859 = vadd.f32 %v12699, %v12843
  %v12860 = vadd.f32 %v12700, %v12844
  %v12861 = vadd.f32 %v12701, %v12845
  %v12862 = vadd.f32 %v12702, %v12846
  %v12863 = vadd.f32 %v12703, %v12847
  %v12864 = vadd.f32 %v12704, %v12848
  %v12865 = vadd.f32 %v12705, %v12849
  %v12866 = vadd.f32 %v12706, %v12850
  %v12867 = vsub.f32 %v12083, %v12211
  %v12868 = vsub.f32 %v12084, %v12212
  %v12869 = vsub.f32 %v12085, %v12213
  %v12870 = vsub.f32 %v12086, %v12214
  %v12871 = vsub.f32 %v12087, %v12215
  %v12872 = vsub.f32 %v12088, %v12216
  %v12873 = vsub.f32 %v12089, %v12217
  %v12874 = vsub.f32 %v12090, %v12218
  %v12875 = vsub.f32 %v12091, %v12219
  %v12876 = vsub.f32 %v12092, %v12220
  %v12877 = vsub.f32 %v12093, %v12221
  %v12878 = vsub.f32 %v12094, %v12222
  %v12879 = vsub.f32 %v12095, %v12223
  %v12880 = vsub.f32 %v12096, %v12224
  %v12881 = vsub.f32 %v12097, %v12225
  %v12882 = vsub.f32 %v12098, %v12226
  %v12883 = vmul.f32 %v12867, 1.442695
  %v12884 = vpow.pop %v12883
  %v12885 = vmul.f32 %v12868, 1.442695
  %v12886 = vpow.pop %v12885
  %v12887 = vmul.f32 %v12869, 1.442695
  %v12888 = vpow.pop %v12887
  %v12889 = vmul.f32 %v12870, 1.442695
  %v12890 = vpow.pop %v12889
  %v12891 = vmul.f32 %v12871, 1.442695
  %v12892 = vpow.pop %v12891
  %v12893 = vmul.f32 %v12872, 1.442695
  %v12894 = vpow.pop %v12893
  %v12895 = vmul.f32 %v12873, 1.442695
  %v12896 = vpow.pop %v12895
  %v12897 = vmul.f32 %v12874, 1.442695
  %v12898 = vpow.pop %v12897
  %v12899 = vmul.f32 %v12875, 1.442695
  %v12900 = vpow.pop %v12899
  %v12901 = vmul.f32 %v12876, 1.442695
  %v12902 = vpow.pop %v12901
  %v12903 = vmul.f32 %v12877, 1.442695
  %v12904 = vpow.pop %v12903
  %v12905 = vmul.f32 %v12878, 1.442695
  %v12906 = vpow.pop %v12905
  %v12907 = vmul.f32 %v12879, 1.442695
  %v12908 = vpow.pop %v12907
  %v12909 = vmul.f32 %v12880, 1.442695
  %v12910 = vpow.pop %v12909
  %v12911 = vmul.f32 %v12881, 1.442695
  %v12912 = vpow.pop %v12911
  %v12913 = vmul.f32 %v12882, 1.442695
  %v12914 = vpow.pop %v12913
  %v12915 = vadd.f32 %v12755, %v12884
  %v12916 = vadd.f32 %v12756, %v12886
  %v12917 = vadd.f32 %v12757, %v12888
  %v12918 = vadd.f32 %v12758, %v12890
  %v12919 = vadd.f32 %v12759, %v12892
  %v12920 = vadd.f32 %v12760, %v12894
  %v12921 = vadd.f32 %v12761, %v12896
  %v12922 = vadd.f32 %v12762, %v12898
  %v12923 = vadd.f32 %v12763, %v12900
  %v12924 = vadd.f32 %v12764, %v12902
  %v12925 = vadd.f32 %v12765, %v12904
  %v12926 = vadd.f32 %v12766, %v12906
  %v12927 = vadd.f32 %v12767, %v12908
  %v12928 = vadd.f32 %v12768, %v12910
  %v12929 = vadd.f32 %v12769, %v12912
  %v12930 = vadd.f32 %v12770, %v12914
  %12947 = vrot.lane.b32.xlu0 %v12147, 64
  %v12948 = vpop.permute.xlu0 %12947
  %12949 = vrot.lane.b32.xlu0 %v12148, 64
  %v12950 = vpop.permute.xlu0 %12949
  %12951 = vrot.lane.b32.xlu0 %v12149, 64
  %v12952 = vpop.permute.xlu0 %12951
  %12953 = vrot.lane.b32.xlu0 %v12150, 64
  %v12954 = vpop.permute.xlu0 %12953
  %12955 = vrot.lane.b32.xlu0 %v12151, 64
  %v12956 = vpop.permute.xlu0 %12955
  %12957 = vrot.lane.b32.xlu0 %v12152, 64
  %v12958 = vpop.permute.xlu0 %12957
  %12959 = vrot.lane.b32.xlu0 %v12153, 64
  %v12960 = vpop.permute.xlu0 %12959
  %12961 = vrot.lane.b32.xlu0 %v12154, 64
  %v12962 = vpop.permute.xlu0 %12961
  %12963 = vrot.lane.b32.xlu0 %v12155, 64
  %v12964 = vpop.permute.xlu0 %12963
  %12965 = vrot.lane.b32.xlu0 %v12156, 64
  %v12966 = vpop.permute.xlu0 %12965
  %12967 = vrot.lane.b32.xlu0 %v12157, 64
  %v12968 = vpop.permute.xlu0 %12967
  %12969 = vrot.lane.b32.xlu0 %v12158, 64
  %v12970 = vpop.permute.xlu0 %12969
  %12971 = vrot.lane.b32.xlu0 %v12159, 64
  %v12972 = vpop.permute.xlu0 %12971
  %12973 = vrot.lane.b32.xlu0 %v12160, 64
  %v12974 = vpop.permute.xlu0 %12973
  %12975 = vrot.lane.b32.xlu0 %v12161, 64
  %v12976 = vpop.permute.xlu0 %12975
  %12977 = vrot.lane.b32.xlu0 %v12162, 64
  %v12978 = vpop.permute.xlu0 %12977
  %v12995 = vmul.f32 %v12884, %v12948
  %v12996 = vmul.f32 %v12886, %v12950
  %v12997 = vmul.f32 %v12888, %v12952
  %v12998 = vmul.f32 %v12890, %v12954
  %v12999 = vmul.f32 %v12892, %v12956
  %v13000 = vmul.f32 %v12894, %v12958
  %v13001 = vmul.f32 %v12896, %v12960
  %v13002 = vmul.f32 %v12898, %v12962
  %v13003 = vmul.f32 %v12900, %v12964
  %v13004 = vmul.f32 %v12902, %v12966
  %v13005 = vmul.f32 %v12904, %v12968
  %v13006 = vmul.f32 %v12906, %v12970
  %v13007 = vmul.f32 %v12908, %v12972
  %v13008 = vmul.f32 %v12910, %v12974
  %v13009 = vmul.f32 %v12912, %v12976
  %v13010 = vmul.f32 %v12914, %v12978
  %v13011 = vadd.f32 %v12851, %v12995
  %v13012 = vadd.f32 %v12852, %v12996
  %v13013 = vadd.f32 %v12853, %v12997
  %v13014 = vadd.f32 %v12854, %v12998
  %v13015 = vadd.f32 %v12855, %v12999
  %v13016 = vadd.f32 %v12856, %v13000
  %v13017 = vadd.f32 %v12857, %v13001
  %v13018 = vadd.f32 %v12858, %v13002
  %v13019 = vadd.f32 %v12859, %v13003
  %v13020 = vadd.f32 %v12860, %v13004
  %v13021 = vadd.f32 %v12861, %v13005
  %v13022 = vadd.f32 %v12862, %v13006
  %v13023 = vadd.f32 %v12863, %v13007
  %v13024 = vadd.f32 %v12864, %v13008
  %v13025 = vadd.f32 %v12865, %v13009
  %v13026 = vadd.f32 %v12866, %v13010
  %v13027 = vrcp.pop %v12915
  %v13028 = vrcp.pop %v12916
  %v13029 = vrcp.pop %v12917
  %v13030 = vrcp.pop %v12918
  %v13031 = vrcp.pop %v12919
  %v13032 = vrcp.pop %v12920
  %v13033 = vrcp.pop %v12921
  %v13034 = vrcp.pop %v12922
  %v13035 = vrcp.pop %v12923
  %v13036 = vrcp.pop %v12924
  %v13037 = vrcp.pop %v12925
  %v13038 = vrcp.pop %v12926
  %v13039 = vrcp.pop %v12927
  %v13040 = vrcp.pop %v12928
  %v13041 = vrcp.pop %v12929
  %v13042 = vrcp.pop %v12930
  %v13043 = vmul.f32 %v13011, %v13027
  %v13044 = vmul.f32 %v13012, %v13028
  %v13045 = vmul.f32 %v13013, %v13029
  %v13046 = vmul.f32 %v13014, %v13030
  %v13047 = vmul.f32 %v13015, %v13031
  %v13048 = vmul.f32 %v13016, %v13032
  %v13049 = vmul.f32 %v13017, %v13033
  %v13050 = vmul.f32 %v13018, %v13034
  %v13051 = vmul.f32 %v13019, %v13035
  %v13052 = vmul.f32 %v13020, %v13036
  %v13053 = vmul.f32 %v13021, %v13037
  %v13054 = vmul.f32 %v13022, %v13038
  %v13055 = vmul.f32 %v13023, %v13039
  %v13056 = vmul.f32 %v13024, %v13040
  %v13057 = vmul.f32 %v13025, %v13041
  %v13058 = vmul.f32 %v13026, %v13042
  %v13059 = vmax.f32 %v10587, %v13043
  %v13060 = vmax.f32 %v10588, %v13044
  %v13061 = vmax.f32 %v10589, %v13045
  %v13062 = vmax.f32 %v10590, %v13046
  %v13063 = vmax.f32 %v10591, %v13047
  %v13064 = vmax.f32 %v10592, %v13048
  %v13065 = vmax.f32 %v10593, %v13049
  %v13066 = vmax.f32 %v10594, %v13050
  %v13067 = vmax.f32 %v10595, %v13051
  %v13068 = vmax.f32 %v10596, %v13052
  %v13069 = vmax.f32 %v10597, %v13053
  %v13070 = vmax.f32 %v10598, %v13054
  %v13071 = vmax.f32 %v10599, %v13055
  %v13072 = vmax.f32 %v10600, %v13056
  %v13073 = vmax.f32 %v10601, %v13057
  %v13074 = vmax.f32 %v10602, %v13058
  %v13075 = vadd.f32 %v7961, %v13059
  %v13076 = vadd.f32 %v7962, %v13060
  %v13077 = vadd.f32 %v7963, %v13061
  %v13078 = vadd.f32 %v7964, %v13062
  %v13079 = vadd.f32 %v7965, %v13063
  %v13080 = vadd.f32 %v7966, %v13064
  %v13081 = vadd.f32 %v7967, %v13065
  %v13082 = vadd.f32 %v7968, %v13066
  %v13083 = vadd.f32 %v7969, %v13067
  %v13084 = vadd.f32 %v7970, %v13068
  %v13085 = vadd.f32 %v7971, %v13069
  %v13086 = vadd.f32 %v7972, %v13070
  %v13087 = vadd.f32 %v7973, %v13071
  %v13088 = vadd.f32 %v7974, %v13072
  %v13089 = vadd.f32 %v7975, %v13073
  %v13090 = vadd.f32 %v7976, %v13074
  %v13091 = vmul.f32 %v13075, 0.5
  %v13092 = vmul.f32 %v13076, 0.5
  %v13093 = vmul.f32 %v13077, 0.5
  %v13094 = vmul.f32 %v13078, 0.5
  %v13095 = vmul.f32 %v13079, 0.5
  %v13096 = vmul.f32 %v13080, 0.5
  %v13097 = vmul.f32 %v13081, 0.5
  %v13098 = vmul.f32 %v13082, 0.5
  %v13099 = vmul.f32 %v13083, 0.5
  %v13100 = vmul.f32 %v13084, 0.5
  %v13101 = vmul.f32 %v13085, 0.5
  %v13102 = vmul.f32 %v13086, 0.5
  %v13103 = vmul.f32 %v13087, 0.5
  %v13104 = vmul.f32 %v13088, 0.5
  %v13105 = vmul.f32 %v13089, 0.5
  %v13106 = vmul.f32 %v13090, 0.5
  %13107 = vst.msk [vmem:[%s7] sm:$0xff] %vm2895, %v13091
  %13108 = vst.msk [vmem:[%s7 + $0x8] sm:$0xff] %vm2895, %v13092
  %13109 = vst.msk [vmem:[%s7 + $0x10] sm:$0xff] %vm2895, %v13093
  %13110 = vst.msk [vmem:[%s7 + $0x18] sm:$0xff] %vm2895, %v13094
  %13111 = vst.msk [vmem:[%s7 + $0x20] sm:$0xff] %vm2895, %v13095
  %13112 = vst.msk [vmem:[%s7 + $0x28] sm:$0xff] %vm2895, %v13096
  %13113 = vst.msk [vmem:[%s7 + $0x30] sm:$0xff] %vm2895, %v13097
  %13114 = vst.msk [vmem:[%s7 + $0x38] sm:$0xff] %vm2895, %v13098
  %13115 = vst.msk [vmem:[%s7 + $0x40] sm:$0xff] %vm2895, %v13099
  %13116 = vst.msk [vmem:[%s7 + $0x48] sm:$0xff] %vm2895, %v13100
  %13117 = vst.msk [vmem:[%s7 + $0x50] sm:$0xff] %vm2895, %v13101
  %13118 = vst.msk [vmem:[%s7 + $0x58] sm:$0xff] %vm2895, %v13102
  %13119 = vst.msk [vmem:[%s7 + $0x60] sm:$0xff] %vm2895, %v13103
  %13120 = vst.msk [vmem:[%s7 + $0x68] sm:$0xff] %vm2895, %v13104
  %13121 = vst.msk [vmem:[%s7 + $0x70] sm:$0xff] %vm2895, %v13105
  %13122 = vst.msk [vmem:[%s7 + $0x78] sm:$0xff] %vm2895, %v13106
  // Predicated region
  $region30: #{extractor_forward.3} parent=0 // pred_check
    _
  $region31: #{extractor_forward.3} parent=0 // pred_check_branch
    %13124 = sbr.rel (0) target = $region33
  $region32: #{extractor_forward.3} parent=0 // pred_region
    _
  $region33: #{extractor_forward.3} parent=0 // pred_fallthru
    _
  // Predicated region
  $region34: #{extractor_forward.3} parent=0 // pred_check
    _
  $region35: #{extractor_forward.3} parent=0 // pred_check_branch
    %13126 = sbr.rel (0) target = $region37
  $region36: #{extractor_forward.3} parent=0 // pred_region
    _
  $region37: #{extractor_forward.3} parent=0 // pred_fallthru
    _

</llo_original>
